<compile_context>
chip_gen: v7x
topology: tpu7x:2x2x1
jax: 0.10.0
libtpu: 0.0.40
codegen_flags: <defaults>
</compile_context>

<pallas_src>
import functools

import jax
import jax.numpy as jnp
from jax.experimental import pallas as pl
from jax.experimental.pallas import tpu as pltpu


# ----------------------------- fused whole-network kernel -----------------------------
def _cnn_kernel(x_ref, m1_ref, b1_ref, m2_ref, b2_ref, w1r_ref, bf1_ref,
                w2p_ref, bf2_ref, o_ref, p1s_ref, p2s_ref):
    f32 = jnp.float32
    bf16 = jnp.bfloat16
    bt = o_ref.shape[1]          # images handled by this grid step
    s7 = 7 * bt                  # rows of a 7-slot slab (slot-major, image minor)

    def mm(a, b):                # bf16 MXU matmul, f32 accumulation
        return jnp.dot(a.astype(bf16), b, preferred_element_type=f32)

    # conv1 + bias + ReLU on four row groups: group g holds image rows h = 4*slot + g.
    # x_ref[kh*4 + g] is the host-gathered tap-kh input window for group g, shape (7*bt, 28).
    c1 = []
    for g in range(4):
        acc = mm(x_ref[g], m1_ref[0])
        acc = acc + mm(x_ref[4 + g], m1_ref[1])
        acc = acc + mm(x_ref[8 + g], m1_ref[2])
        c1.append(jnp.maximum(acc + b1_ref[...], 0.0))          # (7*bt, 512)

    # 2x2 max-pool #1: H-pairs via the group pairing, W-pairs via the even/odd lane halves.
    e_h = jnp.maximum(c1[0], c1[1])                             # p1 even rows (2t)
    o_h = jnp.maximum(c1[2], c1[3])                             # p1 odd rows  (2t+1)
    e1 = jnp.maximum(e_h[:, :256], e_h[:, 256:])                # (7*bt, 256)
    o1 = jnp.maximum(o_h[:, :256], o_h[:, 256:])

    # Stash p1 rows as [E0..E6 | 0 | O0..O6]; every offset is a multiple of bt (8-aligned).
    p1s_ref[pl.ds(0, s7), :] = e1
    p1s_ref[pl.ds(s7, bt), :] = jnp.zeros((bt, 256), f32)
    p1s_ref[pl.ds(8 * bt, s7), :] = o1

    # conv2 taps are 1-slot-shifted windows of the stash (aligned contiguous reads).
    eA = p1s_ref[pl.ds(0, s7), :]          # slot t -> p1[2t]
    eB = p1s_ref[pl.ds(bt, s7), :]         # slot t -> p1[2t+2]   (p1[14] := 0 via the zero slot)
    oA = p1s_ref[pl.ds(s7, s7), :]         # slot t -> p1[2t-1]   (p1[-1] := 0 via the zero slot)
    oB = p1s_ref[pl.ds(8 * bt, s7), :]     # slot t -> p1[2t+1]

    acc = mm(oA, m2_ref[0]) + mm(eA, m2_ref[1]) + mm(oB, m2_ref[2])
    c2e = jnp.maximum(acc + b2_ref[...], 0.0)                   # conv2 rows h2 = 2t
    acc = mm(eA, m2_ref[0]) + mm(oB, m2_ref[1]) + mm(eB, m2_ref[2])
    c2o = jnp.maximum(acc + b2_ref[...], 0.0)                   # conv2 rows h2 = 2t+1

    # 2x2 max-pool #2 (same structure), result slot t = pooled row t.
    hp = jnp.maximum(c2e, c2o)                                  # (7*bt, 512)
    p2s_ref[...] = jnp.maximum(hp[:, :256], hp[:, 256:])        # (7*bt, 256)

    # fc1 + ReLU + fc2 with M = bt (torch (C,H,W) flatten order baked into w1r).
    acc = mm(p2s_ref[pl.ds(0, bt), :], w1r_ref[0])
    for i in range(1, 7):
        acc = acc + mm(p2s_ref[pl.ds(i * bt, bt), :], w1r_ref[i])
    h1 = jnp.maximum(acc + bf1_ref[...], 0.0)                   # (bt, 128)
    out = mm(h1, w2p_ref[...]) + bf2_ref[...]                   # (bt, 128), cols 10.. are zero
    o_ref[0] = out.astype(o_ref.dtype)


def cnn_forward(x_nchw, kp, bt=32):
    """x_nchw: (B, 1, 28, 28) float32.  Returns (B, 10) float32 logits."""
    assert bt % 8 == 0, "batch tile must be a multiple of 8 (sublane alignment)"
    B = x_nchw.shape[0]
    assert x_nchw.shape[1:] == (1, 28, 28)
    b_pad = -(-B // bt) * bt
    steps = b_pad // bt

    # Host prep: zero-pad batch, pad H with one zero row on each side, then gather the
    # 12 conv1 input windows (3 taps x 4 row groups) in slot-major/image-minor order.
    x2 = x_nchw.reshape(B, 28, 28).astype(jnp.float32)
    if b_pad != B:
        x2 = jnp.concatenate([x2, jnp.zeros((b_pad - B, 28, 28), jnp.float32)], axis=0)
    xpad = jnp.pad(x2, ((0, 0), (1, 1), (0, 0)))                        # (b_pad, 30, 28)
    rows = (jnp.arange(3)[:, None, None] + jnp.arange(4)[None, :, None]
            + 4 * jnp.arange(7)[None, None, :])                        # kh + g + 4*slot
    xt = xpad[:, rows, :]                                               # (b_pad, 3, 4, 7, 28)
    xt = xt.transpose(1, 2, 3, 0, 4).reshape(12, 7, steps, bt, 28)
    xt = xt.transpose(2, 0, 1, 3, 4).reshape(steps * 12, 7 * bt, 28)

    def full(a):
        return pl.BlockSpec(a.shape, lambda t, _nd=a.ndim: (0,) * _nd)

    out = pl.pallas_call(
        _cnn_kernel,
        out_shape=jax.ShapeDtypeStruct((steps, bt, 128), jnp.float32),
        grid=(steps,),
        in_specs=[
            pl.BlockSpec((12, 7 * bt, 28), lambda t: (t, 0, 0)),
            full(kp['m1']), full(kp['b1']), full(kp['m2']), full(kp['b2']),
            full(kp['w1r']), full(kp['bf1']), full(kp['w2p']), full(kp['bf2']),
        ],
        out_specs=pl.BlockSpec((1, bt, 128), lambda t: (t, 0, 0)),
        scratch_shapes=[pltpu.VMEM((15 * bt, 256), jnp.float32),
                        pltpu.VMEM((7 * bt, 256), jnp.float32)],
        compiler_params=pltpu.CompilerParams(
            dimension_semantics=("parallel",),
            vmem_limit_bytes=32 * 1024 * 1024),
    )(xt, kp['m1'], kp['b1'], kp['m2'], kp['b2'],
      kp['w1r'], kp['bf1'], kp['w2p'], kp['bf2'])
    return out.reshape(b_pad, 128)[:B, :10]


# ----------------------------- host-side operand preparation -----------------------------
def build_kernel_params(tp):
    """Re-lay PyTorch-shaped parameters into the kernel's (bf16) matmul operands."""
    f32, bf16 = jnp.float32, jnp.bfloat16

    def band(n):
        # T[kw, w_in, w_out] = 1 where w_in == w_out + kw - 1  (stride-1, pad-1 conv taps)
        wi = jnp.arange(n)[None, :, None]
        wo = jnp.arange(n)[None, None, :]
        kw = jnp.arange(3)[:, None, None]
        return (wi == wo + kw - 1).astype(f32)

    def split_halves(t):
        # t: (..., W, C) with W even.  Output lane layout (width 512):
        #   [even w: (w//2)*C + c | zeros to 256 | odd w: (w//2)*C + c | zeros to 512]
        def flat_pad(u):
            u = u.reshape(u.shape[:-2] + (-1,))
            z = jnp.zeros(u.shape[:-1] + (256 - u.shape[-1],), u.dtype)
            return jnp.concatenate([u, z], axis=-1)
        return jnp.concatenate([flat_pad(t[..., 0::2, :]), flat_pad(t[..., 1::2, :])], axis=-1)

    # conv1: banded weights, output lanes in even/odd-column halves (W-pool = max of halves)
    m1 = split_halves(jnp.einsum('kio,chk->hioc', band(28), tp['w_conv1'][:, 0]))   # (3, 28, 512)
    half = jnp.concatenate([jnp.tile(tp['b_conv1'], 14), jnp.zeros((32,), f32)])
    b1 = jnp.concatenate([half, half])[None, :]                                      # (1, 512)

    # conv2: K rows follow p1's lane order (col*16 + ch), padded to 256 zero rows
    m2 = jnp.einsum('kio,uchk->hicou', band(14), tp['w_conv2']).reshape(3, 224, 14, 32)
    m2 = split_halves(m2)                                                            # (3, 224, 512)
    m2 = jnp.concatenate([m2, jnp.zeros((3, 32, 512), f32)], axis=1)                 # (3, 256, 512)
    half = jnp.concatenate([jnp.tile(tp['b_conv2'], 7), jnp.zeros((32,), f32)])
    b2 = jnp.concatenate([half, half])[None, :]                                      # (1, 512)

    # fc1: one (256, 128) block per pooled row; rows follow p2's lane order (col*32 + ch),
    # which together with the per-row blocks reproduces torch's (C, H, W) flatten order.
    w1r = tp['w_fc1'].reshape(128, 32, 7, 7).transpose(2, 3, 1, 0).reshape(7, 224, 128)
    w1r = jnp.concatenate([w1r, jnp.zeros((7, 32, 128), f32)], axis=1)               # (7, 256, 128)
    bf1 = tp['b_fc1'][None, :]                                                       # (1, 128)

    # fc2 padded to a lane-dense 128-wide output; wrapper slices [:, :10]
    w2p = jnp.zeros((128, 128), f32).at[:, :10].set(tp['w_fc2'].T)
    bf2 = jnp.zeros((1, 128), f32).at[0, :10].set(tp['b_fc2'])

    return dict(m1=m1.astype(bf16), b1=b1, m2=m2.astype(bf16), b2=b2,
                w1r=w1r.astype(bf16), bf1=bf1, w2p=w2p.astype(bf16), bf2=bf2)


def init_torch_params(key):
    ks = jax.random.split(key, 8)

    def u(k, shape, fan_in):
        bound = 1.0 / jnp.sqrt(jnp.float32(fan_in))
        return jax.random.uniform(k, shape, jnp.float32, -bound, bound)

    return dict(
        w_conv1=u(ks[0], (16, 1, 3, 3), 1 * 9),
        b_conv1=u(ks[1], (16,), 1 * 9),
        w_conv2=u(ks[2], (32, 16, 3, 3), 16 * 9),
        b_conv2=u(ks[3], (32,), 16 * 9),
        w_fc1=u(ks[4], (128, 7 * 7 * 32), 7 * 7 * 32),
        b_fc1=u(ks[5], (128,), 7 * 7 * 32),
        w_fc2=u(ks[6], (10, 128), 128),
        b_fc2=u(ks[7], (10,), 128),
    )


def cnn_reference(x_nchw, tp):
    """Pure-JAX (f32) reference matching the PyTorch module."""
    dn = ('NCHW', 'OIHW', 'NCHW')
    y = jax.lax.conv_general_dilated(x_nchw.astype(jnp.float32), tp['w_conv1'],
                                     (1, 1), ((1, 1), (1, 1)), dimension_numbers=dn)
    y = jnp.maximum(y + tp['b_conv1'][None, :, None, None], 0.0)
    y = jax.lax.reduce_window(y, -jnp.inf, jax.lax.max, (1, 1, 2, 2), (1, 1, 2, 2), 'VALID')
    y = jax.lax.conv_general_dilated(y, tp['w_conv2'],
                                     (1, 1), ((1, 1), (1, 1)), dimension_numbers=dn)
    y = jnp.maximum(y + tp['b_conv2'][None, :, None, None], 0.0)
    y = jax.lax.reduce_window(y, -jnp.inf, jax.lax.max, (1, 1, 2, 2), (1, 1, 2, 2), 'VALID')
    y = y.reshape(y.shape[0], -1)
    y = jnp.maximum(y @ tp['w_fc1'].T + tp['b_fc1'], 0.0)
    return y @ tp['w_fc2'].T + tp['b_fc2']


if __name__ == "__main__":
    key = jax.random.PRNGKey(0)
    pkey, xkey = jax.random.split(key)
    torch_params = init_torch_params(pkey)
    kparams = build_kernel_params(torch_params)

    # fc1 = Linear(7*7*32, 128) forces a 28x28 single-channel input (MNIST-like); batch = 2.
    x = jax.random.normal(xkey, (2, 1, 28, 28), jnp.float32)

    fwd = jax.jit(functools.partial(cnn_forward, bt=8))   # small batch tile for the tiny demo
    out = jax.block_until_ready(fwd(x, kparams))
    assert out.shape == (2, 10) and out.dtype == jnp.float32

    ref = cnn_reference(x, torch_params)
    assert jnp.allclose(out, ref, atol=5e-2, rtol=5e-2), \
        f"mismatch vs reference (max abs err {float(jnp.max(jnp.abs(out - ref)))})"
    print("KERNEL_OK")
</pallas_src>

<mosaic_0001>
module attributes {stable_mosaic.version = 11 : i64} {
  func.func @_cnn_kernel(%arg0: i32, %arg1: memref<12x56x28xf32, #tpu.memory_space<vmem>>, %arg2: memref<3x28x512xbf16, #tpu.memory_space<vmem>>, %arg3: memref<1x512xf32, #tpu.memory_space<vmem>>, %arg4: memref<3x256x512xbf16, #tpu.memory_space<vmem>>, %arg5: memref<1x512xf32, #tpu.memory_space<vmem>>, %arg6: memref<7x256x128xbf16, #tpu.memory_space<vmem>>, %arg7: memref<1x128xf32, #tpu.memory_space<vmem>>, %arg8: memref<128x128xbf16, #tpu.memory_space<vmem>>, %arg9: memref<1x128xf32, #tpu.memory_space<vmem>>, %arg10: memref<1x8x128xf32, #tpu.memory_space<vmem>>, %arg11: memref<120x256xf32, #tpu.memory_space<vmem>>, %arg12: memref<56x256xf32, #tpu.memory_space<vmem>>) attributes {dimension_semantics = [#tpu.dimension_semantics<parallel>], iteration_bounds = array<i64: 1>, scalar_prefetch = 0 : i64, scratch_operands = 2 : i64, tpu.core_type = #tpu.core_type<tc>, window_params = [{transform_indices = @transform_0, window_bounds = array<i64: 12, 56, 28>}, {pipeline_mode = #tpu.pipeline_mode<synchronous>, transform_indices = @transform_1, window_bounds = array<i64: 3, 28, 512>}, {pipeline_mode = #tpu.pipeline_mode<synchronous>, transform_indices = @transform_2, window_bounds = array<i64: 1, 512>}, {pipeline_mode = #tpu.pipeline_mode<synchronous>, transform_indices = @transform_3, window_bounds = array<i64: 3, 256, 512>}, {pipeline_mode = #tpu.pipeline_mode<synchronous>, transform_indices = @transform_4, window_bounds = array<i64: 1, 512>}, {pipeline_mode = #tpu.pipeline_mode<synchronous>, transform_indices = @transform_5, window_bounds = array<i64: 7, 256, 128>}, {pipeline_mode = #tpu.pipeline_mode<synchronous>, transform_indices = @transform_6, window_bounds = array<i64: 1, 128>}, {pipeline_mode = #tpu.pipeline_mode<synchronous>, transform_indices = @transform_7, window_bounds = array<i64: 128, 128>}, {pipeline_mode = #tpu.pipeline_mode<synchronous>, transform_indices = @transform_8, window_bounds = array<i64: 1, 128>}, {transform_indices = @transform_9, window_bounds = array<i64: 1, 8, 128>}]} {
    %c0 = arith.constant 0 : index
    %c0_0 = arith.constant 0 : index
    %c0_1 = arith.constant 0 : index
    %0 = vector.load %arg1[%c0, %c0_0, %c0_1] : memref<12x56x28xf32, #tpu.memory_space<vmem>>, vector<1x56x28xf32>
    %1 = vector.shape_cast %0 : vector<1x56x28xf32> to vector<56x28xf32>
    %c0_2 = arith.constant 0 : index
    %c0_3 = arith.constant 0 : index
    %c0_4 = arith.constant 0 : index
    %2 = vector.load %arg2[%c0_2, %c0_3, %c0_4] : memref<3x28x512xbf16, #tpu.memory_space<vmem>>, vector<1x28x512xbf16>
    %3 = vector.shape_cast %2 : vector<1x28x512xbf16> to vector<28x512xbf16>
    %4 = arith.truncf %1 : vector<56x28xf32> to vector<56x28xbf16>
    %cst = arith.constant dense<0.000000e+00> : vector<56x512xf32>
    %5 = tpu.matmul %4, %3, %cst {dimension_numbers = #tpu.dot_dimension_numbers<[1], [0], [0], [1], [0, 0, 1, 1], [], []>} : vector<56x28xbf16>, vector<28x512xbf16>, vector<56x512xf32> -> vector<56x512xf32>
    %c4 = arith.constant 4 : index
    %c0_5 = arith.constant 0 : index
    %c0_6 = arith.constant 0 : index
    %6 = vector.load %arg1[%c4, %c0_5, %c0_6] : memref<12x56x28xf32, #tpu.memory_space<vmem>>, vector<1x56x28xf32>
    %7 = vector.shape_cast %6 : vector<1x56x28xf32> to vector<56x28xf32>
    %c1 = arith.constant 1 : index
    %c0_7 = arith.constant 0 : index
    %c0_8 = arith.constant 0 : index
    %8 = vector.load %arg2[%c1, %c0_7, %c0_8] : memref<3x28x512xbf16, #tpu.memory_space<vmem>>, vector<1x28x512xbf16>
    %9 = vector.shape_cast %8 : vector<1x28x512xbf16> to vector<28x512xbf16>
    %10 = arith.truncf %7 : vector<56x28xf32> to vector<56x28xbf16>
    %cst_9 = arith.constant dense<0.000000e+00> : vector<56x512xf32>
    %11 = tpu.matmul %10, %9, %cst_9 {dimension_numbers = #tpu.dot_dimension_numbers<[1], [0], [0], [1], [0, 0, 1, 1], [], []>} : vector<56x28xbf16>, vector<28x512xbf16>, vector<56x512xf32> -> vector<56x512xf32>
    %12 = arith.addf %5, %11 : vector<56x512xf32>
    %c8 = arith.constant 8 : index
    %c0_10 = arith.constant 0 : index
    %c0_11 = arith.constant 0 : index
    %13 = vector.load %arg1[%c8, %c0_10, %c0_11] : memref<12x56x28xf32, #tpu.memory_space<vmem>>, vector<1x56x28xf32>
    %14 = vector.shape_cast %13 : vector<1x56x28xf32> to vector<56x28xf32>
    %c2 = arith.constant 2 : index
    %c0_12 = arith.constant 0 : index
    %c0_13 = arith.constant 0 : index
    %15 = vector.load %arg2[%c2, %c0_12, %c0_13] : memref<3x28x512xbf16, #tpu.memory_space<vmem>>, vector<1x28x512xbf16>
    %16 = vector.shape_cast %15 : vector<1x28x512xbf16> to vector<28x512xbf16>
    %17 = arith.truncf %14 : vector<56x28xf32> to vector<56x28xbf16>
    %cst_14 = arith.constant dense<0.000000e+00> : vector<56x512xf32>
    %18 = tpu.matmul %17, %16, %cst_14 {dimension_numbers = #tpu.dot_dimension_numbers<[1], [0], [0], [1], [0, 0, 1, 1], [], []>} : vector<56x28xbf16>, vector<28x512xbf16>, vector<56x512xf32> -> vector<56x512xf32>
    %19 = arith.addf %12, %18 : vector<56x512xf32>
    %c0_15 = arith.constant 0 : index
    %c0_16 = arith.constant 0 : index
    %20 = vector.load %arg3[%c0_15, %c0_16] : memref<1x512xf32, #tpu.memory_space<vmem>>, vector<1x512xf32>
    %21 = vector.broadcast %20 : vector<1x512xf32> to vector<56x512xf32>
    %22 = arith.addf %19, %21 : vector<56x512xf32>
    %cst_17 = arith.constant 0.000000e+00 : f32
    %23 = vector.broadcast %cst_17 : f32 to vector<56x512xf32>
    %24 = arith.maximumf %22, %23 : vector<56x512xf32>
    %c1_18 = arith.constant 1 : index
    %c0_19 = arith.constant 0 : index
    %c0_20 = arith.constant 0 : index
    %25 = vector.load %arg1[%c1_18, %c0_19, %c0_20] : memref<12x56x28xf32, #tpu.memory_space<vmem>>, vector<1x56x28xf32>
    %26 = vector.shape_cast %25 : vector<1x56x28xf32> to vector<56x28xf32>
    %c0_21 = arith.constant 0 : index
    %c0_22 = arith.constant 0 : index
    %c0_23 = arith.constant 0 : index
    %27 = vector.load %arg2[%c0_21, %c0_22, %c0_23] : memref<3x28x512xbf16, #tpu.memory_space<vmem>>, vector<1x28x512xbf16>
    %28 = vector.shape_cast %27 : vector<1x28x512xbf16> to vector<28x512xbf16>
    %29 = arith.truncf %26 : vector<56x28xf32> to vector<56x28xbf16>
    %cst_24 = arith.constant dense<0.000000e+00> : vector<56x512xf32>
    %30 = tpu.matmul %29, %28, %cst_24 {dimension_numbers = #tpu.dot_dimension_numbers<[1], [0], [0], [1], [0, 0, 1, 1], [], []>} : vector<56x28xbf16>, vector<28x512xbf16>, vector<56x512xf32> -> vector<56x512xf32>
    %c5 = arith.constant 5 : index
    %c0_25 = arith.constant 0 : index
    %c0_26 = arith.constant 0 : index
    %31 = vector.load %arg1[%c5, %c0_25, %c0_26] : memref<12x56x28xf32, #tpu.memory_space<vmem>>, vector<1x56x28xf32>
    %32 = vector.shape_cast %31 : vector<1x56x28xf32> to vector<56x28xf32>
    %c1_27 = arith.constant 1 : index
    %c0_28 = arith.constant 0 : index
    %c0_29 = arith.constant 0 : index
    %33 = vector.load %arg2[%c1_27, %c0_28, %c0_29] : memref<3x28x512xbf16, #tpu.memory_space<vmem>>, vector<1x28x512xbf16>
    %34 = vector.shape_cast %33 : vector<1x28x512xbf16> to vector<28x512xbf16>
    %35 = arith.truncf %32 : vector<56x28xf32> to vector<56x28xbf16>
    %cst_30 = arith.constant dense<0.000000e+00> : vector<56x512xf32>
    %36 = tpu.matmul %35, %34, %cst_30 {dimension_numbers = #tpu.dot_dimension_numbers<[1], [0], [0], [1], [0, 0, 1, 1], [], []>} : vector<56x28xbf16>, vector<28x512xbf16>, vector<56x512xf32> -> vector<56x512xf32>
    %37 = arith.addf %30, %36 : vector<56x512xf32>
    %c9 = arith.constant 9 : index
    %c0_31 = arith.constant 0 : index
    %c0_32 = arith.constant 0 : index
    %38 = vector.load %arg1[%c9, %c0_31, %c0_32] : memref<12x56x28xf32, #tpu.memory_space<vmem>>, vector<1x56x28xf32>
    %39 = vector.shape_cast %38 : vector<1x56x28xf32> to vector<56x28xf32>
    %c2_33 = arith.constant 2 : index
    %c0_34 = arith.constant 0 : index
    %c0_35 = arith.constant 0 : index
    %40 = vector.load %arg2[%c2_33, %c0_34, %c0_35] : memref<3x28x512xbf16, #tpu.memory_space<vmem>>, vector<1x28x512xbf16>
    %41 = vector.shape_cast %40 : vector<1x28x512xbf16> to vector<28x512xbf16>
    %42 = arith.truncf %39 : vector<56x28xf32> to vector<56x28xbf16>
    %cst_36 = arith.constant dense<0.000000e+00> : vector<56x512xf32>
    %43 = tpu.matmul %42, %41, %cst_36 {dimension_numbers = #tpu.dot_dimension_numbers<[1], [0], [0], [1], [0, 0, 1, 1], [], []>} : vector<56x28xbf16>, vector<28x512xbf16>, vector<56x512xf32> -> vector<56x512xf32>
    %44 = arith.addf %37, %43 : vector<56x512xf32>
    %c0_37 = arith.constant 0 : index
    %c0_38 = arith.constant 0 : index
    %45 = vector.load %arg3[%c0_37, %c0_38] : memref<1x512xf32, #tpu.memory_space<vmem>>, vector<1x512xf32>
    %46 = vector.broadcast %45 : vector<1x512xf32> to vector<56x512xf32>
    %47 = arith.addf %44, %46 : vector<56x512xf32>
    %cst_39 = arith.constant 0.000000e+00 : f32
    %48 = vector.broadcast %cst_39 : f32 to vector<56x512xf32>
    %49 = arith.maximumf %47, %48 : vector<56x512xf32>
    %c2_40 = arith.constant 2 : index
    %c0_41 = arith.constant 0 : index
    %c0_42 = arith.constant 0 : index
    %50 = vector.load %arg1[%c2_40, %c0_41, %c0_42] : memref<12x56x28xf32, #tpu.memory_space<vmem>>, vector<1x56x28xf32>
    %51 = vector.shape_cast %50 : vector<1x56x28xf32> to vector<56x28xf32>
    %c0_43 = arith.constant 0 : index
    %c0_44 = arith.constant 0 : index
    %c0_45 = arith.constant 0 : index
    %52 = vector.load %arg2[%c0_43, %c0_44, %c0_45] : memref<3x28x512xbf16, #tpu.memory_space<vmem>>, vector<1x28x512xbf16>
    %53 = vector.shape_cast %52 : vector<1x28x512xbf16> to vector<28x512xbf16>
    %54 = arith.truncf %51 : vector<56x28xf32> to vector<56x28xbf16>
    %cst_46 = arith.constant dense<0.000000e+00> : vector<56x512xf32>
    %55 = tpu.matmul %54, %53, %cst_46 {dimension_numbers = #tpu.dot_dimension_numbers<[1], [0], [0], [1], [0, 0, 1, 1], [], []>} : vector<56x28xbf16>, vector<28x512xbf16>, vector<56x512xf32> -> vector<56x512xf32>
    %c6 = arith.constant 6 : index
    %c0_47 = arith.constant 0 : index
    %c0_48 = arith.constant 0 : index
    %56 = vector.load %arg1[%c6, %c0_47, %c0_48] : memref<12x56x28xf32, #tpu.memory_space<vmem>>, vector<1x56x28xf32>
    %57 = vector.shape_cast %56 : vector<1x56x28xf32> to vector<56x28xf32>
    %c1_49 = arith.constant 1 : index
    %c0_50 = arith.constant 0 : index
    %c0_51 = arith.constant 0 : index
    %58 = vector.load %arg2[%c1_49, %c0_50, %c0_51] : memref<3x28x512xbf16, #tpu.memory_space<vmem>>, vector<1x28x512xbf16>
    %59 = vector.shape_cast %58 : vector<1x28x512xbf16> to vector<28x512xbf16>
    %60 = arith.truncf %57 : vector<56x28xf32> to vector<56x28xbf16>
    %cst_52 = arith.constant dense<0.000000e+00> : vector<56x512xf32>
    %61 = tpu.matmul %60, %59, %cst_52 {dimension_numbers = #tpu.dot_dimension_numbers<[1], [0], [0], [1], [0, 0, 1, 1], [], []>} : vector<56x28xbf16>, vector<28x512xbf16>, vector<56x512xf32> -> vector<56x512xf32>
    %62 = arith.addf %55, %61 : vector<56x512xf32>
    %c10 = arith.constant 10 : index
    %c0_53 = arith.constant 0 : index
    %c0_54 = arith.constant 0 : index
    %63 = vector.load %arg1[%c10, %c0_53, %c0_54] : memref<12x56x28xf32, #tpu.memory_space<vmem>>, vector<1x56x28xf32>
    %64 = vector.shape_cast %63 : vector<1x56x28xf32> to vector<56x28xf32>
    %c2_55 = arith.constant 2 : index
    %c0_56 = arith.constant 0 : index
    %c0_57 = arith.constant 0 : index
    %65 = vector.load %arg2[%c2_55, %c0_56, %c0_57] : memref<3x28x512xbf16, #tpu.memory_space<vmem>>, vector<1x28x512xbf16>
    %66 = vector.shape_cast %65 : vector<1x28x512xbf16> to vector<28x512xbf16>
    %67 = arith.truncf %64 : vector<56x28xf32> to vector<56x28xbf16>
    %cst_58 = arith.constant dense<0.000000e+00> : vector<56x512xf32>
    %68 = tpu.matmul %67, %66, %cst_58 {dimension_numbers = #tpu.dot_dimension_numbers<[1], [0], [0], [1], [0, 0, 1, 1], [], []>} : vector<56x28xbf16>, vector<28x512xbf16>, vector<56x512xf32> -> vector<56x512xf32>
    %69 = arith.addf %62, %68 : vector<56x512xf32>
    %c0_59 = arith.constant 0 : index
    %c0_60 = arith.constant 0 : index
    %70 = vector.load %arg3[%c0_59, %c0_60] : memref<1x512xf32, #tpu.memory_space<vmem>>, vector<1x512xf32>
    %71 = vector.broadcast %70 : vector<1x512xf32> to vector<56x512xf32>
    %72 = arith.addf %69, %71 : vector<56x512xf32>
    %cst_61 = arith.constant 0.000000e+00 : f32
    %73 = vector.broadcast %cst_61 : f32 to vector<56x512xf32>
    %74 = arith.maximumf %72, %73 : vector<56x512xf32>
    %c3 = arith.constant 3 : index
    %c0_62 = arith.constant 0 : index
    %c0_63 = arith.constant 0 : index
    %75 = vector.load %arg1[%c3, %c0_62, %c0_63] : memref<12x56x28xf32, #tpu.memory_space<vmem>>, vector<1x56x28xf32>
    %76 = vector.shape_cast %75 : vector<1x56x28xf32> to vector<56x28xf32>
    %c0_64 = arith.constant 0 : index
    %c0_65 = arith.constant 0 : index
    %c0_66 = arith.constant 0 : index
    %77 = vector.load %arg2[%c0_64, %c0_65, %c0_66] : memref<3x28x512xbf16, #tpu.memory_space<vmem>>, vector<1x28x512xbf16>
    %78 = vector.shape_cast %77 : vector<1x28x512xbf16> to vector<28x512xbf16>
    %79 = arith.truncf %76 : vector<56x28xf32> to vector<56x28xbf16>
    %cst_67 = arith.constant dense<0.000000e+00> : vector<56x512xf32>
    %80 = tpu.matmul %79, %78, %cst_67 {dimension_numbers = #tpu.dot_dimension_numbers<[1], [0], [0], [1], [0, 0, 1, 1], [], []>} : vector<56x28xbf16>, vector<28x512xbf16>, vector<56x512xf32> -> vector<56x512xf32>
    %c7 = arith.constant 7 : index
    %c0_68 = arith.constant 0 : index
    %c0_69 = arith.constant 0 : index
    %81 = vector.load %arg1[%c7, %c0_68, %c0_69] : memref<12x56x28xf32, #tpu.memory_space<vmem>>, vector<1x56x28xf32>
    %82 = vector.shape_cast %81 : vector<1x56x28xf32> to vector<56x28xf32>
    %c1_70 = arith.constant 1 : index
    %c0_71 = arith.constant 0 : index
    %c0_72 = arith.constant 0 : index
    %83 = vector.load %arg2[%c1_70, %c0_71, %c0_72] : memref<3x28x512xbf16, #tpu.memory_space<vmem>>, vector<1x28x512xbf16>
    %84 = vector.shape_cast %83 : vector<1x28x512xbf16> to vector<28x512xbf16>
    %85 = arith.truncf %82 : vector<56x28xf32> to vector<56x28xbf16>
    %cst_73 = arith.constant dense<0.000000e+00> : vector<56x512xf32>
    %86 = tpu.matmul %85, %84, %cst_73 {dimension_numbers = #tpu.dot_dimension_numbers<[1], [0], [0], [1], [0, 0, 1, 1], [], []>} : vector<56x28xbf16>, vector<28x512xbf16>, vector<56x512xf32> -> vector<56x512xf32>
    %87 = arith.addf %80, %86 : vector<56x512xf32>
    %c11 = arith.constant 11 : index
    %c0_74 = arith.constant 0 : index
    %c0_75 = arith.constant 0 : index
    %88 = vector.load %arg1[%c11, %c0_74, %c0_75] : memref<12x56x28xf32, #tpu.memory_space<vmem>>, vector<1x56x28xf32>
    %89 = vector.shape_cast %88 : vector<1x56x28xf32> to vector<56x28xf32>
    %c2_76 = arith.constant 2 : index
    %c0_77 = arith.constant 0 : index
    %c0_78 = arith.constant 0 : index
    %90 = vector.load %arg2[%c2_76, %c0_77, %c0_78] : memref<3x28x512xbf16, #tpu.memory_space<vmem>>, vector<1x28x512xbf16>
    %91 = vector.shape_cast %90 : vector<1x28x512xbf16> to vector<28x512xbf16>
    %92 = arith.truncf %89 : vector<56x28xf32> to vector<56x28xbf16>
    %cst_79 = arith.constant dense<0.000000e+00> : vector<56x512xf32>
    %93 = tpu.matmul %92, %91, %cst_79 {dimension_numbers = #tpu.dot_dimension_numbers<[1], [0], [0], [1], [0, 0, 1, 1], [], []>} : vector<56x28xbf16>, vector<28x512xbf16>, vector<56x512xf32> -> vector<56x512xf32>
    %94 = arith.addf %87, %93 : vector<56x512xf32>
    %c0_80 = arith.constant 0 : index
    %c0_81 = arith.constant 0 : index
    %95 = vector.load %arg3[%c0_80, %c0_81] : memref<1x512xf32, #tpu.memory_space<vmem>>, vector<1x512xf32>
    %96 = vector.broadcast %95 : vector<1x512xf32> to vector<56x512xf32>
    %97 = arith.addf %94, %96 : vector<56x512xf32>
    %cst_82 = arith.constant 0.000000e+00 : f32
    %98 = vector.broadcast %cst_82 : f32 to vector<56x512xf32>
    %99 = arith.maximumf %97, %98 : vector<56x512xf32>
    %100 = arith.maximumf %24, %49 : vector<56x512xf32>
    %101 = arith.maximumf %74, %99 : vector<56x512xf32>
    %102 = vector.extract_strided_slice %100 {offsets = [0, 0], sizes = [56, 256], strides = [1, 1]} : vector<56x512xf32> to vector<56x256xf32>
    %103 = vector.extract_strided_slice %100 {offsets = [0, 256], sizes = [56, 256], strides = [1, 1]} : vector<56x512xf32> to vector<56x256xf32>
    %104 = arith.maximumf %102, %103 : vector<56x256xf32>
    %105 = vector.extract_strided_slice %101 {offsets = [0, 0], sizes = [56, 256], strides = [1, 1]} : vector<56x512xf32> to vector<56x256xf32>
    %106 = vector.extract_strided_slice %101 {offsets = [0, 256], sizes = [56, 256], strides = [1, 1]} : vector<56x512xf32> to vector<56x256xf32>
    %107 = arith.maximumf %105, %106 : vector<56x256xf32>
    %c0_83 = arith.constant 0 : index
    %c0_84 = arith.constant 0 : index
    %108 = vector.load %arg11[%c0_83, %c0_84] : memref<120x256xf32, #tpu.memory_space<vmem>>, vector<56x256xf32>
    tpu.vector_store %arg11[%c0_83, %c0_84], %104 {strides = array<i32>} : memref<120x256xf32, #tpu.memory_space<vmem>>, vector<56x256xf32>,
    %cst_85 = arith.constant 0.000000e+00 : f32
    %109 = vector.broadcast %cst_85 : f32 to vector<8x256xf32>
    %c56 = arith.constant 56 : index
    %c0_86 = arith.constant 0 : index
    %110 = vector.load %arg11[%c56, %c0_86] : memref<120x256xf32, #tpu.memory_space<vmem>>, vector<8x256xf32>
    tpu.vector_store %arg11[%c56, %c0_86], %109 {strides = array<i32>} : memref<120x256xf32, #tpu.memory_space<vmem>>, vector<8x256xf32>,
    %c64 = arith.constant 64 : index
    %c0_87 = arith.constant 0 : index
    %111 = vector.load %arg11[%c64, %c0_87] : memref<120x256xf32, #tpu.memory_space<vmem>>, vector<56x256xf32>
    tpu.vector_store %arg11[%c64, %c0_87], %107 {strides = array<i32>} : memref<120x256xf32, #tpu.memory_space<vmem>>, vector<56x256xf32>,
    %c0_88 = arith.constant 0 : index
    %c0_89 = arith.constant 0 : index
    %112 = vector.load %arg11[%c0_88, %c0_89] : memref<120x256xf32, #tpu.memory_space<vmem>>, vector<56x256xf32>
    %c8_90 = arith.constant 8 : index
    %c0_91 = arith.constant 0 : index
    %113 = vector.load %arg11[%c8_90, %c0_91] : memref<120x256xf32, #tpu.memory_space<vmem>>, vector<56x256xf32>
    %c56_92 = arith.constant 56 : index
    %c0_93 = arith.constant 0 : index
    %114 = vector.load %arg11[%c56_92, %c0_93] : memref<120x256xf32, #tpu.memory_space<vmem>>, vector<56x256xf32>
    %c64_94 = arith.constant 64 : index
    %c0_95 = arith.constant 0 : index
    %115 = vector.load %arg11[%c64_94, %c0_95] : memref<120x256xf32, #tpu.memory_space<vmem>>, vector<56x256xf32>
    %c0_96 = arith.constant 0 : index
    %c0_97 = arith.constant 0 : index
    %c0_98 = arith.constant 0 : index
    %116 = vector.load %arg4[%c0_96, %c0_97, %c0_98] : memref<3x256x512xbf16, #tpu.memory_space<vmem>>, vector<1x256x512xbf16>
    %117 = vector.shape_cast %116 : vector<1x256x512xbf16> to vector<256x512xbf16>
    %118 = arith.truncf %114 : vector<56x256xf32> to vector<56x256xbf16>
    %cst_99 = arith.constant dense<0.000000e+00> : vector<56x512xf32>
    %119 = tpu.matmul %118, %117, %cst_99 {dimension_numbers = #tpu.dot_dimension_numbers<[1], [0], [0], [1], [0, 0, 1, 1], [], []>} : vector<56x256xbf16>, vector<256x512xbf16>, vector<56x512xf32> -> vector<56x512xf32>
    %c1_100 = arith.constant 1 : index
    %c0_101 = arith.constant 0 : index
    %c0_102 = arith.constant 0 : index
    %120 = vector.load %arg4[%c1_100, %c0_101, %c0_102] : memref<3x256x512xbf16, #tpu.memory_space<vmem>>, vector<1x256x512xbf16>
    %121 = vector.shape_cast %120 : vector<1x256x512xbf16> to vector<256x512xbf16>
    %122 = arith.truncf %112 : vector<56x256xf32> to vector<56x256xbf16>
    %cst_103 = arith.constant dense<0.000000e+00> : vector<56x512xf32>
    %123 = tpu.matmul %122, %121, %cst_103 {dimension_numbers = #tpu.dot_dimension_numbers<[1], [0], [0], [1], [0, 0, 1, 1], [], []>} : vector<56x256xbf16>, vector<256x512xbf16>, vector<56x512xf32> -> vector<56x512xf32>
    %124 = arith.addf %119, %123 : vector<56x512xf32>
    %c2_104 = arith.constant 2 : index
    %c0_105 = arith.constant 0 : index
    %c0_106 = arith.constant 0 : index
    %125 = vector.load %arg4[%c2_104, %c0_105, %c0_106] : memref<3x256x512xbf16, #tpu.memory_space<vmem>>, vector<1x256x512xbf16>
    %126 = vector.shape_cast %125 : vector<1x256x512xbf16> to vector<256x512xbf16>
    %127 = arith.truncf %115 : vector<56x256xf32> to vector<56x256xbf16>
    %cst_107 = arith.constant dense<0.000000e+00> : vector<56x512xf32>
    %128 = tpu.matmul %127, %126, %cst_107 {dimension_numbers = #tpu.dot_dimension_numbers<[1], [0], [0], [1], [0, 0, 1, 1], [], []>} : vector<56x256xbf16>, vector<256x512xbf16>, vector<56x512xf32> -> vector<56x512xf32>
    %129 = arith.addf %124, %128 : vector<56x512xf32>
    %c0_108 = arith.constant 0 : index
    %c0_109 = arith.constant 0 : index
    %130 = vector.load %arg5[%c0_108, %c0_109] : memref<1x512xf32, #tpu.memory_space<vmem>>, vector<1x512xf32>
    %131 = vector.broadcast %130 : vector<1x512xf32> to vector<56x512xf32>
    %132 = arith.addf %129, %131 : vector<56x512xf32>
    %cst_110 = arith.constant 0.000000e+00 : f32
    %133 = vector.broadcast %cst_110 : f32 to vector<56x512xf32>
    %134 = arith.maximumf %132, %133 : vector<56x512xf32>
    %c0_111 = arith.constant 0 : index
    %c0_112 = arith.constant 0 : index
    %c0_113 = arith.constant 0 : index
    %135 = vector.load %arg4[%c0_111, %c0_112, %c0_113] : memref<3x256x512xbf16, #tpu.memory_space<vmem>>, vector<1x256x512xbf16>
    %136 = vector.shape_cast %135 : vector<1x256x512xbf16> to vector<256x512xbf16>
    %137 = arith.truncf %112 : vector<56x256xf32> to vector<56x256xbf16>
    %cst_114 = arith.constant dense<0.000000e+00> : vector<56x512xf32>
    %138 = tpu.matmul %137, %136, %cst_114 {dimension_numbers = #tpu.dot_dimension_numbers<[1], [0], [0], [1], [0, 0, 1, 1], [], []>} : vector<56x256xbf16>, vector<256x512xbf16>, vector<56x512xf32> -> vector<56x512xf32>
    %c1_115 = arith.constant 1 : index
    %c0_116 = arith.constant 0 : index
    %c0_117 = arith.constant 0 : index
    %139 = vector.load %arg4[%c1_115, %c0_116, %c0_117] : memref<3x256x512xbf16, #tpu.memory_space<vmem>>, vector<1x256x512xbf16>
    %140 = vector.shape_cast %139 : vector<1x256x512xbf16> to vector<256x512xbf16>
    %141 = arith.truncf %115 : vector<56x256xf32> to vector<56x256xbf16>
    %cst_118 = arith.constant dense<0.000000e+00> : vector<56x512xf32>
    %142 = tpu.matmul %141, %140, %cst_118 {dimension_numbers = #tpu.dot_dimension_numbers<[1], [0], [0], [1], [0, 0, 1, 1], [], []>} : vector<56x256xbf16>, vector<256x512xbf16>, vector<56x512xf32> -> vector<56x512xf32>
    %143 = arith.addf %138, %142 : vector<56x512xf32>
    %c2_119 = arith.constant 2 : index
    %c0_120 = arith.constant 0 : index
    %c0_121 = arith.constant 0 : index
    %144 = vector.load %arg4[%c2_119, %c0_120, %c0_121] : memref<3x256x512xbf16, #tpu.memory_space<vmem>>, vector<1x256x512xbf16>
    %145 = vector.shape_cast %144 : vector<1x256x512xbf16> to vector<256x512xbf16>
    %146 = arith.truncf %113 : vector<56x256xf32> to vector<56x256xbf16>
    %cst_122 = arith.constant dense<0.000000e+00> : vector<56x512xf32>
    %147 = tpu.matmul %146, %145, %cst_122 {dimension_numbers = #tpu.dot_dimension_numbers<[1], [0], [0], [1], [0, 0, 1, 1], [], []>} : vector<56x256xbf16>, vector<256x512xbf16>, vector<56x512xf32> -> vector<56x512xf32>
    %148 = arith.addf %143, %147 : vector<56x512xf32>
    %c0_123 = arith.constant 0 : index
    %c0_124 = arith.constant 0 : index
    %149 = vector.load %arg5[%c0_123, %c0_124] : memref<1x512xf32, #tpu.memory_space<vmem>>, vector<1x512xf32>
    %150 = vector.broadcast %149 : vector<1x512xf32> to vector<56x512xf32>
    %151 = arith.addf %148, %150 : vector<56x512xf32>
    %cst_125 = arith.constant 0.000000e+00 : f32
    %152 = vector.broadcast %cst_125 : f32 to vector<56x512xf32>
    %153 = arith.maximumf %151, %152 : vector<56x512xf32>
    %154 = arith.maximumf %134, %153 : vector<56x512xf32>
    %155 = vector.extract_strided_slice %154 {offsets = [0, 0], sizes = [56, 256], strides = [1, 1]} : vector<56x512xf32> to vector<56x256xf32>
    %156 = vector.extract_strided_slice %154 {offsets = [0, 256], sizes = [56, 256], strides = [1, 1]} : vector<56x512xf32> to vector<56x256xf32>
    %157 = arith.maximumf %155, %156 : vector<56x256xf32>
    %c0_126 = arith.constant 0 : index
    %c0_127 = arith.constant 0 : index
    %158 = vector.load %arg12[%c0_126, %c0_127] : memref<56x256xf32, #tpu.memory_space<vmem>>, vector<56x256xf32>
    tpu.vector_store %arg12[%c0_126, %c0_127], %157 {strides = array<i32>} : memref<56x256xf32, #tpu.memory_space<vmem>>, vector<56x256xf32>,
    %c0_128 = arith.constant 0 : index
    %c0_129 = arith.constant 0 : index
    %159 = vector.load %arg12[%c0_128, %c0_129] : memref<56x256xf32, #tpu.memory_space<vmem>>, vector<8x256xf32>
    %c0_130 = arith.constant 0 : index
    %c0_131 = arith.constant 0 : index
    %c0_132 = arith.constant 0 : index
    %160 = vector.load %arg6[%c0_130, %c0_131, %c0_132] : memref<7x256x128xbf16, #tpu.memory_space<vmem>>, vector<1x256x128xbf16>
    %161 = vector.shape_cast %160 : vector<1x256x128xbf16> to vector<256x128xbf16>
    %162 = arith.truncf %159 : vector<8x256xf32> to vector<8x256xbf16>
    %cst_133 = arith.constant dense<0.000000e+00> : vector<8x128xf32>
    %163 = tpu.matmul %162, %161, %cst_133 {dimension_numbers = #tpu.dot_dimension_numbers<[1], [0], [0], [1], [0, 0, 1, 1], [], []>} : vector<8x256xbf16>, vector<256x128xbf16>, vector<8x128xf32> -> vector<8x128xf32>
    %c8_134 = arith.constant 8 : index
    %c0_135 = arith.constant 0 : index
    %164 = vector.load %arg12[%c8_134, %c0_135] : memref<56x256xf32, #tpu.memory_space<vmem>>, vector<8x256xf32>
    %c1_136 = arith.constant 1 : index
    %c0_137 = arith.constant 0 : index
    %c0_138 = arith.constant 0 : index
    %165 = vector.load %arg6[%c1_136, %c0_137, %c0_138] : memref<7x256x128xbf16, #tpu.memory_space<vmem>>, vector<1x256x128xbf16>
    %166 = vector.shape_cast %165 : vector<1x256x128xbf16> to vector<256x128xbf16>
    %167 = arith.truncf %164 : vector<8x256xf32> to vector<8x256xbf16>
    %cst_139 = arith.constant dense<0.000000e+00> : vector<8x128xf32>
    %168 = tpu.matmul %167, %166, %cst_139 {dimension_numbers = #tpu.dot_dimension_numbers<[1], [0], [0], [1], [0, 0, 1, 1], [], []>} : vector<8x256xbf16>, vector<256x128xbf16>, vector<8x128xf32> -> vector<8x128xf32>
    %169 = arith.addf %163, %168 : vector<8x128xf32>
    %c16 = arith.constant 16 : index
    %c0_140 = arith.constant 0 : index
    %170 = vector.load %arg12[%c16, %c0_140] : memref<56x256xf32, #tpu.memory_space<vmem>>, vector<8x256xf32>
    %c2_141 = arith.constant 2 : index
    %c0_142 = arith.constant 0 : index
    %c0_143 = arith.constant 0 : index
    %171 = vector.load %arg6[%c2_141, %c0_142, %c0_143] : memref<7x256x128xbf16, #tpu.memory_space<vmem>>, vector<1x256x128xbf16>
    %172 = vector.shape_cast %171 : vector<1x256x128xbf16> to vector<256x128xbf16>
    %173 = arith.truncf %170 : vector<8x256xf32> to vector<8x256xbf16>
    %cst_144 = arith.constant dense<0.000000e+00> : vector<8x128xf32>
    %174 = tpu.matmul %173, %172, %cst_144 {dimension_numbers = #tpu.dot_dimension_numbers<[1], [0], [0], [1], [0, 0, 1, 1], [], []>} : vector<8x256xbf16>, vector<256x128xbf16>, vector<8x128xf32> -> vector<8x128xf32>
    %175 = arith.addf %169, %174 : vector<8x128xf32>
    %c24 = arith.constant 24 : index
    %c0_145 = arith.constant 0 : index
    %176 = vector.load %arg12[%c24, %c0_145] : memref<56x256xf32, #tpu.memory_space<vmem>>, vector<8x256xf32>
    %c3_146 = arith.constant 3 : index
    %c0_147 = arith.constant 0 : index
    %c0_148 = arith.constant 0 : index
    %177 = vector.load %arg6[%c3_146, %c0_147, %c0_148] : memref<7x256x128xbf16, #tpu.memory_space<vmem>>, vector<1x256x128xbf16>
    %178 = vector.shape_cast %177 : vector<1x256x128xbf16> to vector<256x128xbf16>
    %179 = arith.truncf %176 : vector<8x256xf32> to vector<8x256xbf16>
    %cst_149 = arith.constant dense<0.000000e+00> : vector<8x128xf32>
    %180 = tpu.matmul %179, %178, %cst_149 {dimension_numbers = #tpu.dot_dimension_numbers<[1], [0], [0], [1], [0, 0, 1, 1], [], []>} : vector<8x256xbf16>, vector<256x128xbf16>, vector<8x128xf32> -> vector<8x128xf32>
    %181 = arith.addf %175, %180 : vector<8x128xf32>
    %c32 = arith.constant 32 : index
    %c0_150 = arith.constant 0 : index
    %182 = vector.load %arg12[%c32, %c0_150] : memref<56x256xf32, #tpu.memory_space<vmem>>, vector<8x256xf32>
    %c4_151 = arith.constant 4 : index
    %c0_152 = arith.constant 0 : index
    %c0_153 = arith.constant 0 : index
    %183 = vector.load %arg6[%c4_151, %c0_152, %c0_153] : memref<7x256x128xbf16, #tpu.memory_space<vmem>>, vector<1x256x128xbf16>
    %184 = vector.shape_cast %183 : vector<1x256x128xbf16> to vector<256x128xbf16>
    %185 = arith.truncf %182 : vector<8x256xf32> to vector<8x256xbf16>
    %cst_154 = arith.constant dense<0.000000e+00> : vector<8x128xf32>
    %186 = tpu.matmul %185, %184, %cst_154 {dimension_numbers = #tpu.dot_dimension_numbers<[1], [0], [0], [1], [0, 0, 1, 1], [], []>} : vector<8x256xbf16>, vector<256x128xbf16>, vector<8x128xf32> -> vector<8x128xf32>
    %187 = arith.addf %181, %186 : vector<8x128xf32>
    %c40 = arith.constant 40 : index
    %c0_155 = arith.constant 0 : index
    %188 = vector.load %arg12[%c40, %c0_155] : memref<56x256xf32, #tpu.memory_space<vmem>>, vector<8x256xf32>
    %c5_156 = arith.constant 5 : index
    %c0_157 = arith.constant 0 : index
    %c0_158 = arith.constant 0 : index
    %189 = vector.load %arg6[%c5_156, %c0_157, %c0_158] : memref<7x256x128xbf16, #tpu.memory_space<vmem>>, vector<1x256x128xbf16>
    %190 = vector.shape_cast %189 : vector<1x256x128xbf16> to vector<256x128xbf16>
    %191 = arith.truncf %188 : vector<8x256xf32> to vector<8x256xbf16>
    %cst_159 = arith.constant dense<0.000000e+00> : vector<8x128xf32>
    %192 = tpu.matmul %191, %190, %cst_159 {dimension_numbers = #tpu.dot_dimension_numbers<[1], [0], [0], [1], [0, 0, 1, 1], [], []>} : vector<8x256xbf16>, vector<256x128xbf16>, vector<8x128xf32> -> vector<8x128xf32>
    %193 = arith.addf %187, %192 : vector<8x128xf32>
    %c48 = arith.constant 48 : index
    %c0_160 = arith.constant 0 : index
    %194 = vector.load %arg12[%c48, %c0_160] : memref<56x256xf32, #tpu.memory_space<vmem>>, vector<8x256xf32>
    %c6_161 = arith.constant 6 : index
    %c0_162 = arith.constant 0 : index
    %c0_163 = arith.constant 0 : index
    %195 = vector.load %arg6[%c6_161, %c0_162, %c0_163] : memref<7x256x128xbf16, #tpu.memory_space<vmem>>, vector<1x256x128xbf16>
    %196 = vector.shape_cast %195 : vector<1x256x128xbf16> to vector<256x128xbf16>
    %197 = arith.truncf %194 : vector<8x256xf32> to vector<8x256xbf16>
    %cst_164 = arith.constant dense<0.000000e+00> : vector<8x128xf32>
    %198 = tpu.matmul %197, %196, %cst_164 {dimension_numbers = #tpu.dot_dimension_numbers<[1], [0], [0], [1], [0, 0, 1, 1], [], []>} : vector<8x256xbf16>, vector<256x128xbf16>, vector<8x128xf32> -> vector<8x128xf32>
    %199 = arith.addf %193, %198 : vector<8x128xf32>
    %c0_165 = arith.constant 0 : index
    %c0_166 = arith.constant 0 : index
    %200 = vector.load %arg7[%c0_165, %c0_166] : memref<1x128xf32, #tpu.memory_space<vmem>>, vector<1x128xf32>
    %201 = vector.broadcast %200 : vector<1x128xf32> to vector<8x128xf32>
    %202 = arith.addf %199, %201 : vector<8x128xf32>
    %cst_167 = arith.constant 0.000000e+00 : f32
    %203 = vector.broadcast %cst_167 : f32 to vector<8x128xf32>
    %204 = arith.maximumf %202, %203 : vector<8x128xf32>
    %c0_168 = arith.constant 0 : index
    %c0_169 = arith.constant 0 : index
    %205 = vector.load %arg8[%c0_168, %c0_169] : memref<128x128xbf16, #tpu.memory_space<vmem>>, vector<128x128xbf16>
    %206 = arith.truncf %204 : vector<8x128xf32> to vector<8x128xbf16>
    %cst_170 = arith.constant dense<0.000000e+00> : vector<8x128xf32>
    %207 = tpu.matmul %206, %205, %cst_170 {dimension_numbers = #tpu.dot_dimension_numbers<[1], [0], [0], [1], [0, 0, 1, 1], [], []>} : vector<8x128xbf16>, vector<128x128xbf16>, vector<8x128xf32> -> vector<8x128xf32>
    %c0_171 = arith.constant 0 : index
    %c0_172 = arith.constant 0 : index
    %208 = vector.load %arg9[%c0_171, %c0_172] : memref<1x128xf32, #tpu.memory_space<vmem>>, vector<1x128xf32>
    %209 = vector.broadcast %208 : vector<1x128xf32> to vector<8x128xf32>
    %210 = arith.addf %207, %209 : vector<8x128xf32>
    %c0_173 = arith.constant 0 : index
    %c0_174 = arith.constant 0 : index
    %c0_175 = arith.constant 0 : index
    %211 = vector.load %arg10[%c0_173, %c0_174, %c0_175] : memref<1x8x128xf32, #tpu.memory_space<vmem>>, vector<1x8x128xf32>
    %212 = vector.shape_cast %211 : vector<1x8x128xf32> to vector<8x128xf32>
    %213 = vector.shape_cast %210 : vector<8x128xf32> to vector<1x8x128xf32>
    tpu.vector_store %arg10[%c0_173, %c0_174, %c0_175], %213 {strides = array<i32>} : memref<1x8x128xf32, #tpu.memory_space<vmem>>, vector<1x8x128xf32>,
    return
  }
  func.func @transform_0(%arg0: i32) -> (i32, i32, i32) {
    %c0_i32 = arith.constant 0 : i32
    %c0_i32_0 = arith.constant 0 : i32
    %c0_i32_1 = arith.constant 0 : i32
    return %arg0, %c0_i32, %c0_i32_0 : i32, i32, i32
  }
  func.func @transform_1(%arg0: i32) -> (i32, i32, i32) {
    %c0_i32 = arith.constant 0 : i32
    %c0_i32_0 = arith.constant 0 : i32
    %c0_i32_1 = arith.constant 0 : i32
    %c0_i32_2 = arith.constant 0 : i32
    return %c0_i32, %c0_i32_0, %c0_i32_1 : i32, i32, i32
  }
  func.func @transform_2(%arg0: i32) -> (i32, i32) {
    %c0_i32 = arith.constant 0 : i32
    %c0_i32_0 = arith.constant 0 : i32
    %c0_i32_1 = arith.constant 0 : i32
    return %c0_i32, %c0_i32_0 : i32, i32
  }
  func.func @transform_3(%arg0: i32) -> (i32, i32, i32) {
    %c0_i32 = arith.constant 0 : i32
    %c0_i32_0 = arith.constant 0 : i32
    %c0_i32_1 = arith.constant 0 : i32
    %c0_i32_2 = arith.constant 0 : i32
    return %c0_i32, %c0_i32_0, %c0_i32_1 : i32, i32, i32
  }
  func.func @transform_4(%arg0: i32) -> (i32, i32) {
    %c0_i32 = arith.constant 0 : i32
    %c0_i32_0 = arith.constant 0 : i32
    %c0_i32_1 = arith.constant 0 : i32
    return %c0_i32, %c0_i32_0 : i32, i32
  }
  func.func @transform_5(%arg0: i32) -> (i32, i32, i32) {
    %c0_i32 = arith.constant 0 : i32
    %c0_i32_0 = arith.constant 0 : i32
    %c0_i32_1 = arith.constant 0 : i32
    %c0_i32_2 = arith.constant 0 : i32
    return %c0_i32, %c0_i32_0, %c0_i32_1 : i32, i32, i32
  }
  func.func @transform_6(%arg0: i32) -> (i32, i32) {
    %c0_i32 = arith.constant 0 : i32
    %c0_i32_0 = arith.constant 0 : i32
    %c0_i32_1 = arith.constant 0 : i32
    return %c0_i32, %c0_i32_0 : i32, i32
  }
  func.func @transform_7(%arg0: i32) -> (i32, i32) {
    %c0_i32 = arith.constant 0 : i32
    %c0_i32_0 = arith.constant 0 : i32
    %c0_i32_1 = arith.constant 0 : i32
    return %c0_i32, %c0_i32_0 : i32, i32
  }
  func.func @transform_8(%arg0: i32) -> (i32, i32) {
    %c0_i32 = arith.constant 0 : i32
    %c0_i32_0 = arith.constant 0 : i32
    %c0_i32_1 = arith.constant 0 : i32
    return %c0_i32, %c0_i32_0 : i32, i32
  }
  func.func @transform_9(%arg0: i32) -> (i32, i32, i32) {
    %c0_i32 = arith.constant 0 : i32
    %c0_i32_0 = arith.constant 0 : i32
    %c0_i32_1 = arith.constant 0 : i32
    return %arg0, %c0_i32, %c0_i32_0 : i32, i32, i32
  }
}

</mosaic_0001>

<llo_original>
// kernel: cnn_forward.1
$region0: #{cnn_forward.1}
  #allocation0 [shape = 'u32[]', space=smem, size = 0x4, offset = 0x4, fixed_abs, tag = 'smem constant byte address 0x4 - core index']
  #allocation1 [shape = 'u32[144,128]{1,0:T(1,128)}', space=vmem, size = 0x12000, scoped, tag = 'internal scratch']
  #allocation2 [shape = 'f32[120,256]{1,0:T(8,128)}', space=vmem, size = 0x1e000, scoped, tag = 'scratch operand']
  #allocation3 [shape = 'f32[56,256]{1,0:T(8,128)}', space=vmem, size = 0xe000, scoped, tag = 'scratch operand']
  %s0 = inlined_call_operand.vmem [shape: f32[12,56,28], index: 0, kind: input, shape index: {}]
  %s1 = inlined_call_operand.vmem [shape: bf16[3,28,512], index: 1, kind: input, shape index: {}]
  %s2 = inlined_call_operand.vmem [shape: f32[1,512], index: 2, kind: input, shape index: {}]
  %s3 = inlined_call_operand.vmem [shape: bf16[3,256,512], index: 3, kind: input, shape index: {}]
  %s4 = inlined_call_operand.vmem [shape: f32[1,512], index: 4, kind: input, shape index: {}]
  %s5 = inlined_call_operand.hbm [shape: bf16[7,256,128], index: 5, kind: input, shape index: {}]
  %s6 = inlined_call_operand.vmem [shape: f32[1,128], index: 6, kind: input, shape index: {}]
  %s7 = inlined_call_operand.vmem [shape: bf16[128,128], index: 7, kind: input, shape index: {}]
  %s8 = inlined_call_operand.vmem [shape: f32[1,128], index: 8, kind: input, shape index: {}]
  %s9 = inlined_call_operand.vmem [shape: f32[1,8,128], index: 9, kind: output, shape index: {}]
  %s10 = sld [smem:[#allocation0]]
  $region50: #{cnn_forward.1} parent=0
    _
  %s12 = ssub.s32 1, %s10
  %s13 = scalar_select 0, %s12, %s10
  $region1: #{cnn_forward.1} parent=0
    #allocation4 [shape = 'u8[458752]{0}', space=vmem, size = 0x70000, scoped, tag = 'input window, operand 5, single buffered']
    #allocation5 [shape = 's32[1]{0}', space=sflag, size = 0x4, scoped, tag = 'scoped memory for cnn_forward.1']
    %14 = vsyncpa [#allocation5], 0
    // Predicated region
    $region2: #{cnn_forward.1} parent=1 // pred_check
      _
    $region3: #{cnn_forward.1} parent=1 // pred_check_branch
      %16 = sbr.rel (0) target = $region5
    $region4: #{cnn_forward.1} parent=1 // pred_region
      _
    $region5: #{cnn_forward.1} parent=1 // pred_fallthru
      _
    // Predicated region
    $region6: #{cnn_forward.1} parent=1 // pred_check
      _
    $region7: #{cnn_forward.1} parent=1 // pred_check_branch
      %18 = sbr.rel (0) target = $region9
    $region8: #{cnn_forward.1} parent=1 // pred_region
      _
    $region9: #{cnn_forward.1} parent=1 // pred_fallthru
      _
    // Predicated region
    $region10: #{cnn_forward.1} parent=1 // pred_check
      _
    $region11: #{cnn_forward.1} parent=1 // pred_check_branch
      %20 = sbr.rel (0) target = $region13
    $region12: #{cnn_forward.1} parent=1 // pred_region
      _
    $region13: #{cnn_forward.1} parent=1 // pred_fallthru
      _
    // Predicated region
    $region14: #{cnn_forward.1} parent=1 // pred_check
      _
    $region15: #{cnn_forward.1} parent=1 // pred_check_branch
      %22 = sbr.rel (0) target = $region17
    $region16: #{cnn_forward.1} parent=1 // pred_region
      _
    $region17: #{cnn_forward.1} parent=1 // pred_fallthru
      _
    // Predicated region
    $region18: #{cnn_forward.1} parent=1 // pred_check
      _
    $region19: #{cnn_forward.1} parent=1 // pred_check_branch
      %24 = sbr.rel (0) target = $region21
    $region20: #{cnn_forward.1} parent=1 // pred_region
      _
    $region21: #{cnn_forward.1} parent=1 // pred_fallthru
      _
    // Predicated region
    $region22: #{cnn_forward.1} parent=1 // pred_check
      _
    $region23: #{cnn_forward.1} parent=1 // pred_check_branch
      %26 = sbr.rel (0) target = $region25
    $region24: #{cnn_forward.1} parent=1 // pred_region
      %s28 = ssub.s32 14336, 14336
      %29 = vsyncadd [#allocation5], %s28
      %s30 = sshll.u32 [#allocation4], 4
      %s31 = int_to_ptr.vmem [resolvable:$true] %s30
      %36 = dma.hbm_to_vmem [thread:$0]  %s5, 14336, %s31, [#allocation5], 64, 64, 4
    $region25: #{cnn_forward.1} parent=1 // pred_fallthru
      _
    // Predicated region
    $region26: #{cnn_forward.1} parent=1 // pred_check
      _
    $region27: #{cnn_forward.1} parent=1 // pred_check_branch
      %38 = sbr.rel (0) target = $region29
    $region28: #{cnn_forward.1} parent=1 // pred_region
      _
    $region29: #{cnn_forward.1} parent=1 // pred_fallthru
      _
    // Predicated region
    $region30: #{cnn_forward.1} parent=1 // pred_check
      _
    $region31: #{cnn_forward.1} parent=1 // pred_check_branch
      %40 = sbr.rel (0) target = $region33
    $region32: #{cnn_forward.1} parent=1 // pred_region
      _
    $region33: #{cnn_forward.1} parent=1 // pred_fallthru
      _
    // Predicated region
    $region34: #{cnn_forward.1} parent=1 // pred_check
      _
    $region35: #{cnn_forward.1} parent=1 // pred_check_branch
      %42 = sbr.rel (0) target = $region37
    $region36: #{cnn_forward.1} parent=1 // pred_region
      _
    $region37: #{cnn_forward.1} parent=1 // pred_fallthru
      _
    // Predicated region
    $region38: #{cnn_forward.1} parent=1 // pred_check
      _
    $region39: #{cnn_forward.1} parent=1 // pred_check_branch
      %44 = sbr.rel (0) target = $region41
    $region40: #{cnn_forward.1} parent=1 // pred_region
      %45 = dma.done [#allocation5], 14336
    $region41: #{cnn_forward.1} parent=1 // pred_fallthru
      _
    %v47 = vld [vmem:[%s0] sm:$0xff]
    %v48 = vld [vmem:[%s0 + $0x8] sm:$0xff]
    %v49 = vld [vmem:[%s0 + $0x10] sm:$0xff]
    %v50 = vld [vmem:[%s0 + $0x18] sm:$0xff]
    %v51 = vld [vmem:[%s0 + $0x20] sm:$0xff]
    %v52 = vld [vmem:[%s0 + $0x28] sm:$0xff]
    %v53 = vld [vmem:[%s0 + $0x30] sm:$0xff]
    %v54 = vld [vmem:[%s1] sm:$0xff]
    %v55 = vld [vmem:[%s1 + $0x8] sm:$0xff]
    %v56 = vld [vmem:[%s1 + $0x10] sm:$0xff]
    %v57 = vld [vmem:[%s1 + $0x18] sm:$0xff]
    %v58 = vld [vmem:[%s1 + $0x20] sm:$0xff]
    %v59 = vld [vmem:[%s1 + $0x28] sm:$0xff]
    %v60 = vld [vmem:[%s1 + $0x30] sm:$0x33]
    %v61 = vld [vmem:[%s1 + $0x38] sm:$0x33]
    %v62 = vpack.c.bf16 %v48, %v47
    %v63 = vpack.c.bf16 %v50, %v49
    %v64 = vpack.c.bf16 %v52, %v51
    %v65 = vpack.c.bf16 %v53, %v53
    %s66 = scalar_lea.vmem %s0, 224
    %v67 = vld [vmem:[%s66] sm:$0xff]
    %v68 = vld [vmem:[%s66 + $0x8] sm:$0xff]
    %v69 = vld [vmem:[%s66 + $0x10] sm:$0xff]
    %v70 = vld [vmem:[%s66 + $0x18] sm:$0xff]
    %v71 = vld [vmem:[%s66 + $0x20] sm:$0xff]
    %v72 = vld [vmem:[%s66 + $0x28] sm:$0xff]
    %v73 = vld [vmem:[%s66 + $0x30] sm:$0xff]
    %s74 = scalar_lea.vmem %s1, 64
    %v75 = vld [vmem:[%s74] sm:$0xff]
    %v76 = vld [vmem:[%s74 + $0x8] sm:$0xff]
    %v77 = vld [vmem:[%s74 + $0x10] sm:$0xff]
    %v78 = vld [vmem:[%s74 + $0x18] sm:$0xff]
    %v79 = vld [vmem:[%s74 + $0x20] sm:$0xff]
    %v80 = vld [vmem:[%s74 + $0x28] sm:$0xff]
    %v81 = vld [vmem:[%s74 + $0x30] sm:$0x33]
    %v82 = vld [vmem:[%s74 + $0x38] sm:$0x33]
    %v83 = vpack.c.bf16 %v68, %v67
    %v84 = vpack.c.bf16 %v70, %v69
    %v85 = vpack.c.bf16 %v72, %v71
    %v86 = vpack.c.bf16 %v73, %v73
    %v95 = vunpack.c.l.b16 %v75
    %v96 = vunpack.c.h.b16 %v75
    %v97 = vunpack.c.l.b16 %v76
    %v98 = vunpack.c.h.b16 %v76
    %v99 = vunpack.c.l.b16 %v77
    %v100 = vunpack.c.h.b16 %v77
    %v101 = vunpack.c.l.b16 %v78
    %v102 = vunpack.c.h.b16 %v78
    %v103 = vunpack.c.l.b16 %v79
    %v104 = vunpack.c.h.b16 %v79
    %v105 = vunpack.c.l.b16 %v80
    %v106 = vunpack.c.h.b16 %v80
    %v107 = vunpack.c.l.b16 %v81
    %v108 = vunpack.c.h.b16 %v81
    %v109 = vunpack.c.l.b16 %v82
    %v110 = vunpack.c.h.b16 %v82
    %v111 = vpack.c.b16 %v99, %v95
    %v112 = vpack.c.b16 %v100, %v96
    %v113 = vpack.c.b16 %v101, %v97
    %v114 = vpack.c.b16 %v102, %v98
    %v115 = vpack.c.b16 %v107, %v103
    %v116 = vpack.c.b16 %v108, %v104
    %v117 = vpack.c.b16 %v109, %v105
    %v118 = vpack.c.b16 %v110, %v106
    %vm123 = vcmask 228352
    %v125 = vsel %vm123, %v83, 0
    %v128 = vsel %vm123, %v84, 0
    %v131 = vsel %vm123, %v85, 0
    %v134 = vsel %vm123, %v86, 0
    %vm136 = vcmask 1045504
    %v138 = vsel %vm136, %v115, 0
    %v141 = vsel %vm136, %v116, 0
    %v144 = vsel %vm136, %v117, 0
    %v147 = vsel %vm136, %v118, 0
    %149 = vmatprep.subr.bf16.mxu0 %v112
    %150 = vmatpush1.bf16.msra.mxu0 %v111
    %151 = vmatprep.subr.bf16.mxu0 %v141
    %152 = vmatpush1.bf16.msra.mxu0 %v138
    %153 = vmatprep.subr.bf16.mxu0 0
    %154 = vmatpush1.bf16.msra.mxu0 0
    %155 = vmatprep.subr.bf16.mxu0 0
    %156 = vmatpush1.bf16.msra.mxu0 0
    %157 = vmatprep.subr.bf16.mxu0 0
    %158 = vmatpush1.bf16.msra.mxu0 0
    %159 = vmatprep.subr.bf16.mxu0 0
    %160 = vmatpush1.bf16.msra.mxu0 0
    %161 = vmatprep.subr.bf16.mxu0 0
    %162 = vmatpush1.bf16.msra.mxu0 0
    %163 = vmatprep.subr.bf16.mxu0 0
    %164 = vmatpush1.bf16.msra.mxu0 0
    %165 = vmatprep.subr.bf16.mxu0 0
    %166 = vmatpush1.bf16.msra.mxu0 0
    %167 = vmatprep.subr.bf16.mxu0 0
    %168 = vmatpush1.bf16.msra.mxu0 0
    %169 = vmatprep.subr.bf16.mxu0 0
    %170 = vmatpush1.bf16.msra.mxu0 0
    %171 = vmatprep.subr.bf16.mxu0 0
    %172 = vmatpush1.bf16.msra.mxu0 0
    %173 = vmatprep.subr.bf16.mxu0 0
    %174 = vmatpush1.bf16.msra.mxu0 0
    %175 = vmatprep.subr.bf16.mxu0 0
    %176 = vmatpush1.bf16.msra.mxu0 0
    %177 = vmatprep.subr.bf16.mxu0 0
    %178 = vmatpush1.bf16.msra.mxu0 0
    %179 = vmatprep.subr.bf16.mxu0 0
    %180 = vmatpush1.bf16.msra.mxu0 0
    %181 = vmatprep.mubr.bf16.mxu0 0
    %182 = vmatmul.mubr.bf16.gmra.mrb[0].mxu0 %v125
    %v183 = vpop.f32.mrb[0].mxu0
    %v184 = vadd.f32 0.0, %v183
    %v185 = vpop.f32.mrb[0].mxu0
    %v186 = vadd.f32 0.0, %v185
    %v187 = vpop.f32.mrb[0].mxu0
    %v188 = vadd.f32 0.0, %v187
    %v189 = vpop.f32.mrb[0].mxu0
    %v190 = vadd.f32 0.0, %v189
    %191 = vmatprep.mubr.bf16.mxu0 0
    %192 = vmatmul.mubr.bf16.gmra.mrb[0].mxu0 %v128
    %v193 = vpop.f32.mrb[0].mxu0
    %v194 = vadd.f32 0.0, %v193
    %v195 = vpop.f32.mrb[0].mxu0
    %v196 = vadd.f32 0.0, %v195
    %v197 = vpop.f32.mrb[0].mxu0
    %v198 = vadd.f32 0.0, %v197
    %v199 = vpop.f32.mrb[0].mxu0
    %v200 = vadd.f32 0.0, %v199
    %201 = vmatprep.mubr.bf16.mxu0 0
    %202 = vmatmul.mubr.bf16.gmra.mrb[0].mxu0 %v131
    %v203 = vpop.f32.mrb[0].mxu0
    %v204 = vadd.f32 0.0, %v203
    %v205 = vpop.f32.mrb[0].mxu0
    %v206 = vadd.f32 0.0, %v205
    %v207 = vpop.f32.mrb[0].mxu0
    %v208 = vadd.f32 0.0, %v207
    %v209 = vpop.f32.mrb[0].mxu0
    %v210 = vadd.f32 0.0, %v209
    %211 = vmatprep.mubr.bf16.mxu0 0
    %212 = vmatmul.mubr.bf16.gmra.mrb[0].mxu0 %v134
    %v213 = vpop.f32.mrb[0].mxu0
    %v214 = vadd.f32 0.0, %v213
    %v215 = vpop.f32.mrb[0].mxu0
    %v216 = vadd.f32 0.0, %v215
    %v217 = vpop.f32.mrb[0].mxu0
    %v218 = vpop.f32.mrb[0].mxu0
    %219 = vdwg.mxu0
    %220 = vmatprep.subr.bf16.mxu0 %v114
    %221 = vmatpush1.bf16.msra.mxu0 %v113
    %222 = vmatprep.subr.bf16.mxu0 %v147
    %223 = vmatpush1.bf16.msra.mxu0 %v144
    %224 = vmatprep.subr.bf16.mxu0 0
    %225 = vmatpush1.bf16.msra.mxu0 0
    %226 = vmatprep.subr.bf16.mxu0 0
    %227 = vmatpush1.bf16.msra.mxu0 0
    %228 = vmatprep.subr.bf16.mxu0 0
    %229 = vmatpush1.bf16.msra.mxu0 0
    %230 = vmatprep.subr.bf16.mxu0 0
    %231 = vmatpush1.bf16.msra.mxu0 0
    %232 = vmatprep.subr.bf16.mxu0 0
    %233 = vmatpush1.bf16.msra.mxu0 0
    %234 = vmatprep.subr.bf16.mxu0 0
    %235 = vmatpush1.bf16.msra.mxu0 0
    %236 = vmatprep.subr.bf16.mxu0 0
    %237 = vmatpush1.bf16.msra.mxu0 0
    %238 = vmatprep.subr.bf16.mxu0 0
    %239 = vmatpush1.bf16.msra.mxu0 0
    %240 = vmatprep.subr.bf16.mxu0 0
    %241 = vmatpush1.bf16.msra.mxu0 0
    %242 = vmatprep.subr.bf16.mxu0 0
    %243 = vmatpush1.bf16.msra.mxu0 0
    %244 = vmatprep.subr.bf16.mxu0 0
    %245 = vmatpush1.bf16.msra.mxu0 0
    %246 = vmatprep.subr.bf16.mxu0 0
    %247 = vmatpush1.bf16.msra.mxu0 0
    %248 = vmatprep.subr.bf16.mxu0 0
    %249 = vmatpush1.bf16.msra.mxu0 0
    %250 = vmatprep.subr.bf16.mxu0 0
    %251 = vmatpush1.bf16.msra.mxu0 0
    %252 = vmatprep.mubr.bf16.mxu0 0
    %253 = vmatmul.mubr.bf16.gmra.mrb[0].mxu0 %v125
    %v254 = vpop.f32.mrb[0].mxu0
    %v255 = vadd.f32 0.0, %v254
    %v256 = vpop.f32.mrb[0].mxu0
    %v257 = vadd.f32 0.0, %v256
    %v258 = vpop.f32.mrb[0].mxu0
    %v259 = vadd.f32 0.0, %v258
    %v260 = vpop.f32.mrb[0].mxu0
    %v261 = vadd.f32 0.0, %v260
    %262 = vmatprep.mubr.bf16.mxu0 0
    %263 = vmatmul.mubr.bf16.gmra.mrb[0].mxu0 %v128
    %v264 = vpop.f32.mrb[0].mxu0
    %v265 = vadd.f32 0.0, %v264
    %v266 = vpop.f32.mrb[0].mxu0
    %v267 = vadd.f32 0.0, %v266
    %v268 = vpop.f32.mrb[0].mxu0
    %v269 = vadd.f32 0.0, %v268
    %v270 = vpop.f32.mrb[0].mxu0
    %v271 = vadd.f32 0.0, %v270
    %272 = vmatprep.mubr.bf16.mxu0 0
    %273 = vmatmul.mubr.bf16.gmra.mrb[0].mxu0 %v131
    %v274 = vpop.f32.mrb[0].mxu0
    %v275 = vadd.f32 0.0, %v274
    %v276 = vpop.f32.mrb[0].mxu0
    %v277 = vadd.f32 0.0, %v276
    %v278 = vpop.f32.mrb[0].mxu0
    %v279 = vadd.f32 0.0, %v278
    %v280 = vpop.f32.mrb[0].mxu0
    %v281 = vadd.f32 0.0, %v280
    %282 = vmatprep.mubr.bf16.mxu0 0
    %283 = vmatmul.mubr.bf16.gmra.mrb[0].mxu0 %v134
    %v284 = vpop.f32.mrb[0].mxu0
    %v285 = vadd.f32 0.0, %v284
    %v286 = vpop.f32.mrb[0].mxu0
    %v287 = vadd.f32 0.0, %v286
    %v288 = vpop.f32.mrb[0].mxu0
    %v289 = vpop.f32.mrb[0].mxu0
    %290 = vdwg.mxu0
    %v299 = vunpack.c.l.b16 %v54
    %v300 = vunpack.c.h.b16 %v54
    %v301 = vunpack.c.l.b16 %v55
    %v302 = vunpack.c.h.b16 %v55
    %v303 = vunpack.c.l.b16 %v56
    %v304 = vunpack.c.h.b16 %v56
    %v305 = vunpack.c.l.b16 %v57
    %v306 = vunpack.c.h.b16 %v57
    %v307 = vunpack.c.l.b16 %v58
    %v308 = vunpack.c.h.b16 %v58
    %v309 = vunpack.c.l.b16 %v59
    %v310 = vunpack.c.h.b16 %v59
    %v311 = vunpack.c.l.b16 %v60
    %v312 = vunpack.c.h.b16 %v60
    %v313 = vunpack.c.l.b16 %v61
    %v314 = vunpack.c.h.b16 %v61
    %v315 = vpack.c.b16 %v303, %v299
    %v316 = vpack.c.b16 %v304, %v300
    %v317 = vpack.c.b16 %v305, %v301
    %v318 = vpack.c.b16 %v306, %v302
    %v319 = vpack.c.b16 %v311, %v307
    %v320 = vpack.c.b16 %v312, %v308
    %v321 = vpack.c.b16 %v313, %v309
    %v322 = vpack.c.b16 %v314, %v310
    %v328 = vsel %vm123, %v62, 0
    %v331 = vsel %vm123, %v63, 0
    %v334 = vsel %vm123, %v64, 0
    %v337 = vsel %vm123, %v65, 0
    %v340 = vsel %vm136, %v319, 0
    %v343 = vsel %vm136, %v320, 0
    %v346 = vsel %vm136, %v321, 0
    %v349 = vsel %vm136, %v322, 0
    %351 = vmatprep.subr.bf16.mxu0 %v316
    %352 = vmatpush1.bf16.msra.mxu0 %v315
    %353 = vmatprep.subr.bf16.mxu0 %v343
    %354 = vmatpush1.bf16.msra.mxu0 %v340
    %355 = vmatprep.subr.bf16.mxu0 0
    %356 = vmatpush1.bf16.msra.mxu0 0
    %357 = vmatprep.subr.bf16.mxu0 0
    %358 = vmatpush1.bf16.msra.mxu0 0
    %359 = vmatprep.subr.bf16.mxu0 0
    %360 = vmatpush1.bf16.msra.mxu0 0
    %361 = vmatprep.subr.bf16.mxu0 0
    %362 = vmatpush1.bf16.msra.mxu0 0
    %363 = vmatprep.subr.bf16.mxu0 0
    %364 = vmatpush1.bf16.msra.mxu0 0
    %365 = vmatprep.subr.bf16.mxu0 0
    %366 = vmatpush1.bf16.msra.mxu0 0
    %367 = vmatprep.subr.bf16.mxu0 0
    %368 = vmatpush1.bf16.msra.mxu0 0
    %369 = vmatprep.subr.bf16.mxu0 0
    %370 = vmatpush1.bf16.msra.mxu0 0
    %371 = vmatprep.subr.bf16.mxu0 0
    %372 = vmatpush1.bf16.msra.mxu0 0
    %373 = vmatprep.subr.bf16.mxu0 0
    %374 = vmatpush1.bf16.msra.mxu0 0
    %375 = vmatprep.subr.bf16.mxu0 0
    %376 = vmatpush1.bf16.msra.mxu0 0
    %377 = vmatprep.subr.bf16.mxu0 0
    %378 = vmatpush1.bf16.msra.mxu0 0
    %379 = vmatprep.subr.bf16.mxu0 0
    %380 = vmatpush1.bf16.msra.mxu0 0
    %381 = vmatprep.subr.bf16.mxu0 0
    %382 = vmatpush1.bf16.msra.mxu0 0
    %383 = vmatprep.mubr.bf16.mxu0 0
    %384 = vmatmul.mubr.bf16.gmra.mrb[0].mxu0 %v328
    %v385 = vpop.f32.mrb[0].mxu0
    %v386 = vadd.f32 %v184, %v385
    %v387 = vpop.f32.mrb[0].mxu0
    %v388 = vadd.f32 %v186, %v387
    %v389 = vpop.f32.mrb[0].mxu0
    %v390 = vadd.f32 %v188, %v389
    %v391 = vpop.f32.mrb[0].mxu0
    %v392 = vadd.f32 %v190, %v391
    %393 = vmatprep.mubr.bf16.mxu0 0
    %394 = vmatmul.mubr.bf16.gmra.mrb[0].mxu0 %v331
    %v395 = vpop.f32.mrb[0].mxu0
    %v396 = vadd.f32 %v194, %v395
    %v397 = vpop.f32.mrb[0].mxu0
    %v398 = vadd.f32 %v196, %v397
    %v399 = vpop.f32.mrb[0].mxu0
    %v400 = vadd.f32 %v198, %v399
    %v401 = vpop.f32.mrb[0].mxu0
    %v402 = vadd.f32 %v200, %v401
    %403 = vmatprep.mubr.bf16.mxu0 0
    %404 = vmatmul.mubr.bf16.gmra.mrb[0].mxu0 %v334
    %v405 = vpop.f32.mrb[0].mxu0
    %v406 = vadd.f32 %v204, %v405
    %v407 = vpop.f32.mrb[0].mxu0
    %v408 = vadd.f32 %v206, %v407
    %v409 = vpop.f32.mrb[0].mxu0
    %v410 = vadd.f32 %v208, %v409
    %v411 = vpop.f32.mrb[0].mxu0
    %v412 = vadd.f32 %v210, %v411
    %413 = vmatprep.mubr.bf16.mxu0 0
    %414 = vmatmul.mubr.bf16.gmra.mrb[0].mxu0 %v337
    %v415 = vpop.f32.mrb[0].mxu0
    %v416 = vadd.f32 %v214, %v415
    %v417 = vpop.f32.mrb[0].mxu0
    %v418 = vadd.f32 %v216, %v417
    %v419 = vpop.f32.mrb[0].mxu0
    %v420 = vpop.f32.mrb[0].mxu0
    %421 = vdwg.mxu0
    %422 = vmatprep.subr.bf16.mxu0 %v318
    %423 = vmatpush1.bf16.msra.mxu0 %v317
    %424 = vmatprep.subr.bf16.mxu0 %v349
    %425 = vmatpush1.bf16.msra.mxu0 %v346
    %426 = vmatprep.subr.bf16.mxu0 0
    %427 = vmatpush1.bf16.msra.mxu0 0
    %428 = vmatprep.subr.bf16.mxu0 0
    %429 = vmatpush1.bf16.msra.mxu0 0
    %430 = vmatprep.subr.bf16.mxu0 0
    %431 = vmatpush1.bf16.msra.mxu0 0
    %432 = vmatprep.subr.bf16.mxu0 0
    %433 = vmatpush1.bf16.msra.mxu0 0
    %434 = vmatprep.subr.bf16.mxu0 0
    %435 = vmatpush1.bf16.msra.mxu0 0
    %436 = vmatprep.subr.bf16.mxu0 0
    %437 = vmatpush1.bf16.msra.mxu0 0
    %438 = vmatprep.subr.bf16.mxu0 0
    %439 = vmatpush1.bf16.msra.mxu0 0
    %440 = vmatprep.subr.bf16.mxu0 0
    %441 = vmatpush1.bf16.msra.mxu0 0
    %442 = vmatprep.subr.bf16.mxu0 0
    %443 = vmatpush1.bf16.msra.mxu0 0
    %444 = vmatprep.subr.bf16.mxu0 0
    %445 = vmatpush1.bf16.msra.mxu0 0
    %446 = vmatprep.subr.bf16.mxu0 0
    %447 = vmatpush1.bf16.msra.mxu0 0
    %448 = vmatprep.subr.bf16.mxu0 0
    %449 = vmatpush1.bf16.msra.mxu0 0
    %450 = vmatprep.subr.bf16.mxu0 0
    %451 = vmatpush1.bf16.msra.mxu0 0
    %452 = vmatprep.subr.bf16.mxu0 0
    %453 = vmatpush1.bf16.msra.mxu0 0
    %454 = vmatprep.mubr.bf16.mxu0 0
    %455 = vmatmul.mubr.bf16.gmra.mrb[0].mxu0 %v328
    %v456 = vpop.f32.mrb[0].mxu0
    %v457 = vadd.f32 %v255, %v456
    %v458 = vpop.f32.mrb[0].mxu0
    %v459 = vadd.f32 %v257, %v458
    %v460 = vpop.f32.mrb[0].mxu0
    %v461 = vadd.f32 %v259, %v460
    %v462 = vpop.f32.mrb[0].mxu0
    %v463 = vadd.f32 %v261, %v462
    %464 = vmatprep.mubr.bf16.mxu0 0
    %465 = vmatmul.mubr.bf16.gmra.mrb[0].mxu0 %v331
    %v466 = vpop.f32.mrb[0].mxu0
    %v467 = vadd.f32 %v265, %v466
    %v468 = vpop.f32.mrb[0].mxu0
    %v469 = vadd.f32 %v267, %v468
    %v470 = vpop.f32.mrb[0].mxu0
    %v471 = vadd.f32 %v269, %v470
    %v472 = vpop.f32.mrb[0].mxu0
    %v473 = vadd.f32 %v271, %v472
    %474 = vmatprep.mubr.bf16.mxu0 0
    %475 = vmatmul.mubr.bf16.gmra.mrb[0].mxu0 %v334
    %v476 = vpop.f32.mrb[0].mxu0
    %v477 = vadd.f32 %v275, %v476
    %v478 = vpop.f32.mrb[0].mxu0
    %v479 = vadd.f32 %v277, %v478
    %v480 = vpop.f32.mrb[0].mxu0
    %v481 = vadd.f32 %v279, %v480
    %v482 = vpop.f32.mrb[0].mxu0
    %v483 = vadd.f32 %v281, %v482
    %484 = vmatprep.mubr.bf16.mxu0 0
    %485 = vmatmul.mubr.bf16.gmra.mrb[0].mxu0 %v337
    %v486 = vpop.f32.mrb[0].mxu0
    %v487 = vadd.f32 %v285, %v486
    %v488 = vpop.f32.mrb[0].mxu0
    %v489 = vadd.f32 %v287, %v488
    %v490 = vpop.f32.mrb[0].mxu0
    %v491 = vpop.f32.mrb[0].mxu0
    %492 = vdwg.mxu0
    %s493 = scalar_lea.vmem %s0, 448
    %v494 = vld [vmem:[%s493] sm:$0xff]
    %v495 = vld [vmem:[%s493 + $0x8] sm:$0xff]
    %v496 = vld [vmem:[%s493 + $0x10] sm:$0xff]
    %v497 = vld [vmem:[%s493 + $0x18] sm:$0xff]
    %v498 = vld [vmem:[%s493 + $0x20] sm:$0xff]
    %v499 = vld [vmem:[%s493 + $0x28] sm:$0xff]
    %v500 = vld [vmem:[%s493 + $0x30] sm:$0xff]
    %s501 = scalar_lea.vmem %s1, 128
    %v502 = vld [vmem:[%s501] sm:$0xff]
    %v503 = vld [vmem:[%s501 + $0x8] sm:$0xff]
    %v504 = vld [vmem:[%s501 + $0x10] sm:$0xff]
    %v505 = vld [vmem:[%s501 + $0x18] sm:$0xff]
    %v506 = vld [vmem:[%s501 + $0x20] sm:$0xff]
    %v507 = vld [vmem:[%s501 + $0x28] sm:$0xff]
    %v508 = vld [vmem:[%s501 + $0x30] sm:$0x33]
    %v509 = vld [vmem:[%s501 + $0x38] sm:$0x33]
    %v510 = vpack.c.bf16 %v495, %v494
    %v511 = vpack.c.bf16 %v497, %v496
    %v512 = vpack.c.bf16 %v499, %v498
    %v513 = vpack.c.bf16 %v500, %v500
    %v522 = vunpack.c.l.b16 %v502
    %v523 = vunpack.c.h.b16 %v502
    %v524 = vunpack.c.l.b16 %v503
    %v525 = vunpack.c.h.b16 %v503
    %v526 = vunpack.c.l.b16 %v504
    %v527 = vunpack.c.h.b16 %v504
    %v528 = vunpack.c.l.b16 %v505
    %v529 = vunpack.c.h.b16 %v505
    %v530 = vunpack.c.l.b16 %v506
    %v531 = vunpack.c.h.b16 %v506
    %v532 = vunpack.c.l.b16 %v507
    %v533 = vunpack.c.h.b16 %v507
    %v534 = vunpack.c.l.b16 %v508
    %v535 = vunpack.c.h.b16 %v508
    %v536 = vunpack.c.l.b16 %v509
    %v537 = vunpack.c.h.b16 %v509
    %v538 = vpack.c.b16 %v526, %v522
    %v539 = vpack.c.b16 %v527, %v523
    %v540 = vpack.c.b16 %v528, %v524
    %v541 = vpack.c.b16 %v529, %v525
    %v542 = vpack.c.b16 %v534, %v530
    %v543 = vpack.c.b16 %v535, %v531
    %v544 = vpack.c.b16 %v536, %v532
    %v545 = vpack.c.b16 %v537, %v533
    %v551 = vsel %vm123, %v510, 0
    %v554 = vsel %vm123, %v511, 0
    %v557 = vsel %vm123, %v512, 0
    %v560 = vsel %vm123, %v513, 0
    %v563 = vsel %vm136, %v542, 0
    %v566 = vsel %vm136, %v543, 0
    %v569 = vsel %vm136, %v544, 0
    %v572 = vsel %vm136, %v545, 0
    %574 = vmatprep.subr.bf16.mxu0 %v539
    %575 = vmatpush1.bf16.msra.mxu0 %v538
    %576 = vmatprep.subr.bf16.mxu0 %v566
    %577 = vmatpush1.bf16.msra.mxu0 %v563
    %578 = vmatprep.subr.bf16.mxu0 0
    %579 = vmatpush1.bf16.msra.mxu0 0
    %580 = vmatprep.subr.bf16.mxu0 0
    %581 = vmatpush1.bf16.msra.mxu0 0
    %582 = vmatprep.subr.bf16.mxu0 0
    %583 = vmatpush1.bf16.msra.mxu0 0
    %584 = vmatprep.subr.bf16.mxu0 0
    %585 = vmatpush1.bf16.msra.mxu0 0
    %586 = vmatprep.subr.bf16.mxu0 0
    %587 = vmatpush1.bf16.msra.mxu0 0
    %588 = vmatprep.subr.bf16.mxu0 0
    %589 = vmatpush1.bf16.msra.mxu0 0
    %590 = vmatprep.subr.bf16.mxu0 0
    %591 = vmatpush1.bf16.msra.mxu0 0
    %592 = vmatprep.subr.bf16.mxu0 0
    %593 = vmatpush1.bf16.msra.mxu0 0
    %594 = vmatprep.subr.bf16.mxu0 0
    %595 = vmatpush1.bf16.msra.mxu0 0
    %596 = vmatprep.subr.bf16.mxu0 0
    %597 = vmatpush1.bf16.msra.mxu0 0
    %598 = vmatprep.subr.bf16.mxu0 0
    %599 = vmatpush1.bf16.msra.mxu0 0
    %600 = vmatprep.subr.bf16.mxu0 0
    %601 = vmatpush1.bf16.msra.mxu0 0
    %602 = vmatprep.subr.bf16.mxu0 0
    %603 = vmatpush1.bf16.msra.mxu0 0
    %604 = vmatprep.subr.bf16.mxu0 0
    %605 = vmatpush1.bf16.msra.mxu0 0
    %606 = vmatprep.mubr.bf16.mxu0 0
    %607 = vmatmul.mubr.bf16.gmra.mrb[0].mxu0 %v551
    %v608 = vpop.f32.mrb[0].mxu0
    %v609 = vadd.f32 0.0, %v608
    %v610 = vpop.f32.mrb[0].mxu0
    %v611 = vadd.f32 0.0, %v610
    %v612 = vpop.f32.mrb[0].mxu0
    %v613 = vadd.f32 0.0, %v612
    %v614 = vpop.f32.mrb[0].mxu0
    %v615 = vadd.f32 0.0, %v614
    %616 = vmatprep.mubr.bf16.mxu0 0
    %617 = vmatmul.mubr.bf16.gmra.mrb[0].mxu0 %v554
    %v618 = vpop.f32.mrb[0].mxu0
    %v619 = vadd.f32 0.0, %v618
    %v620 = vpop.f32.mrb[0].mxu0
    %v621 = vadd.f32 0.0, %v620
    %v622 = vpop.f32.mrb[0].mxu0
    %v623 = vadd.f32 0.0, %v622
    %v624 = vpop.f32.mrb[0].mxu0
    %v625 = vadd.f32 0.0, %v624
    %626 = vmatprep.mubr.bf16.mxu0 0
    %627 = vmatmul.mubr.bf16.gmra.mrb[0].mxu0 %v557
    %v628 = vpop.f32.mrb[0].mxu0
    %v629 = vadd.f32 0.0, %v628
    %v630 = vpop.f32.mrb[0].mxu0
    %v631 = vadd.f32 0.0, %v630
    %v632 = vpop.f32.mrb[0].mxu0
    %v633 = vadd.f32 0.0, %v632
    %v634 = vpop.f32.mrb[0].mxu0
    %v635 = vadd.f32 0.0, %v634
    %636 = vmatprep.mubr.bf16.mxu0 0
    %637 = vmatmul.mubr.bf16.gmra.mrb[0].mxu0 %v560
    %v638 = vpop.f32.mrb[0].mxu0
    %v639 = vadd.f32 0.0, %v638
    %v640 = vpop.f32.mrb[0].mxu0
    %v641 = vadd.f32 0.0, %v640
    %v642 = vpop.f32.mrb[0].mxu0
    %v643 = vpop.f32.mrb[0].mxu0
    %644 = vdwg.mxu0
    %645 = vmatprep.subr.bf16.mxu0 %v541
    %646 = vmatpush1.bf16.msra.mxu0 %v540
    %647 = vmatprep.subr.bf16.mxu0 %v572
    %648 = vmatpush1.bf16.msra.mxu0 %v569
    %649 = vmatprep.subr.bf16.mxu0 0
    %650 = vmatpush1.bf16.msra.mxu0 0
    %651 = vmatprep.subr.bf16.mxu0 0
    %652 = vmatpush1.bf16.msra.mxu0 0
    %653 = vmatprep.subr.bf16.mxu0 0
    %654 = vmatpush1.bf16.msra.mxu0 0
    %655 = vmatprep.subr.bf16.mxu0 0
    %656 = vmatpush1.bf16.msra.mxu0 0
    %657 = vmatprep.subr.bf16.mxu0 0
    %658 = vmatpush1.bf16.msra.mxu0 0
    %659 = vmatprep.subr.bf16.mxu0 0
    %660 = vmatpush1.bf16.msra.mxu0 0
    %661 = vmatprep.subr.bf16.mxu0 0
    %662 = vmatpush1.bf16.msra.mxu0 0
    %663 = vmatprep.subr.bf16.mxu0 0
    %664 = vmatpush1.bf16.msra.mxu0 0
    %665 = vmatprep.subr.bf16.mxu0 0
    %666 = vmatpush1.bf16.msra.mxu0 0
    %667 = vmatprep.subr.bf16.mxu0 0
    %668 = vmatpush1.bf16.msra.mxu0 0
    %669 = vmatprep.subr.bf16.mxu0 0
    %670 = vmatpush1.bf16.msra.mxu0 0
    %671 = vmatprep.subr.bf16.mxu0 0
    %672 = vmatpush1.bf16.msra.mxu0 0
    %673 = vmatprep.subr.bf16.mxu0 0
    %674 = vmatpush1.bf16.msra.mxu0 0
    %675 = vmatprep.subr.bf16.mxu0 0
    %676 = vmatpush1.bf16.msra.mxu0 0
    %677 = vmatprep.mubr.bf16.mxu0 0
    %678 = vmatmul.mubr.bf16.gmra.mrb[0].mxu0 %v551
    %v679 = vpop.f32.mrb[0].mxu0
    %v680 = vadd.f32 0.0, %v679
    %v681 = vpop.f32.mrb[0].mxu0
    %v682 = vadd.f32 0.0, %v681
    %v683 = vpop.f32.mrb[0].mxu0
    %v684 = vadd.f32 0.0, %v683
    %v685 = vpop.f32.mrb[0].mxu0
    %v686 = vadd.f32 0.0, %v685
    %687 = vmatprep.mubr.bf16.mxu0 0
    %688 = vmatmul.mubr.bf16.gmra.mrb[0].mxu0 %v554
    %v689 = vpop.f32.mrb[0].mxu0
    %v690 = vadd.f32 0.0, %v689
    %v691 = vpop.f32.mrb[0].mxu0
    %v692 = vadd.f32 0.0, %v691
    %v693 = vpop.f32.mrb[0].mxu0
    %v694 = vadd.f32 0.0, %v693
    %v695 = vpop.f32.mrb[0].mxu0
    %v696 = vadd.f32 0.0, %v695
    %697 = vmatprep.mubr.bf16.mxu0 0
    %698 = vmatmul.mubr.bf16.gmra.mrb[0].mxu0 %v557
    %v699 = vpop.f32.mrb[0].mxu0
    %v700 = vadd.f32 0.0, %v699
    %v701 = vpop.f32.mrb[0].mxu0
    %v702 = vadd.f32 0.0, %v701
    %v703 = vpop.f32.mrb[0].mxu0
    %v704 = vadd.f32 0.0, %v703
    %v705 = vpop.f32.mrb[0].mxu0
    %v706 = vadd.f32 0.0, %v705
    %707 = vmatprep.mubr.bf16.mxu0 0
    %708 = vmatmul.mubr.bf16.gmra.mrb[0].mxu0 %v560
    %v709 = vpop.f32.mrb[0].mxu0
    %v710 = vadd.f32 0.0, %v709
    %v711 = vpop.f32.mrb[0].mxu0
    %v712 = vadd.f32 0.0, %v711
    %v713 = vpop.f32.mrb[0].mxu0
    %v714 = vpop.f32.mrb[0].mxu0
    %715 = vdwg.mxu0
    %v716 = vadd.f32 %v386, %v609
    %v717 = vadd.f32 %v388, %v611
    %v718 = vadd.f32 %v457, %v680
    %v719 = vadd.f32 %v459, %v682
    %v720 = vadd.f32 %v390, %v613
    %v721 = vadd.f32 %v392, %v615
    %v722 = vadd.f32 %v461, %v684
    %v723 = vadd.f32 %v463, %v686
    %v724 = vadd.f32 %v396, %v619
    %v725 = vadd.f32 %v398, %v621
    %v726 = vadd.f32 %v467, %v690
    %v727 = vadd.f32 %v469, %v692
    %v728 = vadd.f32 %v400, %v623
    %v729 = vadd.f32 %v402, %v625
    %v730 = vadd.f32 %v471, %v694
    %v731 = vadd.f32 %v473, %v696
    %v732 = vadd.f32 %v406, %v629
    %v733 = vadd.f32 %v408, %v631
    %v734 = vadd.f32 %v477, %v700
    %v735 = vadd.f32 %v479, %v702
    %v736 = vadd.f32 %v410, %v633
    %v737 = vadd.f32 %v412, %v635
    %v738 = vadd.f32 %v481, %v704
    %v739 = vadd.f32 %v483, %v706
    %v740 = vadd.f32 %v416, %v639
    %v741 = vadd.f32 %v418, %v641
    %v742 = vadd.f32 %v487, %v710
    %v743 = vadd.f32 %v489, %v712
    %v744 = vld [vmem:[%s2] sm:$0xf]
    %v746 = vlaneseq
    %v747 = vshrl.u32 %v746, 7
    %v748 = vsub.s32 0, %v747
    %v749 = vrot.slane %v744, %v748
    %v750 = vlaneseq
    %v751 = vshrl.u32 %v750, 7
    %v752 = vsub.s32 1, %v751
    %v753 = vrot.slane %v744, %v752
    %v754 = vlaneseq
    %v755 = vshrl.u32 %v754, 7
    %v756 = vsub.s32 2, %v755
    %v757 = vrot.slane %v744, %v756
    %v758 = vlaneseq
    %v759 = vshrl.u32 %v758, 7
    %v760 = vsub.s32 3, %v759
    %v761 = vrot.slane %v744, %v760
    %v766 = vadd.f32 %v716, %v749
    %v767 = vadd.f32 %v717, %v753
    %v768 = vadd.f32 %v718, %v757
    %v769 = vadd.f32 %v719, %v761
    %v770 = vadd.f32 %v720, %v749
    %v771 = vadd.f32 %v721, %v753
    %v772 = vadd.f32 %v722, %v757
    %v773 = vadd.f32 %v723, %v761
    %v774 = vadd.f32 %v724, %v749
    %v775 = vadd.f32 %v725, %v753
    %v776 = vadd.f32 %v726, %v757
    %v777 = vadd.f32 %v727, %v761
    %v778 = vadd.f32 %v728, %v749
    %v779 = vadd.f32 %v729, %v753
    %v780 = vadd.f32 %v730, %v757
    %v781 = vadd.f32 %v731, %v761
    %v782 = vadd.f32 %v732, %v749
    %v783 = vadd.f32 %v733, %v753
    %v784 = vadd.f32 %v734, %v757
    %v785 = vadd.f32 %v735, %v761
    %v786 = vadd.f32 %v736, %v749
    %v787 = vadd.f32 %v737, %v753
    %v788 = vadd.f32 %v738, %v757
    %v789 = vadd.f32 %v739, %v761
    %v790 = vadd.f32 %v740, %v749
    %v791 = vadd.f32 %v741, %v753
    %v792 = vadd.f32 %v742, %v757
    %v793 = vadd.f32 %v743, %v761
    %v794 = vmax.f32 %v766, 0.0
    %v795 = vmax.f32 %v767, 0.0
    %v796 = vmax.f32 %v768, 0.0
    %v797 = vmax.f32 %v769, 0.0
    %v798 = vmax.f32 %v770, 0.0
    %v799 = vmax.f32 %v771, 0.0
    %v800 = vmax.f32 %v772, 0.0
    %v801 = vmax.f32 %v773, 0.0
    %v802 = vmax.f32 %v774, 0.0
    %v803 = vmax.f32 %v775, 0.0
    %v804 = vmax.f32 %v776, 0.0
    %v805 = vmax.f32 %v777, 0.0
    %v806 = vmax.f32 %v778, 0.0
    %v807 = vmax.f32 %v779, 0.0
    %v808 = vmax.f32 %v780, 0.0
    %v809 = vmax.f32 %v781, 0.0
    %v810 = vmax.f32 %v782, 0.0
    %v811 = vmax.f32 %v783, 0.0
    %v812 = vmax.f32 %v784, 0.0
    %v813 = vmax.f32 %v785, 0.0
    %v814 = vmax.f32 %v786, 0.0
    %v815 = vmax.f32 %v787, 0.0
    %v816 = vmax.f32 %v788, 0.0
    %v817 = vmax.f32 %v789, 0.0
    %v818 = vmax.f32 %v790, 0.0
    %v819 = vmax.f32 %v791, 0.0
    %v820 = vmax.f32 %v792, 0.0
    %v821 = vmax.f32 %v793, 0.0
    %s822 = scalar_lea.vmem %s0, 56
    %v823 = vld [vmem:[%s822] sm:$0xff]
    %v824 = vld [vmem:[%s822 + $0x8] sm:$0xff]
    %v825 = vld [vmem:[%s822 + $0x10] sm:$0xff]
    %v826 = vld [vmem:[%s822 + $0x18] sm:$0xff]
    %v827 = vld [vmem:[%s822 + $0x20] sm:$0xff]
    %v828 = vld [vmem:[%s822 + $0x28] sm:$0xff]
    %v829 = vld [vmem:[%s822 + $0x30] sm:$0xff]
    %v830 = vpack.c.bf16 %v824, %v823
    %v831 = vpack.c.bf16 %v826, %v825
    %v832 = vpack.c.bf16 %v828, %v827
    %v833 = vpack.c.bf16 %v829, %v829
    %s834 = scalar_lea.vmem %s0, 280
    %v835 = vld [vmem:[%s834] sm:$0xff]
    %v836 = vld [vmem:[%s834 + $0x8] sm:$0xff]
    %v837 = vld [vmem:[%s834 + $0x10] sm:$0xff]
    %v838 = vld [vmem:[%s834 + $0x18] sm:$0xff]
    %v839 = vld [vmem:[%s834 + $0x20] sm:$0xff]
    %v840 = vld [vmem:[%s834 + $0x28] sm:$0xff]
    %v841 = vld [vmem:[%s834 + $0x30] sm:$0xff]
    %v842 = vpack.c.bf16 %v836, %v835
    %v843 = vpack.c.bf16 %v838, %v837
    %v844 = vpack.c.bf16 %v840, %v839
    %v845 = vpack.c.bf16 %v841, %v841
    %v847 = vsel %vm123, %v842, 0
    %v850 = vsel %vm123, %v843, 0
    %v853 = vsel %vm123, %v844, 0
    %v856 = vsel %vm123, %v845, 0
    %858 = vmatprep.subr.bf16.mxu0 %v112
    %859 = vmatpush1.bf16.msra.mxu0 %v111
    %860 = vmatprep.subr.bf16.mxu0 %v141
    %861 = vmatpush1.bf16.msra.mxu0 %v138
    %862 = vmatprep.subr.bf16.mxu0 0
    %863 = vmatpush1.bf16.msra.mxu0 0
    %864 = vmatprep.subr.bf16.mxu0 0
    %865 = vmatpush1.bf16.msra.mxu0 0
    %866 = vmatprep.subr.bf16.mxu0 0
    %867 = vmatpush1.bf16.msra.mxu0 0
    %868 = vmatprep.subr.bf16.mxu0 0
    %869 = vmatpush1.bf16.msra.mxu0 0
    %870 = vmatprep.subr.bf16.mxu0 0
    %871 = vmatpush1.bf16.msra.mxu0 0
    %872 = vmatprep.subr.bf16.mxu0 0
    %873 = vmatpush1.bf16.msra.mxu0 0
    %874 = vmatprep.subr.bf16.mxu0 0
    %875 = vmatpush1.bf16.msra.mxu0 0
    %876 = vmatprep.subr.bf16.mxu0 0
    %877 = vmatpush1.bf16.msra.mxu0 0
    %878 = vmatprep.subr.bf16.mxu0 0
    %879 = vmatpush1.bf16.msra.mxu0 0
    %880 = vmatprep.subr.bf16.mxu0 0
    %881 = vmatpush1.bf16.msra.mxu0 0
    %882 = vmatprep.subr.bf16.mxu0 0
    %883 = vmatpush1.bf16.msra.mxu0 0
    %884 = vmatprep.subr.bf16.mxu0 0
    %885 = vmatpush1.bf16.msra.mxu0 0
    %886 = vmatprep.subr.bf16.mxu0 0
    %887 = vmatpush1.bf16.msra.mxu0 0
    %888 = vmatprep.subr.bf16.mxu0 0
    %889 = vmatpush1.bf16.msra.mxu0 0
    %890 = vmatprep.mubr.bf16.mxu0 0
    %891 = vmatmul.mubr.bf16.gmra.mrb[0].mxu0 %v847
    %v892 = vpop.f32.mrb[0].mxu0
    %v893 = vadd.f32 0.0, %v892
    %v894 = vpop.f32.mrb[0].mxu0
    %v895 = vadd.f32 0.0, %v894
    %v896 = vpop.f32.mrb[0].mxu0
    %v897 = vadd.f32 0.0, %v896
    %v898 = vpop.f32.mrb[0].mxu0
    %v899 = vadd.f32 0.0, %v898
    %900 = vmatprep.mubr.bf16.mxu0 0
    %901 = vmatmul.mubr.bf16.gmra.mrb[0].mxu0 %v850
    %v902 = vpop.f32.mrb[0].mxu0
    %v903 = vadd.f32 0.0, %v902
    %v904 = vpop.f32.mrb[0].mxu0
    %v905 = vadd.f32 0.0, %v904
    %v906 = vpop.f32.mrb[0].mxu0
    %v907 = vadd.f32 0.0, %v906
    %v908 = vpop.f32.mrb[0].mxu0
    %v909 = vadd.f32 0.0, %v908
    %910 = vmatprep.mubr.bf16.mxu0 0
    %911 = vmatmul.mubr.bf16.gmra.mrb[0].mxu0 %v853
    %v912 = vpop.f32.mrb[0].mxu0
    %v913 = vadd.f32 0.0, %v912
    %v914 = vpop.f32.mrb[0].mxu0
    %v915 = vadd.f32 0.0, %v914
    %v916 = vpop.f32.mrb[0].mxu0
    %v917 = vadd.f32 0.0, %v916
    %v918 = vpop.f32.mrb[0].mxu0
    %v919 = vadd.f32 0.0, %v918
    %920 = vmatprep.mubr.bf16.mxu0 0
    %921 = vmatmul.mubr.bf16.gmra.mrb[0].mxu0 %v856
    %v922 = vpop.f32.mrb[0].mxu0
    %v923 = vadd.f32 0.0, %v922
    %v924 = vpop.f32.mrb[0].mxu0
    %v925 = vadd.f32 0.0, %v924
    %v926 = vpop.f32.mrb[0].mxu0
    %v927 = vpop.f32.mrb[0].mxu0
    %928 = vdwg.mxu0
    %929 = vmatprep.subr.bf16.mxu0 %v114
    %930 = vmatpush1.bf16.msra.mxu0 %v113
    %931 = vmatprep.subr.bf16.mxu0 %v147
    %932 = vmatpush1.bf16.msra.mxu0 %v144
    %933 = vmatprep.subr.bf16.mxu0 0
    %934 = vmatpush1.bf16.msra.mxu0 0
    %935 = vmatprep.subr.bf16.mxu0 0
    %936 = vmatpush1.bf16.msra.mxu0 0
    %937 = vmatprep.subr.bf16.mxu0 0
    %938 = vmatpush1.bf16.msra.mxu0 0
    %939 = vmatprep.subr.bf16.mxu0 0
    %940 = vmatpush1.bf16.msra.mxu0 0
    %941 = vmatprep.subr.bf16.mxu0 0
    %942 = vmatpush1.bf16.msra.mxu0 0
    %943 = vmatprep.subr.bf16.mxu0 0
    %944 = vmatpush1.bf16.msra.mxu0 0
    %945 = vmatprep.subr.bf16.mxu0 0
    %946 = vmatpush1.bf16.msra.mxu0 0
    %947 = vmatprep.subr.bf16.mxu0 0
    %948 = vmatpush1.bf16.msra.mxu0 0
    %949 = vmatprep.subr.bf16.mxu0 0
    %950 = vmatpush1.bf16.msra.mxu0 0
    %951 = vmatprep.subr.bf16.mxu0 0
    %952 = vmatpush1.bf16.msra.mxu0 0
    %953 = vmatprep.subr.bf16.mxu0 0
    %954 = vmatpush1.bf16.msra.mxu0 0
    %955 = vmatprep.subr.bf16.mxu0 0
    %956 = vmatpush1.bf16.msra.mxu0 0
    %957 = vmatprep.subr.bf16.mxu0 0
    %958 = vmatpush1.bf16.msra.mxu0 0
    %959 = vmatprep.subr.bf16.mxu0 0
    %960 = vmatpush1.bf16.msra.mxu0 0
    %961 = vmatprep.mubr.bf16.mxu0 0
    %962 = vmatmul.mubr.bf16.gmra.mrb[0].mxu0 %v847
    %v963 = vpop.f32.mrb[0].mxu0
    %v964 = vadd.f32 0.0, %v963
    %v965 = vpop.f32.mrb[0].mxu0
    %v966 = vadd.f32 0.0, %v965
    %v967 = vpop.f32.mrb[0].mxu0
    %v968 = vadd.f32 0.0, %v967
    %v969 = vpop.f32.mrb[0].mxu0
    %v970 = vadd.f32 0.0, %v969
    %971 = vmatprep.mubr.bf16.mxu0 0
    %972 = vmatmul.mubr.bf16.gmra.mrb[0].mxu0 %v850
    %v973 = vpop.f32.mrb[0].mxu0
    %v974 = vadd.f32 0.0, %v973
    %v975 = vpop.f32.mrb[0].mxu0
    %v976 = vadd.f32 0.0, %v975
    %v977 = vpop.f32.mrb[0].mxu0
    %v978 = vadd.f32 0.0, %v977
    %v979 = vpop.f32.mrb[0].mxu0
    %v980 = vadd.f32 0.0, %v979
    %981 = vmatprep.mubr.bf16.mxu0 0
    %982 = vmatmul.mubr.bf16.gmra.mrb[0].mxu0 %v853
    %v983 = vpop.f32.mrb[0].mxu0
    %v984 = vadd.f32 0.0, %v983
    %v985 = vpop.f32.mrb[0].mxu0
    %v986 = vadd.f32 0.0, %v985
    %v987 = vpop.f32.mrb[0].mxu0
    %v988 = vadd.f32 0.0, %v987
    %v989 = vpop.f32.mrb[0].mxu0
    %v990 = vadd.f32 0.0, %v989
    %991 = vmatprep.mubr.bf16.mxu0 0
    %992 = vmatmul.mubr.bf16.gmra.mrb[0].mxu0 %v856
    %v993 = vpop.f32.mrb[0].mxu0
    %v994 = vadd.f32 0.0, %v993
    %v995 = vpop.f32.mrb[0].mxu0
    %v996 = vadd.f32 0.0, %v995
    %v997 = vpop.f32.mrb[0].mxu0
    %v998 = vpop.f32.mrb[0].mxu0
    %999 = vdwg.mxu0
    %v1001 = vsel %vm123, %v830, 0
    %v1004 = vsel %vm123, %v831, 0
    %v1007 = vsel %vm123, %v832, 0
    %v1010 = vsel %vm123, %v833, 0
    %1012 = vmatprep.subr.bf16.mxu0 %v316
    %1013 = vmatpush1.bf16.msra.mxu0 %v315
    %1014 = vmatprep.subr.bf16.mxu0 %v343
    %1015 = vmatpush1.bf16.msra.mxu0 %v340
    %1016 = vmatprep.subr.bf16.mxu0 0
    %1017 = vmatpush1.bf16.msra.mxu0 0
    %1018 = vmatprep.subr.bf16.mxu0 0
    %1019 = vmatpush1.bf16.msra.mxu0 0
    %1020 = vmatprep.subr.bf16.mxu0 0
    %1021 = vmatpush1.bf16.msra.mxu0 0
    %1022 = vmatprep.subr.bf16.mxu0 0
    %1023 = vmatpush1.bf16.msra.mxu0 0
    %1024 = vmatprep.subr.bf16.mxu0 0
    %1025 = vmatpush1.bf16.msra.mxu0 0
    %1026 = vmatprep.subr.bf16.mxu0 0
    %1027 = vmatpush1.bf16.msra.mxu0 0
    %1028 = vmatprep.subr.bf16.mxu0 0
    %1029 = vmatpush1.bf16.msra.mxu0 0
    %1030 = vmatprep.subr.bf16.mxu0 0
    %1031 = vmatpush1.bf16.msra.mxu0 0
    %1032 = vmatprep.subr.bf16.mxu0 0
    %1033 = vmatpush1.bf16.msra.mxu0 0
    %1034 = vmatprep.subr.bf16.mxu0 0
    %1035 = vmatpush1.bf16.msra.mxu0 0
    %1036 = vmatprep.subr.bf16.mxu0 0
    %1037 = vmatpush1.bf16.msra.mxu0 0
    %1038 = vmatprep.subr.bf16.mxu0 0
    %1039 = vmatpush1.bf16.msra.mxu0 0
    %1040 = vmatprep.subr.bf16.mxu0 0
    %1041 = vmatpush1.bf16.msra.mxu0 0
    %1042 = vmatprep.subr.bf16.mxu0 0
    %1043 = vmatpush1.bf16.msra.mxu0 0
    %1044 = vmatprep.mubr.bf16.mxu0 0
    %1045 = vmatmul.mubr.bf16.gmra.mrb[0].mxu0 %v1001
    %v1046 = vpop.f32.mrb[0].mxu0
    %v1047 = vadd.f32 %v893, %v1046
    %v1048 = vpop.f32.mrb[0].mxu0
    %v1049 = vadd.f32 %v895, %v1048
    %v1050 = vpop.f32.mrb[0].mxu0
    %v1051 = vadd.f32 %v897, %v1050
    %v1052 = vpop.f32.mrb[0].mxu0
    %v1053 = vadd.f32 %v899, %v1052
    %1054 = vmatprep.mubr.bf16.mxu0 0
    %1055 = vmatmul.mubr.bf16.gmra.mrb[0].mxu0 %v1004
    %v1056 = vpop.f32.mrb[0].mxu0
    %v1057 = vadd.f32 %v903, %v1056
    %v1058 = vpop.f32.mrb[0].mxu0
    %v1059 = vadd.f32 %v905, %v1058
    %v1060 = vpop.f32.mrb[0].mxu0
    %v1061 = vadd.f32 %v907, %v1060
    %v1062 = vpop.f32.mrb[0].mxu0
    %v1063 = vadd.f32 %v909, %v1062
    %1064 = vmatprep.mubr.bf16.mxu0 0
    %1065 = vmatmul.mubr.bf16.gmra.mrb[0].mxu0 %v1007
    %v1066 = vpop.f32.mrb[0].mxu0
    %v1067 = vadd.f32 %v913, %v1066
    %v1068 = vpop.f32.mrb[0].mxu0
    %v1069 = vadd.f32 %v915, %v1068
    %v1070 = vpop.f32.mrb[0].mxu0
    %v1071 = vadd.f32 %v917, %v1070
    %v1072 = vpop.f32.mrb[0].mxu0
    %v1073 = vadd.f32 %v919, %v1072
    %1074 = vmatprep.mubr.bf16.mxu0 0
    %1075 = vmatmul.mubr.bf16.gmra.mrb[0].mxu0 %v1010
    %v1076 = vpop.f32.mrb[0].mxu0
    %v1077 = vadd.f32 %v923, %v1076
    %v1078 = vpop.f32.mrb[0].mxu0
    %v1079 = vadd.f32 %v925, %v1078
    %v1080 = vpop.f32.mrb[0].mxu0
    %v1081 = vpop.f32.mrb[0].mxu0
    %1082 = vdwg.mxu0
    %1083 = vmatprep.subr.bf16.mxu0 %v318
    %1084 = vmatpush1.bf16.msra.mxu0 %v317
    %1085 = vmatprep.subr.bf16.mxu0 %v349
    %1086 = vmatpush1.bf16.msra.mxu0 %v346
    %1087 = vmatprep.subr.bf16.mxu0 0
    %1088 = vmatpush1.bf16.msra.mxu0 0
    %1089 = vmatprep.subr.bf16.mxu0 0
    %1090 = vmatpush1.bf16.msra.mxu0 0
    %1091 = vmatprep.subr.bf16.mxu0 0
    %1092 = vmatpush1.bf16.msra.mxu0 0
    %1093 = vmatprep.subr.bf16.mxu0 0
    %1094 = vmatpush1.bf16.msra.mxu0 0
    %1095 = vmatprep.subr.bf16.mxu0 0
    %1096 = vmatpush1.bf16.msra.mxu0 0
    %1097 = vmatprep.subr.bf16.mxu0 0
    %1098 = vmatpush1.bf16.msra.mxu0 0
    %1099 = vmatprep.subr.bf16.mxu0 0
    %1100 = vmatpush1.bf16.msra.mxu0 0
    %1101 = vmatprep.subr.bf16.mxu0 0
    %1102 = vmatpush1.bf16.msra.mxu0 0
    %1103 = vmatprep.subr.bf16.mxu0 0
    %1104 = vmatpush1.bf16.msra.mxu0 0
    %1105 = vmatprep.subr.bf16.mxu0 0
    %1106 = vmatpush1.bf16.msra.mxu0 0
    %1107 = vmatprep.subr.bf16.mxu0 0
    %1108 = vmatpush1.bf16.msra.mxu0 0
    %1109 = vmatprep.subr.bf16.mxu0 0
    %1110 = vmatpush1.bf16.msra.mxu0 0
    %1111 = vmatprep.subr.bf16.mxu0 0
    %1112 = vmatpush1.bf16.msra.mxu0 0
    %1113 = vmatprep.subr.bf16.mxu0 0
    %1114 = vmatpush1.bf16.msra.mxu0 0
    %1115 = vmatprep.mubr.bf16.mxu0 0
    %1116 = vmatmul.mubr.bf16.gmra.mrb[0].mxu0 %v1001
    %v1117 = vpop.f32.mrb[0].mxu0
    %v1118 = vadd.f32 %v964, %v1117
    %v1119 = vpop.f32.mrb[0].mxu0
    %v1120 = vadd.f32 %v966, %v1119
    %v1121 = vpop.f32.mrb[0].mxu0
    %v1122 = vadd.f32 %v968, %v1121
    %v1123 = vpop.f32.mrb[0].mxu0
    %v1124 = vadd.f32 %v970, %v1123
    %1125 = vmatprep.mubr.bf16.mxu0 0
    %1126 = vmatmul.mubr.bf16.gmra.mrb[0].mxu0 %v1004
    %v1127 = vpop.f32.mrb[0].mxu0
    %v1128 = vadd.f32 %v974, %v1127
    %v1129 = vpop.f32.mrb[0].mxu0
    %v1130 = vadd.f32 %v976, %v1129
    %v1131 = vpop.f32.mrb[0].mxu0
    %v1132 = vadd.f32 %v978, %v1131
    %v1133 = vpop.f32.mrb[0].mxu0
    %v1134 = vadd.f32 %v980, %v1133
    %1135 = vmatprep.mubr.bf16.mxu0 0
    %1136 = vmatmul.mubr.bf16.gmra.mrb[0].mxu0 %v1007
    %v1137 = vpop.f32.mrb[0].mxu0
    %v1138 = vadd.f32 %v984, %v1137
    %v1139 = vpop.f32.mrb[0].mxu0
    %v1140 = vadd.f32 %v986, %v1139
    %v1141 = vpop.f32.mrb[0].mxu0
    %v1142 = vadd.f32 %v988, %v1141
    %v1143 = vpop.f32.mrb[0].mxu0
    %v1144 = vadd.f32 %v990, %v1143
    %1145 = vmatprep.mubr.bf16.mxu0 0
    %1146 = vmatmul.mubr.bf16.gmra.mrb[0].mxu0 %v1010
    %v1147 = vpop.f32.mrb[0].mxu0
    %v1148 = vadd.f32 %v994, %v1147
    %v1149 = vpop.f32.mrb[0].mxu0
    %v1150 = vadd.f32 %v996, %v1149
    %v1151 = vpop.f32.mrb[0].mxu0
    %v1152 = vpop.f32.mrb[0].mxu0
    %1153 = vdwg.mxu0
    %s1154 = scalar_lea.vmem %s0, 504
    %v1155 = vld [vmem:[%s1154] sm:$0xff]
    %v1156 = vld [vmem:[%s1154 + $0x8] sm:$0xff]
    %v1157 = vld [vmem:[%s1154 + $0x10] sm:$0xff]
    %v1158 = vld [vmem:[%s1154 + $0x18] sm:$0xff]
    %v1159 = vld [vmem:[%s1154 + $0x20] sm:$0xff]
    %v1160 = vld [vmem:[%s1154 + $0x28] sm:$0xff]
    %v1161 = vld [vmem:[%s1154 + $0x30] sm:$0xff]
    %v1162 = vpack.c.bf16 %v1156, %v1155
    %v1163 = vpack.c.bf16 %v1158, %v1157
    %v1164 = vpack.c.bf16 %v1160, %v1159
    %v1165 = vpack.c.bf16 %v1161, %v1161
    %v1167 = vsel %vm123, %v1162, 0
    %v1170 = vsel %vm123, %v1163, 0
    %v1173 = vsel %vm123, %v1164, 0
    %v1176 = vsel %vm123, %v1165, 0
    %1178 = vmatprep.subr.bf16.mxu0 %v539
    %1179 = vmatpush1.bf16.msra.mxu0 %v538
    %1180 = vmatprep.subr.bf16.mxu0 %v566
    %1181 = vmatpush1.bf16.msra.mxu0 %v563
    %1182 = vmatprep.subr.bf16.mxu0 0
    %1183 = vmatpush1.bf16.msra.mxu0 0
    %1184 = vmatprep.subr.bf16.mxu0 0
    %1185 = vmatpush1.bf16.msra.mxu0 0
    %1186 = vmatprep.subr.bf16.mxu0 0
    %1187 = vmatpush1.bf16.msra.mxu0 0
    %1188 = vmatprep.subr.bf16.mxu0 0
    %1189 = vmatpush1.bf16.msra.mxu0 0
    %1190 = vmatprep.subr.bf16.mxu0 0
    %1191 = vmatpush1.bf16.msra.mxu0 0
    %1192 = vmatprep.subr.bf16.mxu0 0
    %1193 = vmatpush1.bf16.msra.mxu0 0
    %1194 = vmatprep.subr.bf16.mxu0 0
    %1195 = vmatpush1.bf16.msra.mxu0 0
    %1196 = vmatprep.subr.bf16.mxu0 0
    %1197 = vmatpush1.bf16.msra.mxu0 0
    %1198 = vmatprep.subr.bf16.mxu0 0
    %1199 = vmatpush1.bf16.msra.mxu0 0
    %1200 = vmatprep.subr.bf16.mxu0 0
    %1201 = vmatpush1.bf16.msra.mxu0 0
    %1202 = vmatprep.subr.bf16.mxu0 0
    %1203 = vmatpush1.bf16.msra.mxu0 0
    %1204 = vmatprep.subr.bf16.mxu0 0
    %1205 = vmatpush1.bf16.msra.mxu0 0
    %1206 = vmatprep.subr.bf16.mxu0 0
    %1207 = vmatpush1.bf16.msra.mxu0 0
    %1208 = vmatprep.subr.bf16.mxu0 0
    %1209 = vmatpush1.bf16.msra.mxu0 0
    %1210 = vmatprep.mubr.bf16.mxu0 0
    %1211 = vmatmul.mubr.bf16.gmra.mrb[0].mxu0 %v1167
    %v1212 = vpop.f32.mrb[0].mxu0
    %v1213 = vadd.f32 0.0, %v1212
    %v1214 = vpop.f32.mrb[0].mxu0
    %v1215 = vadd.f32 0.0, %v1214
    %v1216 = vpop.f32.mrb[0].mxu0
    %v1217 = vadd.f32 0.0, %v1216
    %v1218 = vpop.f32.mrb[0].mxu0
    %v1219 = vadd.f32 0.0, %v1218
    %1220 = vmatprep.mubr.bf16.mxu0 0
    %1221 = vmatmul.mubr.bf16.gmra.mrb[0].mxu0 %v1170
    %v1222 = vpop.f32.mrb[0].mxu0
    %v1223 = vadd.f32 0.0, %v1222
    %v1224 = vpop.f32.mrb[0].mxu0
    %v1225 = vadd.f32 0.0, %v1224
    %v1226 = vpop.f32.mrb[0].mxu0
    %v1227 = vadd.f32 0.0, %v1226
    %v1228 = vpop.f32.mrb[0].mxu0
    %v1229 = vadd.f32 0.0, %v1228
    %1230 = vmatprep.mubr.bf16.mxu0 0
    %1231 = vmatmul.mubr.bf16.gmra.mrb[0].mxu0 %v1173
    %v1232 = vpop.f32.mrb[0].mxu0
    %v1233 = vadd.f32 0.0, %v1232
    %v1234 = vpop.f32.mrb[0].mxu0
    %v1235 = vadd.f32 0.0, %v1234
    %v1236 = vpop.f32.mrb[0].mxu0
    %v1237 = vadd.f32 0.0, %v1236
    %v1238 = vpop.f32.mrb[0].mxu0
    %v1239 = vadd.f32 0.0, %v1238
    %1240 = vmatprep.mubr.bf16.mxu0 0
    %1241 = vmatmul.mubr.bf16.gmra.mrb[0].mxu0 %v1176
    %v1242 = vpop.f32.mrb[0].mxu0
    %v1243 = vadd.f32 0.0, %v1242
    %v1244 = vpop.f32.mrb[0].mxu0
    %v1245 = vadd.f32 0.0, %v1244
    %v1246 = vpop.f32.mrb[0].mxu0
    %v1247 = vpop.f32.mrb[0].mxu0
    %1248 = vdwg.mxu0
    %1249 = vmatprep.subr.bf16.mxu0 %v541
    %1250 = vmatpush1.bf16.msra.mxu0 %v540
    %1251 = vmatprep.subr.bf16.mxu0 %v572
    %1252 = vmatpush1.bf16.msra.mxu0 %v569
    %1253 = vmatprep.subr.bf16.mxu0 0
    %1254 = vmatpush1.bf16.msra.mxu0 0
    %1255 = vmatprep.subr.bf16.mxu0 0
    %1256 = vmatpush1.bf16.msra.mxu0 0
    %1257 = vmatprep.subr.bf16.mxu0 0
    %1258 = vmatpush1.bf16.msra.mxu0 0
    %1259 = vmatprep.subr.bf16.mxu0 0
    %1260 = vmatpush1.bf16.msra.mxu0 0
    %1261 = vmatprep.subr.bf16.mxu0 0
    %1262 = vmatpush1.bf16.msra.mxu0 0
    %1263 = vmatprep.subr.bf16.mxu0 0
    %1264 = vmatpush1.bf16.msra.mxu0 0
    %1265 = vmatprep.subr.bf16.mxu0 0
    %1266 = vmatpush1.bf16.msra.mxu0 0
    %1267 = vmatprep.subr.bf16.mxu0 0
    %1268 = vmatpush1.bf16.msra.mxu0 0
    %1269 = vmatprep.subr.bf16.mxu0 0
    %1270 = vmatpush1.bf16.msra.mxu0 0
    %1271 = vmatprep.subr.bf16.mxu0 0
    %1272 = vmatpush1.bf16.msra.mxu0 0
    %1273 = vmatprep.subr.bf16.mxu0 0
    %1274 = vmatpush1.bf16.msra.mxu0 0
    %1275 = vmatprep.subr.bf16.mxu0 0
    %1276 = vmatpush1.bf16.msra.mxu0 0
    %1277 = vmatprep.subr.bf16.mxu0 0
    %1278 = vmatpush1.bf16.msra.mxu0 0
    %1279 = vmatprep.subr.bf16.mxu0 0
    %1280 = vmatpush1.bf16.msra.mxu0 0
    %1281 = vmatprep.mubr.bf16.mxu0 0
    %1282 = vmatmul.mubr.bf16.gmra.mrb[0].mxu0 %v1167
    %v1283 = vpop.f32.mrb[0].mxu0
    %v1284 = vadd.f32 0.0, %v1283
    %v1285 = vpop.f32.mrb[0].mxu0
    %v1286 = vadd.f32 0.0, %v1285
    %v1287 = vpop.f32.mrb[0].mxu0
    %v1288 = vadd.f32 0.0, %v1287
    %v1289 = vpop.f32.mrb[0].mxu0
    %v1290 = vadd.f32 0.0, %v1289
    %1291 = vmatprep.mubr.bf16.mxu0 0
    %1292 = vmatmul.mubr.bf16.gmra.mrb[0].mxu0 %v1170
    %v1293 = vpop.f32.mrb[0].mxu0
    %v1294 = vadd.f32 0.0, %v1293
    %v1295 = vpop.f32.mrb[0].mxu0
    %v1296 = vadd.f32 0.0, %v1295
    %v1297 = vpop.f32.mrb[0].mxu0
    %v1298 = vadd.f32 0.0, %v1297
    %v1299 = vpop.f32.mrb[0].mxu0
    %v1300 = vadd.f32 0.0, %v1299
    %1301 = vmatprep.mubr.bf16.mxu0 0
    %1302 = vmatmul.mubr.bf16.gmra.mrb[0].mxu0 %v1173
    %v1303 = vpop.f32.mrb[0].mxu0
    %v1304 = vadd.f32 0.0, %v1303
    %v1305 = vpop.f32.mrb[0].mxu0
    %v1306 = vadd.f32 0.0, %v1305
    %v1307 = vpop.f32.mrb[0].mxu0
    %v1308 = vadd.f32 0.0, %v1307
    %v1309 = vpop.f32.mrb[0].mxu0
    %v1310 = vadd.f32 0.0, %v1309
    %1311 = vmatprep.mubr.bf16.mxu0 0
    %1312 = vmatmul.mubr.bf16.gmra.mrb[0].mxu0 %v1176
    %v1313 = vpop.f32.mrb[0].mxu0
    %v1314 = vadd.f32 0.0, %v1313
    %v1315 = vpop.f32.mrb[0].mxu0
    %v1316 = vadd.f32 0.0, %v1315
    %v1317 = vpop.f32.mrb[0].mxu0
    %v1318 = vpop.f32.mrb[0].mxu0
    %1319 = vdwg.mxu0
    %v1320 = vadd.f32 %v1047, %v1213
    %v1321 = vadd.f32 %v1049, %v1215
    %v1322 = vadd.f32 %v1118, %v1284
    %v1323 = vadd.f32 %v1120, %v1286
    %v1324 = vadd.f32 %v1051, %v1217
    %v1325 = vadd.f32 %v1053, %v1219
    %v1326 = vadd.f32 %v1122, %v1288
    %v1327 = vadd.f32 %v1124, %v1290
    %v1328 = vadd.f32 %v1057, %v1223
    %v1329 = vadd.f32 %v1059, %v1225
    %v1330 = vadd.f32 %v1128, %v1294
    %v1331 = vadd.f32 %v1130, %v1296
    %v1332 = vadd.f32 %v1061, %v1227
    %v1333 = vadd.f32 %v1063, %v1229
    %v1334 = vadd.f32 %v1132, %v1298
    %v1335 = vadd.f32 %v1134, %v1300
    %v1336 = vadd.f32 %v1067, %v1233
    %v1337 = vadd.f32 %v1069, %v1235
    %v1338 = vadd.f32 %v1138, %v1304
    %v1339 = vadd.f32 %v1140, %v1306
    %v1340 = vadd.f32 %v1071, %v1237
    %v1341 = vadd.f32 %v1073, %v1239
    %v1342 = vadd.f32 %v1142, %v1308
    %v1343 = vadd.f32 %v1144, %v1310
    %v1344 = vadd.f32 %v1077, %v1243
    %v1345 = vadd.f32 %v1079, %v1245
    %v1346 = vadd.f32 %v1148, %v1314
    %v1347 = vadd.f32 %v1150, %v1316
    %v1348 = vadd.f32 %v1320, %v749
    %v1349 = vadd.f32 %v1321, %v753
    %v1350 = vadd.f32 %v1322, %v757
    %v1351 = vadd.f32 %v1323, %v761
    %v1352 = vadd.f32 %v1324, %v749
    %v1353 = vadd.f32 %v1325, %v753
    %v1354 = vadd.f32 %v1326, %v757
    %v1355 = vadd.f32 %v1327, %v761
    %v1356 = vadd.f32 %v1328, %v749
    %v1357 = vadd.f32 %v1329, %v753
    %v1358 = vadd.f32 %v1330, %v757
    %v1359 = vadd.f32 %v1331, %v761
    %v1360 = vadd.f32 %v1332, %v749
    %v1361 = vadd.f32 %v1333, %v753
    %v1362 = vadd.f32 %v1334, %v757
    %v1363 = vadd.f32 %v1335, %v761
    %v1364 = vadd.f32 %v1336, %v749
    %v1365 = vadd.f32 %v1337, %v753
    %v1366 = vadd.f32 %v1338, %v757
    %v1367 = vadd.f32 %v1339, %v761
    %v1368 = vadd.f32 %v1340, %v749
    %v1369 = vadd.f32 %v1341, %v753
    %v1370 = vadd.f32 %v1342, %v757
    %v1371 = vadd.f32 %v1343, %v761
    %v1372 = vadd.f32 %v1344, %v749
    %v1373 = vadd.f32 %v1345, %v753
    %v1374 = vadd.f32 %v1346, %v757
    %v1375 = vadd.f32 %v1347, %v761
    %v1376 = vmax.f32 %v1348, 0.0
    %v1377 = vmax.f32 %v1349, 0.0
    %v1378 = vmax.f32 %v1350, 0.0
    %v1379 = vmax.f32 %v1351, 0.0
    %v1380 = vmax.f32 %v1352, 0.0
    %v1381 = vmax.f32 %v1353, 0.0
    %v1382 = vmax.f32 %v1354, 0.0
    %v1383 = vmax.f32 %v1355, 0.0
    %v1384 = vmax.f32 %v1356, 0.0
    %v1385 = vmax.f32 %v1357, 0.0
    %v1386 = vmax.f32 %v1358, 0.0
    %v1387 = vmax.f32 %v1359, 0.0
    %v1388 = vmax.f32 %v1360, 0.0
    %v1389 = vmax.f32 %v1361, 0.0
    %v1390 = vmax.f32 %v1362, 0.0
    %v1391 = vmax.f32 %v1363, 0.0
    %v1392 = vmax.f32 %v1364, 0.0
    %v1393 = vmax.f32 %v1365, 0.0
    %v1394 = vmax.f32 %v1366, 0.0
    %v1395 = vmax.f32 %v1367, 0.0
    %v1396 = vmax.f32 %v1368, 0.0
    %v1397 = vmax.f32 %v1369, 0.0
    %v1398 = vmax.f32 %v1370, 0.0
    %v1399 = vmax.f32 %v1371, 0.0
    %v1400 = vmax.f32 %v1372, 0.0
    %v1401 = vmax.f32 %v1373, 0.0
    %v1402 = vmax.f32 %v1374, 0.0
    %v1403 = vmax.f32 %v1375, 0.0
    %s1404 = scalar_lea.vmem %s0, 112
    %v1405 = vld [vmem:[%s1404] sm:$0xff]
    %v1406 = vld [vmem:[%s1404 + $0x8] sm:$0xff]
    %v1407 = vld [vmem:[%s1404 + $0x10] sm:$0xff]
    %v1408 = vld [vmem:[%s1404 + $0x18] sm:$0xff]
    %v1409 = vld [vmem:[%s1404 + $0x20] sm:$0xff]
    %v1410 = vld [vmem:[%s1404 + $0x28] sm:$0xff]
    %v1411 = vld [vmem:[%s1404 + $0x30] sm:$0xff]
    %v1412 = vpack.c.bf16 %v1406, %v1405
    %v1413 = vpack.c.bf16 %v1408, %v1407
    %v1414 = vpack.c.bf16 %v1410, %v1409
    %v1415 = vpack.c.bf16 %v1411, %v1411
    %s1416 = scalar_lea.vmem %s0, 336
    %v1417 = vld [vmem:[%s1416] sm:$0xff]
    %v1418 = vld [vmem:[%s1416 + $0x8] sm:$0xff]
    %v1419 = vld [vmem:[%s1416 + $0x10] sm:$0xff]
    %v1420 = vld [vmem:[%s1416 + $0x18] sm:$0xff]
    %v1421 = vld [vmem:[%s1416 + $0x20] sm:$0xff]
    %v1422 = vld [vmem:[%s1416 + $0x28] sm:$0xff]
    %v1423 = vld [vmem:[%s1416 + $0x30] sm:$0xff]
    %v1424 = vpack.c.bf16 %v1418, %v1417
    %v1425 = vpack.c.bf16 %v1420, %v1419
    %v1426 = vpack.c.bf16 %v1422, %v1421
    %v1427 = vpack.c.bf16 %v1423, %v1423
    %v1429 = vsel %vm123, %v1424, 0
    %v1432 = vsel %vm123, %v1425, 0
    %v1435 = vsel %vm123, %v1426, 0
    %v1438 = vsel %vm123, %v1427, 0
    %1440 = vmatprep.subr.bf16.mxu0 %v112
    %1441 = vmatpush1.bf16.msra.mxu0 %v111
    %1442 = vmatprep.subr.bf16.mxu0 %v141
    %1443 = vmatpush1.bf16.msra.mxu0 %v138
    %1444 = vmatprep.subr.bf16.mxu0 0
    %1445 = vmatpush1.bf16.msra.mxu0 0
    %1446 = vmatprep.subr.bf16.mxu0 0
    %1447 = vmatpush1.bf16.msra.mxu0 0
    %1448 = vmatprep.subr.bf16.mxu0 0
    %1449 = vmatpush1.bf16.msra.mxu0 0
    %1450 = vmatprep.subr.bf16.mxu0 0
    %1451 = vmatpush1.bf16.msra.mxu0 0
    %1452 = vmatprep.subr.bf16.mxu0 0
    %1453 = vmatpush1.bf16.msra.mxu0 0
    %1454 = vmatprep.subr.bf16.mxu0 0
    %1455 = vmatpush1.bf16.msra.mxu0 0
    %1456 = vmatprep.subr.bf16.mxu0 0
    %1457 = vmatpush1.bf16.msra.mxu0 0
    %1458 = vmatprep.subr.bf16.mxu0 0
    %1459 = vmatpush1.bf16.msra.mxu0 0
    %1460 = vmatprep.subr.bf16.mxu0 0
    %1461 = vmatpush1.bf16.msra.mxu0 0
    %1462 = vmatprep.subr.bf16.mxu0 0
    %1463 = vmatpush1.bf16.msra.mxu0 0
    %1464 = vmatprep.subr.bf16.mxu0 0
    %1465 = vmatpush1.bf16.msra.mxu0 0
    %1466 = vmatprep.subr.bf16.mxu0 0
    %1467 = vmatpush1.bf16.msra.mxu0 0
    %1468 = vmatprep.subr.bf16.mxu0 0
    %1469 = vmatpush1.bf16.msra.mxu0 0
    %1470 = vmatprep.subr.bf16.mxu0 0
    %1471 = vmatpush1.bf16.msra.mxu0 0
    %1472 = vmatprep.mubr.bf16.mxu0 0
    %1473 = vmatmul.mubr.bf16.gmra.mrb[0].mxu0 %v1429
    %v1474 = vpop.f32.mrb[0].mxu0
    %v1475 = vadd.f32 0.0, %v1474
    %v1476 = vpop.f32.mrb[0].mxu0
    %v1477 = vadd.f32 0.0, %v1476
    %v1478 = vpop.f32.mrb[0].mxu0
    %v1479 = vadd.f32 0.0, %v1478
    %v1480 = vpop.f32.mrb[0].mxu0
    %v1481 = vadd.f32 0.0, %v1480
    %1482 = vmatprep.mubr.bf16.mxu0 0
    %1483 = vmatmul.mubr.bf16.gmra.mrb[0].mxu0 %v1432
    %v1484 = vpop.f32.mrb[0].mxu0
    %v1485 = vadd.f32 0.0, %v1484
    %v1486 = vpop.f32.mrb[0].mxu0
    %v1487 = vadd.f32 0.0, %v1486
    %v1488 = vpop.f32.mrb[0].mxu0
    %v1489 = vadd.f32 0.0, %v1488
    %v1490 = vpop.f32.mrb[0].mxu0
    %v1491 = vadd.f32 0.0, %v1490
    %1492 = vmatprep.mubr.bf16.mxu0 0
    %1493 = vmatmul.mubr.bf16.gmra.mrb[0].mxu0 %v1435
    %v1494 = vpop.f32.mrb[0].mxu0
    %v1495 = vadd.f32 0.0, %v1494
    %v1496 = vpop.f32.mrb[0].mxu0
    %v1497 = vadd.f32 0.0, %v1496
    %v1498 = vpop.f32.mrb[0].mxu0
    %v1499 = vadd.f32 0.0, %v1498
    %v1500 = vpop.f32.mrb[0].mxu0
    %v1501 = vadd.f32 0.0, %v1500
    %1502 = vmatprep.mubr.bf16.mxu0 0
    %1503 = vmatmul.mubr.bf16.gmra.mrb[0].mxu0 %v1438
    %v1504 = vpop.f32.mrb[0].mxu0
    %v1505 = vadd.f32 0.0, %v1504
    %v1506 = vpop.f32.mrb[0].mxu0
    %v1507 = vadd.f32 0.0, %v1506
    %v1508 = vpop.f32.mrb[0].mxu0
    %v1509 = vpop.f32.mrb[0].mxu0
    %1510 = vdwg.mxu0
    %1511 = vmatprep.subr.bf16.mxu0 %v114
    %1512 = vmatpush1.bf16.msra.mxu0 %v113
    %1513 = vmatprep.subr.bf16.mxu0 %v147
    %1514 = vmatpush1.bf16.msra.mxu0 %v144
    %1515 = vmatprep.subr.bf16.mxu0 0
    %1516 = vmatpush1.bf16.msra.mxu0 0
    %1517 = vmatprep.subr.bf16.mxu0 0
    %1518 = vmatpush1.bf16.msra.mxu0 0
    %1519 = vmatprep.subr.bf16.mxu0 0
    %1520 = vmatpush1.bf16.msra.mxu0 0
    %1521 = vmatprep.subr.bf16.mxu0 0
    %1522 = vmatpush1.bf16.msra.mxu0 0
    %1523 = vmatprep.subr.bf16.mxu0 0
    %1524 = vmatpush1.bf16.msra.mxu0 0
    %1525 = vmatprep.subr.bf16.mxu0 0
    %1526 = vmatpush1.bf16.msra.mxu0 0
    %1527 = vmatprep.subr.bf16.mxu0 0
    %1528 = vmatpush1.bf16.msra.mxu0 0
    %1529 = vmatprep.subr.bf16.mxu0 0
    %1530 = vmatpush1.bf16.msra.mxu0 0
    %1531 = vmatprep.subr.bf16.mxu0 0
    %1532 = vmatpush1.bf16.msra.mxu0 0
    %1533 = vmatprep.subr.bf16.mxu0 0
    %1534 = vmatpush1.bf16.msra.mxu0 0
    %1535 = vmatprep.subr.bf16.mxu0 0
    %1536 = vmatpush1.bf16.msra.mxu0 0
    %1537 = vmatprep.subr.bf16.mxu0 0
    %1538 = vmatpush1.bf16.msra.mxu0 0
    %1539 = vmatprep.subr.bf16.mxu0 0
    %1540 = vmatpush1.bf16.msra.mxu0 0
    %1541 = vmatprep.subr.bf16.mxu0 0
    %1542 = vmatpush1.bf16.msra.mxu0 0
    %1543 = vmatprep.mubr.bf16.mxu0 0
    %1544 = vmatmul.mubr.bf16.gmra.mrb[0].mxu0 %v1429
    %v1545 = vpop.f32.mrb[0].mxu0
    %v1546 = vadd.f32 0.0, %v1545
    %v1547 = vpop.f32.mrb[0].mxu0
    %v1548 = vadd.f32 0.0, %v1547
    %v1549 = vpop.f32.mrb[0].mxu0
    %v1550 = vadd.f32 0.0, %v1549
    %v1551 = vpop.f32.mrb[0].mxu0
    %v1552 = vadd.f32 0.0, %v1551
    %1553 = vmatprep.mubr.bf16.mxu0 0
    %1554 = vmatmul.mubr.bf16.gmra.mrb[0].mxu0 %v1432
    %v1555 = vpop.f32.mrb[0].mxu0
    %v1556 = vadd.f32 0.0, %v1555
    %v1557 = vpop.f32.mrb[0].mxu0
    %v1558 = vadd.f32 0.0, %v1557
    %v1559 = vpop.f32.mrb[0].mxu0
    %v1560 = vadd.f32 0.0, %v1559
    %v1561 = vpop.f32.mrb[0].mxu0
    %v1562 = vadd.f32 0.0, %v1561
    %1563 = vmatprep.mubr.bf16.mxu0 0
    %1564 = vmatmul.mubr.bf16.gmra.mrb[0].mxu0 %v1435
    %v1565 = vpop.f32.mrb[0].mxu0
    %v1566 = vadd.f32 0.0, %v1565
    %v1567 = vpop.f32.mrb[0].mxu0
    %v1568 = vadd.f32 0.0, %v1567
    %v1569 = vpop.f32.mrb[0].mxu0
    %v1570 = vadd.f32 0.0, %v1569
    %v1571 = vpop.f32.mrb[0].mxu0
    %v1572 = vadd.f32 0.0, %v1571
    %1573 = vmatprep.mubr.bf16.mxu0 0
    %1574 = vmatmul.mubr.bf16.gmra.mrb[0].mxu0 %v1438
    %v1575 = vpop.f32.mrb[0].mxu0
    %v1576 = vadd.f32 0.0, %v1575
    %v1577 = vpop.f32.mrb[0].mxu0
    %v1578 = vadd.f32 0.0, %v1577
    %v1579 = vpop.f32.mrb[0].mxu0
    %v1580 = vpop.f32.mrb[0].mxu0
    %1581 = vdwg.mxu0
    %v1583 = vsel %vm123, %v1412, 0
    %v1586 = vsel %vm123, %v1413, 0
    %v1589 = vsel %vm123, %v1414, 0
    %v1592 = vsel %vm123, %v1415, 0
    %1594 = vmatprep.subr.bf16.mxu0 %v316
    %1595 = vmatpush1.bf16.msra.mxu0 %v315
    %1596 = vmatprep.subr.bf16.mxu0 %v343
    %1597 = vmatpush1.bf16.msra.mxu0 %v340
    %1598 = vmatprep.subr.bf16.mxu0 0
    %1599 = vmatpush1.bf16.msra.mxu0 0
    %1600 = vmatprep.subr.bf16.mxu0 0
    %1601 = vmatpush1.bf16.msra.mxu0 0
    %1602 = vmatprep.subr.bf16.mxu0 0
    %1603 = vmatpush1.bf16.msra.mxu0 0
    %1604 = vmatprep.subr.bf16.mxu0 0
    %1605 = vmatpush1.bf16.msra.mxu0 0
    %1606 = vmatprep.subr.bf16.mxu0 0
    %1607 = vmatpush1.bf16.msra.mxu0 0
    %1608 = vmatprep.subr.bf16.mxu0 0
    %1609 = vmatpush1.bf16.msra.mxu0 0
    %1610 = vmatprep.subr.bf16.mxu0 0
    %1611 = vmatpush1.bf16.msra.mxu0 0
    %1612 = vmatprep.subr.bf16.mxu0 0
    %1613 = vmatpush1.bf16.msra.mxu0 0
    %1614 = vmatprep.subr.bf16.mxu0 0
    %1615 = vmatpush1.bf16.msra.mxu0 0
    %1616 = vmatprep.subr.bf16.mxu0 0
    %1617 = vmatpush1.bf16.msra.mxu0 0
    %1618 = vmatprep.subr.bf16.mxu0 0
    %1619 = vmatpush1.bf16.msra.mxu0 0
    %1620 = vmatprep.subr.bf16.mxu0 0
    %1621 = vmatpush1.bf16.msra.mxu0 0
    %1622 = vmatprep.subr.bf16.mxu0 0
    %1623 = vmatpush1.bf16.msra.mxu0 0
    %1624 = vmatprep.subr.bf16.mxu0 0
    %1625 = vmatpush1.bf16.msra.mxu0 0
    %1626 = vmatprep.mubr.bf16.mxu0 0
    %1627 = vmatmul.mubr.bf16.gmra.mrb[0].mxu0 %v1583
    %v1628 = vpop.f32.mrb[0].mxu0
    %v1629 = vadd.f32 %v1475, %v1628
    %v1630 = vpop.f32.mrb[0].mxu0
    %v1631 = vadd.f32 %v1477, %v1630
    %v1632 = vpop.f32.mrb[0].mxu0
    %v1633 = vadd.f32 %v1479, %v1632
    %v1634 = vpop.f32.mrb[0].mxu0
    %v1635 = vadd.f32 %v1481, %v1634
    %1636 = vmatprep.mubr.bf16.mxu0 0
    %1637 = vmatmul.mubr.bf16.gmra.mrb[0].mxu0 %v1586
    %v1638 = vpop.f32.mrb[0].mxu0
    %v1639 = vadd.f32 %v1485, %v1638
    %v1640 = vpop.f32.mrb[0].mxu0
    %v1641 = vadd.f32 %v1487, %v1640
    %v1642 = vpop.f32.mrb[0].mxu0
    %v1643 = vadd.f32 %v1489, %v1642
    %v1644 = vpop.f32.mrb[0].mxu0
    %v1645 = vadd.f32 %v1491, %v1644
    %1646 = vmatprep.mubr.bf16.mxu0 0
    %1647 = vmatmul.mubr.bf16.gmra.mrb[0].mxu0 %v1589
    %v1648 = vpop.f32.mrb[0].mxu0
    %v1649 = vadd.f32 %v1495, %v1648
    %v1650 = vpop.f32.mrb[0].mxu0
    %v1651 = vadd.f32 %v1497, %v1650
    %v1652 = vpop.f32.mrb[0].mxu0
    %v1653 = vadd.f32 %v1499, %v1652
    %v1654 = vpop.f32.mrb[0].mxu0
    %v1655 = vadd.f32 %v1501, %v1654
    %1656 = vmatprep.mubr.bf16.mxu0 0
    %1657 = vmatmul.mubr.bf16.gmra.mrb[0].mxu0 %v1592
    %v1658 = vpop.f32.mrb[0].mxu0
    %v1659 = vadd.f32 %v1505, %v1658
    %v1660 = vpop.f32.mrb[0].mxu0
    %v1661 = vadd.f32 %v1507, %v1660
    %v1662 = vpop.f32.mrb[0].mxu0
    %v1663 = vpop.f32.mrb[0].mxu0
    %1664 = vdwg.mxu0
    %1665 = vmatprep.subr.bf16.mxu0 %v318
    %1666 = vmatpush1.bf16.msra.mxu0 %v317
    %1667 = vmatprep.subr.bf16.mxu0 %v349
    %1668 = vmatpush1.bf16.msra.mxu0 %v346
    %1669 = vmatprep.subr.bf16.mxu0 0
    %1670 = vmatpush1.bf16.msra.mxu0 0
    %1671 = vmatprep.subr.bf16.mxu0 0
    %1672 = vmatpush1.bf16.msra.mxu0 0
    %1673 = vmatprep.subr.bf16.mxu0 0
    %1674 = vmatpush1.bf16.msra.mxu0 0
    %1675 = vmatprep.subr.bf16.mxu0 0
    %1676 = vmatpush1.bf16.msra.mxu0 0
    %1677 = vmatprep.subr.bf16.mxu0 0
    %1678 = vmatpush1.bf16.msra.mxu0 0
    %1679 = vmatprep.subr.bf16.mxu0 0
    %1680 = vmatpush1.bf16.msra.mxu0 0
    %1681 = vmatprep.subr.bf16.mxu0 0
    %1682 = vmatpush1.bf16.msra.mxu0 0
    %1683 = vmatprep.subr.bf16.mxu0 0
    %1684 = vmatpush1.bf16.msra.mxu0 0
    %1685 = vmatprep.subr.bf16.mxu0 0
    %1686 = vmatpush1.bf16.msra.mxu0 0
    %1687 = vmatprep.subr.bf16.mxu0 0
    %1688 = vmatpush1.bf16.msra.mxu0 0
    %1689 = vmatprep.subr.bf16.mxu0 0
    %1690 = vmatpush1.bf16.msra.mxu0 0
    %1691 = vmatprep.subr.bf16.mxu0 0
    %1692 = vmatpush1.bf16.msra.mxu0 0
    %1693 = vmatprep.subr.bf16.mxu0 0
    %1694 = vmatpush1.bf16.msra.mxu0 0
    %1695 = vmatprep.subr.bf16.mxu0 0
    %1696 = vmatpush1.bf16.msra.mxu0 0
    %1697 = vmatprep.mubr.bf16.mxu0 0
    %1698 = vmatmul.mubr.bf16.gmra.mrb[0].mxu0 %v1583
    %v1699 = vpop.f32.mrb[0].mxu0
    %v1700 = vadd.f32 %v1546, %v1699
    %v1701 = vpop.f32.mrb[0].mxu0
    %v1702 = vadd.f32 %v1548, %v1701
    %v1703 = vpop.f32.mrb[0].mxu0
    %v1704 = vadd.f32 %v1550, %v1703
    %v1705 = vpop.f32.mrb[0].mxu0
    %v1706 = vadd.f32 %v1552, %v1705
    %1707 = vmatprep.mubr.bf16.mxu0 0
    %1708 = vmatmul.mubr.bf16.gmra.mrb[0].mxu0 %v1586
    %v1709 = vpop.f32.mrb[0].mxu0
    %v1710 = vadd.f32 %v1556, %v1709
    %v1711 = vpop.f32.mrb[0].mxu0
    %v1712 = vadd.f32 %v1558, %v1711
    %v1713 = vpop.f32.mrb[0].mxu0
    %v1714 = vadd.f32 %v1560, %v1713
    %v1715 = vpop.f32.mrb[0].mxu0
    %v1716 = vadd.f32 %v1562, %v1715
    %1717 = vmatprep.mubr.bf16.mxu0 0
    %1718 = vmatmul.mubr.bf16.gmra.mrb[0].mxu0 %v1589
    %v1719 = vpop.f32.mrb[0].mxu0
    %v1720 = vadd.f32 %v1566, %v1719
    %v1721 = vpop.f32.mrb[0].mxu0
    %v1722 = vadd.f32 %v1568, %v1721
    %v1723 = vpop.f32.mrb[0].mxu0
    %v1724 = vadd.f32 %v1570, %v1723
    %v1725 = vpop.f32.mrb[0].mxu0
    %v1726 = vadd.f32 %v1572, %v1725
    %1727 = vmatprep.mubr.bf16.mxu0 0
    %1728 = vmatmul.mubr.bf16.gmra.mrb[0].mxu0 %v1592
    %v1729 = vpop.f32.mrb[0].mxu0
    %v1730 = vadd.f32 %v1576, %v1729
    %v1731 = vpop.f32.mrb[0].mxu0
    %v1732 = vadd.f32 %v1578, %v1731
    %v1733 = vpop.f32.mrb[0].mxu0
    %v1734 = vpop.f32.mrb[0].mxu0
    %1735 = vdwg.mxu0
    %s1736 = scalar_lea.vmem %s0, 560
    %v1737 = vld [vmem:[%s1736] sm:$0xff]
    %v1738 = vld [vmem:[%s1736 + $0x8] sm:$0xff]
    %v1739 = vld [vmem:[%s1736 + $0x10] sm:$0xff]
    %v1740 = vld [vmem:[%s1736 + $0x18] sm:$0xff]
    %v1741 = vld [vmem:[%s1736 + $0x20] sm:$0xff]
    %v1742 = vld [vmem:[%s1736 + $0x28] sm:$0xff]
    %v1743 = vld [vmem:[%s1736 + $0x30] sm:$0xff]
    %v1744 = vpack.c.bf16 %v1738, %v1737
    %v1745 = vpack.c.bf16 %v1740, %v1739
    %v1746 = vpack.c.bf16 %v1742, %v1741
    %v1747 = vpack.c.bf16 %v1743, %v1743
    %v1749 = vsel %vm123, %v1744, 0
    %v1752 = vsel %vm123, %v1745, 0
    %v1755 = vsel %vm123, %v1746, 0
    %v1758 = vsel %vm123, %v1747, 0
    %1760 = vmatprep.subr.bf16.mxu0 %v539
    %1761 = vmatpush1.bf16.msra.mxu0 %v538
    %1762 = vmatprep.subr.bf16.mxu0 %v566
    %1763 = vmatpush1.bf16.msra.mxu0 %v563
    %1764 = vmatprep.subr.bf16.mxu0 0
    %1765 = vmatpush1.bf16.msra.mxu0 0
    %1766 = vmatprep.subr.bf16.mxu0 0
    %1767 = vmatpush1.bf16.msra.mxu0 0
    %1768 = vmatprep.subr.bf16.mxu0 0
    %1769 = vmatpush1.bf16.msra.mxu0 0
    %1770 = vmatprep.subr.bf16.mxu0 0
    %1771 = vmatpush1.bf16.msra.mxu0 0
    %1772 = vmatprep.subr.bf16.mxu0 0
    %1773 = vmatpush1.bf16.msra.mxu0 0
    %1774 = vmatprep.subr.bf16.mxu0 0
    %1775 = vmatpush1.bf16.msra.mxu0 0
    %1776 = vmatprep.subr.bf16.mxu0 0
    %1777 = vmatpush1.bf16.msra.mxu0 0
    %1778 = vmatprep.subr.bf16.mxu0 0
    %1779 = vmatpush1.bf16.msra.mxu0 0
    %1780 = vmatprep.subr.bf16.mxu0 0
    %1781 = vmatpush1.bf16.msra.mxu0 0
    %1782 = vmatprep.subr.bf16.mxu0 0
    %1783 = vmatpush1.bf16.msra.mxu0 0
    %1784 = vmatprep.subr.bf16.mxu0 0
    %1785 = vmatpush1.bf16.msra.mxu0 0
    %1786 = vmatprep.subr.bf16.mxu0 0
    %1787 = vmatpush1.bf16.msra.mxu0 0
    %1788 = vmatprep.subr.bf16.mxu0 0
    %1789 = vmatpush1.bf16.msra.mxu0 0
    %1790 = vmatprep.subr.bf16.mxu0 0
    %1791 = vmatpush1.bf16.msra.mxu0 0
    %1792 = vmatprep.mubr.bf16.mxu0 0
    %1793 = vmatmul.mubr.bf16.gmra.mrb[0].mxu0 %v1749
    %v1794 = vpop.f32.mrb[0].mxu0
    %v1795 = vadd.f32 0.0, %v1794
    %v1796 = vpop.f32.mrb[0].mxu0
    %v1797 = vadd.f32 0.0, %v1796
    %v1798 = vpop.f32.mrb[0].mxu0
    %v1799 = vadd.f32 0.0, %v1798
    %v1800 = vpop.f32.mrb[0].mxu0
    %v1801 = vadd.f32 0.0, %v1800
    %1802 = vmatprep.mubr.bf16.mxu0 0
    %1803 = vmatmul.mubr.bf16.gmra.mrb[0].mxu0 %v1752
    %v1804 = vpop.f32.mrb[0].mxu0
    %v1805 = vadd.f32 0.0, %v1804
    %v1806 = vpop.f32.mrb[0].mxu0
    %v1807 = vadd.f32 0.0, %v1806
    %v1808 = vpop.f32.mrb[0].mxu0
    %v1809 = vadd.f32 0.0, %v1808
    %v1810 = vpop.f32.mrb[0].mxu0
    %v1811 = vadd.f32 0.0, %v1810
    %1812 = vmatprep.mubr.bf16.mxu0 0
    %1813 = vmatmul.mubr.bf16.gmra.mrb[0].mxu0 %v1755
    %v1814 = vpop.f32.mrb[0].mxu0
    %v1815 = vadd.f32 0.0, %v1814
    %v1816 = vpop.f32.mrb[0].mxu0
    %v1817 = vadd.f32 0.0, %v1816
    %v1818 = vpop.f32.mrb[0].mxu0
    %v1819 = vadd.f32 0.0, %v1818
    %v1820 = vpop.f32.mrb[0].mxu0
    %v1821 = vadd.f32 0.0, %v1820
    %1822 = vmatprep.mubr.bf16.mxu0 0
    %1823 = vmatmul.mubr.bf16.gmra.mrb[0].mxu0 %v1758
    %v1824 = vpop.f32.mrb[0].mxu0
    %v1825 = vadd.f32 0.0, %v1824
    %v1826 = vpop.f32.mrb[0].mxu0
    %v1827 = vadd.f32 0.0, %v1826
    %v1828 = vpop.f32.mrb[0].mxu0
    %v1829 = vpop.f32.mrb[0].mxu0
    %1830 = vdwg.mxu0
    %1831 = vmatprep.subr.bf16.mxu0 %v541
    %1832 = vmatpush1.bf16.msra.mxu0 %v540
    %1833 = vmatprep.subr.bf16.mxu0 %v572
    %1834 = vmatpush1.bf16.msra.mxu0 %v569
    %1835 = vmatprep.subr.bf16.mxu0 0
    %1836 = vmatpush1.bf16.msra.mxu0 0
    %1837 = vmatprep.subr.bf16.mxu0 0
    %1838 = vmatpush1.bf16.msra.mxu0 0
    %1839 = vmatprep.subr.bf16.mxu0 0
    %1840 = vmatpush1.bf16.msra.mxu0 0
    %1841 = vmatprep.subr.bf16.mxu0 0
    %1842 = vmatpush1.bf16.msra.mxu0 0
    %1843 = vmatprep.subr.bf16.mxu0 0
    %1844 = vmatpush1.bf16.msra.mxu0 0
    %1845 = vmatprep.subr.bf16.mxu0 0
    %1846 = vmatpush1.bf16.msra.mxu0 0
    %1847 = vmatprep.subr.bf16.mxu0 0
    %1848 = vmatpush1.bf16.msra.mxu0 0
    %1849 = vmatprep.subr.bf16.mxu0 0
    %1850 = vmatpush1.bf16.msra.mxu0 0
    %1851 = vmatprep.subr.bf16.mxu0 0
    %1852 = vmatpush1.bf16.msra.mxu0 0
    %1853 = vmatprep.subr.bf16.mxu0 0
    %1854 = vmatpush1.bf16.msra.mxu0 0
    %1855 = vmatprep.subr.bf16.mxu0 0
    %1856 = vmatpush1.bf16.msra.mxu0 0
    %1857 = vmatprep.subr.bf16.mxu0 0
    %1858 = vmatpush1.bf16.msra.mxu0 0
    %1859 = vmatprep.subr.bf16.mxu0 0
    %1860 = vmatpush1.bf16.msra.mxu0 0
    %1861 = vmatprep.subr.bf16.mxu0 0
    %1862 = vmatpush1.bf16.msra.mxu0 0
    %1863 = vmatprep.mubr.bf16.mxu0 0
    %1864 = vmatmul.mubr.bf16.gmra.mrb[0].mxu0 %v1749
    %v1865 = vpop.f32.mrb[0].mxu0
    %v1866 = vadd.f32 0.0, %v1865
    %v1867 = vpop.f32.mrb[0].mxu0
    %v1868 = vadd.f32 0.0, %v1867
    %v1869 = vpop.f32.mrb[0].mxu0
    %v1870 = vadd.f32 0.0, %v1869
    %v1871 = vpop.f32.mrb[0].mxu0
    %v1872 = vadd.f32 0.0, %v1871
    %1873 = vmatprep.mubr.bf16.mxu0 0
    %1874 = vmatmul.mubr.bf16.gmra.mrb[0].mxu0 %v1752
    %v1875 = vpop.f32.mrb[0].mxu0
    %v1876 = vadd.f32 0.0, %v1875
    %v1877 = vpop.f32.mrb[0].mxu0
    %v1878 = vadd.f32 0.0, %v1877
    %v1879 = vpop.f32.mrb[0].mxu0
    %v1880 = vadd.f32 0.0, %v1879
    %v1881 = vpop.f32.mrb[0].mxu0
    %v1882 = vadd.f32 0.0, %v1881
    %1883 = vmatprep.mubr.bf16.mxu0 0
    %1884 = vmatmul.mubr.bf16.gmra.mrb[0].mxu0 %v1755
    %v1885 = vpop.f32.mrb[0].mxu0
    %v1886 = vadd.f32 0.0, %v1885
    %v1887 = vpop.f32.mrb[0].mxu0
    %v1888 = vadd.f32 0.0, %v1887
    %v1889 = vpop.f32.mrb[0].mxu0
    %v1890 = vadd.f32 0.0, %v1889
    %v1891 = vpop.f32.mrb[0].mxu0
    %v1892 = vadd.f32 0.0, %v1891
    %1893 = vmatprep.mubr.bf16.mxu0 0
    %1894 = vmatmul.mubr.bf16.gmra.mrb[0].mxu0 %v1758
    %v1895 = vpop.f32.mrb[0].mxu0
    %v1896 = vadd.f32 0.0, %v1895
    %v1897 = vpop.f32.mrb[0].mxu0
    %v1898 = vadd.f32 0.0, %v1897
    %v1899 = vpop.f32.mrb[0].mxu0
    %v1900 = vpop.f32.mrb[0].mxu0
    %1901 = vdwg.mxu0
    %v1902 = vadd.f32 %v1629, %v1795
    %v1903 = vadd.f32 %v1631, %v1797
    %v1904 = vadd.f32 %v1700, %v1866
    %v1905 = vadd.f32 %v1702, %v1868
    %v1906 = vadd.f32 %v1633, %v1799
    %v1907 = vadd.f32 %v1635, %v1801
    %v1908 = vadd.f32 %v1704, %v1870
    %v1909 = vadd.f32 %v1706, %v1872
    %v1910 = vadd.f32 %v1639, %v1805
    %v1911 = vadd.f32 %v1641, %v1807
    %v1912 = vadd.f32 %v1710, %v1876
    %v1913 = vadd.f32 %v1712, %v1878
    %v1914 = vadd.f32 %v1643, %v1809
    %v1915 = vadd.f32 %v1645, %v1811
    %v1916 = vadd.f32 %v1714, %v1880
    %v1917 = vadd.f32 %v1716, %v1882
    %v1918 = vadd.f32 %v1649, %v1815
    %v1919 = vadd.f32 %v1651, %v1817
    %v1920 = vadd.f32 %v1720, %v1886
    %v1921 = vadd.f32 %v1722, %v1888
    %v1922 = vadd.f32 %v1653, %v1819
    %v1923 = vadd.f32 %v1655, %v1821
    %v1924 = vadd.f32 %v1724, %v1890
    %v1925 = vadd.f32 %v1726, %v1892
    %v1926 = vadd.f32 %v1659, %v1825
    %v1927 = vadd.f32 %v1661, %v1827
    %v1928 = vadd.f32 %v1730, %v1896
    %v1929 = vadd.f32 %v1732, %v1898
    %v1930 = vadd.f32 %v1902, %v749
    %v1931 = vadd.f32 %v1903, %v753
    %v1932 = vadd.f32 %v1904, %v757
    %v1933 = vadd.f32 %v1905, %v761
    %v1934 = vadd.f32 %v1906, %v749
    %v1935 = vadd.f32 %v1907, %v753
    %v1936 = vadd.f32 %v1908, %v757
    %v1937 = vadd.f32 %v1909, %v761
    %v1938 = vadd.f32 %v1910, %v749
    %v1939 = vadd.f32 %v1911, %v753
    %v1940 = vadd.f32 %v1912, %v757
    %v1941 = vadd.f32 %v1913, %v761
    %v1942 = vadd.f32 %v1914, %v749
    %v1943 = vadd.f32 %v1915, %v753
    %v1944 = vadd.f32 %v1916, %v757
    %v1945 = vadd.f32 %v1917, %v761
    %v1946 = vadd.f32 %v1918, %v749
    %v1947 = vadd.f32 %v1919, %v753
    %v1948 = vadd.f32 %v1920, %v757
    %v1949 = vadd.f32 %v1921, %v761
    %v1950 = vadd.f32 %v1922, %v749
    %v1951 = vadd.f32 %v1923, %v753
    %v1952 = vadd.f32 %v1924, %v757
    %v1953 = vadd.f32 %v1925, %v761
    %v1954 = vadd.f32 %v1926, %v749
    %v1955 = vadd.f32 %v1927, %v753
    %v1956 = vadd.f32 %v1928, %v757
    %v1957 = vadd.f32 %v1929, %v761
    %v1958 = vmax.f32 %v1930, 0.0
    %v1959 = vmax.f32 %v1931, 0.0
    %v1960 = vmax.f32 %v1932, 0.0
    %v1961 = vmax.f32 %v1933, 0.0
    %v1962 = vmax.f32 %v1934, 0.0
    %v1963 = vmax.f32 %v1935, 0.0
    %v1964 = vmax.f32 %v1936, 0.0
    %v1965 = vmax.f32 %v1937, 0.0
    %v1966 = vmax.f32 %v1938, 0.0
    %v1967 = vmax.f32 %v1939, 0.0
    %v1968 = vmax.f32 %v1940, 0.0
    %v1969 = vmax.f32 %v1941, 0.0
    %v1970 = vmax.f32 %v1942, 0.0
    %v1971 = vmax.f32 %v1943, 0.0
    %v1972 = vmax.f32 %v1944, 0.0
    %v1973 = vmax.f32 %v1945, 0.0
    %v1974 = vmax.f32 %v1946, 0.0
    %v1975 = vmax.f32 %v1947, 0.0
    %v1976 = vmax.f32 %v1948, 0.0
    %v1977 = vmax.f32 %v1949, 0.0
    %v1978 = vmax.f32 %v1950, 0.0
    %v1979 = vmax.f32 %v1951, 0.0
    %v1980 = vmax.f32 %v1952, 0.0
    %v1981 = vmax.f32 %v1953, 0.0
    %v1982 = vmax.f32 %v1954, 0.0
    %v1983 = vmax.f32 %v1955, 0.0
    %v1984 = vmax.f32 %v1956, 0.0
    %v1985 = vmax.f32 %v1957, 0.0
    %s1986 = scalar_lea.vmem %s0, 168
    %v1987 = vld [vmem:[%s1986] sm:$0xff]
    %v1988 = vld [vmem:[%s1986 + $0x8] sm:$0xff]
    %v1989 = vld [vmem:[%s1986 + $0x10] sm:$0xff]
    %v1990 = vld [vmem:[%s1986 + $0x18] sm:$0xff]
    %v1991 = vld [vmem:[%s1986 + $0x20] sm:$0xff]
    %v1992 = vld [vmem:[%s1986 + $0x28] sm:$0xff]
    %v1993 = vld [vmem:[%s1986 + $0x30] sm:$0xff]
    %v1994 = vpack.c.bf16 %v1988, %v1987
    %v1995 = vpack.c.bf16 %v1990, %v1989
    %v1996 = vpack.c.bf16 %v1992, %v1991
    %v1997 = vpack.c.bf16 %v1993, %v1993
    %s1998 = scalar_lea.vmem %s0, 392
    %v1999 = vld [vmem:[%s1998] sm:$0xff]
    %v2000 = vld [vmem:[%s1998 + $0x8] sm:$0xff]
    %v2001 = vld [vmem:[%s1998 + $0x10] sm:$0xff]
    %v2002 = vld [vmem:[%s1998 + $0x18] sm:$0xff]
    %v2003 = vld [vmem:[%s1998 + $0x20] sm:$0xff]
    %v2004 = vld [vmem:[%s1998 + $0x28] sm:$0xff]
    %v2005 = vld [vmem:[%s1998 + $0x30] sm:$0xff]
    %v2006 = vpack.c.bf16 %v2000, %v1999
    %v2007 = vpack.c.bf16 %v2002, %v2001
    %v2008 = vpack.c.bf16 %v2004, %v2003
    %v2009 = vpack.c.bf16 %v2005, %v2005
    %v2011 = vsel %vm123, %v2006, 0
    %v2014 = vsel %vm123, %v2007, 0
    %v2017 = vsel %vm123, %v2008, 0
    %v2020 = vsel %vm123, %v2009, 0
    %2022 = vmatprep.subr.bf16.mxu0 %v112
    %2023 = vmatpush1.bf16.msra.mxu0 %v111
    %2024 = vmatprep.subr.bf16.mxu0 %v141
    %2025 = vmatpush1.bf16.msra.mxu0 %v138
    %2026 = vmatprep.subr.bf16.mxu0 0
    %2027 = vmatpush1.bf16.msra.mxu0 0
    %2028 = vmatprep.subr.bf16.mxu0 0
    %2029 = vmatpush1.bf16.msra.mxu0 0
    %2030 = vmatprep.subr.bf16.mxu0 0
    %2031 = vmatpush1.bf16.msra.mxu0 0
    %2032 = vmatprep.subr.bf16.mxu0 0
    %2033 = vmatpush1.bf16.msra.mxu0 0
    %2034 = vmatprep.subr.bf16.mxu0 0
    %2035 = vmatpush1.bf16.msra.mxu0 0
    %2036 = vmatprep.subr.bf16.mxu0 0
    %2037 = vmatpush1.bf16.msra.mxu0 0
    %2038 = vmatprep.subr.bf16.mxu0 0
    %2039 = vmatpush1.bf16.msra.mxu0 0
    %2040 = vmatprep.subr.bf16.mxu0 0
    %2041 = vmatpush1.bf16.msra.mxu0 0
    %2042 = vmatprep.subr.bf16.mxu0 0
    %2043 = vmatpush1.bf16.msra.mxu0 0
    %2044 = vmatprep.subr.bf16.mxu0 0
    %2045 = vmatpush1.bf16.msra.mxu0 0
    %2046 = vmatprep.subr.bf16.mxu0 0
    %2047 = vmatpush1.bf16.msra.mxu0 0
    %2048 = vmatprep.subr.bf16.mxu0 0
    %2049 = vmatpush1.bf16.msra.mxu0 0
    %2050 = vmatprep.subr.bf16.mxu0 0
    %2051 = vmatpush1.bf16.msra.mxu0 0
    %2052 = vmatprep.subr.bf16.mxu0 0
    %2053 = vmatpush1.bf16.msra.mxu0 0
    %2054 = vmatprep.mubr.bf16.mxu0 0
    %2055 = vmatmul.mubr.bf16.gmra.mrb[0].mxu0 %v2011
    %v2056 = vpop.f32.mrb[0].mxu0
    %v2057 = vadd.f32 0.0, %v2056
    %v2058 = vpop.f32.mrb[0].mxu0
    %v2059 = vadd.f32 0.0, %v2058
    %v2060 = vpop.f32.mrb[0].mxu0
    %v2061 = vadd.f32 0.0, %v2060
    %v2062 = vpop.f32.mrb[0].mxu0
    %v2063 = vadd.f32 0.0, %v2062
    %2064 = vmatprep.mubr.bf16.mxu0 0
    %2065 = vmatmul.mubr.bf16.gmra.mrb[0].mxu0 %v2014
    %v2066 = vpop.f32.mrb[0].mxu0
    %v2067 = vadd.f32 0.0, %v2066
    %v2068 = vpop.f32.mrb[0].mxu0
    %v2069 = vadd.f32 0.0, %v2068
    %v2070 = vpop.f32.mrb[0].mxu0
    %v2071 = vadd.f32 0.0, %v2070
    %v2072 = vpop.f32.mrb[0].mxu0
    %v2073 = vadd.f32 0.0, %v2072
    %2074 = vmatprep.mubr.bf16.mxu0 0
    %2075 = vmatmul.mubr.bf16.gmra.mrb[0].mxu0 %v2017
    %v2076 = vpop.f32.mrb[0].mxu0
    %v2077 = vadd.f32 0.0, %v2076
    %v2078 = vpop.f32.mrb[0].mxu0
    %v2079 = vadd.f32 0.0, %v2078
    %v2080 = vpop.f32.mrb[0].mxu0
    %v2081 = vadd.f32 0.0, %v2080
    %v2082 = vpop.f32.mrb[0].mxu0
    %v2083 = vadd.f32 0.0, %v2082
    %2084 = vmatprep.mubr.bf16.mxu0 0
    %2085 = vmatmul.mubr.bf16.gmra.mrb[0].mxu0 %v2020
    %v2086 = vpop.f32.mrb[0].mxu0
    %v2087 = vadd.f32 0.0, %v2086
    %v2088 = vpop.f32.mrb[0].mxu0
    %v2089 = vadd.f32 0.0, %v2088
    %v2090 = vpop.f32.mrb[0].mxu0
    %v2091 = vpop.f32.mrb[0].mxu0
    %2092 = vdwg.mxu0
    %2093 = vmatprep.subr.bf16.mxu0 %v114
    %2094 = vmatpush1.bf16.msra.mxu0 %v113
    %2095 = vmatprep.subr.bf16.mxu0 %v147
    %2096 = vmatpush1.bf16.msra.mxu0 %v144
    %2097 = vmatprep.subr.bf16.mxu0 0
    %2098 = vmatpush1.bf16.msra.mxu0 0
    %2099 = vmatprep.subr.bf16.mxu0 0
    %2100 = vmatpush1.bf16.msra.mxu0 0
    %2101 = vmatprep.subr.bf16.mxu0 0
    %2102 = vmatpush1.bf16.msra.mxu0 0
    %2103 = vmatprep.subr.bf16.mxu0 0
    %2104 = vmatpush1.bf16.msra.mxu0 0
    %2105 = vmatprep.subr.bf16.mxu0 0
    %2106 = vmatpush1.bf16.msra.mxu0 0
    %2107 = vmatprep.subr.bf16.mxu0 0
    %2108 = vmatpush1.bf16.msra.mxu0 0
    %2109 = vmatprep.subr.bf16.mxu0 0
    %2110 = vmatpush1.bf16.msra.mxu0 0
    %2111 = vmatprep.subr.bf16.mxu0 0
    %2112 = vmatpush1.bf16.msra.mxu0 0
    %2113 = vmatprep.subr.bf16.mxu0 0
    %2114 = vmatpush1.bf16.msra.mxu0 0
    %2115 = vmatprep.subr.bf16.mxu0 0
    %2116 = vmatpush1.bf16.msra.mxu0 0
    %2117 = vmatprep.subr.bf16.mxu0 0
    %2118 = vmatpush1.bf16.msra.mxu0 0
    %2119 = vmatprep.subr.bf16.mxu0 0
    %2120 = vmatpush1.bf16.msra.mxu0 0
    %2121 = vmatprep.subr.bf16.mxu0 0
    %2122 = vmatpush1.bf16.msra.mxu0 0
    %2123 = vmatprep.subr.bf16.mxu0 0
    %2124 = vmatpush1.bf16.msra.mxu0 0
    %2125 = vmatprep.mubr.bf16.mxu0 0
    %2126 = vmatmul.mubr.bf16.gmra.mrb[0].mxu0 %v2011
    %v2127 = vpop.f32.mrb[0].mxu0
    %v2128 = vadd.f32 0.0, %v2127
    %v2129 = vpop.f32.mrb[0].mxu0
    %v2130 = vadd.f32 0.0, %v2129
    %v2131 = vpop.f32.mrb[0].mxu0
    %v2132 = vadd.f32 0.0, %v2131
    %v2133 = vpop.f32.mrb[0].mxu0
    %v2134 = vadd.f32 0.0, %v2133
    %2135 = vmatprep.mubr.bf16.mxu0 0
    %2136 = vmatmul.mubr.bf16.gmra.mrb[0].mxu0 %v2014
    %v2137 = vpop.f32.mrb[0].mxu0
    %v2138 = vadd.f32 0.0, %v2137
    %v2139 = vpop.f32.mrb[0].mxu0
    %v2140 = vadd.f32 0.0, %v2139
    %v2141 = vpop.f32.mrb[0].mxu0
    %v2142 = vadd.f32 0.0, %v2141
    %v2143 = vpop.f32.mrb[0].mxu0
    %v2144 = vadd.f32 0.0, %v2143
    %2145 = vmatprep.mubr.bf16.mxu0 0
    %2146 = vmatmul.mubr.bf16.gmra.mrb[0].mxu0 %v2017
    %v2147 = vpop.f32.mrb[0].mxu0
    %v2148 = vadd.f32 0.0, %v2147
    %v2149 = vpop.f32.mrb[0].mxu0
    %v2150 = vadd.f32 0.0, %v2149
    %v2151 = vpop.f32.mrb[0].mxu0
    %v2152 = vadd.f32 0.0, %v2151
    %v2153 = vpop.f32.mrb[0].mxu0
    %v2154 = vadd.f32 0.0, %v2153
    %2155 = vmatprep.mubr.bf16.mxu0 0
    %2156 = vmatmul.mubr.bf16.gmra.mrb[0].mxu0 %v2020
    %v2157 = vpop.f32.mrb[0].mxu0
    %v2158 = vadd.f32 0.0, %v2157
    %v2159 = vpop.f32.mrb[0].mxu0
    %v2160 = vadd.f32 0.0, %v2159
    %v2161 = vpop.f32.mrb[0].mxu0
    %v2162 = vpop.f32.mrb[0].mxu0
    %2163 = vdwg.mxu0
    %v2165 = vsel %vm123, %v1994, 0
    %v2168 = vsel %vm123, %v1995, 0
    %v2171 = vsel %vm123, %v1996, 0
    %v2174 = vsel %vm123, %v1997, 0
    %2176 = vmatprep.subr.bf16.mxu0 %v316
    %2177 = vmatpush1.bf16.msra.mxu0 %v315
    %2178 = vmatprep.subr.bf16.mxu0 %v343
    %2179 = vmatpush1.bf16.msra.mxu0 %v340
    %2180 = vmatprep.subr.bf16.mxu0 0
    %2181 = vmatpush1.bf16.msra.mxu0 0
    %2182 = vmatprep.subr.bf16.mxu0 0
    %2183 = vmatpush1.bf16.msra.mxu0 0
    %2184 = vmatprep.subr.bf16.mxu0 0
    %2185 = vmatpush1.bf16.msra.mxu0 0
    %2186 = vmatprep.subr.bf16.mxu0 0
    %2187 = vmatpush1.bf16.msra.mxu0 0
    %2188 = vmatprep.subr.bf16.mxu0 0
    %2189 = vmatpush1.bf16.msra.mxu0 0
    %2190 = vmatprep.subr.bf16.mxu0 0
    %2191 = vmatpush1.bf16.msra.mxu0 0
    %2192 = vmatprep.subr.bf16.mxu0 0
    %2193 = vmatpush1.bf16.msra.mxu0 0
    %2194 = vmatprep.subr.bf16.mxu0 0
    %2195 = vmatpush1.bf16.msra.mxu0 0
    %2196 = vmatprep.subr.bf16.mxu0 0
    %2197 = vmatpush1.bf16.msra.mxu0 0
    %2198 = vmatprep.subr.bf16.mxu0 0
    %2199 = vmatpush1.bf16.msra.mxu0 0
    %2200 = vmatprep.subr.bf16.mxu0 0
    %2201 = vmatpush1.bf16.msra.mxu0 0
    %2202 = vmatprep.subr.bf16.mxu0 0
    %2203 = vmatpush1.bf16.msra.mxu0 0
    %2204 = vmatprep.subr.bf16.mxu0 0
    %2205 = vmatpush1.bf16.msra.mxu0 0
    %2206 = vmatprep.subr.bf16.mxu0 0
    %2207 = vmatpush1.bf16.msra.mxu0 0
    %2208 = vmatprep.mubr.bf16.mxu0 0
    %2209 = vmatmul.mubr.bf16.gmra.mrb[0].mxu0 %v2165
    %v2210 = vpop.f32.mrb[0].mxu0
    %v2211 = vadd.f32 %v2057, %v2210
    %v2212 = vpop.f32.mrb[0].mxu0
    %v2213 = vadd.f32 %v2059, %v2212
    %v2214 = vpop.f32.mrb[0].mxu0
    %v2215 = vadd.f32 %v2061, %v2214
    %v2216 = vpop.f32.mrb[0].mxu0
    %v2217 = vadd.f32 %v2063, %v2216
    %2218 = vmatprep.mubr.bf16.mxu0 0
    %2219 = vmatmul.mubr.bf16.gmra.mrb[0].mxu0 %v2168
    %v2220 = vpop.f32.mrb[0].mxu0
    %v2221 = vadd.f32 %v2067, %v2220
    %v2222 = vpop.f32.mrb[0].mxu0
    %v2223 = vadd.f32 %v2069, %v2222
    %v2224 = vpop.f32.mrb[0].mxu0
    %v2225 = vadd.f32 %v2071, %v2224
    %v2226 = vpop.f32.mrb[0].mxu0
    %v2227 = vadd.f32 %v2073, %v2226
    %2228 = vmatprep.mubr.bf16.mxu0 0
    %2229 = vmatmul.mubr.bf16.gmra.mrb[0].mxu0 %v2171
    %v2230 = vpop.f32.mrb[0].mxu0
    %v2231 = vadd.f32 %v2077, %v2230
    %v2232 = vpop.f32.mrb[0].mxu0
    %v2233 = vadd.f32 %v2079, %v2232
    %v2234 = vpop.f32.mrb[0].mxu0
    %v2235 = vadd.f32 %v2081, %v2234
    %v2236 = vpop.f32.mrb[0].mxu0
    %v2237 = vadd.f32 %v2083, %v2236
    %2238 = vmatprep.mubr.bf16.mxu0 0
    %2239 = vmatmul.mubr.bf16.gmra.mrb[0].mxu0 %v2174
    %v2240 = vpop.f32.mrb[0].mxu0
    %v2241 = vadd.f32 %v2087, %v2240
    %v2242 = vpop.f32.mrb[0].mxu0
    %v2243 = vadd.f32 %v2089, %v2242
    %v2244 = vpop.f32.mrb[0].mxu0
    %v2245 = vpop.f32.mrb[0].mxu0
    %2246 = vdwg.mxu0
    %2247 = vmatprep.subr.bf16.mxu0 %v318
    %2248 = vmatpush1.bf16.msra.mxu0 %v317
    %2249 = vmatprep.subr.bf16.mxu0 %v349
    %2250 = vmatpush1.bf16.msra.mxu0 %v346
    %2251 = vmatprep.subr.bf16.mxu0 0
    %2252 = vmatpush1.bf16.msra.mxu0 0
    %2253 = vmatprep.subr.bf16.mxu0 0
    %2254 = vmatpush1.bf16.msra.mxu0 0
    %2255 = vmatprep.subr.bf16.mxu0 0
    %2256 = vmatpush1.bf16.msra.mxu0 0
    %2257 = vmatprep.subr.bf16.mxu0 0
    %2258 = vmatpush1.bf16.msra.mxu0 0
    %2259 = vmatprep.subr.bf16.mxu0 0
    %2260 = vmatpush1.bf16.msra.mxu0 0
    %2261 = vmatprep.subr.bf16.mxu0 0
    %2262 = vmatpush1.bf16.msra.mxu0 0
    %2263 = vmatprep.subr.bf16.mxu0 0
    %2264 = vmatpush1.bf16.msra.mxu0 0
    %2265 = vmatprep.subr.bf16.mxu0 0
    %2266 = vmatpush1.bf16.msra.mxu0 0
    %2267 = vmatprep.subr.bf16.mxu0 0
    %2268 = vmatpush1.bf16.msra.mxu0 0
    %2269 = vmatprep.subr.bf16.mxu0 0
    %2270 = vmatpush1.bf16.msra.mxu0 0
    %2271 = vmatprep.subr.bf16.mxu0 0
    %2272 = vmatpush1.bf16.msra.mxu0 0
    %2273 = vmatprep.subr.bf16.mxu0 0
    %2274 = vmatpush1.bf16.msra.mxu0 0
    %2275 = vmatprep.subr.bf16.mxu0 0
    %2276 = vmatpush1.bf16.msra.mxu0 0
    %2277 = vmatprep.subr.bf16.mxu0 0
    %2278 = vmatpush1.bf16.msra.mxu0 0
    %2279 = vmatprep.mubr.bf16.mxu0 0
    %2280 = vmatmul.mubr.bf16.gmra.mrb[0].mxu0 %v2165
    %v2281 = vpop.f32.mrb[0].mxu0
    %v2282 = vadd.f32 %v2128, %v2281
    %v2283 = vpop.f32.mrb[0].mxu0
    %v2284 = vadd.f32 %v2130, %v2283
    %v2285 = vpop.f32.mrb[0].mxu0
    %v2286 = vadd.f32 %v2132, %v2285
    %v2287 = vpop.f32.mrb[0].mxu0
    %v2288 = vadd.f32 %v2134, %v2287
    %2289 = vmatprep.mubr.bf16.mxu0 0
    %2290 = vmatmul.mubr.bf16.gmra.mrb[0].mxu0 %v2168
    %v2291 = vpop.f32.mrb[0].mxu0
    %v2292 = vadd.f32 %v2138, %v2291
    %v2293 = vpop.f32.mrb[0].mxu0
    %v2294 = vadd.f32 %v2140, %v2293
    %v2295 = vpop.f32.mrb[0].mxu0
    %v2296 = vadd.f32 %v2142, %v2295
    %v2297 = vpop.f32.mrb[0].mxu0
    %v2298 = vadd.f32 %v2144, %v2297
    %2299 = vmatprep.mubr.bf16.mxu0 0
    %2300 = vmatmul.mubr.bf16.gmra.mrb[0].mxu0 %v2171
    %v2301 = vpop.f32.mrb[0].mxu0
    %v2302 = vadd.f32 %v2148, %v2301
    %v2303 = vpop.f32.mrb[0].mxu0
    %v2304 = vadd.f32 %v2150, %v2303
    %v2305 = vpop.f32.mrb[0].mxu0
    %v2306 = vadd.f32 %v2152, %v2305
    %v2307 = vpop.f32.mrb[0].mxu0
    %v2308 = vadd.f32 %v2154, %v2307
    %2309 = vmatprep.mubr.bf16.mxu0 0
    %2310 = vmatmul.mubr.bf16.gmra.mrb[0].mxu0 %v2174
    %v2311 = vpop.f32.mrb[0].mxu0
    %v2312 = vadd.f32 %v2158, %v2311
    %v2313 = vpop.f32.mrb[0].mxu0
    %v2314 = vadd.f32 %v2160, %v2313
    %v2315 = vpop.f32.mrb[0].mxu0
    %v2316 = vpop.f32.mrb[0].mxu0
    %2317 = vdwg.mxu0
    %s2318 = scalar_lea.vmem %s0, 616
    %v2319 = vld [vmem:[%s2318] sm:$0xff]
    %v2320 = vld [vmem:[%s2318 + $0x8] sm:$0xff]
    %v2321 = vld [vmem:[%s2318 + $0x10] sm:$0xff]
    %v2322 = vld [vmem:[%s2318 + $0x18] sm:$0xff]
    %v2323 = vld [vmem:[%s2318 + $0x20] sm:$0xff]
    %v2324 = vld [vmem:[%s2318 + $0x28] sm:$0xff]
    %v2325 = vld [vmem:[%s2318 + $0x30] sm:$0xff]
    %v2326 = vpack.c.bf16 %v2320, %v2319
    %v2327 = vpack.c.bf16 %v2322, %v2321
    %v2328 = vpack.c.bf16 %v2324, %v2323
    %v2329 = vpack.c.bf16 %v2325, %v2325
    %v2331 = vsel %vm123, %v2326, 0
    %v2334 = vsel %vm123, %v2327, 0
    %v2337 = vsel %vm123, %v2328, 0
    %v2340 = vsel %vm123, %v2329, 0
    %2342 = vmatprep.subr.bf16.mxu0 %v539
    %2343 = vmatpush1.bf16.msra.mxu0 %v538
    %2344 = vmatprep.subr.bf16.mxu0 %v566
    %2345 = vmatpush1.bf16.msra.mxu0 %v563
    %2346 = vmatprep.subr.bf16.mxu0 0
    %2347 = vmatpush1.bf16.msra.mxu0 0
    %2348 = vmatprep.subr.bf16.mxu0 0
    %2349 = vmatpush1.bf16.msra.mxu0 0
    %2350 = vmatprep.subr.bf16.mxu0 0
    %2351 = vmatpush1.bf16.msra.mxu0 0
    %2352 = vmatprep.subr.bf16.mxu0 0
    %2353 = vmatpush1.bf16.msra.mxu0 0
    %2354 = vmatprep.subr.bf16.mxu0 0
    %2355 = vmatpush1.bf16.msra.mxu0 0
    %2356 = vmatprep.subr.bf16.mxu0 0
    %2357 = vmatpush1.bf16.msra.mxu0 0
    %2358 = vmatprep.subr.bf16.mxu0 0
    %2359 = vmatpush1.bf16.msra.mxu0 0
    %2360 = vmatprep.subr.bf16.mxu0 0
    %2361 = vmatpush1.bf16.msra.mxu0 0
    %2362 = vmatprep.subr.bf16.mxu0 0
    %2363 = vmatpush1.bf16.msra.mxu0 0
    %2364 = vmatprep.subr.bf16.mxu0 0
    %2365 = vmatpush1.bf16.msra.mxu0 0
    %2366 = vmatprep.subr.bf16.mxu0 0
    %2367 = vmatpush1.bf16.msra.mxu0 0
    %2368 = vmatprep.subr.bf16.mxu0 0
    %2369 = vmatpush1.bf16.msra.mxu0 0
    %2370 = vmatprep.subr.bf16.mxu0 0
    %2371 = vmatpush1.bf16.msra.mxu0 0
    %2372 = vmatprep.subr.bf16.mxu0 0
    %2373 = vmatpush1.bf16.msra.mxu0 0
    %2374 = vmatprep.mubr.bf16.mxu0 0
    %2375 = vmatmul.mubr.bf16.gmra.mrb[0].mxu0 %v2331
    %v2376 = vpop.f32.mrb[0].mxu0
    %v2377 = vadd.f32 0.0, %v2376
    %v2378 = vpop.f32.mrb[0].mxu0
    %v2379 = vadd.f32 0.0, %v2378
    %v2380 = vpop.f32.mrb[0].mxu0
    %v2381 = vadd.f32 0.0, %v2380
    %v2382 = vpop.f32.mrb[0].mxu0
    %v2383 = vadd.f32 0.0, %v2382
    %2384 = vmatprep.mubr.bf16.mxu0 0
    %2385 = vmatmul.mubr.bf16.gmra.mrb[0].mxu0 %v2334
    %v2386 = vpop.f32.mrb[0].mxu0
    %v2387 = vadd.f32 0.0, %v2386
    %v2388 = vpop.f32.mrb[0].mxu0
    %v2389 = vadd.f32 0.0, %v2388
    %v2390 = vpop.f32.mrb[0].mxu0
    %v2391 = vadd.f32 0.0, %v2390
    %v2392 = vpop.f32.mrb[0].mxu0
    %v2393 = vadd.f32 0.0, %v2392
    %2394 = vmatprep.mubr.bf16.mxu0 0
    %2395 = vmatmul.mubr.bf16.gmra.mrb[0].mxu0 %v2337
    %v2396 = vpop.f32.mrb[0].mxu0
    %v2397 = vadd.f32 0.0, %v2396
    %v2398 = vpop.f32.mrb[0].mxu0
    %v2399 = vadd.f32 0.0, %v2398
    %v2400 = vpop.f32.mrb[0].mxu0
    %v2401 = vadd.f32 0.0, %v2400
    %v2402 = vpop.f32.mrb[0].mxu0
    %v2403 = vadd.f32 0.0, %v2402
    %2404 = vmatprep.mubr.bf16.mxu0 0
    %2405 = vmatmul.mubr.bf16.gmra.mrb[0].mxu0 %v2340
    %v2406 = vpop.f32.mrb[0].mxu0
    %v2407 = vadd.f32 0.0, %v2406
    %v2408 = vpop.f32.mrb[0].mxu0
    %v2409 = vadd.f32 0.0, %v2408
    %v2410 = vpop.f32.mrb[0].mxu0
    %v2411 = vpop.f32.mrb[0].mxu0
    %2412 = vdwg.mxu0
    %2413 = vmatprep.subr.bf16.mxu0 %v541
    %2414 = vmatpush1.bf16.msra.mxu0 %v540
    %2415 = vmatprep.subr.bf16.mxu0 %v572
    %2416 = vmatpush1.bf16.msra.mxu0 %v569
    %2417 = vmatprep.subr.bf16.mxu0 0
    %2418 = vmatpush1.bf16.msra.mxu0 0
    %2419 = vmatprep.subr.bf16.mxu0 0
    %2420 = vmatpush1.bf16.msra.mxu0 0
    %2421 = vmatprep.subr.bf16.mxu0 0
    %2422 = vmatpush1.bf16.msra.mxu0 0
    %2423 = vmatprep.subr.bf16.mxu0 0
    %2424 = vmatpush1.bf16.msra.mxu0 0
    %2425 = vmatprep.subr.bf16.mxu0 0
    %2426 = vmatpush1.bf16.msra.mxu0 0
    %2427 = vmatprep.subr.bf16.mxu0 0
    %2428 = vmatpush1.bf16.msra.mxu0 0
    %2429 = vmatprep.subr.bf16.mxu0 0
    %2430 = vmatpush1.bf16.msra.mxu0 0
    %2431 = vmatprep.subr.bf16.mxu0 0
    %2432 = vmatpush1.bf16.msra.mxu0 0
    %2433 = vmatprep.subr.bf16.mxu0 0
    %2434 = vmatpush1.bf16.msra.mxu0 0
    %2435 = vmatprep.subr.bf16.mxu0 0
    %2436 = vmatpush1.bf16.msra.mxu0 0
    %2437 = vmatprep.subr.bf16.mxu0 0
    %2438 = vmatpush1.bf16.msra.mxu0 0
    %2439 = vmatprep.subr.bf16.mxu0 0
    %2440 = vmatpush1.bf16.msra.mxu0 0
    %2441 = vmatprep.subr.bf16.mxu0 0
    %2442 = vmatpush1.bf16.msra.mxu0 0
    %2443 = vmatprep.subr.bf16.mxu0 0
    %2444 = vmatpush1.bf16.msra.mxu0 0
    %2445 = vmatprep.mubr.bf16.mxu0 0
    %2446 = vmatmul.mubr.bf16.gmra.mrb[0].mxu0 %v2331
    %v2447 = vpop.f32.mrb[0].mxu0
    %v2448 = vadd.f32 0.0, %v2447
    %v2449 = vpop.f32.mrb[0].mxu0
    %v2450 = vadd.f32 0.0, %v2449
    %v2451 = vpop.f32.mrb[0].mxu0
    %v2452 = vadd.f32 0.0, %v2451
    %v2453 = vpop.f32.mrb[0].mxu0
    %v2454 = vadd.f32 0.0, %v2453
    %2455 = vmatprep.mubr.bf16.mxu0 0
    %2456 = vmatmul.mubr.bf16.gmra.mrb[0].mxu0 %v2334
    %v2457 = vpop.f32.mrb[0].mxu0
    %v2458 = vadd.f32 0.0, %v2457
    %v2459 = vpop.f32.mrb[0].mxu0
    %v2460 = vadd.f32 0.0, %v2459
    %v2461 = vpop.f32.mrb[0].mxu0
    %v2462 = vadd.f32 0.0, %v2461
    %v2463 = vpop.f32.mrb[0].mxu0
    %v2464 = vadd.f32 0.0, %v2463
    %2465 = vmatprep.mubr.bf16.mxu0 0
    %2466 = vmatmul.mubr.bf16.gmra.mrb[0].mxu0 %v2337
    %v2467 = vpop.f32.mrb[0].mxu0
    %v2468 = vadd.f32 0.0, %v2467
    %v2469 = vpop.f32.mrb[0].mxu0
    %v2470 = vadd.f32 0.0, %v2469
    %v2471 = vpop.f32.mrb[0].mxu0
    %v2472 = vadd.f32 0.0, %v2471
    %v2473 = vpop.f32.mrb[0].mxu0
    %v2474 = vadd.f32 0.0, %v2473
    %2475 = vmatprep.mubr.bf16.mxu0 0
    %2476 = vmatmul.mubr.bf16.gmra.mrb[0].mxu0 %v2340
    %v2477 = vpop.f32.mrb[0].mxu0
    %v2478 = vadd.f32 0.0, %v2477
    %v2479 = vpop.f32.mrb[0].mxu0
    %v2480 = vadd.f32 0.0, %v2479
    %v2481 = vpop.f32.mrb[0].mxu0
    %v2482 = vpop.f32.mrb[0].mxu0
    %2483 = vdwg.mxu0
    %v2484 = vadd.f32 %v2211, %v2377
    %v2485 = vadd.f32 %v2213, %v2379
    %v2486 = vadd.f32 %v2282, %v2448
    %v2487 = vadd.f32 %v2284, %v2450
    %v2488 = vadd.f32 %v2215, %v2381
    %v2489 = vadd.f32 %v2217, %v2383
    %v2490 = vadd.f32 %v2286, %v2452
    %v2491 = vadd.f32 %v2288, %v2454
    %v2492 = vadd.f32 %v2221, %v2387
    %v2493 = vadd.f32 %v2223, %v2389
    %v2494 = vadd.f32 %v2292, %v2458
    %v2495 = vadd.f32 %v2294, %v2460
    %v2496 = vadd.f32 %v2225, %v2391
    %v2497 = vadd.f32 %v2227, %v2393
    %v2498 = vadd.f32 %v2296, %v2462
    %v2499 = vadd.f32 %v2298, %v2464
    %v2500 = vadd.f32 %v2231, %v2397
    %v2501 = vadd.f32 %v2233, %v2399
    %v2502 = vadd.f32 %v2302, %v2468
    %v2503 = vadd.f32 %v2304, %v2470
    %v2504 = vadd.f32 %v2235, %v2401
    %v2505 = vadd.f32 %v2237, %v2403
    %v2506 = vadd.f32 %v2306, %v2472
    %v2507 = vadd.f32 %v2308, %v2474
    %v2508 = vadd.f32 %v2241, %v2407
    %v2509 = vadd.f32 %v2243, %v2409
    %v2510 = vadd.f32 %v2312, %v2478
    %v2511 = vadd.f32 %v2314, %v2480
    %v2512 = vadd.f32 %v2484, %v749
    %v2513 = vadd.f32 %v2485, %v753
    %v2514 = vadd.f32 %v2486, %v757
    %v2515 = vadd.f32 %v2487, %v761
    %v2516 = vadd.f32 %v2488, %v749
    %v2517 = vadd.f32 %v2489, %v753
    %v2518 = vadd.f32 %v2490, %v757
    %v2519 = vadd.f32 %v2491, %v761
    %v2520 = vadd.f32 %v2492, %v749
    %v2521 = vadd.f32 %v2493, %v753
    %v2522 = vadd.f32 %v2494, %v757
    %v2523 = vadd.f32 %v2495, %v761
    %v2524 = vadd.f32 %v2496, %v749
    %v2525 = vadd.f32 %v2497, %v753
    %v2526 = vadd.f32 %v2498, %v757
    %v2527 = vadd.f32 %v2499, %v761
    %v2528 = vadd.f32 %v2500, %v749
    %v2529 = vadd.f32 %v2501, %v753
    %v2530 = vadd.f32 %v2502, %v757
    %v2531 = vadd.f32 %v2503, %v761
    %v2532 = vadd.f32 %v2504, %v749
    %v2533 = vadd.f32 %v2505, %v753
    %v2534 = vadd.f32 %v2506, %v757
    %v2535 = vadd.f32 %v2507, %v761
    %v2536 = vadd.f32 %v2508, %v749
    %v2537 = vadd.f32 %v2509, %v753
    %v2538 = vadd.f32 %v2510, %v757
    %v2539 = vadd.f32 %v2511, %v761
    %v2540 = vmax.f32 %v2512, 0.0
    %v2541 = vmax.f32 %v2513, 0.0
    %v2542 = vmax.f32 %v2514, 0.0
    %v2543 = vmax.f32 %v2515, 0.0
    %v2544 = vmax.f32 %v2516, 0.0
    %v2545 = vmax.f32 %v2517, 0.0
    %v2546 = vmax.f32 %v2518, 0.0
    %v2547 = vmax.f32 %v2519, 0.0
    %v2548 = vmax.f32 %v2520, 0.0
    %v2549 = vmax.f32 %v2521, 0.0
    %v2550 = vmax.f32 %v2522, 0.0
    %v2551 = vmax.f32 %v2523, 0.0
    %v2552 = vmax.f32 %v2524, 0.0
    %v2553 = vmax.f32 %v2525, 0.0
    %v2554 = vmax.f32 %v2526, 0.0
    %v2555 = vmax.f32 %v2527, 0.0
    %v2556 = vmax.f32 %v2528, 0.0
    %v2557 = vmax.f32 %v2529, 0.0
    %v2558 = vmax.f32 %v2530, 0.0
    %v2559 = vmax.f32 %v2531, 0.0
    %v2560 = vmax.f32 %v2532, 0.0
    %v2561 = vmax.f32 %v2533, 0.0
    %v2562 = vmax.f32 %v2534, 0.0
    %v2563 = vmax.f32 %v2535, 0.0
    %v2564 = vmax.f32 %v2536, 0.0
    %v2565 = vmax.f32 %v2537, 0.0
    %v2566 = vmax.f32 %v2538, 0.0
    %v2567 = vmax.f32 %v2539, 0.0
    %v2568 = vmax.f32 %v794, %v1376
    %v2569 = vmax.f32 %v795, %v1377
    %v2570 = vmax.f32 %v796, %v1378
    %v2571 = vmax.f32 %v797, %v1379
    %v2572 = vmax.f32 %v798, %v1380
    %v2573 = vmax.f32 %v799, %v1381
    %v2574 = vmax.f32 %v800, %v1382
    %v2575 = vmax.f32 %v801, %v1383
    %v2576 = vmax.f32 %v802, %v1384
    %v2577 = vmax.f32 %v803, %v1385
    %v2578 = vmax.f32 %v804, %v1386
    %v2579 = vmax.f32 %v805, %v1387
    %v2580 = vmax.f32 %v806, %v1388
    %v2581 = vmax.f32 %v807, %v1389
    %v2582 = vmax.f32 %v808, %v1390
    %v2583 = vmax.f32 %v809, %v1391
    %v2584 = vmax.f32 %v810, %v1392
    %v2585 = vmax.f32 %v811, %v1393
    %v2586 = vmax.f32 %v812, %v1394
    %v2587 = vmax.f32 %v813, %v1395
    %v2588 = vmax.f32 %v814, %v1396
    %v2589 = vmax.f32 %v815, %v1397
    %v2590 = vmax.f32 %v816, %v1398
    %v2591 = vmax.f32 %v817, %v1399
    %v2592 = vmax.f32 %v818, %v1400
    %v2593 = vmax.f32 %v819, %v1401
    %v2594 = vmax.f32 %v820, %v1402
    %v2595 = vmax.f32 %v821, %v1403
    %v2596 = vmax.f32 %v1958, %v2540
    %v2597 = vmax.f32 %v1959, %v2541
    %v2598 = vmax.f32 %v1960, %v2542
    %v2599 = vmax.f32 %v1961, %v2543
    %v2600 = vmax.f32 %v1962, %v2544
    %v2601 = vmax.f32 %v1963, %v2545
    %v2602 = vmax.f32 %v1964, %v2546
    %v2603 = vmax.f32 %v1965, %v2547
    %v2604 = vmax.f32 %v1966, %v2548
    %v2605 = vmax.f32 %v1967, %v2549
    %v2606 = vmax.f32 %v1968, %v2550
    %v2607 = vmax.f32 %v1969, %v2551
    %v2608 = vmax.f32 %v1970, %v2552
    %v2609 = vmax.f32 %v1971, %v2553
    %v2610 = vmax.f32 %v1972, %v2554
    %v2611 = vmax.f32 %v1973, %v2555
    %v2612 = vmax.f32 %v1974, %v2556
    %v2613 = vmax.f32 %v1975, %v2557
    %v2614 = vmax.f32 %v1976, %v2558
    %v2615 = vmax.f32 %v1977, %v2559
    %v2616 = vmax.f32 %v1978, %v2560
    %v2617 = vmax.f32 %v1979, %v2561
    %v2618 = vmax.f32 %v1980, %v2562
    %v2619 = vmax.f32 %v1981, %v2563
    %v2620 = vmax.f32 %v1982, %v2564
    %v2621 = vmax.f32 %v1983, %v2565
    %v2622 = vmax.f32 %v1984, %v2566
    %v2623 = vmax.f32 %v1985, %v2567
    %v2624 = vmax.f32 %v2568, %v2570
    %v2625 = vmax.f32 %v2569, %v2571
    %v2626 = vmax.f32 %v2572, %v2574
    %v2627 = vmax.f32 %v2573, %v2575
    %v2628 = vmax.f32 %v2576, %v2578
    %v2629 = vmax.f32 %v2577, %v2579
    %v2630 = vmax.f32 %v2580, %v2582
    %v2631 = vmax.f32 %v2581, %v2583
    %v2632 = vmax.f32 %v2584, %v2586
    %v2633 = vmax.f32 %v2585, %v2587
    %v2634 = vmax.f32 %v2588, %v2590
    %v2635 = vmax.f32 %v2589, %v2591
    %v2636 = vmax.f32 %v2592, %v2594
    %v2637 = vmax.f32 %v2593, %v2595
    %v2638 = vmax.f32 %v2596, %v2598
    %v2639 = vmax.f32 %v2597, %v2599
    %v2640 = vmax.f32 %v2600, %v2602
    %v2641 = vmax.f32 %v2601, %v2603
    %v2642 = vmax.f32 %v2604, %v2606
    %v2643 = vmax.f32 %v2605, %v2607
    %v2644 = vmax.f32 %v2608, %v2610
    %v2645 = vmax.f32 %v2609, %v2611
    %v2646 = vmax.f32 %v2612, %v2614
    %v2647 = vmax.f32 %v2613, %v2615
    %v2648 = vmax.f32 %v2616, %v2618
    %v2649 = vmax.f32 %v2617, %v2619
    %v2650 = vmax.f32 %v2620, %v2622
    %v2651 = vmax.f32 %v2621, %v2623
    %2652 = vst [vmem:[#allocation2] sm:$0xff] %v2624
    %2653 = vst [vmem:[#allocation2 + $0x8] sm:$0xff] %v2625
    %2654 = vst [vmem:[#allocation2 + $0x10] sm:$0xff] %v2626
    %2655 = vst [vmem:[#allocation2 + $0x18] sm:$0xff] %v2627
    %2656 = vst [vmem:[#allocation2 + $0x20] sm:$0xff] %v2628
    %2657 = vst [vmem:[#allocation2 + $0x28] sm:$0xff] %v2629
    %2658 = vst [vmem:[#allocation2 + $0x30] sm:$0xff] %v2630
    %2659 = vst [vmem:[#allocation2 + $0x38] sm:$0xff] %v2631
    %2660 = vst [vmem:[#allocation2 + $0x40] sm:$0xff] %v2632
    %2661 = vst [vmem:[#allocation2 + $0x48] sm:$0xff] %v2633
    %2662 = vst [vmem:[#allocation2 + $0x50] sm:$0xff] %v2634
    %2663 = vst [vmem:[#allocation2 + $0x58] sm:$0xff] %v2635
    %2664 = vst [vmem:[#allocation2 + $0x60] sm:$0xff] %v2636
    %2665 = vst [vmem:[#allocation2 + $0x68] sm:$0xff] %v2637
    %2666 = vst [vmem:[#allocation2 + $0x70] sm:$0xff] 0.0
    %2667 = vst [vmem:[#allocation2 + $0x78] sm:$0xff] 0.0
    %2668 = vst [vmem:[#allocation2 + $0x80] sm:$0xff] %v2638
    %2669 = vst [vmem:[#allocation2 + $0x88] sm:$0xff] %v2639
    %2670 = vst [vmem:[#allocation2 + $0x90] sm:$0xff] %v2640
    %2671 = vst [vmem:[#allocation2 + $0x98] sm:$0xff] %v2641
    %2672 = vst [vmem:[#allocation2 + $0xa0] sm:$0xff] %v2642
    %2673 = vst [vmem:[#allocation2 + $0xa8] sm:$0xff] %v2643
    %2674 = vst [vmem:[#allocation2 + $0xb0] sm:$0xff] %v2644
    %2675 = vst [vmem:[#allocation2 + $0xb8] sm:$0xff] %v2645
    %2676 = vst [vmem:[#allocation2 + $0xc0] sm:$0xff] %v2646
    %2677 = vst [vmem:[#allocation2 + $0xc8] sm:$0xff] %v2647
    %2678 = vst [vmem:[#allocation2 + $0xd0] sm:$0xff] %v2648
    %2679 = vst [vmem:[#allocation2 + $0xd8] sm:$0xff] %v2649
    %2680 = vst [vmem:[#allocation2 + $0xe0] sm:$0xff] %v2650
    %2681 = vst [vmem:[#allocation2 + $0xe8] sm:$0xff] %v2651
    %v2682 = vld [vmem:[#allocation2] sm:$0xff]
    %v2683 = vld [vmem:[#allocation2 + $0x8] sm:$0xff]
    %v2684 = vld [vmem:[#allocation2 + $0x10] sm:$0xff]
    %v2685 = vld [vmem:[#allocation2 + $0x18] sm:$0xff]
    %v2686 = vld [vmem:[#allocation2 + $0x20] sm:$0xff]
    %v2687 = vld [vmem:[#allocation2 + $0x28] sm:$0xff]
    %v2688 = vld [vmem:[#allocation2 + $0x30] sm:$0xff]
    %v2689 = vld [vmem:[#allocation2 + $0x38] sm:$0xff]
    %v2690 = vld [vmem:[#allocation2 + $0x40] sm:$0xff]
    %v2691 = vld [vmem:[#allocation2 + $0x48] sm:$0xff]
    %v2692 = vld [vmem:[#allocation2 + $0x50] sm:$0xff]
    %v2693 = vld [vmem:[#allocation2 + $0x58] sm:$0xff]
    %v2694 = vld [vmem:[#allocation2 + $0x60] sm:$0xff]
    %v2695 = vld [vmem:[#allocation2 + $0x68] sm:$0xff]
    %v2696 = vld [vmem:[#allocation2 + $0x70] sm:$0xff]
    %v2697 = vld [vmem:[#allocation2 + $0x78] sm:$0xff]
    %v2698 = vld [vmem:[#allocation2 + $0x80] sm:$0xff]
    %v2699 = vld [vmem:[#allocation2 + $0x88] sm:$0xff]
    %v2700 = vld [vmem:[#allocation2 + $0x90] sm:$0xff]
    %v2701 = vld [vmem:[#allocation2 + $0x98] sm:$0xff]
    %v2702 = vld [vmem:[#allocation2 + $0xa0] sm:$0xff]
    %v2703 = vld [vmem:[#allocation2 + $0xa8] sm:$0xff]
    %v2704 = vld [vmem:[#allocation2 + $0xb0] sm:$0xff]
    %v2705 = vld [vmem:[#allocation2 + $0xb8] sm:$0xff]
    %v2706 = vld [vmem:[#allocation2 + $0xc0] sm:$0xff]
    %v2707 = vld [vmem:[#allocation2 + $0xc8] sm:$0xff]
    %v2708 = vld [vmem:[#allocation2 + $0xd0] sm:$0xff]
    %v2709 = vld [vmem:[#allocation2 + $0xd8] sm:$0xff]
    %v2710 = vld [vmem:[#allocation2 + $0x80] sm:$0xff]
    %v2711 = vld [vmem:[#allocation2 + $0x88] sm:$0xff]
    %v2712 = vld [vmem:[#allocation2 + $0x90] sm:$0xff]
    %v2713 = vld [vmem:[#allocation2 + $0x98] sm:$0xff]
    %v2714 = vld [vmem:[#allocation2 + $0xa0] sm:$0xff]
    %v2715 = vld [vmem:[#allocation2 + $0xa8] sm:$0xff]
    %v2716 = vld [vmem:[#allocation2 + $0xb0] sm:$0xff]
    %v2717 = vld [vmem:[#allocation2 + $0xb8] sm:$0xff]
    %v2718 = vld [vmem:[#allocation2 + $0xc0] sm:$0xff]
    %v2719 = vld [vmem:[#allocation2 + $0xc8] sm:$0xff]
    %v2720 = vld [vmem:[#allocation2 + $0xd0] sm:$0xff]
    %v2721 = vld [vmem:[#allocation2 + $0xd8] sm:$0xff]
    %v2722 = vld [vmem:[#allocation2 + $0xe0] sm:$0xff]
    %v2723 = vld [vmem:[#allocation2 + $0xe8] sm:$0xff]
    %v2724 = vld [vmem:[%s3] sm:$0xff]
    %v2725 = vld [vmem:[%s3 + $0x8] sm:$0xff]
    %v2726 = vld [vmem:[%s3 + $0x10] sm:$0xff]
    %v2727 = vld [vmem:[%s3 + $0x18] sm:$0xff]
    %v2728 = vld [vmem:[%s3 + $0x20] sm:$0xff]
    %v2729 = vld [vmem:[%s3 + $0x28] sm:$0xff]
    %v2730 = vld [vmem:[%s3 + $0x30] sm:$0xff]
    %v2731 = vld [vmem:[%s3 + $0x38] sm:$0xff]
    %v2732 = vld [vmem:[%s3 + $0x40] sm:$0xff]
    %v2733 = vld [vmem:[%s3 + $0x48] sm:$0xff]
    %v2734 = vld [vmem:[%s3 + $0x50] sm:$0xff]
    %v2735 = vld [vmem:[%s3 + $0x58] sm:$0xff]
    %v2736 = vld [vmem:[%s3 + $0x60] sm:$0xff]
    %v2737 = vld [vmem:[%s3 + $0x68] sm:$0xff]
    %v2738 = vld [vmem:[%s3 + $0x70] sm:$0xff]
    %v2739 = vld [vmem:[%s3 + $0x78] sm:$0xff]
    %v2740 = vld [vmem:[%s3 + $0x80] sm:$0xff]
    %v2741 = vld [vmem:[%s3 + $0x88] sm:$0xff]
    %v2742 = vld [vmem:[%s3 + $0x90] sm:$0xff]
    %v2743 = vld [vmem:[%s3 + $0x98] sm:$0xff]
    %v2744 = vld [vmem:[%s3 + $0xa0] sm:$0xff]
    %v2745 = vld [vmem:[%s3 + $0xa8] sm:$0xff]
    %v2746 = vld [vmem:[%s3 + $0xb0] sm:$0xff]
    %v2747 = vld [vmem:[%s3 + $0xb8] sm:$0xff]
    %v2748 = vld [vmem:[%s3 + $0xc0] sm:$0xff]
    %v2749 = vld [vmem:[%s3 + $0xc8] sm:$0xff]
    %v2750 = vld [vmem:[%s3 + $0xd0] sm:$0xff]
    %v2751 = vld [vmem:[%s3 + $0xd8] sm:$0xff]
    %v2752 = vld [vmem:[%s3 + $0xe0] sm:$0xff]
    %v2753 = vld [vmem:[%s3 + $0xe8] sm:$0xff]
    %v2754 = vld [vmem:[%s3 + $0xf0] sm:$0xff]
    %v2755 = vld [vmem:[%s3 + $0xf8] sm:$0xff]
    %v2756 = vld [vmem:[%s3 + $0x100] sm:$0xff]
    %v2757 = vld [vmem:[%s3 + $0x108] sm:$0xff]
    %v2758 = vld [vmem:[%s3 + $0x110] sm:$0xff]
    %v2759 = vld [vmem:[%s3 + $0x118] sm:$0xff]
    %v2760 = vld [vmem:[%s3 + $0x120] sm:$0xff]
    %v2761 = vld [vmem:[%s3 + $0x128] sm:$0xff]
    %v2762 = vld [vmem:[%s3 + $0x130] sm:$0xff]
    %v2763 = vld [vmem:[%s3 + $0x138] sm:$0xff]
    %v2764 = vld [vmem:[%s3 + $0x140] sm:$0xff]
    %v2765 = vld [vmem:[%s3 + $0x148] sm:$0xff]
    %v2766 = vld [vmem:[%s3 + $0x150] sm:$0xff]
    %v2767 = vld [vmem:[%s3 + $0x158] sm:$0xff]
    %v2768 = vld [vmem:[%s3 + $0x160] sm:$0xff]
    %v2769 = vld [vmem:[%s3 + $0x168] sm:$0xff]
    %v2770 = vld [vmem:[%s3 + $0x170] sm:$0xff]
    %v2771 = vld [vmem:[%s3 + $0x178] sm:$0xff]
    %v2772 = vld [vmem:[%s3 + $0x180] sm:$0xff]
    %v2773 = vld [vmem:[%s3 + $0x188] sm:$0xff]
    %v2774 = vld [vmem:[%s3 + $0x190] sm:$0xff]
    %v2775 = vld [vmem:[%s3 + $0x198] sm:$0xff]
    %v2776 = vld [vmem:[%s3 + $0x1a0] sm:$0xff]
    %v2777 = vld [vmem:[%s3 + $0x1a8] sm:$0xff]
    %v2778 = vld [vmem:[%s3 + $0x1b0] sm:$0xff]
    %v2779 = vld [vmem:[%s3 + $0x1b8] sm:$0xff]
    %v2780 = vld [vmem:[%s3 + $0x1c0] sm:$0xff]
    %v2781 = vld [vmem:[%s3 + $0x1c8] sm:$0xff]
    %v2782 = vld [vmem:[%s3 + $0x1d0] sm:$0xff]
    %v2783 = vld [vmem:[%s3 + $0x1d8] sm:$0xff]
    %v2784 = vld [vmem:[%s3 + $0x1e0] sm:$0xff]
    %v2785 = vld [vmem:[%s3 + $0x1e8] sm:$0xff]
    %v2786 = vld [vmem:[%s3 + $0x1f0] sm:$0xff]
    %v2787 = vld [vmem:[%s3 + $0x1f8] sm:$0xff]
    %v2788 = vpack.c.bf16 %v2698, %v2696
    %v2789 = vpack.c.bf16 %v2699, %v2697
    %v2790 = vpack.c.bf16 %v2702, %v2700
    %v2791 = vpack.c.bf16 %v2703, %v2701
    %v2792 = vpack.c.bf16 %v2706, %v2704
    %v2793 = vpack.c.bf16 %v2707, %v2705
    %v2794 = vpack.c.bf16 %v2708, %v2708
    %v2795 = vpack.c.bf16 %v2709, %v2709
    %s2796 = scalar_lea.vmem %s3, 512
    %v2797 = vld [vmem:[%s2796] sm:$0xff]
    %v2798 = vld [vmem:[%s2796 + $0x8] sm:$0xff]
    %v2799 = vld [vmem:[%s2796 + $0x10] sm:$0xff]
    %v2800 = vld [vmem:[%s2796 + $0x18] sm:$0xff]
    %v2801 = vld [vmem:[%s2796 + $0x20] sm:$0xff]
    %v2802 = vld [vmem:[%s2796 + $0x28] sm:$0xff]
    %v2803 = vld [vmem:[%s2796 + $0x30] sm:$0xff]
    %v2804 = vld [vmem:[%s2796 + $0x38] sm:$0xff]
    %v2805 = vld [vmem:[%s2796 + $0x40] sm:$0xff]
    %v2806 = vld [vmem:[%s2796 + $0x48] sm:$0xff]
    %v2807 = vld [vmem:[%s2796 + $0x50] sm:$0xff]
    %v2808 = vld [vmem:[%s2796 + $0x58] sm:$0xff]
    %v2809 = vld [vmem:[%s2796 + $0x60] sm:$0xff]
    %v2810 = vld [vmem:[%s2796 + $0x68] sm:$0xff]
    %v2811 = vld [vmem:[%s2796 + $0x70] sm:$0xff]
    %v2812 = vld [vmem:[%s2796 + $0x78] sm:$0xff]
    %v2813 = vld [vmem:[%s2796 + $0x80] sm:$0xff]
    %v2814 = vld [vmem:[%s2796 + $0x88] sm:$0xff]
    %v2815 = vld [vmem:[%s2796 + $0x90] sm:$0xff]
    %v2816 = vld [vmem:[%s2796 + $0x98] sm:$0xff]
    %v2817 = vld [vmem:[%s2796 + $0xa0] sm:$0xff]
    %v2818 = vld [vmem:[%s2796 + $0xa8] sm:$0xff]
    %v2819 = vld [vmem:[%s2796 + $0xb0] sm:$0xff]
    %v2820 = vld [vmem:[%s2796 + $0xb8] sm:$0xff]
    %v2821 = vld [vmem:[%s2796 + $0xc0] sm:$0xff]
    %v2822 = vld [vmem:[%s2796 + $0xc8] sm:$0xff]
    %v2823 = vld [vmem:[%s2796 + $0xd0] sm:$0xff]
    %v2824 = vld [vmem:[%s2796 + $0xd8] sm:$0xff]
    %v2825 = vld [vmem:[%s2796 + $0xe0] sm:$0xff]
    %v2826 = vld [vmem:[%s2796 + $0xe8] sm:$0xff]
    %v2827 = vld [vmem:[%s2796 + $0xf0] sm:$0xff]
    %v2828 = vld [vmem:[%s2796 + $0xf8] sm:$0xff]
    %v2829 = vld [vmem:[%s2796 + $0x100] sm:$0xff]
    %v2830 = vld [vmem:[%s2796 + $0x108] sm:$0xff]
    %v2831 = vld [vmem:[%s2796 + $0x110] sm:$0xff]
    %v2832 = vld [vmem:[%s2796 + $0x118] sm:$0xff]
    %v2833 = vld [vmem:[%s2796 + $0x120] sm:$0xff]
    %v2834 = vld [vmem:[%s2796 + $0x128] sm:$0xff]
    %v2835 = vld [vmem:[%s2796 + $0x130] sm:$0xff]
    %v2836 = vld [vmem:[%s2796 + $0x138] sm:$0xff]
    %v2837 = vld [vmem:[%s2796 + $0x140] sm:$0xff]
    %v2838 = vld [vmem:[%s2796 + $0x148] sm:$0xff]
    %v2839 = vld [vmem:[%s2796 + $0x150] sm:$0xff]
    %v2840 = vld [vmem:[%s2796 + $0x158] sm:$0xff]
    %v2841 = vld [vmem:[%s2796 + $0x160] sm:$0xff]
    %v2842 = vld [vmem:[%s2796 + $0x168] sm:$0xff]
    %v2843 = vld [vmem:[%s2796 + $0x170] sm:$0xff]
    %v2844 = vld [vmem:[%s2796 + $0x178] sm:$0xff]
    %v2845 = vld [vmem:[%s2796 + $0x180] sm:$0xff]
    %v2846 = vld [vmem:[%s2796 + $0x188] sm:$0xff]
    %v2847 = vld [vmem:[%s2796 + $0x190] sm:$0xff]
    %v2848 = vld [vmem:[%s2796 + $0x198] sm:$0xff]
    %v2849 = vld [vmem:[%s2796 + $0x1a0] sm:$0xff]
    %v2850 = vld [vmem:[%s2796 + $0x1a8] sm:$0xff]
    %v2851 = vld [vmem:[%s2796 + $0x1b0] sm:$0xff]
    %v2852 = vld [vmem:[%s2796 + $0x1b8] sm:$0xff]
    %v2853 = vld [vmem:[%s2796 + $0x1c0] sm:$0xff]
    %v2854 = vld [vmem:[%s2796 + $0x1c8] sm:$0xff]
    %v2855 = vld [vmem:[%s2796 + $0x1d0] sm:$0xff]
    %v2856 = vld [vmem:[%s2796 + $0x1d8] sm:$0xff]
    %v2857 = vld [vmem:[%s2796 + $0x1e0] sm:$0xff]
    %v2858 = vld [vmem:[%s2796 + $0x1e8] sm:$0xff]
    %v2859 = vld [vmem:[%s2796 + $0x1f0] sm:$0xff]
    %v2860 = vld [vmem:[%s2796 + $0x1f8] sm:$0xff]
    %v2861 = vpack.c.bf16 %v2684, %v2682
    %v2862 = vpack.c.bf16 %v2685, %v2683
    %v2863 = vpack.c.bf16 %v2688, %v2686
    %v2864 = vpack.c.bf16 %v2689, %v2687
    %v2865 = vpack.c.bf16 %v2692, %v2690
    %v2866 = vpack.c.bf16 %v2693, %v2691
    %v2867 = vpack.c.bf16 %v2694, %v2694
    %v2868 = vpack.c.bf16 %v2695, %v2695
    %v2933 = vunpack.c.l.b16 %v2797
    %v2934 = vunpack.c.h.b16 %v2797
    %v2935 = vunpack.c.l.b16 %v2798
    %v2936 = vunpack.c.h.b16 %v2798
    %v2937 = vunpack.c.l.b16 %v2799
    %v2938 = vunpack.c.h.b16 %v2799
    %v2939 = vunpack.c.l.b16 %v2800
    %v2940 = vunpack.c.h.b16 %v2800
    %v2941 = vunpack.c.l.b16 %v2801
    %v2942 = vunpack.c.h.b16 %v2801
    %v2943 = vunpack.c.l.b16 %v2802
    %v2944 = vunpack.c.h.b16 %v2802
    %v2945 = vunpack.c.l.b16 %v2803
    %v2946 = vunpack.c.h.b16 %v2803
    %v2947 = vunpack.c.l.b16 %v2804
    %v2948 = vunpack.c.h.b16 %v2804
    %v2949 = vunpack.c.l.b16 %v2805
    %v2950 = vunpack.c.h.b16 %v2805
    %v2951 = vunpack.c.l.b16 %v2806
    %v2952 = vunpack.c.h.b16 %v2806
    %v2953 = vunpack.c.l.b16 %v2807
    %v2954 = vunpack.c.h.b16 %v2807
    %v2955 = vunpack.c.l.b16 %v2808
    %v2956 = vunpack.c.h.b16 %v2808
    %v2957 = vunpack.c.l.b16 %v2809
    %v2958 = vunpack.c.h.b16 %v2809
    %v2959 = vunpack.c.l.b16 %v2810
    %v2960 = vunpack.c.h.b16 %v2810
    %v2961 = vunpack.c.l.b16 %v2811
    %v2962 = vunpack.c.h.b16 %v2811
    %v2963 = vunpack.c.l.b16 %v2812
    %v2964 = vunpack.c.h.b16 %v2812
    %v2965 = vunpack.c.l.b16 %v2813
    %v2966 = vunpack.c.h.b16 %v2813
    %v2967 = vunpack.c.l.b16 %v2814
    %v2968 = vunpack.c.h.b16 %v2814
    %v2969 = vunpack.c.l.b16 %v2815
    %v2970 = vunpack.c.h.b16 %v2815
    %v2971 = vunpack.c.l.b16 %v2816
    %v2972 = vunpack.c.h.b16 %v2816
    %v2973 = vunpack.c.l.b16 %v2817
    %v2974 = vunpack.c.h.b16 %v2817
    %v2975 = vunpack.c.l.b16 %v2818
    %v2976 = vunpack.c.h.b16 %v2818
    %v2977 = vunpack.c.l.b16 %v2819
    %v2978 = vunpack.c.h.b16 %v2819
    %v2979 = vunpack.c.l.b16 %v2820
    %v2980 = vunpack.c.h.b16 %v2820
    %v2981 = vunpack.c.l.b16 %v2821
    %v2982 = vunpack.c.h.b16 %v2821
    %v2983 = vunpack.c.l.b16 %v2822
    %v2984 = vunpack.c.h.b16 %v2822
    %v2985 = vunpack.c.l.b16 %v2823
    %v2986 = vunpack.c.h.b16 %v2823
    %v2987 = vunpack.c.l.b16 %v2824
    %v2988 = vunpack.c.h.b16 %v2824
    %v2989 = vunpack.c.l.b16 %v2825
    %v2990 = vunpack.c.h.b16 %v2825
    %v2991 = vunpack.c.l.b16 %v2826
    %v2992 = vunpack.c.h.b16 %v2826
    %v2993 = vunpack.c.l.b16 %v2827
    %v2994 = vunpack.c.h.b16 %v2827
    %v2995 = vunpack.c.l.b16 %v2828
    %v2996 = vunpack.c.h.b16 %v2828
    %v2997 = vunpack.c.l.b16 %v2829
    %v2998 = vunpack.c.h.b16 %v2829
    %v2999 = vunpack.c.l.b16 %v2830
    %v3000 = vunpack.c.h.b16 %v2830
    %v3001 = vunpack.c.l.b16 %v2831
    %v3002 = vunpack.c.h.b16 %v2831
    %v3003 = vunpack.c.l.b16 %v2832
    %v3004 = vunpack.c.h.b16 %v2832
    %v3005 = vunpack.c.l.b16 %v2833
    %v3006 = vunpack.c.h.b16 %v2833
    %v3007 = vunpack.c.l.b16 %v2834
    %v3008 = vunpack.c.h.b16 %v2834
    %v3009 = vunpack.c.l.b16 %v2835
    %v3010 = vunpack.c.h.b16 %v2835
    %v3011 = vunpack.c.l.b16 %v2836
    %v3012 = vunpack.c.h.b16 %v2836
    %v3013 = vunpack.c.l.b16 %v2837
    %v3014 = vunpack.c.h.b16 %v2837
    %v3015 = vunpack.c.l.b16 %v2838
    %v3016 = vunpack.c.h.b16 %v2838
    %v3017 = vunpack.c.l.b16 %v2839
    %v3018 = vunpack.c.h.b16 %v2839
    %v3019 = vunpack.c.l.b16 %v2840
    %v3020 = vunpack.c.h.b16 %v2840
    %v3021 = vunpack.c.l.b16 %v2841
    %v3022 = vunpack.c.h.b16 %v2841
    %v3023 = vunpack.c.l.b16 %v2842
    %v3024 = vunpack.c.h.b16 %v2842
    %v3025 = vunpack.c.l.b16 %v2843
    %v3026 = vunpack.c.h.b16 %v2843
    %v3027 = vunpack.c.l.b16 %v2844
    %v3028 = vunpack.c.h.b16 %v2844
    %v3029 = vunpack.c.l.b16 %v2845
    %v3030 = vunpack.c.h.b16 %v2845
    %v3031 = vunpack.c.l.b16 %v2846
    %v3032 = vunpack.c.h.b16 %v2846
    %v3033 = vunpack.c.l.b16 %v2847
    %v3034 = vunpack.c.h.b16 %v2847
    %v3035 = vunpack.c.l.b16 %v2848
    %v3036 = vunpack.c.h.b16 %v2848
    %v3037 = vunpack.c.l.b16 %v2849
    %v3038 = vunpack.c.h.b16 %v2849
    %v3039 = vunpack.c.l.b16 %v2850
    %v3040 = vunpack.c.h.b16 %v2850
    %v3041 = vunpack.c.l.b16 %v2851
    %v3042 = vunpack.c.h.b16 %v2851
    %v3043 = vunpack.c.l.b16 %v2852
    %v3044 = vunpack.c.h.b16 %v2852
    %v3045 = vunpack.c.l.b16 %v2853
    %v3046 = vunpack.c.h.b16 %v2853
    %v3047 = vunpack.c.l.b16 %v2854
    %v3048 = vunpack.c.h.b16 %v2854
    %v3049 = vunpack.c.l.b16 %v2855
    %v3050 = vunpack.c.h.b16 %v2855
    %v3051 = vunpack.c.l.b16 %v2856
    %v3052 = vunpack.c.h.b16 %v2856
    %v3053 = vunpack.c.l.b16 %v2857
    %v3054 = vunpack.c.h.b16 %v2857
    %v3055 = vunpack.c.l.b16 %v2858
    %v3056 = vunpack.c.h.b16 %v2858
    %v3057 = vunpack.c.l.b16 %v2859
    %v3058 = vunpack.c.h.b16 %v2859
    %v3059 = vunpack.c.l.b16 %v2860
    %v3060 = vunpack.c.h.b16 %v2860
    %v3061 = vpack.c.b16 %v2937, %v2933
    %v3062 = vpack.c.b16 %v2938, %v2934
    %v3063 = vpack.c.b16 %v2939, %v2935
    %v3064 = vpack.c.b16 %v2940, %v2936
    %v3065 = vpack.c.b16 %v2945, %v2941
    %v3066 = vpack.c.b16 %v2946, %v2942
    %v3067 = vpack.c.b16 %v2947, %v2943
    %v3068 = vpack.c.b16 %v2948, %v2944
    %v3069 = vpack.c.b16 %v2953, %v2949
    %v3070 = vpack.c.b16 %v2954, %v2950
    %v3071 = vpack.c.b16 %v2955, %v2951
    %v3072 = vpack.c.b16 %v2956, %v2952
    %v3073 = vpack.c.b16 %v2961, %v2957
    %v3074 = vpack.c.b16 %v2962, %v2958
    %v3075 = vpack.c.b16 %v2963, %v2959
    %v3076 = vpack.c.b16 %v2964, %v2960
    %v3077 = vpack.c.b16 %v2969, %v2965
    %v3078 = vpack.c.b16 %v2970, %v2966
    %v3079 = vpack.c.b16 %v2971, %v2967
    %v3080 = vpack.c.b16 %v2972, %v2968
    %v3081 = vpack.c.b16 %v2977, %v2973
    %v3082 = vpack.c.b16 %v2978, %v2974
    %v3083 = vpack.c.b16 %v2979, %v2975
    %v3084 = vpack.c.b16 %v2980, %v2976
    %v3085 = vpack.c.b16 %v2985, %v2981
    %v3086 = vpack.c.b16 %v2986, %v2982
    %v3087 = vpack.c.b16 %v2987, %v2983
    %v3088 = vpack.c.b16 %v2988, %v2984
    %v3089 = vpack.c.b16 %v2993, %v2989
    %v3090 = vpack.c.b16 %v2994, %v2990
    %v3091 = vpack.c.b16 %v2995, %v2991
    %v3092 = vpack.c.b16 %v2996, %v2992
    %v3093 = vpack.c.b16 %v3001, %v2997
    %v3094 = vpack.c.b16 %v3002, %v2998
    %v3095 = vpack.c.b16 %v3003, %v2999
    %v3096 = vpack.c.b16 %v3004, %v3000
    %v3097 = vpack.c.b16 %v3009, %v3005
    %v3098 = vpack.c.b16 %v3010, %v3006
    %v3099 = vpack.c.b16 %v3011, %v3007
    %v3100 = vpack.c.b16 %v3012, %v3008
    %v3101 = vpack.c.b16 %v3017, %v3013
    %v3102 = vpack.c.b16 %v3018, %v3014
    %v3103 = vpack.c.b16 %v3019, %v3015
    %v3104 = vpack.c.b16 %v3020, %v3016
    %v3105 = vpack.c.b16 %v3025, %v3021
    %v3106 = vpack.c.b16 %v3026, %v3022
    %v3107 = vpack.c.b16 %v3027, %v3023
    %v3108 = vpack.c.b16 %v3028, %v3024
    %v3109 = vpack.c.b16 %v3033, %v3029
    %v3110 = vpack.c.b16 %v3034, %v3030
    %v3111 = vpack.c.b16 %v3035, %v3031
    %v3112 = vpack.c.b16 %v3036, %v3032
    %v3113 = vpack.c.b16 %v3041, %v3037
    %v3114 = vpack.c.b16 %v3042, %v3038
    %v3115 = vpack.c.b16 %v3043, %v3039
    %v3116 = vpack.c.b16 %v3044, %v3040
    %v3117 = vpack.c.b16 %v3049, %v3045
    %v3118 = vpack.c.b16 %v3050, %v3046
    %v3119 = vpack.c.b16 %v3051, %v3047
    %v3120 = vpack.c.b16 %v3052, %v3048
    %v3121 = vpack.c.b16 %v3057, %v3053
    %v3122 = vpack.c.b16 %v3058, %v3054
    %v3123 = vpack.c.b16 %v3059, %v3055
    %v3124 = vpack.c.b16 %v3060, %v3056
    %3189 = vmatprep.subr.bf16.mxu0 %v3062
    %3190 = vmatpush1.bf16.msra.mxu0 %v3061
    %3191 = vmatprep.subr.bf16.mxu0 %v3066
    %3192 = vmatpush1.bf16.msra.mxu0 %v3065
    %3193 = vmatprep.subr.bf16.mxu0 %v3070
    %3194 = vmatpush1.bf16.msra.mxu0 %v3069
    %3195 = vmatprep.subr.bf16.mxu0 %v3074
    %3196 = vmatpush1.bf16.msra.mxu0 %v3073
    %3197 = vmatprep.subr.bf16.mxu0 %v3078
    %3198 = vmatpush1.bf16.msra.mxu0 %v3077
    %3199 = vmatprep.subr.bf16.mxu0 %v3082
    %3200 = vmatpush1.bf16.msra.mxu0 %v3081
    %3201 = vmatprep.subr.bf16.mxu0 %v3086
    %3202 = vmatpush1.bf16.msra.mxu0 %v3085
    %3203 = vmatprep.subr.bf16.mxu0 %v3090
    %3204 = vmatpush1.bf16.msra.mxu0 %v3089
    %3205 = vmatprep.subr.bf16.mxu0 %v3094
    %3206 = vmatpush1.bf16.msra.mxu0 %v3093
    %3207 = vmatprep.subr.bf16.mxu0 %v3098
    %3208 = vmatpush1.bf16.msra.mxu0 %v3097
    %3209 = vmatprep.subr.bf16.mxu0 %v3102
    %3210 = vmatpush1.bf16.msra.mxu0 %v3101
    %3211 = vmatprep.subr.bf16.mxu0 %v3106
    %3212 = vmatpush1.bf16.msra.mxu0 %v3105
    %3213 = vmatprep.subr.bf16.mxu0 %v3110
    %3214 = vmatpush1.bf16.msra.mxu0 %v3109
    %3215 = vmatprep.subr.bf16.mxu0 %v3114
    %3216 = vmatpush1.bf16.msra.mxu0 %v3113
    %3217 = vmatprep.subr.bf16.mxu0 %v3118
    %3218 = vmatpush1.bf16.msra.mxu0 %v3117
    %3219 = vmatprep.subr.bf16.mxu0 %v3122
    %3220 = vmatpush1.bf16.msra.mxu0 %v3121
    %3221 = vmatprep.mubr.bf16.mxu0 %v2862
    %3222 = vmatmul.mubr.bf16.gmra.mrb[0].mxu0 %v2861
    %v3223 = vpop.f32.mrb[0].mxu0
    %v3224 = vadd.f32 0.0, %v3223
    %v3225 = vpop.f32.mrb[0].mxu0
    %v3226 = vadd.f32 0.0, %v3225
    %v3227 = vpop.f32.mrb[0].mxu0
    %v3228 = vadd.f32 0.0, %v3227
    %v3229 = vpop.f32.mrb[0].mxu0
    %v3230 = vadd.f32 0.0, %v3229
    %3231 = vmatprep.mubr.bf16.mxu0 %v2864
    %3232 = vmatmul.mubr.bf16.gmra.mrb[0].mxu0 %v2863
    %v3233 = vpop.f32.mrb[0].mxu0
    %v3234 = vadd.f32 0.0, %v3233
    %v3235 = vpop.f32.mrb[0].mxu0
    %v3236 = vadd.f32 0.0, %v3235
    %v3237 = vpop.f32.mrb[0].mxu0
    %v3238 = vadd.f32 0.0, %v3237
    %v3239 = vpop.f32.mrb[0].mxu0
    %v3240 = vadd.f32 0.0, %v3239
    %3241 = vmatprep.mubr.bf16.mxu0 %v2866
    %3242 = vmatmul.mubr.bf16.gmra.mrb[0].mxu0 %v2865
    %v3243 = vpop.f32.mrb[0].mxu0
    %v3244 = vadd.f32 0.0, %v3243
    %v3245 = vpop.f32.mrb[0].mxu0
    %v3246 = vadd.f32 0.0, %v3245
    %v3247 = vpop.f32.mrb[0].mxu0
    %v3248 = vadd.f32 0.0, %v3247
    %v3249 = vpop.f32.mrb[0].mxu0
    %v3250 = vadd.f32 0.0, %v3249
    %3251 = vmatprep.mubr.bf16.mxu0 %v2868
    %3252 = vmatmul.mubr.bf16.gmra.mrb[0].mxu0 %v2867
    %v3253 = vpop.f32.mrb[0].mxu0
    %v3254 = vadd.f32 0.0, %v3253
    %v3255 = vpop.f32.mrb[0].mxu0
    %v3256 = vadd.f32 0.0, %v3255
    %v3257 = vpop.f32.mrb[0].mxu0
    %v3258 = vpop.f32.mrb[0].mxu0
    %3259 = vdwg.mxu0
    %3260 = vmatprep.subr.bf16.mxu0 %v3064
    %3261 = vmatpush1.bf16.msra.mxu0 %v3063
    %3262 = vmatprep.subr.bf16.mxu0 %v3068
    %3263 = vmatpush1.bf16.msra.mxu0 %v3067
    %3264 = vmatprep.subr.bf16.mxu0 %v3072
    %3265 = vmatpush1.bf16.msra.mxu0 %v3071
    %3266 = vmatprep.subr.bf16.mxu0 %v3076
    %3267 = vmatpush1.bf16.msra.mxu0 %v3075
    %3268 = vmatprep.subr.bf16.mxu0 %v3080
    %3269 = vmatpush1.bf16.msra.mxu0 %v3079
    %3270 = vmatprep.subr.bf16.mxu0 %v3084
    %3271 = vmatpush1.bf16.msra.mxu0 %v3083
    %3272 = vmatprep.subr.bf16.mxu0 %v3088
    %3273 = vmatpush1.bf16.msra.mxu0 %v3087
    %3274 = vmatprep.subr.bf16.mxu0 %v3092
    %3275 = vmatpush1.bf16.msra.mxu0 %v3091
    %3276 = vmatprep.subr.bf16.mxu0 %v3096
    %3277 = vmatpush1.bf16.msra.mxu0 %v3095
    %3278 = vmatprep.subr.bf16.mxu0 %v3100
    %3279 = vmatpush1.bf16.msra.mxu0 %v3099
    %3280 = vmatprep.subr.bf16.mxu0 %v3104
    %3281 = vmatpush1.bf16.msra.mxu0 %v3103
    %3282 = vmatprep.subr.bf16.mxu0 %v3108
    %3283 = vmatpush1.bf16.msra.mxu0 %v3107
    %3284 = vmatprep.subr.bf16.mxu0 %v3112
    %3285 = vmatpush1.bf16.msra.mxu0 %v3111
    %3286 = vmatprep.subr.bf16.mxu0 %v3116
    %3287 = vmatpush1.bf16.msra.mxu0 %v3115
    %3288 = vmatprep.subr.bf16.mxu0 %v3120
    %3289 = vmatpush1.bf16.msra.mxu0 %v3119
    %3290 = vmatprep.subr.bf16.mxu0 %v3124
    %3291 = vmatpush1.bf16.msra.mxu0 %v3123
    %3292 = vmatprep.mubr.bf16.mxu0 %v2862
    %3293 = vmatmul.mubr.bf16.gmra.mrb[0].mxu0 %v2861
    %v3294 = vpop.f32.mrb[0].mxu0
    %v3295 = vadd.f32 0.0, %v3294
    %v3296 = vpop.f32.mrb[0].mxu0
    %v3297 = vadd.f32 0.0, %v3296
    %v3298 = vpop.f32.mrb[0].mxu0
    %v3299 = vadd.f32 0.0, %v3298
    %v3300 = vpop.f32.mrb[0].mxu0
    %v3301 = vadd.f32 0.0, %v3300
    %3302 = vmatprep.mubr.bf16.mxu0 %v2864
    %3303 = vmatmul.mubr.bf16.gmra.mrb[0].mxu0 %v2863
    %v3304 = vpop.f32.mrb[0].mxu0
    %v3305 = vadd.f32 0.0, %v3304
    %v3306 = vpop.f32.mrb[0].mxu0
    %v3307 = vadd.f32 0.0, %v3306
    %v3308 = vpop.f32.mrb[0].mxu0
    %v3309 = vadd.f32 0.0, %v3308
    %v3310 = vpop.f32.mrb[0].mxu0
    %v3311 = vadd.f32 0.0, %v3310
    %3312 = vmatprep.mubr.bf16.mxu0 %v2866
    %3313 = vmatmul.mubr.bf16.gmra.mrb[0].mxu0 %v2865
    %v3314 = vpop.f32.mrb[0].mxu0
    %v3315 = vadd.f32 0.0, %v3314
    %v3316 = vpop.f32.mrb[0].mxu0
    %v3317 = vadd.f32 0.0, %v3316
    %v3318 = vpop.f32.mrb[0].mxu0
    %v3319 = vadd.f32 0.0, %v3318
    %v3320 = vpop.f32.mrb[0].mxu0
    %v3321 = vadd.f32 0.0, %v3320
    %3322 = vmatprep.mubr.bf16.mxu0 %v2868
    %3323 = vmatmul.mubr.bf16.gmra.mrb[0].mxu0 %v2867
    %v3324 = vpop.f32.mrb[0].mxu0
    %v3325 = vadd.f32 0.0, %v3324
    %v3326 = vpop.f32.mrb[0].mxu0
    %v3327 = vadd.f32 0.0, %v3326
    %v3328 = vpop.f32.mrb[0].mxu0
    %v3329 = vpop.f32.mrb[0].mxu0
    %3330 = vdwg.mxu0
    %v3395 = vunpack.c.l.b16 %v2724
    %v3396 = vunpack.c.h.b16 %v2724
    %v3397 = vunpack.c.l.b16 %v2725
    %v3398 = vunpack.c.h.b16 %v2725
    %v3399 = vunpack.c.l.b16 %v2726
    %v3400 = vunpack.c.h.b16 %v2726
    %v3401 = vunpack.c.l.b16 %v2727
    %v3402 = vunpack.c.h.b16 %v2727
    %v3403 = vunpack.c.l.b16 %v2728
    %v3404 = vunpack.c.h.b16 %v2728
    %v3405 = vunpack.c.l.b16 %v2729
    %v3406 = vunpack.c.h.b16 %v2729
    %v3407 = vunpack.c.l.b16 %v2730
    %v3408 = vunpack.c.h.b16 %v2730
    %v3409 = vunpack.c.l.b16 %v2731
    %v3410 = vunpack.c.h.b16 %v2731
    %v3411 = vunpack.c.l.b16 %v2732
    %v3412 = vunpack.c.h.b16 %v2732
    %v3413 = vunpack.c.l.b16 %v2733
    %v3414 = vunpack.c.h.b16 %v2733
    %v3415 = vunpack.c.l.b16 %v2734
    %v3416 = vunpack.c.h.b16 %v2734
    %v3417 = vunpack.c.l.b16 %v2735
    %v3418 = vunpack.c.h.b16 %v2735
    %v3419 = vunpack.c.l.b16 %v2736
    %v3420 = vunpack.c.h.b16 %v2736
    %v3421 = vunpack.c.l.b16 %v2737
    %v3422 = vunpack.c.h.b16 %v2737
    %v3423 = vunpack.c.l.b16 %v2738
    %v3424 = vunpack.c.h.b16 %v2738
    %v3425 = vunpack.c.l.b16 %v2739
    %v3426 = vunpack.c.h.b16 %v2739
    %v3427 = vunpack.c.l.b16 %v2740
    %v3428 = vunpack.c.h.b16 %v2740
    %v3429 = vunpack.c.l.b16 %v2741
    %v3430 = vunpack.c.h.b16 %v2741
    %v3431 = vunpack.c.l.b16 %v2742
    %v3432 = vunpack.c.h.b16 %v2742
    %v3433 = vunpack.c.l.b16 %v2743
    %v3434 = vunpack.c.h.b16 %v2743
    %v3435 = vunpack.c.l.b16 %v2744
    %v3436 = vunpack.c.h.b16 %v2744
    %v3437 = vunpack.c.l.b16 %v2745
    %v3438 = vunpack.c.h.b16 %v2745
    %v3439 = vunpack.c.l.b16 %v2746
    %v3440 = vunpack.c.h.b16 %v2746
    %v3441 = vunpack.c.l.b16 %v2747
    %v3442 = vunpack.c.h.b16 %v2747
    %v3443 = vunpack.c.l.b16 %v2748
    %v3444 = vunpack.c.h.b16 %v2748
    %v3445 = vunpack.c.l.b16 %v2749
    %v3446 = vunpack.c.h.b16 %v2749
    %v3447 = vunpack.c.l.b16 %v2750
    %v3448 = vunpack.c.h.b16 %v2750
    %v3449 = vunpack.c.l.b16 %v2751
    %v3450 = vunpack.c.h.b16 %v2751
    %v3451 = vunpack.c.l.b16 %v2752
    %v3452 = vunpack.c.h.b16 %v2752
    %v3453 = vunpack.c.l.b16 %v2753
    %v3454 = vunpack.c.h.b16 %v2753
    %v3455 = vunpack.c.l.b16 %v2754
    %v3456 = vunpack.c.h.b16 %v2754
    %v3457 = vunpack.c.l.b16 %v2755
    %v3458 = vunpack.c.h.b16 %v2755
    %v3459 = vunpack.c.l.b16 %v2756
    %v3460 = vunpack.c.h.b16 %v2756
    %v3461 = vunpack.c.l.b16 %v2757
    %v3462 = vunpack.c.h.b16 %v2757
    %v3463 = vunpack.c.l.b16 %v2758
    %v3464 = vunpack.c.h.b16 %v2758
    %v3465 = vunpack.c.l.b16 %v2759
    %v3466 = vunpack.c.h.b16 %v2759
    %v3467 = vunpack.c.l.b16 %v2760
    %v3468 = vunpack.c.h.b16 %v2760
    %v3469 = vunpack.c.l.b16 %v2761
    %v3470 = vunpack.c.h.b16 %v2761
    %v3471 = vunpack.c.l.b16 %v2762
    %v3472 = vunpack.c.h.b16 %v2762
    %v3473 = vunpack.c.l.b16 %v2763
    %v3474 = vunpack.c.h.b16 %v2763
    %v3475 = vunpack.c.l.b16 %v2764
    %v3476 = vunpack.c.h.b16 %v2764
    %v3477 = vunpack.c.l.b16 %v2765
    %v3478 = vunpack.c.h.b16 %v2765
    %v3479 = vunpack.c.l.b16 %v2766
    %v3480 = vunpack.c.h.b16 %v2766
    %v3481 = vunpack.c.l.b16 %v2767
    %v3482 = vunpack.c.h.b16 %v2767
    %v3483 = vunpack.c.l.b16 %v2768
    %v3484 = vunpack.c.h.b16 %v2768
    %v3485 = vunpack.c.l.b16 %v2769
    %v3486 = vunpack.c.h.b16 %v2769
    %v3487 = vunpack.c.l.b16 %v2770
    %v3488 = vunpack.c.h.b16 %v2770
    %v3489 = vunpack.c.l.b16 %v2771
    %v3490 = vunpack.c.h.b16 %v2771
    %v3491 = vunpack.c.l.b16 %v2772
    %v3492 = vunpack.c.h.b16 %v2772
    %v3493 = vunpack.c.l.b16 %v2773
    %v3494 = vunpack.c.h.b16 %v2773
    %v3495 = vunpack.c.l.b16 %v2774
    %v3496 = vunpack.c.h.b16 %v2774
    %v3497 = vunpack.c.l.b16 %v2775
    %v3498 = vunpack.c.h.b16 %v2775
    %v3499 = vunpack.c.l.b16 %v2776
    %v3500 = vunpack.c.h.b16 %v2776
    %v3501 = vunpack.c.l.b16 %v2777
    %v3502 = vunpack.c.h.b16 %v2777
    %v3503 = vunpack.c.l.b16 %v2778
    %v3504 = vunpack.c.h.b16 %v2778
    %v3505 = vunpack.c.l.b16 %v2779
    %v3506 = vunpack.c.h.b16 %v2779
    %v3507 = vunpack.c.l.b16 %v2780
    %v3508 = vunpack.c.h.b16 %v2780
    %v3509 = vunpack.c.l.b16 %v2781
    %v3510 = vunpack.c.h.b16 %v2781
    %v3511 = vunpack.c.l.b16 %v2782
    %v3512 = vunpack.c.h.b16 %v2782
    %v3513 = vunpack.c.l.b16 %v2783
    %v3514 = vunpack.c.h.b16 %v2783
    %v3515 = vunpack.c.l.b16 %v2784
    %v3516 = vunpack.c.h.b16 %v2784
    %v3517 = vunpack.c.l.b16 %v2785
    %v3518 = vunpack.c.h.b16 %v2785
    %v3519 = vunpack.c.l.b16 %v2786
    %v3520 = vunpack.c.h.b16 %v2786
    %v3521 = vunpack.c.l.b16 %v2787
    %v3522 = vunpack.c.h.b16 %v2787
    %v3523 = vpack.c.b16 %v3399, %v3395
    %v3524 = vpack.c.b16 %v3400, %v3396
    %v3525 = vpack.c.b16 %v3401, %v3397
    %v3526 = vpack.c.b16 %v3402, %v3398
    %v3527 = vpack.c.b16 %v3407, %v3403
    %v3528 = vpack.c.b16 %v3408, %v3404
    %v3529 = vpack.c.b16 %v3409, %v3405
    %v3530 = vpack.c.b16 %v3410, %v3406
    %v3531 = vpack.c.b16 %v3415, %v3411
    %v3532 = vpack.c.b16 %v3416, %v3412
    %v3533 = vpack.c.b16 %v3417, %v3413
    %v3534 = vpack.c.b16 %v3418, %v3414
    %v3535 = vpack.c.b16 %v3423, %v3419
    %v3536 = vpack.c.b16 %v3424, %v3420
    %v3537 = vpack.c.b16 %v3425, %v3421
    %v3538 = vpack.c.b16 %v3426, %v3422
    %v3539 = vpack.c.b16 %v3431, %v3427
    %v3540 = vpack.c.b16 %v3432, %v3428
    %v3541 = vpack.c.b16 %v3433, %v3429
    %v3542 = vpack.c.b16 %v3434, %v3430
    %v3543 = vpack.c.b16 %v3439, %v3435
    %v3544 = vpack.c.b16 %v3440, %v3436
    %v3545 = vpack.c.b16 %v3441, %v3437
    %v3546 = vpack.c.b16 %v3442, %v3438
    %v3547 = vpack.c.b16 %v3447, %v3443
    %v3548 = vpack.c.b16 %v3448, %v3444
    %v3549 = vpack.c.b16 %v3449, %v3445
    %v3550 = vpack.c.b16 %v3450, %v3446
    %v3551 = vpack.c.b16 %v3455, %v3451
    %v3552 = vpack.c.b16 %v3456, %v3452
    %v3553 = vpack.c.b16 %v3457, %v3453
    %v3554 = vpack.c.b16 %v3458, %v3454
    %v3555 = vpack.c.b16 %v3463, %v3459
    %v3556 = vpack.c.b16 %v3464, %v3460
    %v3557 = vpack.c.b16 %v3465, %v3461
    %v3558 = vpack.c.b16 %v3466, %v3462
    %v3559 = vpack.c.b16 %v3471, %v3467
    %v3560 = vpack.c.b16 %v3472, %v3468
    %v3561 = vpack.c.b16 %v3473, %v3469
    %v3562 = vpack.c.b16 %v3474, %v3470
    %v3563 = vpack.c.b16 %v3479, %v3475
    %v3564 = vpack.c.b16 %v3480, %v3476
    %v3565 = vpack.c.b16 %v3481, %v3477
    %v3566 = vpack.c.b16 %v3482, %v3478
    %v3567 = vpack.c.b16 %v3487, %v3483
    %v3568 = vpack.c.b16 %v3488, %v3484
    %v3569 = vpack.c.b16 %v3489, %v3485
    %v3570 = vpack.c.b16 %v3490, %v3486
    %v3571 = vpack.c.b16 %v3495, %v3491
    %v3572 = vpack.c.b16 %v3496, %v3492
    %v3573 = vpack.c.b16 %v3497, %v3493
    %v3574 = vpack.c.b16 %v3498, %v3494
    %v3575 = vpack.c.b16 %v3503, %v3499
    %v3576 = vpack.c.b16 %v3504, %v3500
    %v3577 = vpack.c.b16 %v3505, %v3501
    %v3578 = vpack.c.b16 %v3506, %v3502
    %v3579 = vpack.c.b16 %v3511, %v3507
    %v3580 = vpack.c.b16 %v3512, %v3508
    %v3581 = vpack.c.b16 %v3513, %v3509
    %v3582 = vpack.c.b16 %v3514, %v3510
    %v3583 = vpack.c.b16 %v3519, %v3515
    %v3584 = vpack.c.b16 %v3520, %v3516
    %v3585 = vpack.c.b16 %v3521, %v3517
    %v3586 = vpack.c.b16 %v3522, %v3518
    %3651 = vmatprep.subr.bf16.mxu0 %v3524
    %3652 = vmatpush1.bf16.msra.mxu0 %v3523
    %3653 = vmatprep.subr.bf16.mxu0 %v3528
    %3654 = vmatpush1.bf16.msra.mxu0 %v3527
    %3655 = vmatprep.subr.bf16.mxu0 %v3532
    %3656 = vmatpush1.bf16.msra.mxu0 %v3531
    %3657 = vmatprep.subr.bf16.mxu0 %v3536
    %3658 = vmatpush1.bf16.msra.mxu0 %v3535
    %3659 = vmatprep.subr.bf16.mxu0 %v3540
    %3660 = vmatpush1.bf16.msra.mxu0 %v3539
    %3661 = vmatprep.subr.bf16.mxu0 %v3544
    %3662 = vmatpush1.bf16.msra.mxu0 %v3543
    %3663 = vmatprep.subr.bf16.mxu0 %v3548
    %3664 = vmatpush1.bf16.msra.mxu0 %v3547
    %3665 = vmatprep.subr.bf16.mxu0 %v3552
    %3666 = vmatpush1.bf16.msra.mxu0 %v3551
    %3667 = vmatprep.subr.bf16.mxu0 %v3556
    %3668 = vmatpush1.bf16.msra.mxu0 %v3555
    %3669 = vmatprep.subr.bf16.mxu0 %v3560
    %3670 = vmatpush1.bf16.msra.mxu0 %v3559
    %3671 = vmatprep.subr.bf16.mxu0 %v3564
    %3672 = vmatpush1.bf16.msra.mxu0 %v3563
    %3673 = vmatprep.subr.bf16.mxu0 %v3568
    %3674 = vmatpush1.bf16.msra.mxu0 %v3567
    %3675 = vmatprep.subr.bf16.mxu0 %v3572
    %3676 = vmatpush1.bf16.msra.mxu0 %v3571
    %3677 = vmatprep.subr.bf16.mxu0 %v3576
    %3678 = vmatpush1.bf16.msra.mxu0 %v3575
    %3679 = vmatprep.subr.bf16.mxu0 %v3580
    %3680 = vmatpush1.bf16.msra.mxu0 %v3579
    %3681 = vmatprep.subr.bf16.mxu0 %v3584
    %3682 = vmatpush1.bf16.msra.mxu0 %v3583
    %3683 = vmatprep.mubr.bf16.mxu0 %v2789
    %3684 = vmatmul.mubr.bf16.gmra.mrb[0].mxu0 %v2788
    %v3685 = vpop.f32.mrb[0].mxu0
    %v3686 = vadd.f32 %v3224, %v3685
    %v3687 = vpop.f32.mrb[0].mxu0
    %v3688 = vadd.f32 %v3226, %v3687
    %v3689 = vpop.f32.mrb[0].mxu0
    %v3690 = vadd.f32 %v3228, %v3689
    %v3691 = vpop.f32.mrb[0].mxu0
    %v3692 = vadd.f32 %v3230, %v3691
    %3693 = vmatprep.mubr.bf16.mxu0 %v2791
    %3694 = vmatmul.mubr.bf16.gmra.mrb[0].mxu0 %v2790
    %v3695 = vpop.f32.mrb[0].mxu0
    %v3696 = vadd.f32 %v3234, %v3695
    %v3697 = vpop.f32.mrb[0].mxu0
    %v3698 = vadd.f32 %v3236, %v3697
    %v3699 = vpop.f32.mrb[0].mxu0
    %v3700 = vadd.f32 %v3238, %v3699
    %v3701 = vpop.f32.mrb[0].mxu0
    %v3702 = vadd.f32 %v3240, %v3701
    %3703 = vmatprep.mubr.bf16.mxu0 %v2793
    %3704 = vmatmul.mubr.bf16.gmra.mrb[0].mxu0 %v2792
    %v3705 = vpop.f32.mrb[0].mxu0
    %v3706 = vadd.f32 %v3244, %v3705
    %v3707 = vpop.f32.mrb[0].mxu0
    %v3708 = vadd.f32 %v3246, %v3707
    %v3709 = vpop.f32.mrb[0].mxu0
    %v3710 = vadd.f32 %v3248, %v3709
    %v3711 = vpop.f32.mrb[0].mxu0
    %v3712 = vadd.f32 %v3250, %v3711
    %3713 = vmatprep.mubr.bf16.mxu0 %v2795
    %3714 = vmatmul.mubr.bf16.gmra.mrb[0].mxu0 %v2794
    %v3715 = vpop.f32.mrb[0].mxu0
    %v3716 = vadd.f32 %v3254, %v3715
    %v3717 = vpop.f32.mrb[0].mxu0
    %v3718 = vadd.f32 %v3256, %v3717
    %v3719 = vpop.f32.mrb[0].mxu0
    %v3720 = vpop.f32.mrb[0].mxu0
    %3721 = vdwg.mxu0
    %3722 = vmatprep.subr.bf16.mxu0 %v3526
    %3723 = vmatpush1.bf16.msra.mxu0 %v3525
    %3724 = vmatprep.subr.bf16.mxu0 %v3530
    %3725 = vmatpush1.bf16.msra.mxu0 %v3529
    %3726 = vmatprep.subr.bf16.mxu0 %v3534
    %3727 = vmatpush1.bf16.msra.mxu0 %v3533
    %3728 = vmatprep.subr.bf16.mxu0 %v3538
    %3729 = vmatpush1.bf16.msra.mxu0 %v3537
    %3730 = vmatprep.subr.bf16.mxu0 %v3542
    %3731 = vmatpush1.bf16.msra.mxu0 %v3541
    %3732 = vmatprep.subr.bf16.mxu0 %v3546
    %3733 = vmatpush1.bf16.msra.mxu0 %v3545
    %3734 = vmatprep.subr.bf16.mxu0 %v3550
    %3735 = vmatpush1.bf16.msra.mxu0 %v3549
    %3736 = vmatprep.subr.bf16.mxu0 %v3554
    %3737 = vmatpush1.bf16.msra.mxu0 %v3553
    %3738 = vmatprep.subr.bf16.mxu0 %v3558
    %3739 = vmatpush1.bf16.msra.mxu0 %v3557
    %3740 = vmatprep.subr.bf16.mxu0 %v3562
    %3741 = vmatpush1.bf16.msra.mxu0 %v3561
    %3742 = vmatprep.subr.bf16.mxu0 %v3566
    %3743 = vmatpush1.bf16.msra.mxu0 %v3565
    %3744 = vmatprep.subr.bf16.mxu0 %v3570
    %3745 = vmatpush1.bf16.msra.mxu0 %v3569
    %3746 = vmatprep.subr.bf16.mxu0 %v3574
    %3747 = vmatpush1.bf16.msra.mxu0 %v3573
    %3748 = vmatprep.subr.bf16.mxu0 %v3578
    %3749 = vmatpush1.bf16.msra.mxu0 %v3577
    %3750 = vmatprep.subr.bf16.mxu0 %v3582
    %3751 = vmatpush1.bf16.msra.mxu0 %v3581
    %3752 = vmatprep.subr.bf16.mxu0 %v3586
    %3753 = vmatpush1.bf16.msra.mxu0 %v3585
    %3754 = vmatprep.mubr.bf16.mxu0 %v2789
    %3755 = vmatmul.mubr.bf16.gmra.mrb[0].mxu0 %v2788
    %v3756 = vpop.f32.mrb[0].mxu0
    %v3757 = vadd.f32 %v3295, %v3756
    %v3758 = vpop.f32.mrb[0].mxu0
    %v3759 = vadd.f32 %v3297, %v3758
    %v3760 = vpop.f32.mrb[0].mxu0
    %v3761 = vadd.f32 %v3299, %v3760
    %v3762 = vpop.f32.mrb[0].mxu0
    %v3763 = vadd.f32 %v3301, %v3762
    %3764 = vmatprep.mubr.bf16.mxu0 %v2791
    %3765 = vmatmul.mubr.bf16.gmra.mrb[0].mxu0 %v2790
    %v3766 = vpop.f32.mrb[0].mxu0
    %v3767 = vadd.f32 %v3305, %v3766
    %v3768 = vpop.f32.mrb[0].mxu0
    %v3769 = vadd.f32 %v3307, %v3768
    %v3770 = vpop.f32.mrb[0].mxu0
    %v3771 = vadd.f32 %v3309, %v3770
    %v3772 = vpop.f32.mrb[0].mxu0
    %v3773 = vadd.f32 %v3311, %v3772
    %3774 = vmatprep.mubr.bf16.mxu0 %v2793
    %3775 = vmatmul.mubr.bf16.gmra.mrb[0].mxu0 %v2792
    %v3776 = vpop.f32.mrb[0].mxu0
    %v3777 = vadd.f32 %v3315, %v3776
    %v3778 = vpop.f32.mrb[0].mxu0
    %v3779 = vadd.f32 %v3317, %v3778
    %v3780 = vpop.f32.mrb[0].mxu0
    %v3781 = vadd.f32 %v3319, %v3780
    %v3782 = vpop.f32.mrb[0].mxu0
    %v3783 = vadd.f32 %v3321, %v3782
    %3784 = vmatprep.mubr.bf16.mxu0 %v2795
    %3785 = vmatmul.mubr.bf16.gmra.mrb[0].mxu0 %v2794
    %v3786 = vpop.f32.mrb[0].mxu0
    %v3787 = vadd.f32 %v3325, %v3786
    %v3788 = vpop.f32.mrb[0].mxu0
    %v3789 = vadd.f32 %v3327, %v3788
    %v3790 = vpop.f32.mrb[0].mxu0
    %v3791 = vpop.f32.mrb[0].mxu0
    %3792 = vdwg.mxu0
    %s3793 = scalar_lea.vmem %s3, 1024
    %v3794 = vld [vmem:[%s3793] sm:$0xff]
    %v3795 = vld [vmem:[%s3793 + $0x8] sm:$0xff]
    %v3796 = vld [vmem:[%s3793 + $0x10] sm:$0xff]
    %v3797 = vld [vmem:[%s3793 + $0x18] sm:$0xff]
    %v3798 = vld [vmem:[%s3793 + $0x20] sm:$0xff]
    %v3799 = vld [vmem:[%s3793 + $0x28] sm:$0xff]
    %v3800 = vld [vmem:[%s3793 + $0x30] sm:$0xff]
    %v3801 = vld [vmem:[%s3793 + $0x38] sm:$0xff]
    %v3802 = vld [vmem:[%s3793 + $0x40] sm:$0xff]
    %v3803 = vld [vmem:[%s3793 + $0x48] sm:$0xff]
    %v3804 = vld [vmem:[%s3793 + $0x50] sm:$0xff]
    %v3805 = vld [vmem:[%s3793 + $0x58] sm:$0xff]
    %v3806 = vld [vmem:[%s3793 + $0x60] sm:$0xff]
    %v3807 = vld [vmem:[%s3793 + $0x68] sm:$0xff]
    %v3808 = vld [vmem:[%s3793 + $0x70] sm:$0xff]
    %v3809 = vld [vmem:[%s3793 + $0x78] sm:$0xff]
    %v3810 = vld [vmem:[%s3793 + $0x80] sm:$0xff]
    %v3811 = vld [vmem:[%s3793 + $0x88] sm:$0xff]
    %v3812 = vld [vmem:[%s3793 + $0x90] sm:$0xff]
    %v3813 = vld [vmem:[%s3793 + $0x98] sm:$0xff]
    %v3814 = vld [vmem:[%s3793 + $0xa0] sm:$0xff]
    %v3815 = vld [vmem:[%s3793 + $0xa8] sm:$0xff]
    %v3816 = vld [vmem:[%s3793 + $0xb0] sm:$0xff]
    %v3817 = vld [vmem:[%s3793 + $0xb8] sm:$0xff]
    %v3818 = vld [vmem:[%s3793 + $0xc0] sm:$0xff]
    %v3819 = vld [vmem:[%s3793 + $0xc8] sm:$0xff]
    %v3820 = vld [vmem:[%s3793 + $0xd0] sm:$0xff]
    %v3821 = vld [vmem:[%s3793 + $0xd8] sm:$0xff]
    %v3822 = vld [vmem:[%s3793 + $0xe0] sm:$0xff]
    %v3823 = vld [vmem:[%s3793 + $0xe8] sm:$0xff]
    %v3824 = vld [vmem:[%s3793 + $0xf0] sm:$0xff]
    %v3825 = vld [vmem:[%s3793 + $0xf8] sm:$0xff]
    %v3826 = vld [vmem:[%s3793 + $0x100] sm:$0xff]
    %v3827 = vld [vmem:[%s3793 + $0x108] sm:$0xff]
    %v3828 = vld [vmem:[%s3793 + $0x110] sm:$0xff]
    %v3829 = vld [vmem:[%s3793 + $0x118] sm:$0xff]
    %v3830 = vld [vmem:[%s3793 + $0x120] sm:$0xff]
    %v3831 = vld [vmem:[%s3793 + $0x128] sm:$0xff]
    %v3832 = vld [vmem:[%s3793 + $0x130] sm:$0xff]
    %v3833 = vld [vmem:[%s3793 + $0x138] sm:$0xff]
    %v3834 = vld [vmem:[%s3793 + $0x140] sm:$0xff]
    %v3835 = vld [vmem:[%s3793 + $0x148] sm:$0xff]
    %v3836 = vld [vmem:[%s3793 + $0x150] sm:$0xff]
    %v3837 = vld [vmem:[%s3793 + $0x158] sm:$0xff]
    %v3838 = vld [vmem:[%s3793 + $0x160] sm:$0xff]
    %v3839 = vld [vmem:[%s3793 + $0x168] sm:$0xff]
    %v3840 = vld [vmem:[%s3793 + $0x170] sm:$0xff]
    %v3841 = vld [vmem:[%s3793 + $0x178] sm:$0xff]
    %v3842 = vld [vmem:[%s3793 + $0x180] sm:$0xff]
    %v3843 = vld [vmem:[%s3793 + $0x188] sm:$0xff]
    %v3844 = vld [vmem:[%s3793 + $0x190] sm:$0xff]
    %v3845 = vld [vmem:[%s3793 + $0x198] sm:$0xff]
    %v3846 = vld [vmem:[%s3793 + $0x1a0] sm:$0xff]
    %v3847 = vld [vmem:[%s3793 + $0x1a8] sm:$0xff]
    %v3848 = vld [vmem:[%s3793 + $0x1b0] sm:$0xff]
    %v3849 = vld [vmem:[%s3793 + $0x1b8] sm:$0xff]
    %v3850 = vld [vmem:[%s3793 + $0x1c0] sm:$0xff]
    %v3851 = vld [vmem:[%s3793 + $0x1c8] sm:$0xff]
    %v3852 = vld [vmem:[%s3793 + $0x1d0] sm:$0xff]
    %v3853 = vld [vmem:[%s3793 + $0x1d8] sm:$0xff]
    %v3854 = vld [vmem:[%s3793 + $0x1e0] sm:$0xff]
    %v3855 = vld [vmem:[%s3793 + $0x1e8] sm:$0xff]
    %v3856 = vld [vmem:[%s3793 + $0x1f0] sm:$0xff]
    %v3857 = vld [vmem:[%s3793 + $0x1f8] sm:$0xff]
    %v3858 = vpack.c.bf16 %v2712, %v2710
    %v3859 = vpack.c.bf16 %v2713, %v2711
    %v3860 = vpack.c.bf16 %v2716, %v2714
    %v3861 = vpack.c.bf16 %v2717, %v2715
    %v3862 = vpack.c.bf16 %v2720, %v2718
    %v3863 = vpack.c.bf16 %v2721, %v2719
    %v3864 = vpack.c.bf16 %v2722, %v2722
    %v3865 = vpack.c.bf16 %v2723, %v2723
    %v3930 = vunpack.c.l.b16 %v3794
    %v3931 = vunpack.c.h.b16 %v3794
    %v3932 = vunpack.c.l.b16 %v3795
    %v3933 = vunpack.c.h.b16 %v3795
    %v3934 = vunpack.c.l.b16 %v3796
    %v3935 = vunpack.c.h.b16 %v3796
    %v3936 = vunpack.c.l.b16 %v3797
    %v3937 = vunpack.c.h.b16 %v3797
    %v3938 = vunpack.c.l.b16 %v3798
    %v3939 = vunpack.c.h.b16 %v3798
    %v3940 = vunpack.c.l.b16 %v3799
    %v3941 = vunpack.c.h.b16 %v3799
    %v3942 = vunpack.c.l.b16 %v3800
    %v3943 = vunpack.c.h.b16 %v3800
    %v3944 = vunpack.c.l.b16 %v3801
    %v3945 = vunpack.c.h.b16 %v3801
    %v3946 = vunpack.c.l.b16 %v3802
    %v3947 = vunpack.c.h.b16 %v3802
    %v3948 = vunpack.c.l.b16 %v3803
    %v3949 = vunpack.c.h.b16 %v3803
    %v3950 = vunpack.c.l.b16 %v3804
    %v3951 = vunpack.c.h.b16 %v3804
    %v3952 = vunpack.c.l.b16 %v3805
    %v3953 = vunpack.c.h.b16 %v3805
    %v3954 = vunpack.c.l.b16 %v3806
    %v3955 = vunpack.c.h.b16 %v3806
    %v3956 = vunpack.c.l.b16 %v3807
    %v3957 = vunpack.c.h.b16 %v3807
    %v3958 = vunpack.c.l.b16 %v3808
    %v3959 = vunpack.c.h.b16 %v3808
    %v3960 = vunpack.c.l.b16 %v3809
    %v3961 = vunpack.c.h.b16 %v3809
    %v3962 = vunpack.c.l.b16 %v3810
    %v3963 = vunpack.c.h.b16 %v3810
    %v3964 = vunpack.c.l.b16 %v3811
    %v3965 = vunpack.c.h.b16 %v3811
    %v3966 = vunpack.c.l.b16 %v3812
    %v3967 = vunpack.c.h.b16 %v3812
    %v3968 = vunpack.c.l.b16 %v3813
    %v3969 = vunpack.c.h.b16 %v3813
    %v3970 = vunpack.c.l.b16 %v3814
    %v3971 = vunpack.c.h.b16 %v3814
    %v3972 = vunpack.c.l.b16 %v3815
    %v3973 = vunpack.c.h.b16 %v3815
    %v3974 = vunpack.c.l.b16 %v3816
    %v3975 = vunpack.c.h.b16 %v3816
    %v3976 = vunpack.c.l.b16 %v3817
    %v3977 = vunpack.c.h.b16 %v3817
    %v3978 = vunpack.c.l.b16 %v3818
    %v3979 = vunpack.c.h.b16 %v3818
    %v3980 = vunpack.c.l.b16 %v3819
    %v3981 = vunpack.c.h.b16 %v3819
    %v3982 = vunpack.c.l.b16 %v3820
    %v3983 = vunpack.c.h.b16 %v3820
    %v3984 = vunpack.c.l.b16 %v3821
    %v3985 = vunpack.c.h.b16 %v3821
    %v3986 = vunpack.c.l.b16 %v3822
    %v3987 = vunpack.c.h.b16 %v3822
    %v3988 = vunpack.c.l.b16 %v3823
    %v3989 = vunpack.c.h.b16 %v3823
    %v3990 = vunpack.c.l.b16 %v3824
    %v3991 = vunpack.c.h.b16 %v3824
    %v3992 = vunpack.c.l.b16 %v3825
    %v3993 = vunpack.c.h.b16 %v3825
    %v3994 = vunpack.c.l.b16 %v3826
    %v3995 = vunpack.c.h.b16 %v3826
    %v3996 = vunpack.c.l.b16 %v3827
    %v3997 = vunpack.c.h.b16 %v3827
    %v3998 = vunpack.c.l.b16 %v3828
    %v3999 = vunpack.c.h.b16 %v3828
    %v4000 = vunpack.c.l.b16 %v3829
    %v4001 = vunpack.c.h.b16 %v3829
    %v4002 = vunpack.c.l.b16 %v3830
    %v4003 = vunpack.c.h.b16 %v3830
    %v4004 = vunpack.c.l.b16 %v3831
    %v4005 = vunpack.c.h.b16 %v3831
    %v4006 = vunpack.c.l.b16 %v3832
    %v4007 = vunpack.c.h.b16 %v3832
    %v4008 = vunpack.c.l.b16 %v3833
    %v4009 = vunpack.c.h.b16 %v3833
    %v4010 = vunpack.c.l.b16 %v3834
    %v4011 = vunpack.c.h.b16 %v3834
    %v4012 = vunpack.c.l.b16 %v3835
    %v4013 = vunpack.c.h.b16 %v3835
    %v4014 = vunpack.c.l.b16 %v3836
    %v4015 = vunpack.c.h.b16 %v3836
    %v4016 = vunpack.c.l.b16 %v3837
    %v4017 = vunpack.c.h.b16 %v3837
    %v4018 = vunpack.c.l.b16 %v3838
    %v4019 = vunpack.c.h.b16 %v3838
    %v4020 = vunpack.c.l.b16 %v3839
    %v4021 = vunpack.c.h.b16 %v3839
    %v4022 = vunpack.c.l.b16 %v3840
    %v4023 = vunpack.c.h.b16 %v3840
    %v4024 = vunpack.c.l.b16 %v3841
    %v4025 = vunpack.c.h.b16 %v3841
    %v4026 = vunpack.c.l.b16 %v3842
    %v4027 = vunpack.c.h.b16 %v3842
    %v4028 = vunpack.c.l.b16 %v3843
    %v4029 = vunpack.c.h.b16 %v3843
    %v4030 = vunpack.c.l.b16 %v3844
    %v4031 = vunpack.c.h.b16 %v3844
    %v4032 = vunpack.c.l.b16 %v3845
    %v4033 = vunpack.c.h.b16 %v3845
    %v4034 = vunpack.c.l.b16 %v3846
    %v4035 = vunpack.c.h.b16 %v3846
    %v4036 = vunpack.c.l.b16 %v3847
    %v4037 = vunpack.c.h.b16 %v3847
    %v4038 = vunpack.c.l.b16 %v3848
    %v4039 = vunpack.c.h.b16 %v3848
    %v4040 = vunpack.c.l.b16 %v3849
    %v4041 = vunpack.c.h.b16 %v3849
    %v4042 = vunpack.c.l.b16 %v3850
    %v4043 = vunpack.c.h.b16 %v3850
    %v4044 = vunpack.c.l.b16 %v3851
    %v4045 = vunpack.c.h.b16 %v3851
    %v4046 = vunpack.c.l.b16 %v3852
    %v4047 = vunpack.c.h.b16 %v3852
    %v4048 = vunpack.c.l.b16 %v3853
    %v4049 = vunpack.c.h.b16 %v3853
    %v4050 = vunpack.c.l.b16 %v3854
    %v4051 = vunpack.c.h.b16 %v3854
    %v4052 = vunpack.c.l.b16 %v3855
    %v4053 = vunpack.c.h.b16 %v3855
    %v4054 = vunpack.c.l.b16 %v3856
    %v4055 = vunpack.c.h.b16 %v3856
    %v4056 = vunpack.c.l.b16 %v3857
    %v4057 = vunpack.c.h.b16 %v3857
    %v4058 = vpack.c.b16 %v3934, %v3930
    %v4059 = vpack.c.b16 %v3935, %v3931
    %v4060 = vpack.c.b16 %v3936, %v3932
    %v4061 = vpack.c.b16 %v3937, %v3933
    %v4062 = vpack.c.b16 %v3942, %v3938
    %v4063 = vpack.c.b16 %v3943, %v3939
    %v4064 = vpack.c.b16 %v3944, %v3940
    %v4065 = vpack.c.b16 %v3945, %v3941
    %v4066 = vpack.c.b16 %v3950, %v3946
    %v4067 = vpack.c.b16 %v3951, %v3947
    %v4068 = vpack.c.b16 %v3952, %v3948
    %v4069 = vpack.c.b16 %v3953, %v3949
    %v4070 = vpack.c.b16 %v3958, %v3954
    %v4071 = vpack.c.b16 %v3959, %v3955
    %v4072 = vpack.c.b16 %v3960, %v3956
    %v4073 = vpack.c.b16 %v3961, %v3957
    %v4074 = vpack.c.b16 %v3966, %v3962
    %v4075 = vpack.c.b16 %v3967, %v3963
    %v4076 = vpack.c.b16 %v3968, %v3964
    %v4077 = vpack.c.b16 %v3969, %v3965
    %v4078 = vpack.c.b16 %v3974, %v3970
    %v4079 = vpack.c.b16 %v3975, %v3971
    %v4080 = vpack.c.b16 %v3976, %v3972
    %v4081 = vpack.c.b16 %v3977, %v3973
    %v4082 = vpack.c.b16 %v3982, %v3978
    %v4083 = vpack.c.b16 %v3983, %v3979
    %v4084 = vpack.c.b16 %v3984, %v3980
    %v4085 = vpack.c.b16 %v3985, %v3981
    %v4086 = vpack.c.b16 %v3990, %v3986
    %v4087 = vpack.c.b16 %v3991, %v3987
    %v4088 = vpack.c.b16 %v3992, %v3988
    %v4089 = vpack.c.b16 %v3993, %v3989
    %v4090 = vpack.c.b16 %v3998, %v3994
    %v4091 = vpack.c.b16 %v3999, %v3995
    %v4092 = vpack.c.b16 %v4000, %v3996
    %v4093 = vpack.c.b16 %v4001, %v3997
    %v4094 = vpack.c.b16 %v4006, %v4002
    %v4095 = vpack.c.b16 %v4007, %v4003
    %v4096 = vpack.c.b16 %v4008, %v4004
    %v4097 = vpack.c.b16 %v4009, %v4005
    %v4098 = vpack.c.b16 %v4014, %v4010
    %v4099 = vpack.c.b16 %v4015, %v4011
    %v4100 = vpack.c.b16 %v4016, %v4012
    %v4101 = vpack.c.b16 %v4017, %v4013
    %v4102 = vpack.c.b16 %v4022, %v4018
    %v4103 = vpack.c.b16 %v4023, %v4019
    %v4104 = vpack.c.b16 %v4024, %v4020
    %v4105 = vpack.c.b16 %v4025, %v4021
    %v4106 = vpack.c.b16 %v4030, %v4026
    %v4107 = vpack.c.b16 %v4031, %v4027
    %v4108 = vpack.c.b16 %v4032, %v4028
    %v4109 = vpack.c.b16 %v4033, %v4029
    %v4110 = vpack.c.b16 %v4038, %v4034
    %v4111 = vpack.c.b16 %v4039, %v4035
    %v4112 = vpack.c.b16 %v4040, %v4036
    %v4113 = vpack.c.b16 %v4041, %v4037
    %v4114 = vpack.c.b16 %v4046, %v4042
    %v4115 = vpack.c.b16 %v4047, %v4043
    %v4116 = vpack.c.b16 %v4048, %v4044
    %v4117 = vpack.c.b16 %v4049, %v4045
    %v4118 = vpack.c.b16 %v4054, %v4050
    %v4119 = vpack.c.b16 %v4055, %v4051
    %v4120 = vpack.c.b16 %v4056, %v4052
    %v4121 = vpack.c.b16 %v4057, %v4053
    %4186 = vmatprep.subr.bf16.mxu0 %v4059
    %4187 = vmatpush1.bf16.msra.mxu0 %v4058
    %4188 = vmatprep.subr.bf16.mxu0 %v4063
    %4189 = vmatpush1.bf16.msra.mxu0 %v4062
    %4190 = vmatprep.subr.bf16.mxu0 %v4067
    %4191 = vmatpush1.bf16.msra.mxu0 %v4066
    %4192 = vmatprep.subr.bf16.mxu0 %v4071
    %4193 = vmatpush1.bf16.msra.mxu0 %v4070
    %4194 = vmatprep.subr.bf16.mxu0 %v4075
    %4195 = vmatpush1.bf16.msra.mxu0 %v4074
    %4196 = vmatprep.subr.bf16.mxu0 %v4079
    %4197 = vmatpush1.bf16.msra.mxu0 %v4078
    %4198 = vmatprep.subr.bf16.mxu0 %v4083
    %4199 = vmatpush1.bf16.msra.mxu0 %v4082
    %4200 = vmatprep.subr.bf16.mxu0 %v4087
    %4201 = vmatpush1.bf16.msra.mxu0 %v4086
    %4202 = vmatprep.subr.bf16.mxu0 %v4091
    %4203 = vmatpush1.bf16.msra.mxu0 %v4090
    %4204 = vmatprep.subr.bf16.mxu0 %v4095
    %4205 = vmatpush1.bf16.msra.mxu0 %v4094
    %4206 = vmatprep.subr.bf16.mxu0 %v4099
    %4207 = vmatpush1.bf16.msra.mxu0 %v4098
    %4208 = vmatprep.subr.bf16.mxu0 %v4103
    %4209 = vmatpush1.bf16.msra.mxu0 %v4102
    %4210 = vmatprep.subr.bf16.mxu0 %v4107
    %4211 = vmatpush1.bf16.msra.mxu0 %v4106
    %4212 = vmatprep.subr.bf16.mxu0 %v4111
    %4213 = vmatpush1.bf16.msra.mxu0 %v4110
    %4214 = vmatprep.subr.bf16.mxu0 %v4115
    %4215 = vmatpush1.bf16.msra.mxu0 %v4114
    %4216 = vmatprep.subr.bf16.mxu0 %v4119
    %4217 = vmatpush1.bf16.msra.mxu0 %v4118
    %4218 = vmatprep.mubr.bf16.mxu0 %v3859
    %4219 = vmatmul.mubr.bf16.gmra.mrb[0].mxu0 %v3858
    %v4220 = vpop.f32.mrb[0].mxu0
    %v4221 = vadd.f32 0.0, %v4220
    %v4222 = vpop.f32.mrb[0].mxu0
    %v4223 = vadd.f32 0.0, %v4222
    %v4224 = vpop.f32.mrb[0].mxu0
    %v4225 = vadd.f32 0.0, %v4224
    %v4226 = vpop.f32.mrb[0].mxu0
    %v4227 = vadd.f32 0.0, %v4226
    %4228 = vmatprep.mubr.bf16.mxu0 %v3861
    %4229 = vmatmul.mubr.bf16.gmra.mrb[0].mxu0 %v3860
    %v4230 = vpop.f32.mrb[0].mxu0
    %v4231 = vadd.f32 0.0, %v4230
    %v4232 = vpop.f32.mrb[0].mxu0
    %v4233 = vadd.f32 0.0, %v4232
    %v4234 = vpop.f32.mrb[0].mxu0
    %v4235 = vadd.f32 0.0, %v4234
    %v4236 = vpop.f32.mrb[0].mxu0
    %v4237 = vadd.f32 0.0, %v4236
    %4238 = vmatprep.mubr.bf16.mxu0 %v3863
    %4239 = vmatmul.mubr.bf16.gmra.mrb[0].mxu0 %v3862
    %v4240 = vpop.f32.mrb[0].mxu0
    %v4241 = vadd.f32 0.0, %v4240
    %v4242 = vpop.f32.mrb[0].mxu0
    %v4243 = vadd.f32 0.0, %v4242
    %v4244 = vpop.f32.mrb[0].mxu0
    %v4245 = vadd.f32 0.0, %v4244
    %v4246 = vpop.f32.mrb[0].mxu0
    %v4247 = vadd.f32 0.0, %v4246
    %4248 = vmatprep.mubr.bf16.mxu0 %v3865
    %4249 = vmatmul.mubr.bf16.gmra.mrb[0].mxu0 %v3864
    %v4250 = vpop.f32.mrb[0].mxu0
    %v4251 = vadd.f32 0.0, %v4250
    %v4252 = vpop.f32.mrb[0].mxu0
    %v4253 = vadd.f32 0.0, %v4252
    %v4254 = vpop.f32.mrb[0].mxu0
    %v4255 = vpop.f32.mrb[0].mxu0
    %4256 = vdwg.mxu0
    %4257 = vmatprep.subr.bf16.mxu0 %v4061
    %4258 = vmatpush1.bf16.msra.mxu0 %v4060
    %4259 = vmatprep.subr.bf16.mxu0 %v4065
    %4260 = vmatpush1.bf16.msra.mxu0 %v4064
    %4261 = vmatprep.subr.bf16.mxu0 %v4069
    %4262 = vmatpush1.bf16.msra.mxu0 %v4068
    %4263 = vmatprep.subr.bf16.mxu0 %v4073
    %4264 = vmatpush1.bf16.msra.mxu0 %v4072
    %4265 = vmatprep.subr.bf16.mxu0 %v4077
    %4266 = vmatpush1.bf16.msra.mxu0 %v4076
    %4267 = vmatprep.subr.bf16.mxu0 %v4081
    %4268 = vmatpush1.bf16.msra.mxu0 %v4080
    %4269 = vmatprep.subr.bf16.mxu0 %v4085
    %4270 = vmatpush1.bf16.msra.mxu0 %v4084
    %4271 = vmatprep.subr.bf16.mxu0 %v4089
    %4272 = vmatpush1.bf16.msra.mxu0 %v4088
    %4273 = vmatprep.subr.bf16.mxu0 %v4093
    %4274 = vmatpush1.bf16.msra.mxu0 %v4092
    %4275 = vmatprep.subr.bf16.mxu0 %v4097
    %4276 = vmatpush1.bf16.msra.mxu0 %v4096
    %4277 = vmatprep.subr.bf16.mxu0 %v4101
    %4278 = vmatpush1.bf16.msra.mxu0 %v4100
    %4279 = vmatprep.subr.bf16.mxu0 %v4105
    %4280 = vmatpush1.bf16.msra.mxu0 %v4104
    %4281 = vmatprep.subr.bf16.mxu0 %v4109
    %4282 = vmatpush1.bf16.msra.mxu0 %v4108
    %4283 = vmatprep.subr.bf16.mxu0 %v4113
    %4284 = vmatpush1.bf16.msra.mxu0 %v4112
    %4285 = vmatprep.subr.bf16.mxu0 %v4117
    %4286 = vmatpush1.bf16.msra.mxu0 %v4116
    %4287 = vmatprep.subr.bf16.mxu0 %v4121
    %4288 = vmatpush1.bf16.msra.mxu0 %v4120
    %4289 = vmatprep.mubr.bf16.mxu0 %v3859
    %4290 = vmatmul.mubr.bf16.gmra.mrb[0].mxu0 %v3858
    %v4291 = vpop.f32.mrb[0].mxu0
    %v4292 = vadd.f32 0.0, %v4291
    %v4293 = vpop.f32.mrb[0].mxu0
    %v4294 = vadd.f32 0.0, %v4293
    %v4295 = vpop.f32.mrb[0].mxu0
    %v4296 = vadd.f32 0.0, %v4295
    %v4297 = vpop.f32.mrb[0].mxu0
    %v4298 = vadd.f32 0.0, %v4297
    %4299 = vmatprep.mubr.bf16.mxu0 %v3861
    %4300 = vmatmul.mubr.bf16.gmra.mrb[0].mxu0 %v3860
    %v4301 = vpop.f32.mrb[0].mxu0
    %v4302 = vadd.f32 0.0, %v4301
    %v4303 = vpop.f32.mrb[0].mxu0
    %v4304 = vadd.f32 0.0, %v4303
    %v4305 = vpop.f32.mrb[0].mxu0
    %v4306 = vadd.f32 0.0, %v4305
    %v4307 = vpop.f32.mrb[0].mxu0
    %v4308 = vadd.f32 0.0, %v4307
    %4309 = vmatprep.mubr.bf16.mxu0 %v3863
    %4310 = vmatmul.mubr.bf16.gmra.mrb[0].mxu0 %v3862
    %v4311 = vpop.f32.mrb[0].mxu0
    %v4312 = vadd.f32 0.0, %v4311
    %v4313 = vpop.f32.mrb[0].mxu0
    %v4314 = vadd.f32 0.0, %v4313
    %v4315 = vpop.f32.mrb[0].mxu0
    %v4316 = vadd.f32 0.0, %v4315
    %v4317 = vpop.f32.mrb[0].mxu0
    %v4318 = vadd.f32 0.0, %v4317
    %4319 = vmatprep.mubr.bf16.mxu0 %v3865
    %4320 = vmatmul.mubr.bf16.gmra.mrb[0].mxu0 %v3864
    %v4321 = vpop.f32.mrb[0].mxu0
    %v4322 = vadd.f32 0.0, %v4321
    %v4323 = vpop.f32.mrb[0].mxu0
    %v4324 = vadd.f32 0.0, %v4323
    %v4325 = vpop.f32.mrb[0].mxu0
    %v4326 = vpop.f32.mrb[0].mxu0
    %4327 = vdwg.mxu0
    %v4328 = vadd.f32 %v3686, %v4221
    %v4329 = vadd.f32 %v3688, %v4223
    %v4330 = vadd.f32 %v3757, %v4292
    %v4331 = vadd.f32 %v3759, %v4294
    %v4332 = vadd.f32 %v3690, %v4225
    %v4333 = vadd.f32 %v3692, %v4227
    %v4334 = vadd.f32 %v3761, %v4296
    %v4335 = vadd.f32 %v3763, %v4298
    %v4336 = vadd.f32 %v3696, %v4231
    %v4337 = vadd.f32 %v3698, %v4233
    %v4338 = vadd.f32 %v3767, %v4302
    %v4339 = vadd.f32 %v3769, %v4304
    %v4340 = vadd.f32 %v3700, %v4235
    %v4341 = vadd.f32 %v3702, %v4237
    %v4342 = vadd.f32 %v3771, %v4306
    %v4343 = vadd.f32 %v3773, %v4308
    %v4344 = vadd.f32 %v3706, %v4241
    %v4345 = vadd.f32 %v3708, %v4243
    %v4346 = vadd.f32 %v3777, %v4312
    %v4347 = vadd.f32 %v3779, %v4314
    %v4348 = vadd.f32 %v3710, %v4245
    %v4349 = vadd.f32 %v3712, %v4247
    %v4350 = vadd.f32 %v3781, %v4316
    %v4351 = vadd.f32 %v3783, %v4318
    %v4352 = vadd.f32 %v3716, %v4251
    %v4353 = vadd.f32 %v3718, %v4253
    %v4354 = vadd.f32 %v3787, %v4322
    %v4355 = vadd.f32 %v3789, %v4324
    %v4356 = vld [vmem:[%s4] sm:$0xf]
    %v4358 = vlaneseq
    %v4359 = vshrl.u32 %v4358, 7
    %v4360 = vsub.s32 0, %v4359
    %v4361 = vrot.slane %v4356, %v4360
    %v4362 = vlaneseq
    %v4363 = vshrl.u32 %v4362, 7
    %v4364 = vsub.s32 1, %v4363
    %v4365 = vrot.slane %v4356, %v4364
    %v4366 = vlaneseq
    %v4367 = vshrl.u32 %v4366, 7
    %v4368 = vsub.s32 2, %v4367
    %v4369 = vrot.slane %v4356, %v4368
    %v4370 = vlaneseq
    %v4371 = vshrl.u32 %v4370, 7
    %v4372 = vsub.s32 3, %v4371
    %v4373 = vrot.slane %v4356, %v4372
    %v4378 = vadd.f32 %v4328, %v4361
    %v4379 = vadd.f32 %v4329, %v4365
    %v4380 = vadd.f32 %v4330, %v4369
    %v4381 = vadd.f32 %v4331, %v4373
    %v4382 = vadd.f32 %v4332, %v4361
    %v4383 = vadd.f32 %v4333, %v4365
    %v4384 = vadd.f32 %v4334, %v4369
    %v4385 = vadd.f32 %v4335, %v4373
    %v4386 = vadd.f32 %v4336, %v4361
    %v4387 = vadd.f32 %v4337, %v4365
    %v4388 = vadd.f32 %v4338, %v4369
    %v4389 = vadd.f32 %v4339, %v4373
    %v4390 = vadd.f32 %v4340, %v4361
    %v4391 = vadd.f32 %v4341, %v4365
    %v4392 = vadd.f32 %v4342, %v4369
    %v4393 = vadd.f32 %v4343, %v4373
    %v4394 = vadd.f32 %v4344, %v4361
    %v4395 = vadd.f32 %v4345, %v4365
    %v4396 = vadd.f32 %v4346, %v4369
    %v4397 = vadd.f32 %v4347, %v4373
    %v4398 = vadd.f32 %v4348, %v4361
    %v4399 = vadd.f32 %v4349, %v4365
    %v4400 = vadd.f32 %v4350, %v4369
    %v4401 = vadd.f32 %v4351, %v4373
    %v4402 = vadd.f32 %v4352, %v4361
    %v4403 = vadd.f32 %v4353, %v4365
    %v4404 = vadd.f32 %v4354, %v4369
    %v4405 = vadd.f32 %v4355, %v4373
    %v4406 = vmax.f32 %v4378, 0.0
    %v4407 = vmax.f32 %v4379, 0.0
    %v4408 = vmax.f32 %v4380, 0.0
    %v4409 = vmax.f32 %v4381, 0.0
    %v4410 = vmax.f32 %v4382, 0.0
    %v4411 = vmax.f32 %v4383, 0.0
    %v4412 = vmax.f32 %v4384, 0.0
    %v4413 = vmax.f32 %v4385, 0.0
    %v4414 = vmax.f32 %v4386, 0.0
    %v4415 = vmax.f32 %v4387, 0.0
    %v4416 = vmax.f32 %v4388, 0.0
    %v4417 = vmax.f32 %v4389, 0.0
    %v4418 = vmax.f32 %v4390, 0.0
    %v4419 = vmax.f32 %v4391, 0.0
    %v4420 = vmax.f32 %v4392, 0.0
    %v4421 = vmax.f32 %v4393, 0.0
    %v4422 = vmax.f32 %v4394, 0.0
    %v4423 = vmax.f32 %v4395, 0.0
    %v4424 = vmax.f32 %v4396, 0.0
    %v4425 = vmax.f32 %v4397, 0.0
    %v4426 = vmax.f32 %v4398, 0.0
    %v4427 = vmax.f32 %v4399, 0.0
    %v4428 = vmax.f32 %v4400, 0.0
    %v4429 = vmax.f32 %v4401, 0.0
    %v4430 = vmax.f32 %v4402, 0.0
    %v4431 = vmax.f32 %v4403, 0.0
    %v4432 = vmax.f32 %v4404, 0.0
    %v4433 = vmax.f32 %v4405, 0.0
    %4434 = vmatprep.subr.bf16.mxu0 %v3062
    %4435 = vmatpush1.bf16.msra.mxu0 %v3061
    %4436 = vmatprep.subr.bf16.mxu0 %v3066
    %4437 = vmatpush1.bf16.msra.mxu0 %v3065
    %4438 = vmatprep.subr.bf16.mxu0 %v3070
    %4439 = vmatpush1.bf16.msra.mxu0 %v3069
    %4440 = vmatprep.subr.bf16.mxu0 %v3074
    %4441 = vmatpush1.bf16.msra.mxu0 %v3073
    %4442 = vmatprep.subr.bf16.mxu0 %v3078
    %4443 = vmatpush1.bf16.msra.mxu0 %v3077
    %4444 = vmatprep.subr.bf16.mxu0 %v3082
    %4445 = vmatpush1.bf16.msra.mxu0 %v3081
    %4446 = vmatprep.subr.bf16.mxu0 %v3086
    %4447 = vmatpush1.bf16.msra.mxu0 %v3085
    %4448 = vmatprep.subr.bf16.mxu0 %v3090
    %4449 = vmatpush1.bf16.msra.mxu0 %v3089
    %4450 = vmatprep.subr.bf16.mxu0 %v3094
    %4451 = vmatpush1.bf16.msra.mxu0 %v3093
    %4452 = vmatprep.subr.bf16.mxu0 %v3098
    %4453 = vmatpush1.bf16.msra.mxu0 %v3097
    %4454 = vmatprep.subr.bf16.mxu0 %v3102
    %4455 = vmatpush1.bf16.msra.mxu0 %v3101
    %4456 = vmatprep.subr.bf16.mxu0 %v3106
    %4457 = vmatpush1.bf16.msra.mxu0 %v3105
    %4458 = vmatprep.subr.bf16.mxu0 %v3110
    %4459 = vmatpush1.bf16.msra.mxu0 %v3109
    %4460 = vmatprep.subr.bf16.mxu0 %v3114
    %4461 = vmatpush1.bf16.msra.mxu0 %v3113
    %4462 = vmatprep.subr.bf16.mxu0 %v3118
    %4463 = vmatpush1.bf16.msra.mxu0 %v3117
    %4464 = vmatprep.subr.bf16.mxu0 %v3122
    %4465 = vmatpush1.bf16.msra.mxu0 %v3121
    %4466 = vmatprep.mubr.bf16.mxu0 %v3859
    %4467 = vmatmul.mubr.bf16.gmra.mrb[0].mxu0 %v3858
    %v4468 = vpop.f32.mrb[0].mxu0
    %v4469 = vadd.f32 0.0, %v4468
    %v4470 = vpop.f32.mrb[0].mxu0
    %v4471 = vadd.f32 0.0, %v4470
    %v4472 = vpop.f32.mrb[0].mxu0
    %v4473 = vadd.f32 0.0, %v4472
    %v4474 = vpop.f32.mrb[0].mxu0
    %v4475 = vadd.f32 0.0, %v4474
    %4476 = vmatprep.mubr.bf16.mxu0 %v3861
    %4477 = vmatmul.mubr.bf16.gmra.mrb[0].mxu0 %v3860
    %v4478 = vpop.f32.mrb[0].mxu0
    %v4479 = vadd.f32 0.0, %v4478
    %v4480 = vpop.f32.mrb[0].mxu0
    %v4481 = vadd.f32 0.0, %v4480
    %v4482 = vpop.f32.mrb[0].mxu0
    %v4483 = vadd.f32 0.0, %v4482
    %v4484 = vpop.f32.mrb[0].mxu0
    %v4485 = vadd.f32 0.0, %v4484
    %4486 = vmatprep.mubr.bf16.mxu0 %v3863
    %4487 = vmatmul.mubr.bf16.gmra.mrb[0].mxu0 %v3862
    %v4488 = vpop.f32.mrb[0].mxu0
    %v4489 = vadd.f32 0.0, %v4488
    %v4490 = vpop.f32.mrb[0].mxu0
    %v4491 = vadd.f32 0.0, %v4490
    %v4492 = vpop.f32.mrb[0].mxu0
    %v4493 = vadd.f32 0.0, %v4492
    %v4494 = vpop.f32.mrb[0].mxu0
    %v4495 = vadd.f32 0.0, %v4494
    %4496 = vmatprep.mubr.bf16.mxu0 %v3865
    %4497 = vmatmul.mubr.bf16.gmra.mrb[0].mxu0 %v3864
    %v4498 = vpop.f32.mrb[0].mxu0
    %v4499 = vadd.f32 0.0, %v4498
    %v4500 = vpop.f32.mrb[0].mxu0
    %v4501 = vadd.f32 0.0, %v4500
    %v4502 = vpop.f32.mrb[0].mxu0
    %v4503 = vpop.f32.mrb[0].mxu0
    %4504 = vdwg.mxu0
    %4505 = vmatprep.subr.bf16.mxu0 %v3064
    %4506 = vmatpush1.bf16.msra.mxu0 %v3063
    %4507 = vmatprep.subr.bf16.mxu0 %v3068
    %4508 = vmatpush1.bf16.msra.mxu0 %v3067
    %4509 = vmatprep.subr.bf16.mxu0 %v3072
    %4510 = vmatpush1.bf16.msra.mxu0 %v3071
    %4511 = vmatprep.subr.bf16.mxu0 %v3076
    %4512 = vmatpush1.bf16.msra.mxu0 %v3075
    %4513 = vmatprep.subr.bf16.mxu0 %v3080
    %4514 = vmatpush1.bf16.msra.mxu0 %v3079
    %4515 = vmatprep.subr.bf16.mxu0 %v3084
    %4516 = vmatpush1.bf16.msra.mxu0 %v3083
    %4517 = vmatprep.subr.bf16.mxu0 %v3088
    %4518 = vmatpush1.bf16.msra.mxu0 %v3087
    %4519 = vmatprep.subr.bf16.mxu0 %v3092
    %4520 = vmatpush1.bf16.msra.mxu0 %v3091
    %4521 = vmatprep.subr.bf16.mxu0 %v3096
    %4522 = vmatpush1.bf16.msra.mxu0 %v3095
    %4523 = vmatprep.subr.bf16.mxu0 %v3100
    %4524 = vmatpush1.bf16.msra.mxu0 %v3099
    %4525 = vmatprep.subr.bf16.mxu0 %v3104
    %4526 = vmatpush1.bf16.msra.mxu0 %v3103
    %4527 = vmatprep.subr.bf16.mxu0 %v3108
    %4528 = vmatpush1.bf16.msra.mxu0 %v3107
    %4529 = vmatprep.subr.bf16.mxu0 %v3112
    %4530 = vmatpush1.bf16.msra.mxu0 %v3111
    %4531 = vmatprep.subr.bf16.mxu0 %v3116
    %4532 = vmatpush1.bf16.msra.mxu0 %v3115
    %4533 = vmatprep.subr.bf16.mxu0 %v3120
    %4534 = vmatpush1.bf16.msra.mxu0 %v3119
    %4535 = vmatprep.subr.bf16.mxu0 %v3124
    %4536 = vmatpush1.bf16.msra.mxu0 %v3123
    %4537 = vmatprep.mubr.bf16.mxu0 %v3859
    %4538 = vmatmul.mubr.bf16.gmra.mrb[0].mxu0 %v3858
    %v4539 = vpop.f32.mrb[0].mxu0
    %v4540 = vadd.f32 0.0, %v4539
    %v4541 = vpop.f32.mrb[0].mxu0
    %v4542 = vadd.f32 0.0, %v4541
    %v4543 = vpop.f32.mrb[0].mxu0
    %v4544 = vadd.f32 0.0, %v4543
    %v4545 = vpop.f32.mrb[0].mxu0
    %v4546 = vadd.f32 0.0, %v4545
    %4547 = vmatprep.mubr.bf16.mxu0 %v3861
    %4548 = vmatmul.mubr.bf16.gmra.mrb[0].mxu0 %v3860
    %v4549 = vpop.f32.mrb[0].mxu0
    %v4550 = vadd.f32 0.0, %v4549
    %v4551 = vpop.f32.mrb[0].mxu0
    %v4552 = vadd.f32 0.0, %v4551
    %v4553 = vpop.f32.mrb[0].mxu0
    %v4554 = vadd.f32 0.0, %v4553
    %v4555 = vpop.f32.mrb[0].mxu0
    %v4556 = vadd.f32 0.0, %v4555
    %4557 = vmatprep.mubr.bf16.mxu0 %v3863
    %4558 = vmatmul.mubr.bf16.gmra.mrb[0].mxu0 %v3862
    %v4559 = vpop.f32.mrb[0].mxu0
    %v4560 = vadd.f32 0.0, %v4559
    %v4561 = vpop.f32.mrb[0].mxu0
    %v4562 = vadd.f32 0.0, %v4561
    %v4563 = vpop.f32.mrb[0].mxu0
    %v4564 = vadd.f32 0.0, %v4563
    %v4565 = vpop.f32.mrb[0].mxu0
    %v4566 = vadd.f32 0.0, %v4565
    %4567 = vmatprep.mubr.bf16.mxu0 %v3865
    %4568 = vmatmul.mubr.bf16.gmra.mrb[0].mxu0 %v3864
    %v4569 = vpop.f32.mrb[0].mxu0
    %v4570 = vadd.f32 0.0, %v4569
    %v4571 = vpop.f32.mrb[0].mxu0
    %v4572 = vadd.f32 0.0, %v4571
    %v4573 = vpop.f32.mrb[0].mxu0
    %v4574 = vpop.f32.mrb[0].mxu0
    %4575 = vdwg.mxu0
    %4576 = vmatprep.subr.bf16.mxu0 %v3524
    %4577 = vmatpush1.bf16.msra.mxu0 %v3523
    %4578 = vmatprep.subr.bf16.mxu0 %v3528
    %4579 = vmatpush1.bf16.msra.mxu0 %v3527
    %4580 = vmatprep.subr.bf16.mxu0 %v3532
    %4581 = vmatpush1.bf16.msra.mxu0 %v3531
    %4582 = vmatprep.subr.bf16.mxu0 %v3536
    %4583 = vmatpush1.bf16.msra.mxu0 %v3535
    %4584 = vmatprep.subr.bf16.mxu0 %v3540
    %4585 = vmatpush1.bf16.msra.mxu0 %v3539
    %4586 = vmatprep.subr.bf16.mxu0 %v3544
    %4587 = vmatpush1.bf16.msra.mxu0 %v3543
    %4588 = vmatprep.subr.bf16.mxu0 %v3548
    %4589 = vmatpush1.bf16.msra.mxu0 %v3547
    %4590 = vmatprep.subr.bf16.mxu0 %v3552
    %4591 = vmatpush1.bf16.msra.mxu0 %v3551
    %4592 = vmatprep.subr.bf16.mxu0 %v3556
    %4593 = vmatpush1.bf16.msra.mxu0 %v3555
    %4594 = vmatprep.subr.bf16.mxu0 %v3560
    %4595 = vmatpush1.bf16.msra.mxu0 %v3559
    %4596 = vmatprep.subr.bf16.mxu0 %v3564
    %4597 = vmatpush1.bf16.msra.mxu0 %v3563
    %4598 = vmatprep.subr.bf16.mxu0 %v3568
    %4599 = vmatpush1.bf16.msra.mxu0 %v3567
    %4600 = vmatprep.subr.bf16.mxu0 %v3572
    %4601 = vmatpush1.bf16.msra.mxu0 %v3571
    %4602 = vmatprep.subr.bf16.mxu0 %v3576
    %4603 = vmatpush1.bf16.msra.mxu0 %v3575
    %4604 = vmatprep.subr.bf16.mxu0 %v3580
    %4605 = vmatpush1.bf16.msra.mxu0 %v3579
    %4606 = vmatprep.subr.bf16.mxu0 %v3584
    %4607 = vmatpush1.bf16.msra.mxu0 %v3583
    %4608 = vmatprep.mubr.bf16.mxu0 %v2862
    %4609 = vmatmul.mubr.bf16.gmra.mrb[0].mxu0 %v2861
    %v4610 = vpop.f32.mrb[0].mxu0
    %v4611 = vadd.f32 %v4469, %v4610
    %v4612 = vpop.f32.mrb[0].mxu0
    %v4613 = vadd.f32 %v4471, %v4612
    %v4614 = vpop.f32.mrb[0].mxu0
    %v4615 = vadd.f32 %v4473, %v4614
    %v4616 = vpop.f32.mrb[0].mxu0
    %v4617 = vadd.f32 %v4475, %v4616
    %4618 = vmatprep.mubr.bf16.mxu0 %v2864
    %4619 = vmatmul.mubr.bf16.gmra.mrb[0].mxu0 %v2863
    %v4620 = vpop.f32.mrb[0].mxu0
    %v4621 = vadd.f32 %v4479, %v4620
    %v4622 = vpop.f32.mrb[0].mxu0
    %v4623 = vadd.f32 %v4481, %v4622
    %v4624 = vpop.f32.mrb[0].mxu0
    %v4625 = vadd.f32 %v4483, %v4624
    %v4626 = vpop.f32.mrb[0].mxu0
    %v4627 = vadd.f32 %v4485, %v4626
    %4628 = vmatprep.mubr.bf16.mxu0 %v2866
    %4629 = vmatmul.mubr.bf16.gmra.mrb[0].mxu0 %v2865
    %v4630 = vpop.f32.mrb[0].mxu0
    %v4631 = vadd.f32 %v4489, %v4630
    %v4632 = vpop.f32.mrb[0].mxu0
    %v4633 = vadd.f32 %v4491, %v4632
    %v4634 = vpop.f32.mrb[0].mxu0
    %v4635 = vadd.f32 %v4493, %v4634
    %v4636 = vpop.f32.mrb[0].mxu0
    %v4637 = vadd.f32 %v4495, %v4636
    %4638 = vmatprep.mubr.bf16.mxu0 %v2868
    %4639 = vmatmul.mubr.bf16.gmra.mrb[0].mxu0 %v2867
    %v4640 = vpop.f32.mrb[0].mxu0
    %v4641 = vadd.f32 %v4499, %v4640
    %v4642 = vpop.f32.mrb[0].mxu0
    %v4643 = vadd.f32 %v4501, %v4642
    %v4644 = vpop.f32.mrb[0].mxu0
    %v4645 = vpop.f32.mrb[0].mxu0
    %4646 = vdwg.mxu0
    %4647 = vmatprep.subr.bf16.mxu0 %v3526
    %4648 = vmatpush1.bf16.msra.mxu0 %v3525
    %4649 = vmatprep.subr.bf16.mxu0 %v3530
    %4650 = vmatpush1.bf16.msra.mxu0 %v3529
    %4651 = vmatprep.subr.bf16.mxu0 %v3534
    %4652 = vmatpush1.bf16.msra.mxu0 %v3533
    %4653 = vmatprep.subr.bf16.mxu0 %v3538
    %4654 = vmatpush1.bf16.msra.mxu0 %v3537
    %4655 = vmatprep.subr.bf16.mxu0 %v3542
    %4656 = vmatpush1.bf16.msra.mxu0 %v3541
    %4657 = vmatprep.subr.bf16.mxu0 %v3546
    %4658 = vmatpush1.bf16.msra.mxu0 %v3545
    %4659 = vmatprep.subr.bf16.mxu0 %v3550
    %4660 = vmatpush1.bf16.msra.mxu0 %v3549
    %4661 = vmatprep.subr.bf16.mxu0 %v3554
    %4662 = vmatpush1.bf16.msra.mxu0 %v3553
    %4663 = vmatprep.subr.bf16.mxu0 %v3558
    %4664 = vmatpush1.bf16.msra.mxu0 %v3557
    %4665 = vmatprep.subr.bf16.mxu0 %v3562
    %4666 = vmatpush1.bf16.msra.mxu0 %v3561
    %4667 = vmatprep.subr.bf16.mxu0 %v3566
    %4668 = vmatpush1.bf16.msra.mxu0 %v3565
    %4669 = vmatprep.subr.bf16.mxu0 %v3570
    %4670 = vmatpush1.bf16.msra.mxu0 %v3569
    %4671 = vmatprep.subr.bf16.mxu0 %v3574
    %4672 = vmatpush1.bf16.msra.mxu0 %v3573
    %4673 = vmatprep.subr.bf16.mxu0 %v3578
    %4674 = vmatpush1.bf16.msra.mxu0 %v3577
    %4675 = vmatprep.subr.bf16.mxu0 %v3582
    %4676 = vmatpush1.bf16.msra.mxu0 %v3581
    %4677 = vmatprep.subr.bf16.mxu0 %v3586
    %4678 = vmatpush1.bf16.msra.mxu0 %v3585
    %4679 = vmatprep.mubr.bf16.mxu0 %v2862
    %4680 = vmatmul.mubr.bf16.gmra.mrb[0].mxu0 %v2861
    %v4681 = vpop.f32.mrb[0].mxu0
    %v4682 = vadd.f32 %v4540, %v4681
    %v4683 = vpop.f32.mrb[0].mxu0
    %v4684 = vadd.f32 %v4542, %v4683
    %v4685 = vpop.f32.mrb[0].mxu0
    %v4686 = vadd.f32 %v4544, %v4685
    %v4687 = vpop.f32.mrb[0].mxu0
    %v4688 = vadd.f32 %v4546, %v4687
    %4689 = vmatprep.mubr.bf16.mxu0 %v2864
    %4690 = vmatmul.mubr.bf16.gmra.mrb[0].mxu0 %v2863
    %v4691 = vpop.f32.mrb[0].mxu0
    %v4692 = vadd.f32 %v4550, %v4691
    %v4693 = vpop.f32.mrb[0].mxu0
    %v4694 = vadd.f32 %v4552, %v4693
    %v4695 = vpop.f32.mrb[0].mxu0
    %v4696 = vadd.f32 %v4554, %v4695
    %v4697 = vpop.f32.mrb[0].mxu0
    %v4698 = vadd.f32 %v4556, %v4697
    %4699 = vmatprep.mubr.bf16.mxu0 %v2866
    %4700 = vmatmul.mubr.bf16.gmra.mrb[0].mxu0 %v2865
    %v4701 = vpop.f32.mrb[0].mxu0
    %v4702 = vadd.f32 %v4560, %v4701
    %v4703 = vpop.f32.mrb[0].mxu0
    %v4704 = vadd.f32 %v4562, %v4703
    %v4705 = vpop.f32.mrb[0].mxu0
    %v4706 = vadd.f32 %v4564, %v4705
    %v4707 = vpop.f32.mrb[0].mxu0
    %v4708 = vadd.f32 %v4566, %v4707
    %4709 = vmatprep.mubr.bf16.mxu0 %v2868
    %4710 = vmatmul.mubr.bf16.gmra.mrb[0].mxu0 %v2867
    %v4711 = vpop.f32.mrb[0].mxu0
    %v4712 = vadd.f32 %v4570, %v4711
    %v4713 = vpop.f32.mrb[0].mxu0
    %v4714 = vadd.f32 %v4572, %v4713
    %v4715 = vpop.f32.mrb[0].mxu0
    %v4716 = vpop.f32.mrb[0].mxu0
    %4717 = vdwg.mxu0
    %v4718 = vpack.c.bf16 %v2686, %v2684
    %v4719 = vpack.c.bf16 %v2687, %v2685
    %v4720 = vpack.c.bf16 %v2690, %v2688
    %v4721 = vpack.c.bf16 %v2691, %v2689
    %v4722 = vpack.c.bf16 %v2694, %v2692
    %v4723 = vpack.c.bf16 %v2695, %v2693
    %v4724 = vpack.c.bf16 %v2696, %v2696
    %v4725 = vpack.c.bf16 %v2697, %v2697
    %4726 = vmatprep.subr.bf16.mxu0 %v4059
    %4727 = vmatpush1.bf16.msra.mxu0 %v4058
    %4728 = vmatprep.subr.bf16.mxu0 %v4063
    %4729 = vmatpush1.bf16.msra.mxu0 %v4062
    %4730 = vmatprep.subr.bf16.mxu0 %v4067
    %4731 = vmatpush1.bf16.msra.mxu0 %v4066
    %4732 = vmatprep.subr.bf16.mxu0 %v4071
    %4733 = vmatpush1.bf16.msra.mxu0 %v4070
    %4734 = vmatprep.subr.bf16.mxu0 %v4075
    %4735 = vmatpush1.bf16.msra.mxu0 %v4074
    %4736 = vmatprep.subr.bf16.mxu0 %v4079
    %4737 = vmatpush1.bf16.msra.mxu0 %v4078
    %4738 = vmatprep.subr.bf16.mxu0 %v4083
    %4739 = vmatpush1.bf16.msra.mxu0 %v4082
    %4740 = vmatprep.subr.bf16.mxu0 %v4087
    %4741 = vmatpush1.bf16.msra.mxu0 %v4086
    %4742 = vmatprep.subr.bf16.mxu0 %v4091
    %4743 = vmatpush1.bf16.msra.mxu0 %v4090
    %4744 = vmatprep.subr.bf16.mxu0 %v4095
    %4745 = vmatpush1.bf16.msra.mxu0 %v4094
    %4746 = vmatprep.subr.bf16.mxu0 %v4099
    %4747 = vmatpush1.bf16.msra.mxu0 %v4098
    %4748 = vmatprep.subr.bf16.mxu0 %v4103
    %4749 = vmatpush1.bf16.msra.mxu0 %v4102
    %4750 = vmatprep.subr.bf16.mxu0 %v4107
    %4751 = vmatpush1.bf16.msra.mxu0 %v4106
    %4752 = vmatprep.subr.bf16.mxu0 %v4111
    %4753 = vmatpush1.bf16.msra.mxu0 %v4110
    %4754 = vmatprep.subr.bf16.mxu0 %v4115
    %4755 = vmatpush1.bf16.msra.mxu0 %v4114
    %4756 = vmatprep.subr.bf16.mxu0 %v4119
    %4757 = vmatpush1.bf16.msra.mxu0 %v4118
    %4758 = vmatprep.mubr.bf16.mxu0 %v4719
    %4759 = vmatmul.mubr.bf16.gmra.mrb[0].mxu0 %v4718
    %v4760 = vpop.f32.mrb[0].mxu0
    %v4761 = vadd.f32 0.0, %v4760
    %v4762 = vpop.f32.mrb[0].mxu0
    %v4763 = vadd.f32 0.0, %v4762
    %v4764 = vpop.f32.mrb[0].mxu0
    %v4765 = vadd.f32 0.0, %v4764
    %v4766 = vpop.f32.mrb[0].mxu0
    %v4767 = vadd.f32 0.0, %v4766
    %4768 = vmatprep.mubr.bf16.mxu0 %v4721
    %4769 = vmatmul.mubr.bf16.gmra.mrb[0].mxu0 %v4720
    %v4770 = vpop.f32.mrb[0].mxu0
    %v4771 = vadd.f32 0.0, %v4770
    %v4772 = vpop.f32.mrb[0].mxu0
    %v4773 = vadd.f32 0.0, %v4772
    %v4774 = vpop.f32.mrb[0].mxu0
    %v4775 = vadd.f32 0.0, %v4774
    %v4776 = vpop.f32.mrb[0].mxu0
    %v4777 = vadd.f32 0.0, %v4776
    %4778 = vmatprep.mubr.bf16.mxu0 %v4723
    %4779 = vmatmul.mubr.bf16.gmra.mrb[0].mxu0 %v4722
    %v4780 = vpop.f32.mrb[0].mxu0
    %v4781 = vadd.f32 0.0, %v4780
    %v4782 = vpop.f32.mrb[0].mxu0
    %v4783 = vadd.f32 0.0, %v4782
    %v4784 = vpop.f32.mrb[0].mxu0
    %v4785 = vadd.f32 0.0, %v4784
    %v4786 = vpop.f32.mrb[0].mxu0
    %v4787 = vadd.f32 0.0, %v4786
    %4788 = vmatprep.mubr.bf16.mxu0 %v4725
    %4789 = vmatmul.mubr.bf16.gmra.mrb[0].mxu0 %v4724
    %v4790 = vpop.f32.mrb[0].mxu0
    %v4791 = vadd.f32 0.0, %v4790
    %v4792 = vpop.f32.mrb[0].mxu0
    %v4793 = vadd.f32 0.0, %v4792
    %v4794 = vpop.f32.mrb[0].mxu0
    %v4795 = vpop.f32.mrb[0].mxu0
    %4796 = vdwg.mxu0
    %4797 = vmatprep.subr.bf16.mxu0 %v4061
    %4798 = vmatpush1.bf16.msra.mxu0 %v4060
    %4799 = vmatprep.subr.bf16.mxu0 %v4065
    %4800 = vmatpush1.bf16.msra.mxu0 %v4064
    %4801 = vmatprep.subr.bf16.mxu0 %v4069
    %4802 = vmatpush1.bf16.msra.mxu0 %v4068
    %4803 = vmatprep.subr.bf16.mxu0 %v4073
    %4804 = vmatpush1.bf16.msra.mxu0 %v4072
    %4805 = vmatprep.subr.bf16.mxu0 %v4077
    %4806 = vmatpush1.bf16.msra.mxu0 %v4076
    %4807 = vmatprep.subr.bf16.mxu0 %v4081
    %4808 = vmatpush1.bf16.msra.mxu0 %v4080
    %4809 = vmatprep.subr.bf16.mxu0 %v4085
    %4810 = vmatpush1.bf16.msra.mxu0 %v4084
    %4811 = vmatprep.subr.bf16.mxu0 %v4089
    %4812 = vmatpush1.bf16.msra.mxu0 %v4088
    %4813 = vmatprep.subr.bf16.mxu0 %v4093
    %4814 = vmatpush1.bf16.msra.mxu0 %v4092
    %4815 = vmatprep.subr.bf16.mxu0 %v4097
    %4816 = vmatpush1.bf16.msra.mxu0 %v4096
    %4817 = vmatprep.subr.bf16.mxu0 %v4101
    %4818 = vmatpush1.bf16.msra.mxu0 %v4100
    %4819 = vmatprep.subr.bf16.mxu0 %v4105
    %4820 = vmatpush1.bf16.msra.mxu0 %v4104
    %4821 = vmatprep.subr.bf16.mxu0 %v4109
    %4822 = vmatpush1.bf16.msra.mxu0 %v4108
    %4823 = vmatprep.subr.bf16.mxu0 %v4113
    %4824 = vmatpush1.bf16.msra.mxu0 %v4112
    %4825 = vmatprep.subr.bf16.mxu0 %v4117
    %4826 = vmatpush1.bf16.msra.mxu0 %v4116
    %4827 = vmatprep.subr.bf16.mxu0 %v4121
    %4828 = vmatpush1.bf16.msra.mxu0 %v4120
    %4829 = vmatprep.mubr.bf16.mxu0 %v4719
    %4830 = vmatmul.mubr.bf16.gmra.mrb[0].mxu0 %v4718
    %v4831 = vpop.f32.mrb[0].mxu0
    %v4832 = vadd.f32 0.0, %v4831
    %v4833 = vpop.f32.mrb[0].mxu0
    %v4834 = vadd.f32 0.0, %v4833
    %v4835 = vpop.f32.mrb[0].mxu0
    %v4836 = vadd.f32 0.0, %v4835
    %v4837 = vpop.f32.mrb[0].mxu0
    %v4838 = vadd.f32 0.0, %v4837
    %4839 = vmatprep.mubr.bf16.mxu0 %v4721
    %4840 = vmatmul.mubr.bf16.gmra.mrb[0].mxu0 %v4720
    %v4841 = vpop.f32.mrb[0].mxu0
    %v4842 = vadd.f32 0.0, %v4841
    %v4843 = vpop.f32.mrb[0].mxu0
    %v4844 = vadd.f32 0.0, %v4843
    %v4845 = vpop.f32.mrb[0].mxu0
    %v4846 = vadd.f32 0.0, %v4845
    %v4847 = vpop.f32.mrb[0].mxu0
    %v4848 = vadd.f32 0.0, %v4847
    %4849 = vmatprep.mubr.bf16.mxu0 %v4723
    %4850 = vmatmul.mubr.bf16.gmra.mrb[0].mxu0 %v4722
    %v4851 = vpop.f32.mrb[0].mxu0
    %v4852 = vadd.f32 0.0, %v4851
    %v4853 = vpop.f32.mrb[0].mxu0
    %v4854 = vadd.f32 0.0, %v4853
    %v4855 = vpop.f32.mrb[0].mxu0
    %v4856 = vadd.f32 0.0, %v4855
    %v4857 = vpop.f32.mrb[0].mxu0
    %v4858 = vadd.f32 0.0, %v4857
    %4859 = vmatprep.mubr.bf16.mxu0 %v4725
    %4860 = vmatmul.mubr.bf16.gmra.mrb[0].mxu0 %v4724
    %v4861 = vpop.f32.mrb[0].mxu0
    %v4862 = vadd.f32 0.0, %v4861
    %v4863 = vpop.f32.mrb[0].mxu0
    %v4864 = vadd.f32 0.0, %v4863
    %v4865 = vpop.f32.mrb[0].mxu0
    %v4866 = vpop.f32.mrb[0].mxu0
    %4867 = vdwg.mxu0
    %v4868 = vadd.f32 %v4611, %v4761
    %v4869 = vadd.f32 %v4613, %v4763
    %v4870 = vadd.f32 %v4682, %v4832
    %v4871 = vadd.f32 %v4684, %v4834
    %v4872 = vadd.f32 %v4615, %v4765
    %v4873 = vadd.f32 %v4617, %v4767
    %v4874 = vadd.f32 %v4686, %v4836
    %v4875 = vadd.f32 %v4688, %v4838
    %v4876 = vadd.f32 %v4621, %v4771
    %v4877 = vadd.f32 %v4623, %v4773
    %v4878 = vadd.f32 %v4692, %v4842
    %v4879 = vadd.f32 %v4694, %v4844
    %v4880 = vadd.f32 %v4625, %v4775
    %v4881 = vadd.f32 %v4627, %v4777
    %v4882 = vadd.f32 %v4696, %v4846
    %v4883 = vadd.f32 %v4698, %v4848
    %v4884 = vadd.f32 %v4631, %v4781
    %v4885 = vadd.f32 %v4633, %v4783
    %v4886 = vadd.f32 %v4702, %v4852
    %v4887 = vadd.f32 %v4704, %v4854
    %v4888 = vadd.f32 %v4635, %v4785
    %v4889 = vadd.f32 %v4637, %v4787
    %v4890 = vadd.f32 %v4706, %v4856
    %v4891 = vadd.f32 %v4708, %v4858
    %v4892 = vadd.f32 %v4641, %v4791
    %v4893 = vadd.f32 %v4643, %v4793
    %v4894 = vadd.f32 %v4712, %v4862
    %v4895 = vadd.f32 %v4714, %v4864
    %v4896 = vadd.f32 %v4868, %v4361
    %v4897 = vadd.f32 %v4869, %v4365
    %v4898 = vadd.f32 %v4870, %v4369
    %v4899 = vadd.f32 %v4871, %v4373
    %v4900 = vadd.f32 %v4872, %v4361
    %v4901 = vadd.f32 %v4873, %v4365
    %v4902 = vadd.f32 %v4874, %v4369
    %v4903 = vadd.f32 %v4875, %v4373
    %v4904 = vadd.f32 %v4876, %v4361
    %v4905 = vadd.f32 %v4877, %v4365
    %v4906 = vadd.f32 %v4878, %v4369
    %v4907 = vadd.f32 %v4879, %v4373
    %v4908 = vadd.f32 %v4880, %v4361
    %v4909 = vadd.f32 %v4881, %v4365
    %v4910 = vadd.f32 %v4882, %v4369
    %v4911 = vadd.f32 %v4883, %v4373
    %v4912 = vadd.f32 %v4884, %v4361
    %v4913 = vadd.f32 %v4885, %v4365
    %v4914 = vadd.f32 %v4886, %v4369
    %v4915 = vadd.f32 %v4887, %v4373
    %v4916 = vadd.f32 %v4888, %v4361
    %v4917 = vadd.f32 %v4889, %v4365
    %v4918 = vadd.f32 %v4890, %v4369
    %v4919 = vadd.f32 %v4891, %v4373
    %v4920 = vadd.f32 %v4892, %v4361
    %v4921 = vadd.f32 %v4893, %v4365
    %v4922 = vadd.f32 %v4894, %v4369
    %v4923 = vadd.f32 %v4895, %v4373
    %v4924 = vmax.f32 %v4896, 0.0
    %v4925 = vmax.f32 %v4897, 0.0
    %v4926 = vmax.f32 %v4898, 0.0
    %v4927 = vmax.f32 %v4899, 0.0
    %v4928 = vmax.f32 %v4900, 0.0
    %v4929 = vmax.f32 %v4901, 0.0
    %v4930 = vmax.f32 %v4902, 0.0
    %v4931 = vmax.f32 %v4903, 0.0
    %v4932 = vmax.f32 %v4904, 0.0
    %v4933 = vmax.f32 %v4905, 0.0
    %v4934 = vmax.f32 %v4906, 0.0
    %v4935 = vmax.f32 %v4907, 0.0
    %v4936 = vmax.f32 %v4908, 0.0
    %v4937 = vmax.f32 %v4909, 0.0
    %v4938 = vmax.f32 %v4910, 0.0
    %v4939 = vmax.f32 %v4911, 0.0
    %v4940 = vmax.f32 %v4912, 0.0
    %v4941 = vmax.f32 %v4913, 0.0
    %v4942 = vmax.f32 %v4914, 0.0
    %v4943 = vmax.f32 %v4915, 0.0
    %v4944 = vmax.f32 %v4916, 0.0
    %v4945 = vmax.f32 %v4917, 0.0
    %v4946 = vmax.f32 %v4918, 0.0
    %v4947 = vmax.f32 %v4919, 0.0
    %v4948 = vmax.f32 %v4920, 0.0
    %v4949 = vmax.f32 %v4921, 0.0
    %v4950 = vmax.f32 %v4922, 0.0
    %v4951 = vmax.f32 %v4923, 0.0
    %v4952 = vmax.f32 %v4406, %v4924
    %v4953 = vmax.f32 %v4407, %v4925
    %v4954 = vmax.f32 %v4408, %v4926
    %v4955 = vmax.f32 %v4409, %v4927
    %v4956 = vmax.f32 %v4410, %v4928
    %v4957 = vmax.f32 %v4411, %v4929
    %v4958 = vmax.f32 %v4412, %v4930
    %v4959 = vmax.f32 %v4413, %v4931
    %v4960 = vmax.f32 %v4414, %v4932
    %v4961 = vmax.f32 %v4415, %v4933
    %v4962 = vmax.f32 %v4416, %v4934
    %v4963 = vmax.f32 %v4417, %v4935
    %v4964 = vmax.f32 %v4418, %v4936
    %v4965 = vmax.f32 %v4419, %v4937
    %v4966 = vmax.f32 %v4420, %v4938
    %v4967 = vmax.f32 %v4421, %v4939
    %v4968 = vmax.f32 %v4422, %v4940
    %v4969 = vmax.f32 %v4423, %v4941
    %v4970 = vmax.f32 %v4424, %v4942
    %v4971 = vmax.f32 %v4425, %v4943
    %v4972 = vmax.f32 %v4426, %v4944
    %v4973 = vmax.f32 %v4427, %v4945
    %v4974 = vmax.f32 %v4428, %v4946
    %v4975 = vmax.f32 %v4429, %v4947
    %v4976 = vmax.f32 %v4430, %v4948
    %v4977 = vmax.f32 %v4431, %v4949
    %v4978 = vmax.f32 %v4432, %v4950
    %v4979 = vmax.f32 %v4433, %v4951
    %v4980 = vmax.f32 %v4952, %v4954
    %v4981 = vmax.f32 %v4953, %v4955
    %v4982 = vmax.f32 %v4956, %v4958
    %v4983 = vmax.f32 %v4957, %v4959
    %v4984 = vmax.f32 %v4960, %v4962
    %v4985 = vmax.f32 %v4961, %v4963
    %v4986 = vmax.f32 %v4964, %v4966
    %v4987 = vmax.f32 %v4965, %v4967
    %v4988 = vmax.f32 %v4968, %v4970
    %v4989 = vmax.f32 %v4969, %v4971
    %v4990 = vmax.f32 %v4972, %v4974
    %v4991 = vmax.f32 %v4973, %v4975
    %v4992 = vmax.f32 %v4976, %v4978
    %v4993 = vmax.f32 %v4977, %v4979
    %4994 = vst [vmem:[#allocation3] sm:$0xff] %v4980
    %4995 = vst [vmem:[#allocation3 + $0x8] sm:$0xff] %v4981
    %4996 = vst [vmem:[#allocation3 + $0x10] sm:$0xff] %v4982
    %4997 = vst [vmem:[#allocation3 + $0x18] sm:$0xff] %v4983
    %4998 = vst [vmem:[#allocation3 + $0x20] sm:$0xff] %v4984
    %4999 = vst [vmem:[#allocation3 + $0x28] sm:$0xff] %v4985
    %5000 = vst [vmem:[#allocation3 + $0x30] sm:$0xff] %v4986
    %5001 = vst [vmem:[#allocation3 + $0x38] sm:$0xff] %v4987
    %5002 = vst [vmem:[#allocation3 + $0x40] sm:$0xff] %v4988
    %5003 = vst [vmem:[#allocation3 + $0x48] sm:$0xff] %v4989
    %5004 = vst [vmem:[#allocation3 + $0x50] sm:$0xff] %v4990
    %5005 = vst [vmem:[#allocation3 + $0x58] sm:$0xff] %v4991
    %5006 = vst [vmem:[#allocation3 + $0x60] sm:$0xff] %v4992
    %5007 = vst [vmem:[#allocation3 + $0x68] sm:$0xff] %v4993
    %v5008 = vld [vmem:[#allocation3] sm:$0xff]
    %v5009 = vld [vmem:[#allocation3 + $0x8] sm:$0xff]
    %v5010 = vld [vmem:[#allocation4] sm:$0xf]
    %v5011 = vld [vmem:[#allocation4 + $0x4] sm:$0xf]
    %v5012 = vld [vmem:[#allocation4 + $0x8] sm:$0xf]
    %v5013 = vld [vmem:[#allocation4 + $0xc] sm:$0xf]
    %v5014 = vld [vmem:[#allocation4 + $0x10] sm:$0xf]
    %v5015 = vld [vmem:[#allocation4 + $0x14] sm:$0xf]
    %v5016 = vld [vmem:[#allocation4 + $0x18] sm:$0xf]
    %v5017 = vld [vmem:[#allocation4 + $0x1c] sm:$0xf]
    %v5018 = vld [vmem:[#allocation4 + $0x20] sm:$0xf]
    %v5019 = vld [vmem:[#allocation4 + $0x24] sm:$0xf]
    %v5020 = vld [vmem:[#allocation4 + $0x28] sm:$0xf]
    %v5021 = vld [vmem:[#allocation4 + $0x2c] sm:$0xf]
    %v5022 = vld [vmem:[#allocation4 + $0x30] sm:$0xf]
    %v5023 = vld [vmem:[#allocation4 + $0x34] sm:$0xf]
    %v5024 = vld [vmem:[#allocation4 + $0x38] sm:$0xf]
    %v5025 = vld [vmem:[#allocation4 + $0x3c] sm:$0xf]
    %v5026 = vld [vmem:[#allocation4 + $0x40] sm:$0xf]
    %v5027 = vld [vmem:[#allocation4 + $0x44] sm:$0xf]
    %v5028 = vld [vmem:[#allocation4 + $0x48] sm:$0xf]
    %v5029 = vld [vmem:[#allocation4 + $0x4c] sm:$0xf]
    %v5030 = vld [vmem:[#allocation4 + $0x50] sm:$0xf]
    %v5031 = vld [vmem:[#allocation4 + $0x54] sm:$0xf]
    %v5032 = vld [vmem:[#allocation4 + $0x58] sm:$0xf]
    %v5033 = vld [vmem:[#allocation4 + $0x5c] sm:$0xf]
    %v5034 = vld [vmem:[#allocation4 + $0x60] sm:$0xf]
    %v5035 = vld [vmem:[#allocation4 + $0x64] sm:$0xf]
    %v5036 = vld [vmem:[#allocation4 + $0x68] sm:$0xf]
    %v5037 = vld [vmem:[#allocation4 + $0x6c] sm:$0xf]
    %v5038 = vld [vmem:[#allocation4 + $0x70] sm:$0xf]
    %v5039 = vld [vmem:[#allocation4 + $0x74] sm:$0xf]
    %v5040 = vld [vmem:[#allocation4 + $0x78] sm:$0xf]
    %v5041 = vld [vmem:[#allocation4 + $0x7c] sm:$0xf]
    %v5042 = vpack.c.bf16 %v5008, %v5008
    %v5043 = vpack.c.bf16 %v5009, %v5009
    %v5044 = vld [vmem:[#allocation3 + $0x10] sm:$0xff]
    %v5045 = vld [vmem:[#allocation3 + $0x18] sm:$0xff]
    %s5046 = scalar_lea.vmem [#allocation4], 128
    %v5047 = vld [vmem:[%s5046] sm:$0xf]
    %v5048 = vld [vmem:[%s5046 + $0x4] sm:$0xf]
    %v5049 = vld [vmem:[%s5046 + $0x8] sm:$0xf]
    %v5050 = vld [vmem:[%s5046 + $0xc] sm:$0xf]
    %v5051 = vld [vmem:[%s5046 + $0x10] sm:$0xf]
    %v5052 = vld [vmem:[%s5046 + $0x14] sm:$0xf]
    %v5053 = vld [vmem:[%s5046 + $0x18] sm:$0xf]
    %v5054 = vld [vmem:[%s5046 + $0x1c] sm:$0xf]
    %v5055 = vld [vmem:[%s5046 + $0x20] sm:$0xf]
    %v5056 = vld [vmem:[%s5046 + $0x24] sm:$0xf]
    %v5057 = vld [vmem:[%s5046 + $0x28] sm:$0xf]
    %v5058 = vld [vmem:[%s5046 + $0x2c] sm:$0xf]
    %v5059 = vld [vmem:[%s5046 + $0x30] sm:$0xf]
    %v5060 = vld [vmem:[%s5046 + $0x34] sm:$0xf]
    %v5061 = vld [vmem:[%s5046 + $0x38] sm:$0xf]
    %v5062 = vld [vmem:[%s5046 + $0x3c] sm:$0xf]
    %v5063 = vld [vmem:[%s5046 + $0x40] sm:$0xf]
    %v5064 = vld [vmem:[%s5046 + $0x44] sm:$0xf]
    %v5065 = vld [vmem:[%s5046 + $0x48] sm:$0xf]
    %v5066 = vld [vmem:[%s5046 + $0x4c] sm:$0xf]
    %v5067 = vld [vmem:[%s5046 + $0x50] sm:$0xf]
    %v5068 = vld [vmem:[%s5046 + $0x54] sm:$0xf]
    %v5069 = vld [vmem:[%s5046 + $0x58] sm:$0xf]
    %v5070 = vld [vmem:[%s5046 + $0x5c] sm:$0xf]
    %v5071 = vld [vmem:[%s5046 + $0x60] sm:$0xf]
    %v5072 = vld [vmem:[%s5046 + $0x64] sm:$0xf]
    %v5073 = vld [vmem:[%s5046 + $0x68] sm:$0xf]
    %v5074 = vld [vmem:[%s5046 + $0x6c] sm:$0xf]
    %v5075 = vld [vmem:[%s5046 + $0x70] sm:$0xf]
    %v5076 = vld [vmem:[%s5046 + $0x74] sm:$0xf]
    %v5077 = vld [vmem:[%s5046 + $0x78] sm:$0xf]
    %v5078 = vld [vmem:[%s5046 + $0x7c] sm:$0xf]
    %v5079 = vpack.c.bf16 %v5044, %v5044
    %v5080 = vpack.c.bf16 %v5045, %v5045
    %v5113 = vunpack.c.l.b16 %v5047
    %v5114 = vunpack.c.l.b16 %v5048
    %v5115 = vunpack.c.l.b16 %v5049
    %v5116 = vunpack.c.l.b16 %v5050
    %v5117 = vunpack.c.l.b16 %v5051
    %v5118 = vunpack.c.l.b16 %v5052
    %v5119 = vunpack.c.l.b16 %v5053
    %v5120 = vunpack.c.l.b16 %v5054
    %v5121 = vunpack.c.l.b16 %v5055
    %v5122 = vunpack.c.l.b16 %v5056
    %v5123 = vunpack.c.l.b16 %v5057
    %v5124 = vunpack.c.l.b16 %v5058
    %v5125 = vunpack.c.l.b16 %v5059
    %v5126 = vunpack.c.l.b16 %v5060
    %v5127 = vunpack.c.l.b16 %v5061
    %v5128 = vunpack.c.l.b16 %v5062
    %v5129 = vunpack.c.l.b16 %v5063
    %v5130 = vunpack.c.l.b16 %v5064
    %v5131 = vunpack.c.l.b16 %v5065
    %v5132 = vunpack.c.l.b16 %v5066
    %v5133 = vunpack.c.l.b16 %v5067
    %v5134 = vunpack.c.l.b16 %v5068
    %v5135 = vunpack.c.l.b16 %v5069
    %v5136 = vunpack.c.l.b16 %v5070
    %v5137 = vunpack.c.l.b16 %v5071
    %v5138 = vunpack.c.l.b16 %v5072
    %v5139 = vunpack.c.l.b16 %v5073
    %v5140 = vunpack.c.l.b16 %v5074
    %v5141 = vunpack.c.l.b16 %v5075
    %v5142 = vunpack.c.l.b16 %v5076
    %v5143 = vunpack.c.l.b16 %v5077
    %v5144 = vunpack.c.l.b16 %v5078
    %v5145 = vpack.c.b16 %v5114, %v5113
    %v5146 = vpack.c.b16 %v5116, %v5115
    %v5147 = vpack.c.b16 %v5118, %v5117
    %v5148 = vpack.c.b16 %v5120, %v5119
    %v5149 = vpack.c.b16 %v5122, %v5121
    %v5150 = vpack.c.b16 %v5124, %v5123
    %v5151 = vpack.c.b16 %v5126, %v5125
    %v5152 = vpack.c.b16 %v5128, %v5127
    %v5153 = vpack.c.b16 %v5130, %v5129
    %v5154 = vpack.c.b16 %v5132, %v5131
    %v5155 = vpack.c.b16 %v5134, %v5133
    %v5156 = vpack.c.b16 %v5136, %v5135
    %v5157 = vpack.c.b16 %v5138, %v5137
    %v5158 = vpack.c.b16 %v5140, %v5139
    %v5159 = vpack.c.b16 %v5142, %v5141
    %v5160 = vpack.c.b16 %v5144, %v5143
    %5177 = vmatprep.subr.bf16.mxu0 0
    %5178 = vmatpush1.bf16.msra.mxu0 %v5145
    %5179 = vmatprep.subr.bf16.mxu0 0
    %5180 = vmatpush1.bf16.msra.mxu0 %v5146
    %5181 = vmatprep.subr.bf16.mxu0 0
    %5182 = vmatpush1.bf16.msra.mxu0 %v5147
    %5183 = vmatprep.subr.bf16.mxu0 0
    %5184 = vmatpush1.bf16.msra.mxu0 %v5148
    %5185 = vmatprep.subr.bf16.mxu0 0
    %5186 = vmatpush1.bf16.msra.mxu0 %v5149
    %5187 = vmatprep.subr.bf16.mxu0 0
    %5188 = vmatpush1.bf16.msra.mxu0 %v5150
    %5189 = vmatprep.subr.bf16.mxu0 0
    %5190 = vmatpush1.bf16.msra.mxu0 %v5151
    %5191 = vmatprep.subr.bf16.mxu0 0
    %5192 = vmatpush1.bf16.msra.mxu0 %v5152
    %5193 = vmatprep.subr.bf16.mxu0 0
    %5194 = vmatpush1.bf16.msra.mxu0 %v5153
    %5195 = vmatprep.subr.bf16.mxu0 0
    %5196 = vmatpush1.bf16.msra.mxu0 %v5154
    %5197 = vmatprep.subr.bf16.mxu0 0
    %5198 = vmatpush1.bf16.msra.mxu0 %v5155
    %5199 = vmatprep.subr.bf16.mxu0 0
    %5200 = vmatpush1.bf16.msra.mxu0 %v5156
    %5201 = vmatprep.subr.bf16.mxu0 0
    %5202 = vmatpush1.bf16.msra.mxu0 %v5157
    %5203 = vmatprep.subr.bf16.mxu0 0
    %5204 = vmatpush1.bf16.msra.mxu0 %v5158
    %5205 = vmatprep.subr.bf16.mxu0 0
    %5206 = vmatpush1.bf16.msra.mxu0 %v5159
    %5207 = vmatprep.subr.bf16.mxu0 0
    %5208 = vmatpush1.bf16.msra.mxu0 %v5160
    %5209 = vmatprep.mubr.bf16.mxu0 %v5080
    %5210 = vmatmul.mubr.bf16.gmra.mrb[0].mxu0 %v5079
    %v5211 = vpop.f32.mrb[0].mxu0
    %v5212 = vadd.f32 0.0, %v5211
    %v5213 = vpop.f32.mrb[0].mxu0
    %v5214 = vpop.f32.mrb[0].mxu0
    %v5215 = vpop.f32.mrb[0].mxu0
    %5216 = vdwg.mxu0
    %v5249 = vunpack.c.l.b16 %v5010
    %v5250 = vunpack.c.l.b16 %v5011
    %v5251 = vunpack.c.l.b16 %v5012
    %v5252 = vunpack.c.l.b16 %v5013
    %v5253 = vunpack.c.l.b16 %v5014
    %v5254 = vunpack.c.l.b16 %v5015
    %v5255 = vunpack.c.l.b16 %v5016
    %v5256 = vunpack.c.l.b16 %v5017
    %v5257 = vunpack.c.l.b16 %v5018
    %v5258 = vunpack.c.l.b16 %v5019
    %v5259 = vunpack.c.l.b16 %v5020
    %v5260 = vunpack.c.l.b16 %v5021
    %v5261 = vunpack.c.l.b16 %v5022
    %v5262 = vunpack.c.l.b16 %v5023
    %v5263 = vunpack.c.l.b16 %v5024
    %v5264 = vunpack.c.l.b16 %v5025
    %v5265 = vunpack.c.l.b16 %v5026
    %v5266 = vunpack.c.l.b16 %v5027
    %v5267 = vunpack.c.l.b16 %v5028
    %v5268 = vunpack.c.l.b16 %v5029
    %v5269 = vunpack.c.l.b16 %v5030
    %v5270 = vunpack.c.l.b16 %v5031
    %v5271 = vunpack.c.l.b16 %v5032
    %v5272 = vunpack.c.l.b16 %v5033
    %v5273 = vunpack.c.l.b16 %v5034
    %v5274 = vunpack.c.l.b16 %v5035
    %v5275 = vunpack.c.l.b16 %v5036
    %v5276 = vunpack.c.l.b16 %v5037
    %v5277 = vunpack.c.l.b16 %v5038
    %v5278 = vunpack.c.l.b16 %v5039
    %v5279 = vunpack.c.l.b16 %v5040
    %v5280 = vunpack.c.l.b16 %v5041
    %v5281 = vpack.c.b16 %v5250, %v5249
    %v5282 = vpack.c.b16 %v5252, %v5251
    %v5283 = vpack.c.b16 %v5254, %v5253
    %v5284 = vpack.c.b16 %v5256, %v5255
    %v5285 = vpack.c.b16 %v5258, %v5257
    %v5286 = vpack.c.b16 %v5260, %v5259
    %v5287 = vpack.c.b16 %v5262, %v5261
    %v5288 = vpack.c.b16 %v5264, %v5263
    %v5289 = vpack.c.b16 %v5266, %v5265
    %v5290 = vpack.c.b16 %v5268, %v5267
    %v5291 = vpack.c.b16 %v5270, %v5269
    %v5292 = vpack.c.b16 %v5272, %v5271
    %v5293 = vpack.c.b16 %v5274, %v5273
    %v5294 = vpack.c.b16 %v5276, %v5275
    %v5295 = vpack.c.b16 %v5278, %v5277
    %v5296 = vpack.c.b16 %v5280, %v5279
    %5313 = vmatprep.subr.bf16.mxu0 0
    %5314 = vmatpush1.bf16.msra.mxu0 %v5281
    %5315 = vmatprep.subr.bf16.mxu0 0
    %5316 = vmatpush1.bf16.msra.mxu0 %v5282
    %5317 = vmatprep.subr.bf16.mxu0 0
    %5318 = vmatpush1.bf16.msra.mxu0 %v5283
    %5319 = vmatprep.subr.bf16.mxu0 0
    %5320 = vmatpush1.bf16.msra.mxu0 %v5284
    %5321 = vmatprep.subr.bf16.mxu0 0
    %5322 = vmatpush1.bf16.msra.mxu0 %v5285
    %5323 = vmatprep.subr.bf16.mxu0 0
    %5324 = vmatpush1.bf16.msra.mxu0 %v5286
    %5325 = vmatprep.subr.bf16.mxu0 0
    %5326 = vmatpush1.bf16.msra.mxu0 %v5287
    %5327 = vmatprep.subr.bf16.mxu0 0
    %5328 = vmatpush1.bf16.msra.mxu0 %v5288
    %5329 = vmatprep.subr.bf16.mxu0 0
    %5330 = vmatpush1.bf16.msra.mxu0 %v5289
    %5331 = vmatprep.subr.bf16.mxu0 0
    %5332 = vmatpush1.bf16.msra.mxu0 %v5290
    %5333 = vmatprep.subr.bf16.mxu0 0
    %5334 = vmatpush1.bf16.msra.mxu0 %v5291
    %5335 = vmatprep.subr.bf16.mxu0 0
    %5336 = vmatpush1.bf16.msra.mxu0 %v5292
    %5337 = vmatprep.subr.bf16.mxu0 0
    %5338 = vmatpush1.bf16.msra.mxu0 %v5293
    %5339 = vmatprep.subr.bf16.mxu0 0
    %5340 = vmatpush1.bf16.msra.mxu0 %v5294
    %5341 = vmatprep.subr.bf16.mxu0 0
    %5342 = vmatpush1.bf16.msra.mxu0 %v5295
    %5343 = vmatprep.subr.bf16.mxu0 0
    %5344 = vmatpush1.bf16.msra.mxu0 %v5296
    %5345 = vmatprep.mubr.bf16.mxu0 %v5043
    %5346 = vmatmul.mubr.bf16.gmra.mrb[0].mxu0 %v5042
    %v5347 = vpop.f32.mrb[0].mxu0
    %v5348 = vadd.f32 %v5212, %v5347
    %v5349 = vpop.f32.mrb[0].mxu0
    %v5350 = vpop.f32.mrb[0].mxu0
    %v5351 = vpop.f32.mrb[0].mxu0
    %5352 = vdwg.mxu0
    %v5353 = vld [vmem:[#allocation3 + $0x20] sm:$0xff]
    %v5354 = vld [vmem:[#allocation3 + $0x28] sm:$0xff]
    %s5355 = scalar_lea.vmem [#allocation4], 256
    %v5356 = vld [vmem:[%s5355] sm:$0xf]
    %v5357 = vld [vmem:[%s5355 + $0x4] sm:$0xf]
    %v5358 = vld [vmem:[%s5355 + $0x8] sm:$0xf]
    %v5359 = vld [vmem:[%s5355 + $0xc] sm:$0xf]
    %v5360 = vld [vmem:[%s5355 + $0x10] sm:$0xf]
    %v5361 = vld [vmem:[%s5355 + $0x14] sm:$0xf]
    %v5362 = vld [vmem:[%s5355 + $0x18] sm:$0xf]
    %v5363 = vld [vmem:[%s5355 + $0x1c] sm:$0xf]
    %v5364 = vld [vmem:[%s5355 + $0x20] sm:$0xf]
    %v5365 = vld [vmem:[%s5355 + $0x24] sm:$0xf]
    %v5366 = vld [vmem:[%s5355 + $0x28] sm:$0xf]
    %v5367 = vld [vmem:[%s5355 + $0x2c] sm:$0xf]
    %v5368 = vld [vmem:[%s5355 + $0x30] sm:$0xf]
    %v5369 = vld [vmem:[%s5355 + $0x34] sm:$0xf]
    %v5370 = vld [vmem:[%s5355 + $0x38] sm:$0xf]
    %v5371 = vld [vmem:[%s5355 + $0x3c] sm:$0xf]
    %v5372 = vld [vmem:[%s5355 + $0x40] sm:$0xf]
    %v5373 = vld [vmem:[%s5355 + $0x44] sm:$0xf]
    %v5374 = vld [vmem:[%s5355 + $0x48] sm:$0xf]
    %v5375 = vld [vmem:[%s5355 + $0x4c] sm:$0xf]
    %v5376 = vld [vmem:[%s5355 + $0x50] sm:$0xf]
    %v5377 = vld [vmem:[%s5355 + $0x54] sm:$0xf]
    %v5378 = vld [vmem:[%s5355 + $0x58] sm:$0xf]
    %v5379 = vld [vmem:[%s5355 + $0x5c] sm:$0xf]
    %v5380 = vld [vmem:[%s5355 + $0x60] sm:$0xf]
    %v5381 = vld [vmem:[%s5355 + $0x64] sm:$0xf]
    %v5382 = vld [vmem:[%s5355 + $0x68] sm:$0xf]
    %v5383 = vld [vmem:[%s5355 + $0x6c] sm:$0xf]
    %v5384 = vld [vmem:[%s5355 + $0x70] sm:$0xf]
    %v5385 = vld [vmem:[%s5355 + $0x74] sm:$0xf]
    %v5386 = vld [vmem:[%s5355 + $0x78] sm:$0xf]
    %v5387 = vld [vmem:[%s5355 + $0x7c] sm:$0xf]
    %v5388 = vpack.c.bf16 %v5353, %v5353
    %v5389 = vpack.c.bf16 %v5354, %v5354
    %v5422 = vunpack.c.l.b16 %v5356
    %v5423 = vunpack.c.l.b16 %v5357
    %v5424 = vunpack.c.l.b16 %v5358
    %v5425 = vunpack.c.l.b16 %v5359
    %v5426 = vunpack.c.l.b16 %v5360
    %v5427 = vunpack.c.l.b16 %v5361
    %v5428 = vunpack.c.l.b16 %v5362
    %v5429 = vunpack.c.l.b16 %v5363
    %v5430 = vunpack.c.l.b16 %v5364
    %v5431 = vunpack.c.l.b16 %v5365
    %v5432 = vunpack.c.l.b16 %v5366
    %v5433 = vunpack.c.l.b16 %v5367
    %v5434 = vunpack.c.l.b16 %v5368
    %v5435 = vunpack.c.l.b16 %v5369
    %v5436 = vunpack.c.l.b16 %v5370
    %v5437 = vunpack.c.l.b16 %v5371
    %v5438 = vunpack.c.l.b16 %v5372
    %v5439 = vunpack.c.l.b16 %v5373
    %v5440 = vunpack.c.l.b16 %v5374
    %v5441 = vunpack.c.l.b16 %v5375
    %v5442 = vunpack.c.l.b16 %v5376
    %v5443 = vunpack.c.l.b16 %v5377
    %v5444 = vunpack.c.l.b16 %v5378
    %v5445 = vunpack.c.l.b16 %v5379
    %v5446 = vunpack.c.l.b16 %v5380
    %v5447 = vunpack.c.l.b16 %v5381
    %v5448 = vunpack.c.l.b16 %v5382
    %v5449 = vunpack.c.l.b16 %v5383
    %v5450 = vunpack.c.l.b16 %v5384
    %v5451 = vunpack.c.l.b16 %v5385
    %v5452 = vunpack.c.l.b16 %v5386
    %v5453 = vunpack.c.l.b16 %v5387
    %v5454 = vpack.c.b16 %v5423, %v5422
    %v5455 = vpack.c.b16 %v5425, %v5424
    %v5456 = vpack.c.b16 %v5427, %v5426
    %v5457 = vpack.c.b16 %v5429, %v5428
    %v5458 = vpack.c.b16 %v5431, %v5430
    %v5459 = vpack.c.b16 %v5433, %v5432
    %v5460 = vpack.c.b16 %v5435, %v5434
    %v5461 = vpack.c.b16 %v5437, %v5436
    %v5462 = vpack.c.b16 %v5439, %v5438
    %v5463 = vpack.c.b16 %v5441, %v5440
    %v5464 = vpack.c.b16 %v5443, %v5442
    %v5465 = vpack.c.b16 %v5445, %v5444
    %v5466 = vpack.c.b16 %v5447, %v5446
    %v5467 = vpack.c.b16 %v5449, %v5448
    %v5468 = vpack.c.b16 %v5451, %v5450
    %v5469 = vpack.c.b16 %v5453, %v5452
    %5486 = vmatprep.subr.bf16.mxu0 0
    %5487 = vmatpush1.bf16.msra.mxu0 %v5454
    %5488 = vmatprep.subr.bf16.mxu0 0
    %5489 = vmatpush1.bf16.msra.mxu0 %v5455
    %5490 = vmatprep.subr.bf16.mxu0 0
    %5491 = vmatpush1.bf16.msra.mxu0 %v5456
    %5492 = vmatprep.subr.bf16.mxu0 0
    %5493 = vmatpush1.bf16.msra.mxu0 %v5457
    %5494 = vmatprep.subr.bf16.mxu0 0
    %5495 = vmatpush1.bf16.msra.mxu0 %v5458
    %5496 = vmatprep.subr.bf16.mxu0 0
    %5497 = vmatpush1.bf16.msra.mxu0 %v5459
    %5498 = vmatprep.subr.bf16.mxu0 0
    %5499 = vmatpush1.bf16.msra.mxu0 %v5460
    %5500 = vmatprep.subr.bf16.mxu0 0
    %5501 = vmatpush1.bf16.msra.mxu0 %v5461
    %5502 = vmatprep.subr.bf16.mxu0 0
    %5503 = vmatpush1.bf16.msra.mxu0 %v5462
    %5504 = vmatprep.subr.bf16.mxu0 0
    %5505 = vmatpush1.bf16.msra.mxu0 %v5463
    %5506 = vmatprep.subr.bf16.mxu0 0
    %5507 = vmatpush1.bf16.msra.mxu0 %v5464
    %5508 = vmatprep.subr.bf16.mxu0 0
    %5509 = vmatpush1.bf16.msra.mxu0 %v5465
    %5510 = vmatprep.subr.bf16.mxu0 0
    %5511 = vmatpush1.bf16.msra.mxu0 %v5466
    %5512 = vmatprep.subr.bf16.mxu0 0
    %5513 = vmatpush1.bf16.msra.mxu0 %v5467
    %5514 = vmatprep.subr.bf16.mxu0 0
    %5515 = vmatpush1.bf16.msra.mxu0 %v5468
    %5516 = vmatprep.subr.bf16.mxu0 0
    %5517 = vmatpush1.bf16.msra.mxu0 %v5469
    %5518 = vmatprep.mubr.bf16.mxu0 %v5389
    %5519 = vmatmul.mubr.bf16.gmra.mrb[0].mxu0 %v5388
    %v5520 = vpop.f32.mrb[0].mxu0
    %v5521 = vadd.f32 0.0, %v5520
    %v5522 = vpop.f32.mrb[0].mxu0
    %v5523 = vpop.f32.mrb[0].mxu0
    %v5524 = vpop.f32.mrb[0].mxu0
    %5525 = vdwg.mxu0
    %v5526 = vadd.f32 %v5348, %v5521
    %v5527 = vld [vmem:[#allocation3 + $0x30] sm:$0xff]
    %v5528 = vld [vmem:[#allocation3 + $0x38] sm:$0xff]
    %s5529 = scalar_lea.vmem [#allocation4], 384
    %v5530 = vld [vmem:[%s5529] sm:$0xf]
    %v5531 = vld [vmem:[%s5529 + $0x4] sm:$0xf]
    %v5532 = vld [vmem:[%s5529 + $0x8] sm:$0xf]
    %v5533 = vld [vmem:[%s5529 + $0xc] sm:$0xf]
    %v5534 = vld [vmem:[%s5529 + $0x10] sm:$0xf]
    %v5535 = vld [vmem:[%s5529 + $0x14] sm:$0xf]
    %v5536 = vld [vmem:[%s5529 + $0x18] sm:$0xf]
    %v5537 = vld [vmem:[%s5529 + $0x1c] sm:$0xf]
    %v5538 = vld [vmem:[%s5529 + $0x20] sm:$0xf]
    %v5539 = vld [vmem:[%s5529 + $0x24] sm:$0xf]
    %v5540 = vld [vmem:[%s5529 + $0x28] sm:$0xf]
    %v5541 = vld [vmem:[%s5529 + $0x2c] sm:$0xf]
    %v5542 = vld [vmem:[%s5529 + $0x30] sm:$0xf]
    %v5543 = vld [vmem:[%s5529 + $0x34] sm:$0xf]
    %v5544 = vld [vmem:[%s5529 + $0x38] sm:$0xf]
    %v5545 = vld [vmem:[%s5529 + $0x3c] sm:$0xf]
    %v5546 = vld [vmem:[%s5529 + $0x40] sm:$0xf]
    %v5547 = vld [vmem:[%s5529 + $0x44] sm:$0xf]
    %v5548 = vld [vmem:[%s5529 + $0x48] sm:$0xf]
    %v5549 = vld [vmem:[%s5529 + $0x4c] sm:$0xf]
    %v5550 = vld [vmem:[%s5529 + $0x50] sm:$0xf]
    %v5551 = vld [vmem:[%s5529 + $0x54] sm:$0xf]
    %v5552 = vld [vmem:[%s5529 + $0x58] sm:$0xf]
    %v5553 = vld [vmem:[%s5529 + $0x5c] sm:$0xf]
    %v5554 = vld [vmem:[%s5529 + $0x60] sm:$0xf]
    %v5555 = vld [vmem:[%s5529 + $0x64] sm:$0xf]
    %v5556 = vld [vmem:[%s5529 + $0x68] sm:$0xf]
    %v5557 = vld [vmem:[%s5529 + $0x6c] sm:$0xf]
    %v5558 = vld [vmem:[%s5529 + $0x70] sm:$0xf]
    %v5559 = vld [vmem:[%s5529 + $0x74] sm:$0xf]
    %v5560 = vld [vmem:[%s5529 + $0x78] sm:$0xf]
    %v5561 = vld [vmem:[%s5529 + $0x7c] sm:$0xf]
    %v5562 = vpack.c.bf16 %v5527, %v5527
    %v5563 = vpack.c.bf16 %v5528, %v5528
    %v5596 = vunpack.c.l.b16 %v5530
    %v5597 = vunpack.c.l.b16 %v5531
    %v5598 = vunpack.c.l.b16 %v5532
    %v5599 = vunpack.c.l.b16 %v5533
    %v5600 = vunpack.c.l.b16 %v5534
    %v5601 = vunpack.c.l.b16 %v5535
    %v5602 = vunpack.c.l.b16 %v5536
    %v5603 = vunpack.c.l.b16 %v5537
    %v5604 = vunpack.c.l.b16 %v5538
    %v5605 = vunpack.c.l.b16 %v5539
    %v5606 = vunpack.c.l.b16 %v5540
    %v5607 = vunpack.c.l.b16 %v5541
    %v5608 = vunpack.c.l.b16 %v5542
    %v5609 = vunpack.c.l.b16 %v5543
    %v5610 = vunpack.c.l.b16 %v5544
    %v5611 = vunpack.c.l.b16 %v5545
    %v5612 = vunpack.c.l.b16 %v5546
    %v5613 = vunpack.c.l.b16 %v5547
    %v5614 = vunpack.c.l.b16 %v5548
    %v5615 = vunpack.c.l.b16 %v5549
    %v5616 = vunpack.c.l.b16 %v5550
    %v5617 = vunpack.c.l.b16 %v5551
    %v5618 = vunpack.c.l.b16 %v5552
    %v5619 = vunpack.c.l.b16 %v5553
    %v5620 = vunpack.c.l.b16 %v5554
    %v5621 = vunpack.c.l.b16 %v5555
    %v5622 = vunpack.c.l.b16 %v5556
    %v5623 = vunpack.c.l.b16 %v5557
    %v5624 = vunpack.c.l.b16 %v5558
    %v5625 = vunpack.c.l.b16 %v5559
    %v5626 = vunpack.c.l.b16 %v5560
    %v5627 = vunpack.c.l.b16 %v5561
    %v5628 = vpack.c.b16 %v5597, %v5596
    %v5629 = vpack.c.b16 %v5599, %v5598
    %v5630 = vpack.c.b16 %v5601, %v5600
    %v5631 = vpack.c.b16 %v5603, %v5602
    %v5632 = vpack.c.b16 %v5605, %v5604
    %v5633 = vpack.c.b16 %v5607, %v5606
    %v5634 = vpack.c.b16 %v5609, %v5608
    %v5635 = vpack.c.b16 %v5611, %v5610
    %v5636 = vpack.c.b16 %v5613, %v5612
    %v5637 = vpack.c.b16 %v5615, %v5614
    %v5638 = vpack.c.b16 %v5617, %v5616
    %v5639 = vpack.c.b16 %v5619, %v5618
    %v5640 = vpack.c.b16 %v5621, %v5620
    %v5641 = vpack.c.b16 %v5623, %v5622
    %v5642 = vpack.c.b16 %v5625, %v5624
    %v5643 = vpack.c.b16 %v5627, %v5626
    %5660 = vmatprep.subr.bf16.mxu0 0
    %5661 = vmatpush1.bf16.msra.mxu0 %v5628
    %5662 = vmatprep.subr.bf16.mxu0 0
    %5663 = vmatpush1.bf16.msra.mxu0 %v5629
    %5664 = vmatprep.subr.bf16.mxu0 0
    %5665 = vmatpush1.bf16.msra.mxu0 %v5630
    %5666 = vmatprep.subr.bf16.mxu0 0
    %5667 = vmatpush1.bf16.msra.mxu0 %v5631
    %5668 = vmatprep.subr.bf16.mxu0 0
    %5669 = vmatpush1.bf16.msra.mxu0 %v5632
    %5670 = vmatprep.subr.bf16.mxu0 0
    %5671 = vmatpush1.bf16.msra.mxu0 %v5633
    %5672 = vmatprep.subr.bf16.mxu0 0
    %5673 = vmatpush1.bf16.msra.mxu0 %v5634
    %5674 = vmatprep.subr.bf16.mxu0 0
    %5675 = vmatpush1.bf16.msra.mxu0 %v5635
    %5676 = vmatprep.subr.bf16.mxu0 0
    %5677 = vmatpush1.bf16.msra.mxu0 %v5636
    %5678 = vmatprep.subr.bf16.mxu0 0
    %5679 = vmatpush1.bf16.msra.mxu0 %v5637
    %5680 = vmatprep.subr.bf16.mxu0 0
    %5681 = vmatpush1.bf16.msra.mxu0 %v5638
    %5682 = vmatprep.subr.bf16.mxu0 0
    %5683 = vmatpush1.bf16.msra.mxu0 %v5639
    %5684 = vmatprep.subr.bf16.mxu0 0
    %5685 = vmatpush1.bf16.msra.mxu0 %v5640
    %5686 = vmatprep.subr.bf16.mxu0 0
    %5687 = vmatpush1.bf16.msra.mxu0 %v5641
    %5688 = vmatprep.subr.bf16.mxu0 0
    %5689 = vmatpush1.bf16.msra.mxu0 %v5642
    %5690 = vmatprep.subr.bf16.mxu0 0
    %5691 = vmatpush1.bf16.msra.mxu0 %v5643
    %5692 = vmatprep.mubr.bf16.mxu0 %v5563
    %5693 = vmatmul.mubr.bf16.gmra.mrb[0].mxu0 %v5562
    %v5694 = vpop.f32.mrb[0].mxu0
    %v5695 = vadd.f32 0.0, %v5694
    %v5696 = vpop.f32.mrb[0].mxu0
    %v5697 = vpop.f32.mrb[0].mxu0
    %v5698 = vpop.f32.mrb[0].mxu0
    %5699 = vdwg.mxu0
    %v5700 = vadd.f32 %v5526, %v5695
    %v5701 = vld [vmem:[#allocation3 + $0x40] sm:$0xff]
    %v5702 = vld [vmem:[#allocation3 + $0x48] sm:$0xff]
    %s5703 = scalar_lea.vmem [#allocation4], 512
    %v5704 = vld [vmem:[%s5703] sm:$0xf]
    %v5705 = vld [vmem:[%s5703 + $0x4] sm:$0xf]
    %v5706 = vld [vmem:[%s5703 + $0x8] sm:$0xf]
    %v5707 = vld [vmem:[%s5703 + $0xc] sm:$0xf]
    %v5708 = vld [vmem:[%s5703 + $0x10] sm:$0xf]
    %v5709 = vld [vmem:[%s5703 + $0x14] sm:$0xf]
    %v5710 = vld [vmem:[%s5703 + $0x18] sm:$0xf]
    %v5711 = vld [vmem:[%s5703 + $0x1c] sm:$0xf]
    %v5712 = vld [vmem:[%s5703 + $0x20] sm:$0xf]
    %v5713 = vld [vmem:[%s5703 + $0x24] sm:$0xf]
    %v5714 = vld [vmem:[%s5703 + $0x28] sm:$0xf]
    %v5715 = vld [vmem:[%s5703 + $0x2c] sm:$0xf]
    %v5716 = vld [vmem:[%s5703 + $0x30] sm:$0xf]
    %v5717 = vld [vmem:[%s5703 + $0x34] sm:$0xf]
    %v5718 = vld [vmem:[%s5703 + $0x38] sm:$0xf]
    %v5719 = vld [vmem:[%s5703 + $0x3c] sm:$0xf]
    %v5720 = vld [vmem:[%s5703 + $0x40] sm:$0xf]
    %v5721 = vld [vmem:[%s5703 + $0x44] sm:$0xf]
    %v5722 = vld [vmem:[%s5703 + $0x48] sm:$0xf]
    %v5723 = vld [vmem:[%s5703 + $0x4c] sm:$0xf]
    %v5724 = vld [vmem:[%s5703 + $0x50] sm:$0xf]
    %v5725 = vld [vmem:[%s5703 + $0x54] sm:$0xf]
    %v5726 = vld [vmem:[%s5703 + $0x58] sm:$0xf]
    %v5727 = vld [vmem:[%s5703 + $0x5c] sm:$0xf]
    %v5728 = vld [vmem:[%s5703 + $0x60] sm:$0xf]
    %v5729 = vld [vmem:[%s5703 + $0x64] sm:$0xf]
    %v5730 = vld [vmem:[%s5703 + $0x68] sm:$0xf]
    %v5731 = vld [vmem:[%s5703 + $0x6c] sm:$0xf]
    %v5732 = vld [vmem:[%s5703 + $0x70] sm:$0xf]
    %v5733 = vld [vmem:[%s5703 + $0x74] sm:$0xf]
    %v5734 = vld [vmem:[%s5703 + $0x78] sm:$0xf]
    %v5735 = vld [vmem:[%s5703 + $0x7c] sm:$0xf]
    %v5736 = vpack.c.bf16 %v5701, %v5701
    %v5737 = vpack.c.bf16 %v5702, %v5702
    %v5770 = vunpack.c.l.b16 %v5704
    %v5771 = vunpack.c.l.b16 %v5705
    %v5772 = vunpack.c.l.b16 %v5706
    %v5773 = vunpack.c.l.b16 %v5707
    %v5774 = vunpack.c.l.b16 %v5708
    %v5775 = vunpack.c.l.b16 %v5709
    %v5776 = vunpack.c.l.b16 %v5710
    %v5777 = vunpack.c.l.b16 %v5711
    %v5778 = vunpack.c.l.b16 %v5712
    %v5779 = vunpack.c.l.b16 %v5713
    %v5780 = vunpack.c.l.b16 %v5714
    %v5781 = vunpack.c.l.b16 %v5715
    %v5782 = vunpack.c.l.b16 %v5716
    %v5783 = vunpack.c.l.b16 %v5717
    %v5784 = vunpack.c.l.b16 %v5718
    %v5785 = vunpack.c.l.b16 %v5719
    %v5786 = vunpack.c.l.b16 %v5720
    %v5787 = vunpack.c.l.b16 %v5721
    %v5788 = vunpack.c.l.b16 %v5722
    %v5789 = vunpack.c.l.b16 %v5723
    %v5790 = vunpack.c.l.b16 %v5724
    %v5791 = vunpack.c.l.b16 %v5725
    %v5792 = vunpack.c.l.b16 %v5726
    %v5793 = vunpack.c.l.b16 %v5727
    %v5794 = vunpack.c.l.b16 %v5728
    %v5795 = vunpack.c.l.b16 %v5729
    %v5796 = vunpack.c.l.b16 %v5730
    %v5797 = vunpack.c.l.b16 %v5731
    %v5798 = vunpack.c.l.b16 %v5732
    %v5799 = vunpack.c.l.b16 %v5733
    %v5800 = vunpack.c.l.b16 %v5734
    %v5801 = vunpack.c.l.b16 %v5735
    %v5802 = vpack.c.b16 %v5771, %v5770
    %v5803 = vpack.c.b16 %v5773, %v5772
    %v5804 = vpack.c.b16 %v5775, %v5774
    %v5805 = vpack.c.b16 %v5777, %v5776
    %v5806 = vpack.c.b16 %v5779, %v5778
    %v5807 = vpack.c.b16 %v5781, %v5780
    %v5808 = vpack.c.b16 %v5783, %v5782
    %v5809 = vpack.c.b16 %v5785, %v5784
    %v5810 = vpack.c.b16 %v5787, %v5786
    %v5811 = vpack.c.b16 %v5789, %v5788
    %v5812 = vpack.c.b16 %v5791, %v5790
    %v5813 = vpack.c.b16 %v5793, %v5792
    %v5814 = vpack.c.b16 %v5795, %v5794
    %v5815 = vpack.c.b16 %v5797, %v5796
    %v5816 = vpack.c.b16 %v5799, %v5798
    %v5817 = vpack.c.b16 %v5801, %v5800
    %5834 = vmatprep.subr.bf16.mxu0 0
    %5835 = vmatpush1.bf16.msra.mxu0 %v5802
    %5836 = vmatprep.subr.bf16.mxu0 0
    %5837 = vmatpush1.bf16.msra.mxu0 %v5803
    %5838 = vmatprep.subr.bf16.mxu0 0
    %5839 = vmatpush1.bf16.msra.mxu0 %v5804
    %5840 = vmatprep.subr.bf16.mxu0 0
    %5841 = vmatpush1.bf16.msra.mxu0 %v5805
    %5842 = vmatprep.subr.bf16.mxu0 0
    %5843 = vmatpush1.bf16.msra.mxu0 %v5806
    %5844 = vmatprep.subr.bf16.mxu0 0
    %5845 = vmatpush1.bf16.msra.mxu0 %v5807
    %5846 = vmatprep.subr.bf16.mxu0 0
    %5847 = vmatpush1.bf16.msra.mxu0 %v5808
    %5848 = vmatprep.subr.bf16.mxu0 0
    %5849 = vmatpush1.bf16.msra.mxu0 %v5809
    %5850 = vmatprep.subr.bf16.mxu0 0
    %5851 = vmatpush1.bf16.msra.mxu0 %v5810
    %5852 = vmatprep.subr.bf16.mxu0 0
    %5853 = vmatpush1.bf16.msra.mxu0 %v5811
    %5854 = vmatprep.subr.bf16.mxu0 0
    %5855 = vmatpush1.bf16.msra.mxu0 %v5812
    %5856 = vmatprep.subr.bf16.mxu0 0
    %5857 = vmatpush1.bf16.msra.mxu0 %v5813
    %5858 = vmatprep.subr.bf16.mxu0 0
    %5859 = vmatpush1.bf16.msra.mxu0 %v5814
    %5860 = vmatprep.subr.bf16.mxu0 0
    %5861 = vmatpush1.bf16.msra.mxu0 %v5815
    %5862 = vmatprep.subr.bf16.mxu0 0
    %5863 = vmatpush1.bf16.msra.mxu0 %v5816
    %5864 = vmatprep.subr.bf16.mxu0 0
    %5865 = vmatpush1.bf16.msra.mxu0 %v5817
    %5866 = vmatprep.mubr.bf16.mxu0 %v5737
    %5867 = vmatmul.mubr.bf16.gmra.mrb[0].mxu0 %v5736
    %v5868 = vpop.f32.mrb[0].mxu0
    %v5869 = vadd.f32 0.0, %v5868
    %v5870 = vpop.f32.mrb[0].mxu0
    %v5871 = vpop.f32.mrb[0].mxu0
    %v5872 = vpop.f32.mrb[0].mxu0
    %5873 = vdwg.mxu0
    %v5874 = vadd.f32 %v5700, %v5869
    %v5875 = vld [vmem:[#allocation3 + $0x50] sm:$0xff]
    %v5876 = vld [vmem:[#allocation3 + $0x58] sm:$0xff]
    %s5877 = scalar_lea.vmem [#allocation4], 640
    %v5878 = vld [vmem:[%s5877] sm:$0xf]
    %v5879 = vld [vmem:[%s5877 + $0x4] sm:$0xf]
    %v5880 = vld [vmem:[%s5877 + $0x8] sm:$0xf]
    %v5881 = vld [vmem:[%s5877 + $0xc] sm:$0xf]
    %v5882 = vld [vmem:[%s5877 + $0x10] sm:$0xf]
    %v5883 = vld [vmem:[%s5877 + $0x14] sm:$0xf]
    %v5884 = vld [vmem:[%s5877 + $0x18] sm:$0xf]
    %v5885 = vld [vmem:[%s5877 + $0x1c] sm:$0xf]
    %v5886 = vld [vmem:[%s5877 + $0x20] sm:$0xf]
    %v5887 = vld [vmem:[%s5877 + $0x24] sm:$0xf]
    %v5888 = vld [vmem:[%s5877 + $0x28] sm:$0xf]
    %v5889 = vld [vmem:[%s5877 + $0x2c] sm:$0xf]
    %v5890 = vld [vmem:[%s5877 + $0x30] sm:$0xf]
    %v5891 = vld [vmem:[%s5877 + $0x34] sm:$0xf]
    %v5892 = vld [vmem:[%s5877 + $0x38] sm:$0xf]
    %v5893 = vld [vmem:[%s5877 + $0x3c] sm:$0xf]
    %v5894 = vld [vmem:[%s5877 + $0x40] sm:$0xf]
    %v5895 = vld [vmem:[%s5877 + $0x44] sm:$0xf]
    %v5896 = vld [vmem:[%s5877 + $0x48] sm:$0xf]
    %v5897 = vld [vmem:[%s5877 + $0x4c] sm:$0xf]
    %v5898 = vld [vmem:[%s5877 + $0x50] sm:$0xf]
    %v5899 = vld [vmem:[%s5877 + $0x54] sm:$0xf]
    %v5900 = vld [vmem:[%s5877 + $0x58] sm:$0xf]
    %v5901 = vld [vmem:[%s5877 + $0x5c] sm:$0xf]
    %v5902 = vld [vmem:[%s5877 + $0x60] sm:$0xf]
    %v5903 = vld [vmem:[%s5877 + $0x64] sm:$0xf]
    %v5904 = vld [vmem:[%s5877 + $0x68] sm:$0xf]
    %v5905 = vld [vmem:[%s5877 + $0x6c] sm:$0xf]
    %v5906 = vld [vmem:[%s5877 + $0x70] sm:$0xf]
    %v5907 = vld [vmem:[%s5877 + $0x74] sm:$0xf]
    %v5908 = vld [vmem:[%s5877 + $0x78] sm:$0xf]
    %v5909 = vld [vmem:[%s5877 + $0x7c] sm:$0xf]
    %v5910 = vpack.c.bf16 %v5875, %v5875
    %v5911 = vpack.c.bf16 %v5876, %v5876
    %v5944 = vunpack.c.l.b16 %v5878
    %v5945 = vunpack.c.l.b16 %v5879
    %v5946 = vunpack.c.l.b16 %v5880
    %v5947 = vunpack.c.l.b16 %v5881
    %v5948 = vunpack.c.l.b16 %v5882
    %v5949 = vunpack.c.l.b16 %v5883
    %v5950 = vunpack.c.l.b16 %v5884
    %v5951 = vunpack.c.l.b16 %v5885
    %v5952 = vunpack.c.l.b16 %v5886
    %v5953 = vunpack.c.l.b16 %v5887
    %v5954 = vunpack.c.l.b16 %v5888
    %v5955 = vunpack.c.l.b16 %v5889
    %v5956 = vunpack.c.l.b16 %v5890
    %v5957 = vunpack.c.l.b16 %v5891
    %v5958 = vunpack.c.l.b16 %v5892
    %v5959 = vunpack.c.l.b16 %v5893
    %v5960 = vunpack.c.l.b16 %v5894
    %v5961 = vunpack.c.l.b16 %v5895
    %v5962 = vunpack.c.l.b16 %v5896
    %v5963 = vunpack.c.l.b16 %v5897
    %v5964 = vunpack.c.l.b16 %v5898
    %v5965 = vunpack.c.l.b16 %v5899
    %v5966 = vunpack.c.l.b16 %v5900
    %v5967 = vunpack.c.l.b16 %v5901
    %v5968 = vunpack.c.l.b16 %v5902
    %v5969 = vunpack.c.l.b16 %v5903
    %v5970 = vunpack.c.l.b16 %v5904
    %v5971 = vunpack.c.l.b16 %v5905
    %v5972 = vunpack.c.l.b16 %v5906
    %v5973 = vunpack.c.l.b16 %v5907
    %v5974 = vunpack.c.l.b16 %v5908
    %v5975 = vunpack.c.l.b16 %v5909
    %v5976 = vpack.c.b16 %v5945, %v5944
    %v5977 = vpack.c.b16 %v5947, %v5946
    %v5978 = vpack.c.b16 %v5949, %v5948
    %v5979 = vpack.c.b16 %v5951, %v5950
    %v5980 = vpack.c.b16 %v5953, %v5952
    %v5981 = vpack.c.b16 %v5955, %v5954
    %v5982 = vpack.c.b16 %v5957, %v5956
    %v5983 = vpack.c.b16 %v5959, %v5958
    %v5984 = vpack.c.b16 %v5961, %v5960
    %v5985 = vpack.c.b16 %v5963, %v5962
    %v5986 = vpack.c.b16 %v5965, %v5964
    %v5987 = vpack.c.b16 %v5967, %v5966
    %v5988 = vpack.c.b16 %v5969, %v5968
    %v5989 = vpack.c.b16 %v5971, %v5970
    %v5990 = vpack.c.b16 %v5973, %v5972
    %v5991 = vpack.c.b16 %v5975, %v5974
    %6008 = vmatprep.subr.bf16.mxu0 0
    %6009 = vmatpush1.bf16.msra.mxu0 %v5976
    %6010 = vmatprep.subr.bf16.mxu0 0
    %6011 = vmatpush1.bf16.msra.mxu0 %v5977
    %6012 = vmatprep.subr.bf16.mxu0 0
    %6013 = vmatpush1.bf16.msra.mxu0 %v5978
    %6014 = vmatprep.subr.bf16.mxu0 0
    %6015 = vmatpush1.bf16.msra.mxu0 %v5979
    %6016 = vmatprep.subr.bf16.mxu0 0
    %6017 = vmatpush1.bf16.msra.mxu0 %v5980
    %6018 = vmatprep.subr.bf16.mxu0 0
    %6019 = vmatpush1.bf16.msra.mxu0 %v5981
    %6020 = vmatprep.subr.bf16.mxu0 0
    %6021 = vmatpush1.bf16.msra.mxu0 %v5982
    %6022 = vmatprep.subr.bf16.mxu0 0
    %6023 = vmatpush1.bf16.msra.mxu0 %v5983
    %6024 = vmatprep.subr.bf16.mxu0 0
    %6025 = vmatpush1.bf16.msra.mxu0 %v5984
    %6026 = vmatprep.subr.bf16.mxu0 0
    %6027 = vmatpush1.bf16.msra.mxu0 %v5985
    %6028 = vmatprep.subr.bf16.mxu0 0
    %6029 = vmatpush1.bf16.msra.mxu0 %v5986
    %6030 = vmatprep.subr.bf16.mxu0 0
    %6031 = vmatpush1.bf16.msra.mxu0 %v5987
    %6032 = vmatprep.subr.bf16.mxu0 0
    %6033 = vmatpush1.bf16.msra.mxu0 %v5988
    %6034 = vmatprep.subr.bf16.mxu0 0
    %6035 = vmatpush1.bf16.msra.mxu0 %v5989
    %6036 = vmatprep.subr.bf16.mxu0 0
    %6037 = vmatpush1.bf16.msra.mxu0 %v5990
    %6038 = vmatprep.subr.bf16.mxu0 0
    %6039 = vmatpush1.bf16.msra.mxu0 %v5991
    %6040 = vmatprep.mubr.bf16.mxu0 %v5911
    %6041 = vmatmul.mubr.bf16.gmra.mrb[0].mxu0 %v5910
    %v6042 = vpop.f32.mrb[0].mxu0
    %v6043 = vadd.f32 0.0, %v6042
    %v6044 = vpop.f32.mrb[0].mxu0
    %v6045 = vpop.f32.mrb[0].mxu0
    %v6046 = vpop.f32.mrb[0].mxu0
    %6047 = vdwg.mxu0
    %v6048 = vadd.f32 %v5874, %v6043
    %v6049 = vld [vmem:[#allocation3 + $0x60] sm:$0xff]
    %v6050 = vld [vmem:[#allocation3 + $0x68] sm:$0xff]
    %s6051 = scalar_lea.vmem [#allocation4], 768
    %v6052 = vld [vmem:[%s6051] sm:$0xf]
    %v6053 = vld [vmem:[%s6051 + $0x4] sm:$0xf]
    %v6054 = vld [vmem:[%s6051 + $0x8] sm:$0xf]
    %v6055 = vld [vmem:[%s6051 + $0xc] sm:$0xf]
    %v6056 = vld [vmem:[%s6051 + $0x10] sm:$0xf]
    %v6057 = vld [vmem:[%s6051 + $0x14] sm:$0xf]
    %v6058 = vld [vmem:[%s6051 + $0x18] sm:$0xf]
    %v6059 = vld [vmem:[%s6051 + $0x1c] sm:$0xf]
    %v6060 = vld [vmem:[%s6051 + $0x20] sm:$0xf]
    %v6061 = vld [vmem:[%s6051 + $0x24] sm:$0xf]
    %v6062 = vld [vmem:[%s6051 + $0x28] sm:$0xf]
    %v6063 = vld [vmem:[%s6051 + $0x2c] sm:$0xf]
    %v6064 = vld [vmem:[%s6051 + $0x30] sm:$0xf]
    %v6065 = vld [vmem:[%s6051 + $0x34] sm:$0xf]
    %v6066 = vld [vmem:[%s6051 + $0x38] sm:$0xf]
    %v6067 = vld [vmem:[%s6051 + $0x3c] sm:$0xf]
    %v6068 = vld [vmem:[%s6051 + $0x40] sm:$0xf]
    %v6069 = vld [vmem:[%s6051 + $0x44] sm:$0xf]
    %v6070 = vld [vmem:[%s6051 + $0x48] sm:$0xf]
    %v6071 = vld [vmem:[%s6051 + $0x4c] sm:$0xf]
    %v6072 = vld [vmem:[%s6051 + $0x50] sm:$0xf]
    %v6073 = vld [vmem:[%s6051 + $0x54] sm:$0xf]
    %v6074 = vld [vmem:[%s6051 + $0x58] sm:$0xf]
    %v6075 = vld [vmem:[%s6051 + $0x5c] sm:$0xf]
    %v6076 = vld [vmem:[%s6051 + $0x60] sm:$0xf]
    %v6077 = vld [vmem:[%s6051 + $0x64] sm:$0xf]
    %v6078 = vld [vmem:[%s6051 + $0x68] sm:$0xf]
    %v6079 = vld [vmem:[%s6051 + $0x6c] sm:$0xf]
    %v6080 = vld [vmem:[%s6051 + $0x70] sm:$0xf]
    %v6081 = vld [vmem:[%s6051 + $0x74] sm:$0xf]
    %v6082 = vld [vmem:[%s6051 + $0x78] sm:$0xf]
    %v6083 = vld [vmem:[%s6051 + $0x7c] sm:$0xf]
    %v6084 = vpack.c.bf16 %v6049, %v6049
    %v6085 = vpack.c.bf16 %v6050, %v6050
    %v6118 = vunpack.c.l.b16 %v6052
    %v6119 = vunpack.c.l.b16 %v6053
    %v6120 = vunpack.c.l.b16 %v6054
    %v6121 = vunpack.c.l.b16 %v6055
    %v6122 = vunpack.c.l.b16 %v6056
    %v6123 = vunpack.c.l.b16 %v6057
    %v6124 = vunpack.c.l.b16 %v6058
    %v6125 = vunpack.c.l.b16 %v6059
    %v6126 = vunpack.c.l.b16 %v6060
    %v6127 = vunpack.c.l.b16 %v6061
    %v6128 = vunpack.c.l.b16 %v6062
    %v6129 = vunpack.c.l.b16 %v6063
    %v6130 = vunpack.c.l.b16 %v6064
    %v6131 = vunpack.c.l.b16 %v6065
    %v6132 = vunpack.c.l.b16 %v6066
    %v6133 = vunpack.c.l.b16 %v6067
    %v6134 = vunpack.c.l.b16 %v6068
    %v6135 = vunpack.c.l.b16 %v6069
    %v6136 = vunpack.c.l.b16 %v6070
    %v6137 = vunpack.c.l.b16 %v6071
    %v6138 = vunpack.c.l.b16 %v6072
    %v6139 = vunpack.c.l.b16 %v6073
    %v6140 = vunpack.c.l.b16 %v6074
    %v6141 = vunpack.c.l.b16 %v6075
    %v6142 = vunpack.c.l.b16 %v6076
    %v6143 = vunpack.c.l.b16 %v6077
    %v6144 = vunpack.c.l.b16 %v6078
    %v6145 = vunpack.c.l.b16 %v6079
    %v6146 = vunpack.c.l.b16 %v6080
    %v6147 = vunpack.c.l.b16 %v6081
    %v6148 = vunpack.c.l.b16 %v6082
    %v6149 = vunpack.c.l.b16 %v6083
    %v6150 = vpack.c.b16 %v6119, %v6118
    %v6151 = vpack.c.b16 %v6121, %v6120
    %v6152 = vpack.c.b16 %v6123, %v6122
    %v6153 = vpack.c.b16 %v6125, %v6124
    %v6154 = vpack.c.b16 %v6127, %v6126
    %v6155 = vpack.c.b16 %v6129, %v6128
    %v6156 = vpack.c.b16 %v6131, %v6130
    %v6157 = vpack.c.b16 %v6133, %v6132
    %v6158 = vpack.c.b16 %v6135, %v6134
    %v6159 = vpack.c.b16 %v6137, %v6136
    %v6160 = vpack.c.b16 %v6139, %v6138
    %v6161 = vpack.c.b16 %v6141, %v6140
    %v6162 = vpack.c.b16 %v6143, %v6142
    %v6163 = vpack.c.b16 %v6145, %v6144
    %v6164 = vpack.c.b16 %v6147, %v6146
    %v6165 = vpack.c.b16 %v6149, %v6148
    %6182 = vmatprep.subr.bf16.mxu0 0
    %6183 = vmatpush1.bf16.msra.mxu0 %v6150
    %6184 = vmatprep.subr.bf16.mxu0 0
    %6185 = vmatpush1.bf16.msra.mxu0 %v6151
    %6186 = vmatprep.subr.bf16.mxu0 0
    %6187 = vmatpush1.bf16.msra.mxu0 %v6152
    %6188 = vmatprep.subr.bf16.mxu0 0
    %6189 = vmatpush1.bf16.msra.mxu0 %v6153
    %6190 = vmatprep.subr.bf16.mxu0 0
    %6191 = vmatpush1.bf16.msra.mxu0 %v6154
    %6192 = vmatprep.subr.bf16.mxu0 0
    %6193 = vmatpush1.bf16.msra.mxu0 %v6155
    %6194 = vmatprep.subr.bf16.mxu0 0
    %6195 = vmatpush1.bf16.msra.mxu0 %v6156
    %6196 = vmatprep.subr.bf16.mxu0 0
    %6197 = vmatpush1.bf16.msra.mxu0 %v6157
    %6198 = vmatprep.subr.bf16.mxu0 0
    %6199 = vmatpush1.bf16.msra.mxu0 %v6158
    %6200 = vmatprep.subr.bf16.mxu0 0
    %6201 = vmatpush1.bf16.msra.mxu0 %v6159
    %6202 = vmatprep.subr.bf16.mxu0 0
    %6203 = vmatpush1.bf16.msra.mxu0 %v6160
    %6204 = vmatprep.subr.bf16.mxu0 0
    %6205 = vmatpush1.bf16.msra.mxu0 %v6161
    %6206 = vmatprep.subr.bf16.mxu0 0
    %6207 = vmatpush1.bf16.msra.mxu0 %v6162
    %6208 = vmatprep.subr.bf16.mxu0 0
    %6209 = vmatpush1.bf16.msra.mxu0 %v6163
    %6210 = vmatprep.subr.bf16.mxu0 0
    %6211 = vmatpush1.bf16.msra.mxu0 %v6164
    %6212 = vmatprep.subr.bf16.mxu0 0
    %6213 = vmatpush1.bf16.msra.mxu0 %v6165
    %6214 = vmatprep.mubr.bf16.mxu0 %v6085
    %6215 = vmatmul.mubr.bf16.gmra.mrb[0].mxu0 %v6084
    %v6216 = vpop.f32.mrb[0].mxu0
    %v6217 = vadd.f32 0.0, %v6216
    %v6218 = vpop.f32.mrb[0].mxu0
    %v6219 = vpop.f32.mrb[0].mxu0
    %v6220 = vpop.f32.mrb[0].mxu0
    %6221 = vdwg.mxu0
    %v6222 = vadd.f32 %v6048, %v6217
    %v6223 = vld [vmem:[%s6] sm:$0x1]
    %v6225 = vlaneseq
    %v6226 = vshrl.u32 %v6225, 7
    %v6227 = vsub.s32 0, %v6226
    %v6228 = vrot.slane %v6223, %v6227
    %v6230 = vadd.f32 %v6222, %v6228
    %v6231 = vmax.f32 %v6230, 0.0
    %v6232 = vld [vmem:[%s7] sm:$0xf]
    %v6233 = vld [vmem:[%s7 + $0x4] sm:$0xf]
    %v6234 = vld [vmem:[%s7 + $0x8] sm:$0xf]
    %v6235 = vld [vmem:[%s7 + $0xc] sm:$0xf]
    %v6236 = vld [vmem:[%s7 + $0x10] sm:$0xf]
    %v6237 = vld [vmem:[%s7 + $0x14] sm:$0xf]
    %v6238 = vld [vmem:[%s7 + $0x18] sm:$0xf]
    %v6239 = vld [vmem:[%s7 + $0x1c] sm:$0xf]
    %v6240 = vld [vmem:[%s7 + $0x20] sm:$0xf]
    %v6241 = vld [vmem:[%s7 + $0x24] sm:$0xf]
    %v6242 = vld [vmem:[%s7 + $0x28] sm:$0xf]
    %v6243 = vld [vmem:[%s7 + $0x2c] sm:$0xf]
    %v6244 = vld [vmem:[%s7 + $0x30] sm:$0xf]
    %v6245 = vld [vmem:[%s7 + $0x34] sm:$0xf]
    %v6246 = vld [vmem:[%s7 + $0x38] sm:$0xf]
    %v6247 = vld [vmem:[%s7 + $0x3c] sm:$0xf]
    %v6248 = vpack.c.bf16 %v6231, %v6231
    %v6249 = vld [vmem:[%s8] sm:$0x1]
    %v6251 = vlaneseq
    %v6252 = vshrl.u32 %v6251, 7
    %v6253 = vsub.s32 0, %v6252
    %v6254 = vrot.slane %v6249, %v6253
    %v6272 = vunpack.c.l.b16 %v6232
    %v6273 = vunpack.c.l.b16 %v6233
    %v6274 = vunpack.c.l.b16 %v6234
    %v6275 = vunpack.c.l.b16 %v6235
    %v6276 = vunpack.c.l.b16 %v6236
    %v6277 = vunpack.c.l.b16 %v6237
    %v6278 = vunpack.c.l.b16 %v6238
    %v6279 = vunpack.c.l.b16 %v6239
    %v6280 = vunpack.c.l.b16 %v6240
    %v6281 = vunpack.c.l.b16 %v6241
    %v6282 = vunpack.c.l.b16 %v6242
    %v6283 = vunpack.c.l.b16 %v6243
    %v6284 = vunpack.c.l.b16 %v6244
    %v6285 = vunpack.c.l.b16 %v6245
    %v6286 = vunpack.c.l.b16 %v6246
    %v6287 = vunpack.c.l.b16 %v6247
    %v6288 = vpack.c.b16 %v6273, %v6272
    %v6289 = vpack.c.b16 %v6275, %v6274
    %v6290 = vpack.c.b16 %v6277, %v6276
    %v6291 = vpack.c.b16 %v6279, %v6278
    %v6292 = vpack.c.b16 %v6281, %v6280
    %v6293 = vpack.c.b16 %v6283, %v6282
    %v6294 = vpack.c.b16 %v6285, %v6284
    %v6295 = vpack.c.b16 %v6287, %v6286
    %6304 = vmatprep.subr.bf16.mxu0 0
    %6305 = vmatpush1.bf16.msra.mxu0 %v6288
    %6306 = vmatprep.subr.bf16.mxu0 0
    %6307 = vmatpush1.bf16.msra.mxu0 %v6289
    %6308 = vmatprep.subr.bf16.mxu0 0
    %6309 = vmatpush1.bf16.msra.mxu0 %v6290
    %6310 = vmatprep.subr.bf16.mxu0 0
    %6311 = vmatpush1.bf16.msra.mxu0 %v6291
    %6312 = vmatprep.subr.bf16.mxu0 0
    %6313 = vmatpush1.bf16.msra.mxu0 %v6292
    %6314 = vmatprep.subr.bf16.mxu0 0
    %6315 = vmatpush1.bf16.msra.mxu0 %v6293
    %6316 = vmatprep.subr.bf16.mxu0 0
    %6317 = vmatpush1.bf16.msra.mxu0 %v6294
    %6318 = vmatprep.subr.bf16.mxu0 0
    %6319 = vmatpush1.bf16.msra.mxu0 %v6295
    %6320 = vmatprep.subr.bf16.mxu0 0
    %6321 = vmatpush1.bf16.msra.mxu0 0
    %6322 = vmatprep.subr.bf16.mxu0 0
    %6323 = vmatpush1.bf16.msra.mxu0 0
    %6324 = vmatprep.subr.bf16.mxu0 0
    %6325 = vmatpush1.bf16.msra.mxu0 0
    %6326 = vmatprep.subr.bf16.mxu0 0
    %6327 = vmatpush1.bf16.msra.mxu0 0
    %6328 = vmatprep.subr.bf16.mxu0 0
    %6329 = vmatpush1.bf16.msra.mxu0 0
    %6330 = vmatprep.subr.bf16.mxu0 0
    %6331 = vmatpush1.bf16.msra.mxu0 0
    %6332 = vmatprep.subr.bf16.mxu0 0
    %6333 = vmatpush1.bf16.msra.mxu0 0
    %6334 = vmatprep.subr.bf16.mxu0 0
    %6335 = vmatpush1.bf16.msra.mxu0 0
    %6336 = vmatprep.mubr.bf16.mxu0 0
    %6337 = vmatmul.mubr.bf16.gmra.mrb[0].mxu0 %v6248
    %v6338 = vpop.f32.mrb[0].mxu0
    %v6339 = vadd.f32 %v6254, %v6338
    %v6340 = vpop.f32.mrb[0].mxu0
    %v6341 = vpop.f32.mrb[0].mxu0
    %v6342 = vpop.f32.mrb[0].mxu0
    %6343 = vdwg.mxu0
    %6344 = vst [vmem:[%s9] sm:$0xff] %v6339
    // Predicated region
    $region42: #{cnn_forward.1} parent=1 // pred_check
      _
    $region43: #{cnn_forward.1} parent=1 // pred_check_branch
      %6346 = sbr.rel (0) target = $region45
    $region44: #{cnn_forward.1} parent=1 // pred_region
      _
    $region45: #{cnn_forward.1} parent=1 // pred_fallthru
      _
    // Predicated region
    $region46: #{cnn_forward.1} parent=1 // pred_check
      _
    $region47: #{cnn_forward.1} parent=1 // pred_check_branch
      %6348 = sbr.rel (0) target = $region49
    $region48: #{cnn_forward.1} parent=1 // pred_region
      _
    $region49: #{cnn_forward.1} parent=1 // pred_fallthru
      _
    %6349 = vsyncpa [#allocation5], 1

</llo_original>
